<compile_context>
chip_gen: v5e
topology: v5e:2x2
jax: 0.10.0
libtpu: 0.0.40
codegen_flags: <defaults>
</compile_context>

<pallas_src>
import functools

import jax
import jax.numpy as jnp
from jax import lax
from jax.experimental import pallas as pl
from jax.experimental.pallas import tpu as pltpu

# ---------------- config (small, consistent with the forward pass) ----------
BS_G = 2            # global-crop batch size
C_IN = 3
C_PAD = 8           # input channels padded to 8 for clean matmul K
H_G = W_G = 16      # global crop spatial size
H_L = W_L = 8       # local crop spatial size
NUM_LOCAL = 4       # tl, tr, bl, br
BS_L = NUM_LOCAL * BS_G
C_BB = 32           # backbone output channels
FEAT_DIM = 32       # neck / memory-bank feature dim
NEG_NUM = 16        # negatives per global sample (65536 in the original)
BANK_SIZE = 64      # memory bank length
TEMPERATURE = 0.07
BANK_MOMENTUM = 0.5
N_ROWS = BS_G + BS_L  # 10 feature rows


# ---------------- the fused Pallas kernel ------------------------------------
def _fused_forward_kernel(xg_ref, xl_ref, convw_ref, convb_ref,
                          neckw_ref, neckb_ref,
                          pos_g_ref, neg_g_ref, pos_l_ref, neg_l_ref,
                          q_ref, loss_ref, pooled_ref, *, inv_t):
    """conv(+ReLU) + avg-pool + neck + normalize + NPID losses, one call."""
    convb = convb_ref[...]                                     # (1, C_BB)

    def conv_relu(x, n, h, w):
        """3x3 conv (inputs already zero-padded) as 9 shifted matmuls."""
        acc = None
        for t in range(9):
            dh, dw = t // 3, t % 3
            xs = x[:, dh:dh + h, dw:dw + w, :].reshape(n * h * w, C_PAD)
            part = jnp.dot(xs, convw_ref[t],
                           preferred_element_type=jnp.float32)
            acc = part if acc is None else acc + part
        return jnp.maximum(acc + convb, 0.0)                   # (n*h*w, C_BB)

    act_g = conv_relu(xg_ref[...], BS_G, H_G, W_G)             # (512, C_BB)
    act_l = conv_relu(xl_ref[...], BS_L, H_L, W_L)             # (512, C_BB)

    # AdaptiveAvgPool2d((1,1)): per-image f32 segment means -> VMEM scratch.
    hw_g, hw_l = H_G * W_G, H_L * W_L
    for i in range(BS_G):
        seg = act_g[i * hw_g:(i + 1) * hw_g, :]
        pooled_ref[i:i + 1, :] = (jnp.sum(seg, axis=0, keepdims=True)
                                  * (1.0 / hw_g))
    for i in range(BS_L):
        seg = act_l[i * hw_l:(i + 1) * hw_l, :]
        pooled_ref[BS_G + i:BS_G + i + 1, :] = (
            jnp.sum(seg, axis=0, keepdims=True) * (1.0 / hw_l))

    # neck: Linear -> FEAT_DIM
    q = jnp.dot(pooled_ref[...], neckw_ref[...],
                preferred_element_type=jnp.float32) + neckb_ref[...]

    # nn.functional.normalize (eps=1e-12), rsqrt on the EUP slot.
    ss = jnp.sum(q * q, axis=-1, keepdims=True)
    q_norm = q * lax.rsqrt(jnp.maximum(ss, 1e-24))
    q_ref[...] = q_norm

    # ContrastiveHead: CE over [pos | neg] / T with label 0, per row (2D math).
    def row_loss(qrow, pos_row, neg_rows):
        pos_logit = jnp.sum(pos_row * qrow, axis=-1, keepdims=True) * inv_t   # (1,1)
        neg_logit = jnp.sum(neg_rows * qrow, axis=-1, keepdims=True) * inv_t  # (K,1)
        m = jnp.maximum(pos_logit, jnp.max(neg_logit, axis=0, keepdims=True))
        sum_exp = (jnp.exp(pos_logit - m)
                   + jnp.sum(jnp.exp(neg_logit - m), axis=0, keepdims=True))
        return (m + jnp.log(sum_exp)) - pos_logit                             # (1,1)

    # TODO(synk): at production NEG_NUM=65536 this becomes a K-gridded
    # online-softmax: scalar-prefetch neg_idx, keep banks in HBM (pl.ANY),
    # DMA bf16 bank tiles per K step (double-buffered, tile sized for v7x's
    # 64 MiB VMEM) with an MXU einsum; mark the K axis "arbitrary" and add a
    # "parallel" row axis so v7x's second TensorCore splits the work.
    loss_g = jnp.zeros((1, 1), jnp.float32)
    for r in range(BS_G):
        loss_g = loss_g + row_loss(q_norm[r:r + 1, :],
                                   pos_g_ref[r:r + 1, :], neg_g_ref[r])
    loss_l = jnp.zeros((1, 1), jnp.float32)
    for r in range(BS_L):
        loss_l = loss_l + row_loss(q_norm[BS_G + r:BS_G + r + 1, :],
                                   pos_l_ref[r:r + 1, :], neg_l_ref[r])
    loss_ref[0:1, :] = loss_g * (1.0 / BS_G)
    loss_ref[1:2, :] = loss_l * (1.0 / BS_L)


def fused_forward(xg, xl, convw, convb, neckw, neckb,
                  pos_g, neg_g, pos_l, neg_l):
    vmem = pltpu.MemorySpace.VMEM
    return pl.pallas_call(
        functools.partial(_fused_forward_kernel, inv_t=1.0 / TEMPERATURE),
        out_shape=(jax.ShapeDtypeStruct((N_ROWS, FEAT_DIM), jnp.float32),
                   jax.ShapeDtypeStruct((2, 1), jnp.float32)),
        in_specs=[pl.BlockSpec(memory_space=vmem)] * 10,
        out_specs=(pl.BlockSpec(memory_space=vmem),
                   pl.BlockSpec(memory_space=vmem)),
        scratch_shapes=[pltpu.VMEM((N_ROWS, C_BB), jnp.float32)],
    )(xg, xl, convw, convb, neckw, neckb, pos_g, neg_g, pos_l, neg_l)


# ---------------- wrapper-side glue -------------------------------------------
def _pad_crop_nhwc(x_nhwc):
    """Pad spatially by 1 (conv pad) and channels to C_PAD, keep f32."""
    return jnp.pad(x_nhwc, ((0, 0), (1, 1), (1, 1), (0, C_PAD - C_IN))
                   ).astype(jnp.float32)


def _conv_weight_taps(conv_w):
    """(C_BB, C_IN, 3, 3) -> (9, C_PAD, C_BB), tap-major, channel zero-padded."""
    w = conv_w.transpose(2, 3, 1, 0).reshape(9, C_IN, C_BB)
    return jnp.pad(w, ((0, 0), (0, C_PAD - C_IN), (0, 0))).astype(jnp.float32)


def l2_normalize(x, eps=1e-12):
    return x / jnp.maximum(jnp.linalg.norm(x, axis=1, keepdims=True), eps)


def bank_update(bank, idx, feat, momentum=BANK_MOMENTUM):
    old = bank[idx]
    new = momentum * old + (1.0 - momentum) * feat
    return bank.at[idx].set(l2_normalize(new))


# ---------------- NPIDMcrop.forward_train ------------------------------------
def forward_train(params, banks, img2, idx, neg_idx):
    bs_g = img2[0].shape[0]
    bs_l = NUM_LOCAL * bs_g

    # NCHW (PyTorch layout) -> NHWC once; conv activations / patches never
    # leave VMEM.  Global + local crops share the same conv weights, matching
    # the idx_crops grouping of the reference.
    xg = _pad_crop_nhwc(img2[0].transpose(0, 2, 3, 1))            # (2,18,18,8)
    xl = _pad_crop_nhwc(
        jnp.concatenate(img2[1:], axis=0).transpose(0, 2, 3, 1))  # (8,10,10,8)

    convw = _conv_weight_taps(params["conv_w"])
    convb = params["conv_b"][None, :].astype(jnp.float32)
    neckw = params["neck_w"].astype(jnp.float32)
    neckb = params["neck_b"][None, :].astype(jnp.float32)

    # positive / negative bank rows (tiny at this config).
    # TODO(synk): at production NEG_NUM/BANK_SIZE this gather moves inside the
    # kernel via PrefetchScalarGridSpec + manual DMA instead of HBM staging.
    pos_g = banks["main"][idx]                                          # (2, C)
    neg_g = banks["main"][neg_idx].reshape(bs_g, NEG_NUM, FEAT_DIM)     # (2,K,C)
    local_keys = ("tl", "tr", "bl", "br")
    pos_l = jnp.concatenate([banks[k][idx] for k in local_keys], axis=0)
    per_local = NEG_NUM // NUM_LOCAL
    neg_l = jnp.concatenate(
        [banks[k][neg_idx].reshape(bs_l, per_local, FEAT_DIM)
         for k in local_keys], axis=1)                                  # (8,K,C)

    q_norm, loss_pair = fused_forward(xg, xl, convw, convb, neckw, neckb,
                                      pos_g, neg_g, pos_l, neg_l)

    losses = {
        "loss_contra_single": loss_pair[0, 0] * 0.2,
        "loss_contra_mcrop": loss_pair[1, 0] * 0.8,
    }
    # TODO(synk): periodic rank-0 var/mean logging of exp(logits/T) is
    # debug-only side output and is omitted.

    # memory bank momentum updates (torch.no_grad section); banks are donated
    # to jit so these updates reuse the bank buffers in place.
    q_g = q_norm[:bs_g]
    q_l = q_norm[bs_g:]
    new_banks = {
        "main": bank_update(banks["main"], idx, q_g),
        "tl": bank_update(banks["tl"], idx, q_l[:bs_g]),
        "tr": bank_update(banks["tr"], idx, q_l[bs_g:2 * bs_g]),
        "bl": bank_update(banks["bl"], idx, q_l[2 * bs_g:3 * bs_g]),
        "br": bank_update(banks["br"], idx, q_l[3 * bs_g:]),
    }
    return losses, new_banks


# ---------------- driver ------------------------------------------------------
if __name__ == "__main__":
    key = jax.random.PRNGKey(0)
    (k_img_g, k_img_l, k_conv, k_neck, k_bank, k_neg) = jax.random.split(key, 6)

    fan_in_conv = C_IN * 9
    params = {
        "conv_w": jax.random.normal(k_conv, (C_BB, C_IN, 3, 3), jnp.float32)
                  * (2.0 / fan_in_conv) ** 0.5,
        "conv_b": jnp.zeros((C_BB,), jnp.float32),
        "neck_w": jax.random.normal(k_neck, (C_BB, FEAT_DIM), jnp.float32)
                  * (2.0 / C_BB) ** 0.5,
        "neck_b": jnp.zeros((FEAT_DIM,), jnp.float32),
    }

    bank_keys = jax.random.split(k_bank, 5)
    bank_names = ("main", "tl", "tr", "bl", "br")
    banks = {
        name: l2_normalize(
            jax.random.normal(bk, (BANK_SIZE, FEAT_DIM), jnp.float32))
        for name, bk in zip(bank_names, bank_keys)
    }

    img_g = jax.random.normal(k_img_g, (BS_G, C_IN, H_G, W_G), jnp.float32)
    locals_all = jax.random.normal(
        k_img_l, (NUM_LOCAL, BS_G, C_IN, H_L, W_L), jnp.float32)
    img2 = [img_g] + [locals_all[i] for i in range(NUM_LOCAL)]

    idx = jnp.array([3, 7], dtype=jnp.int32)                  # dataset indices
    neg_idx = jax.random.randint(k_neg, (BS_G * NEG_NUM,), 0, BANK_SIZE,
                                 dtype=jnp.int32)             # multinomial.draw

    step = jax.jit(forward_train, donate_argnums=(1,))        # in-place banks
    losses, new_banks = step(params, banks, img2, idx, neg_idx)
    jax.block_until_ready(losses)
    jax.block_until_ready(new_banks)
    print("KERNEL_OK")
</pallas_src>

<mosaic_0001>
module attributes {stable_mosaic.version = 11 : i64} {
  func.func @_fused_forward_kernel(%arg0: memref<2x18x18x8xf32, #tpu.memory_space<vmem>>, %arg1: memref<8x10x10x8xf32, #tpu.memory_space<vmem>>, %arg2: memref<9x8x32xf32, #tpu.memory_space<vmem>>, %arg3: memref<1x32xf32, #tpu.memory_space<vmem>>, %arg4: memref<32x32xf32, #tpu.memory_space<vmem>>, %arg5: memref<1x32xf32, #tpu.memory_space<vmem>>, %arg6: memref<2x32xf32, #tpu.memory_space<vmem>>, %arg7: memref<2x16x32xf32, #tpu.memory_space<vmem>>, %arg8: memref<8x32xf32, #tpu.memory_space<vmem>>, %arg9: memref<8x16x32xf32, #tpu.memory_space<vmem>>, %arg10: memref<10x32xf32, #tpu.memory_space<vmem>>, %arg11: memref<2x1xf32, #tpu.memory_space<vmem>>, %arg12: memref<10x32xf32, #tpu.memory_space<vmem>>) attributes {dimension_semantics = [], scalar_prefetch = 0 : i64, scratch_operands = 1 : i64, tpu.core_type = #tpu.core_type<tc>} {
    %c0 = arith.constant 0 : index
    %c0_0 = arith.constant 0 : index
    %0 = vector.load %arg3[%c0, %c0_0] : memref<1x32xf32, #tpu.memory_space<vmem>>, vector<1x32xf32>
    %c0_1 = arith.constant 0 : index
    %c0_2 = arith.constant 0 : index
    %c0_3 = arith.constant 0 : index
    %c0_4 = arith.constant 0 : index
    %1 = vector.load %arg0[%c0_1, %c0_2, %c0_3, %c0_4] : memref<2x18x18x8xf32, #tpu.memory_space<vmem>>, vector<2x18x18x8xf32>
    %2 = vector.extract_strided_slice %1 {offsets = [0, 0, 0, 0], sizes = [2, 16, 16, 8], strides = [1, 1, 1, 1]} : vector<2x18x18x8xf32> to vector<2x16x16x8xf32>
    %3 = vector.shape_cast %2 : vector<2x16x16x8xf32> to vector<512x8xf32>
    %c0_5 = arith.constant 0 : index
    %c0_6 = arith.constant 0 : index
    %c0_7 = arith.constant 0 : index
    %4 = vector.load %arg2[%c0_5, %c0_6, %c0_7] : memref<9x8x32xf32, #tpu.memory_space<vmem>>, vector<1x8x32xf32>
    %5 = vector.shape_cast %4 : vector<1x8x32xf32> to vector<8x32xf32>
    %cst = arith.constant dense<0.000000e+00> : vector<512x32xf32>
    %6 = tpu.matmul %3, %5, %cst {dimension_numbers = #tpu.dot_dimension_numbers<[1], [0], [0], [1], [0, 0, 1, 1], [], []>} : vector<512x8xf32>, vector<8x32xf32>, vector<512x32xf32> -> vector<512x32xf32>
    %7 = vector.extract_strided_slice %1 {offsets = [0, 0, 1, 0], sizes = [2, 16, 16, 8], strides = [1, 1, 1, 1]} : vector<2x18x18x8xf32> to vector<2x16x16x8xf32>
    %8 = vector.shape_cast %7 : vector<2x16x16x8xf32> to vector<512x8xf32>
    %c1 = arith.constant 1 : index
    %c0_8 = arith.constant 0 : index
    %c0_9 = arith.constant 0 : index
    %9 = vector.load %arg2[%c1, %c0_8, %c0_9] : memref<9x8x32xf32, #tpu.memory_space<vmem>>, vector<1x8x32xf32>
    %10 = vector.shape_cast %9 : vector<1x8x32xf32> to vector<8x32xf32>
    %cst_10 = arith.constant dense<0.000000e+00> : vector<512x32xf32>
    %11 = tpu.matmul %8, %10, %cst_10 {dimension_numbers = #tpu.dot_dimension_numbers<[1], [0], [0], [1], [0, 0, 1, 1], [], []>} : vector<512x8xf32>, vector<8x32xf32>, vector<512x32xf32> -> vector<512x32xf32>
    %12 = arith.addf %6, %11 : vector<512x32xf32>
    %13 = vector.extract_strided_slice %1 {offsets = [0, 0, 2, 0], sizes = [2, 16, 16, 8], strides = [1, 1, 1, 1]} : vector<2x18x18x8xf32> to vector<2x16x16x8xf32>
    %14 = vector.shape_cast %13 : vector<2x16x16x8xf32> to vector<512x8xf32>
    %c2 = arith.constant 2 : index
    %c0_11 = arith.constant 0 : index
    %c0_12 = arith.constant 0 : index
    %15 = vector.load %arg2[%c2, %c0_11, %c0_12] : memref<9x8x32xf32, #tpu.memory_space<vmem>>, vector<1x8x32xf32>
    %16 = vector.shape_cast %15 : vector<1x8x32xf32> to vector<8x32xf32>
    %cst_13 = arith.constant dense<0.000000e+00> : vector<512x32xf32>
    %17 = tpu.matmul %14, %16, %cst_13 {dimension_numbers = #tpu.dot_dimension_numbers<[1], [0], [0], [1], [0, 0, 1, 1], [], []>} : vector<512x8xf32>, vector<8x32xf32>, vector<512x32xf32> -> vector<512x32xf32>
    %18 = arith.addf %12, %17 : vector<512x32xf32>
    %19 = vector.extract_strided_slice %1 {offsets = [0, 1, 0, 0], sizes = [2, 16, 16, 8], strides = [1, 1, 1, 1]} : vector<2x18x18x8xf32> to vector<2x16x16x8xf32>
    %20 = vector.shape_cast %19 : vector<2x16x16x8xf32> to vector<512x8xf32>
    %c3 = arith.constant 3 : index
    %c0_14 = arith.constant 0 : index
    %c0_15 = arith.constant 0 : index
    %21 = vector.load %arg2[%c3, %c0_14, %c0_15] : memref<9x8x32xf32, #tpu.memory_space<vmem>>, vector<1x8x32xf32>
    %22 = vector.shape_cast %21 : vector<1x8x32xf32> to vector<8x32xf32>
    %cst_16 = arith.constant dense<0.000000e+00> : vector<512x32xf32>
    %23 = tpu.matmul %20, %22, %cst_16 {dimension_numbers = #tpu.dot_dimension_numbers<[1], [0], [0], [1], [0, 0, 1, 1], [], []>} : vector<512x8xf32>, vector<8x32xf32>, vector<512x32xf32> -> vector<512x32xf32>
    %24 = arith.addf %18, %23 : vector<512x32xf32>
    %25 = vector.extract_strided_slice %1 {offsets = [0, 1, 1, 0], sizes = [2, 16, 16, 8], strides = [1, 1, 1, 1]} : vector<2x18x18x8xf32> to vector<2x16x16x8xf32>
    %26 = vector.shape_cast %25 : vector<2x16x16x8xf32> to vector<512x8xf32>
    %c4 = arith.constant 4 : index
    %c0_17 = arith.constant 0 : index
    %c0_18 = arith.constant 0 : index
    %27 = vector.load %arg2[%c4, %c0_17, %c0_18] : memref<9x8x32xf32, #tpu.memory_space<vmem>>, vector<1x8x32xf32>
    %28 = vector.shape_cast %27 : vector<1x8x32xf32> to vector<8x32xf32>
    %cst_19 = arith.constant dense<0.000000e+00> : vector<512x32xf32>
    %29 = tpu.matmul %26, %28, %cst_19 {dimension_numbers = #tpu.dot_dimension_numbers<[1], [0], [0], [1], [0, 0, 1, 1], [], []>} : vector<512x8xf32>, vector<8x32xf32>, vector<512x32xf32> -> vector<512x32xf32>
    %30 = arith.addf %24, %29 : vector<512x32xf32>
    %31 = vector.extract_strided_slice %1 {offsets = [0, 1, 2, 0], sizes = [2, 16, 16, 8], strides = [1, 1, 1, 1]} : vector<2x18x18x8xf32> to vector<2x16x16x8xf32>
    %32 = vector.shape_cast %31 : vector<2x16x16x8xf32> to vector<512x8xf32>
    %c5 = arith.constant 5 : index
    %c0_20 = arith.constant 0 : index
    %c0_21 = arith.constant 0 : index
    %33 = vector.load %arg2[%c5, %c0_20, %c0_21] : memref<9x8x32xf32, #tpu.memory_space<vmem>>, vector<1x8x32xf32>
    %34 = vector.shape_cast %33 : vector<1x8x32xf32> to vector<8x32xf32>
    %cst_22 = arith.constant dense<0.000000e+00> : vector<512x32xf32>
    %35 = tpu.matmul %32, %34, %cst_22 {dimension_numbers = #tpu.dot_dimension_numbers<[1], [0], [0], [1], [0, 0, 1, 1], [], []>} : vector<512x8xf32>, vector<8x32xf32>, vector<512x32xf32> -> vector<512x32xf32>
    %36 = arith.addf %30, %35 : vector<512x32xf32>
    %37 = vector.extract_strided_slice %1 {offsets = [0, 2, 0, 0], sizes = [2, 16, 16, 8], strides = [1, 1, 1, 1]} : vector<2x18x18x8xf32> to vector<2x16x16x8xf32>
    %38 = vector.shape_cast %37 : vector<2x16x16x8xf32> to vector<512x8xf32>
    %c6 = arith.constant 6 : index
    %c0_23 = arith.constant 0 : index
    %c0_24 = arith.constant 0 : index
    %39 = vector.load %arg2[%c6, %c0_23, %c0_24] : memref<9x8x32xf32, #tpu.memory_space<vmem>>, vector<1x8x32xf32>
    %40 = vector.shape_cast %39 : vector<1x8x32xf32> to vector<8x32xf32>
    %cst_25 = arith.constant dense<0.000000e+00> : vector<512x32xf32>
    %41 = tpu.matmul %38, %40, %cst_25 {dimension_numbers = #tpu.dot_dimension_numbers<[1], [0], [0], [1], [0, 0, 1, 1], [], []>} : vector<512x8xf32>, vector<8x32xf32>, vector<512x32xf32> -> vector<512x32xf32>
    %42 = arith.addf %36, %41 : vector<512x32xf32>
    %43 = vector.extract_strided_slice %1 {offsets = [0, 2, 1, 0], sizes = [2, 16, 16, 8], strides = [1, 1, 1, 1]} : vector<2x18x18x8xf32> to vector<2x16x16x8xf32>
    %44 = vector.shape_cast %43 : vector<2x16x16x8xf32> to vector<512x8xf32>
    %c7 = arith.constant 7 : index
    %c0_26 = arith.constant 0 : index
    %c0_27 = arith.constant 0 : index
    %45 = vector.load %arg2[%c7, %c0_26, %c0_27] : memref<9x8x32xf32, #tpu.memory_space<vmem>>, vector<1x8x32xf32>
    %46 = vector.shape_cast %45 : vector<1x8x32xf32> to vector<8x32xf32>
    %cst_28 = arith.constant dense<0.000000e+00> : vector<512x32xf32>
    %47 = tpu.matmul %44, %46, %cst_28 {dimension_numbers = #tpu.dot_dimension_numbers<[1], [0], [0], [1], [0, 0, 1, 1], [], []>} : vector<512x8xf32>, vector<8x32xf32>, vector<512x32xf32> -> vector<512x32xf32>
    %48 = arith.addf %42, %47 : vector<512x32xf32>
    %49 = vector.extract_strided_slice %1 {offsets = [0, 2, 2, 0], sizes = [2, 16, 16, 8], strides = [1, 1, 1, 1]} : vector<2x18x18x8xf32> to vector<2x16x16x8xf32>
    %50 = vector.shape_cast %49 : vector<2x16x16x8xf32> to vector<512x8xf32>
    %c8 = arith.constant 8 : index
    %c0_29 = arith.constant 0 : index
    %c0_30 = arith.constant 0 : index
    %51 = vector.load %arg2[%c8, %c0_29, %c0_30] : memref<9x8x32xf32, #tpu.memory_space<vmem>>, vector<1x8x32xf32>
    %52 = vector.shape_cast %51 : vector<1x8x32xf32> to vector<8x32xf32>
    %cst_31 = arith.constant dense<0.000000e+00> : vector<512x32xf32>
    %53 = tpu.matmul %50, %52, %cst_31 {dimension_numbers = #tpu.dot_dimension_numbers<[1], [0], [0], [1], [0, 0, 1, 1], [], []>} : vector<512x8xf32>, vector<8x32xf32>, vector<512x32xf32> -> vector<512x32xf32>
    %54 = arith.addf %48, %53 : vector<512x32xf32>
    %55 = vector.broadcast %0 : vector<1x32xf32> to vector<512x32xf32>
    %56 = arith.addf %54, %55 : vector<512x32xf32>
    %cst_32 = arith.constant 0.000000e+00 : f32
    %57 = vector.broadcast %cst_32 : f32 to vector<512x32xf32>
    %58 = arith.maximumf %56, %57 : vector<512x32xf32>
    %c0_33 = arith.constant 0 : index
    %c0_34 = arith.constant 0 : index
    %c0_35 = arith.constant 0 : index
    %c0_36 = arith.constant 0 : index
    %59 = vector.load %arg1[%c0_33, %c0_34, %c0_35, %c0_36] : memref<8x10x10x8xf32, #tpu.memory_space<vmem>>, vector<8x10x10x8xf32>
    %60 = vector.extract_strided_slice %59 {offsets = [0, 0, 0, 0], sizes = [8, 8, 8, 8], strides = [1, 1, 1, 1]} : vector<8x10x10x8xf32> to vector<8x8x8x8xf32>
    %61 = vector.shape_cast %60 : vector<8x8x8x8xf32> to vector<512x8xf32>
    %c0_37 = arith.constant 0 : index
    %c0_38 = arith.constant 0 : index
    %c0_39 = arith.constant 0 : index
    %62 = vector.load %arg2[%c0_37, %c0_38, %c0_39] : memref<9x8x32xf32, #tpu.memory_space<vmem>>, vector<1x8x32xf32>
    %63 = vector.shape_cast %62 : vector<1x8x32xf32> to vector<8x32xf32>
    %cst_40 = arith.constant dense<0.000000e+00> : vector<512x32xf32>
    %64 = tpu.matmul %61, %63, %cst_40 {dimension_numbers = #tpu.dot_dimension_numbers<[1], [0], [0], [1], [0, 0, 1, 1], [], []>} : vector<512x8xf32>, vector<8x32xf32>, vector<512x32xf32> -> vector<512x32xf32>
    %65 = vector.extract_strided_slice %59 {offsets = [0, 0, 1, 0], sizes = [8, 8, 8, 8], strides = [1, 1, 1, 1]} : vector<8x10x10x8xf32> to vector<8x8x8x8xf32>
    %66 = vector.shape_cast %65 : vector<8x8x8x8xf32> to vector<512x8xf32>
    %c1_41 = arith.constant 1 : index
    %c0_42 = arith.constant 0 : index
    %c0_43 = arith.constant 0 : index
    %67 = vector.load %arg2[%c1_41, %c0_42, %c0_43] : memref<9x8x32xf32, #tpu.memory_space<vmem>>, vector<1x8x32xf32>
    %68 = vector.shape_cast %67 : vector<1x8x32xf32> to vector<8x32xf32>
    %cst_44 = arith.constant dense<0.000000e+00> : vector<512x32xf32>
    %69 = tpu.matmul %66, %68, %cst_44 {dimension_numbers = #tpu.dot_dimension_numbers<[1], [0], [0], [1], [0, 0, 1, 1], [], []>} : vector<512x8xf32>, vector<8x32xf32>, vector<512x32xf32> -> vector<512x32xf32>
    %70 = arith.addf %64, %69 : vector<512x32xf32>
    %71 = vector.extract_strided_slice %59 {offsets = [0, 0, 2, 0], sizes = [8, 8, 8, 8], strides = [1, 1, 1, 1]} : vector<8x10x10x8xf32> to vector<8x8x8x8xf32>
    %72 = vector.shape_cast %71 : vector<8x8x8x8xf32> to vector<512x8xf32>
    %c2_45 = arith.constant 2 : index
    %c0_46 = arith.constant 0 : index
    %c0_47 = arith.constant 0 : index
    %73 = vector.load %arg2[%c2_45, %c0_46, %c0_47] : memref<9x8x32xf32, #tpu.memory_space<vmem>>, vector<1x8x32xf32>
    %74 = vector.shape_cast %73 : vector<1x8x32xf32> to vector<8x32xf32>
    %cst_48 = arith.constant dense<0.000000e+00> : vector<512x32xf32>
    %75 = tpu.matmul %72, %74, %cst_48 {dimension_numbers = #tpu.dot_dimension_numbers<[1], [0], [0], [1], [0, 0, 1, 1], [], []>} : vector<512x8xf32>, vector<8x32xf32>, vector<512x32xf32> -> vector<512x32xf32>
    %76 = arith.addf %70, %75 : vector<512x32xf32>
    %77 = vector.extract_strided_slice %59 {offsets = [0, 1, 0, 0], sizes = [8, 8, 8, 8], strides = [1, 1, 1, 1]} : vector<8x10x10x8xf32> to vector<8x8x8x8xf32>
    %78 = vector.shape_cast %77 : vector<8x8x8x8xf32> to vector<512x8xf32>
    %c3_49 = arith.constant 3 : index
    %c0_50 = arith.constant 0 : index
    %c0_51 = arith.constant 0 : index
    %79 = vector.load %arg2[%c3_49, %c0_50, %c0_51] : memref<9x8x32xf32, #tpu.memory_space<vmem>>, vector<1x8x32xf32>
    %80 = vector.shape_cast %79 : vector<1x8x32xf32> to vector<8x32xf32>
    %cst_52 = arith.constant dense<0.000000e+00> : vector<512x32xf32>
    %81 = tpu.matmul %78, %80, %cst_52 {dimension_numbers = #tpu.dot_dimension_numbers<[1], [0], [0], [1], [0, 0, 1, 1], [], []>} : vector<512x8xf32>, vector<8x32xf32>, vector<512x32xf32> -> vector<512x32xf32>
    %82 = arith.addf %76, %81 : vector<512x32xf32>
    %83 = vector.extract_strided_slice %59 {offsets = [0, 1, 1, 0], sizes = [8, 8, 8, 8], strides = [1, 1, 1, 1]} : vector<8x10x10x8xf32> to vector<8x8x8x8xf32>
    %84 = vector.shape_cast %83 : vector<8x8x8x8xf32> to vector<512x8xf32>
    %c4_53 = arith.constant 4 : index
    %c0_54 = arith.constant 0 : index
    %c0_55 = arith.constant 0 : index
    %85 = vector.load %arg2[%c4_53, %c0_54, %c0_55] : memref<9x8x32xf32, #tpu.memory_space<vmem>>, vector<1x8x32xf32>
    %86 = vector.shape_cast %85 : vector<1x8x32xf32> to vector<8x32xf32>
    %cst_56 = arith.constant dense<0.000000e+00> : vector<512x32xf32>
    %87 = tpu.matmul %84, %86, %cst_56 {dimension_numbers = #tpu.dot_dimension_numbers<[1], [0], [0], [1], [0, 0, 1, 1], [], []>} : vector<512x8xf32>, vector<8x32xf32>, vector<512x32xf32> -> vector<512x32xf32>
    %88 = arith.addf %82, %87 : vector<512x32xf32>
    %89 = vector.extract_strided_slice %59 {offsets = [0, 1, 2, 0], sizes = [8, 8, 8, 8], strides = [1, 1, 1, 1]} : vector<8x10x10x8xf32> to vector<8x8x8x8xf32>
    %90 = vector.shape_cast %89 : vector<8x8x8x8xf32> to vector<512x8xf32>
    %c5_57 = arith.constant 5 : index
    %c0_58 = arith.constant 0 : index
    %c0_59 = arith.constant 0 : index
    %91 = vector.load %arg2[%c5_57, %c0_58, %c0_59] : memref<9x8x32xf32, #tpu.memory_space<vmem>>, vector<1x8x32xf32>
    %92 = vector.shape_cast %91 : vector<1x8x32xf32> to vector<8x32xf32>
    %cst_60 = arith.constant dense<0.000000e+00> : vector<512x32xf32>
    %93 = tpu.matmul %90, %92, %cst_60 {dimension_numbers = #tpu.dot_dimension_numbers<[1], [0], [0], [1], [0, 0, 1, 1], [], []>} : vector<512x8xf32>, vector<8x32xf32>, vector<512x32xf32> -> vector<512x32xf32>
    %94 = arith.addf %88, %93 : vector<512x32xf32>
    %95 = vector.extract_strided_slice %59 {offsets = [0, 2, 0, 0], sizes = [8, 8, 8, 8], strides = [1, 1, 1, 1]} : vector<8x10x10x8xf32> to vector<8x8x8x8xf32>
    %96 = vector.shape_cast %95 : vector<8x8x8x8xf32> to vector<512x8xf32>
    %c6_61 = arith.constant 6 : index
    %c0_62 = arith.constant 0 : index
    %c0_63 = arith.constant 0 : index
    %97 = vector.load %arg2[%c6_61, %c0_62, %c0_63] : memref<9x8x32xf32, #tpu.memory_space<vmem>>, vector<1x8x32xf32>
    %98 = vector.shape_cast %97 : vector<1x8x32xf32> to vector<8x32xf32>
    %cst_64 = arith.constant dense<0.000000e+00> : vector<512x32xf32>
    %99 = tpu.matmul %96, %98, %cst_64 {dimension_numbers = #tpu.dot_dimension_numbers<[1], [0], [0], [1], [0, 0, 1, 1], [], []>} : vector<512x8xf32>, vector<8x32xf32>, vector<512x32xf32> -> vector<512x32xf32>
    %100 = arith.addf %94, %99 : vector<512x32xf32>
    %101 = vector.extract_strided_slice %59 {offsets = [0, 2, 1, 0], sizes = [8, 8, 8, 8], strides = [1, 1, 1, 1]} : vector<8x10x10x8xf32> to vector<8x8x8x8xf32>
    %102 = vector.shape_cast %101 : vector<8x8x8x8xf32> to vector<512x8xf32>
    %c7_65 = arith.constant 7 : index
    %c0_66 = arith.constant 0 : index
    %c0_67 = arith.constant 0 : index
    %103 = vector.load %arg2[%c7_65, %c0_66, %c0_67] : memref<9x8x32xf32, #tpu.memory_space<vmem>>, vector<1x8x32xf32>
    %104 = vector.shape_cast %103 : vector<1x8x32xf32> to vector<8x32xf32>
    %cst_68 = arith.constant dense<0.000000e+00> : vector<512x32xf32>
    %105 = tpu.matmul %102, %104, %cst_68 {dimension_numbers = #tpu.dot_dimension_numbers<[1], [0], [0], [1], [0, 0, 1, 1], [], []>} : vector<512x8xf32>, vector<8x32xf32>, vector<512x32xf32> -> vector<512x32xf32>
    %106 = arith.addf %100, %105 : vector<512x32xf32>
    %107 = vector.extract_strided_slice %59 {offsets = [0, 2, 2, 0], sizes = [8, 8, 8, 8], strides = [1, 1, 1, 1]} : vector<8x10x10x8xf32> to vector<8x8x8x8xf32>
    %108 = vector.shape_cast %107 : vector<8x8x8x8xf32> to vector<512x8xf32>
    %c8_69 = arith.constant 8 : index
    %c0_70 = arith.constant 0 : index
    %c0_71 = arith.constant 0 : index
    %109 = vector.load %arg2[%c8_69, %c0_70, %c0_71] : memref<9x8x32xf32, #tpu.memory_space<vmem>>, vector<1x8x32xf32>
    %110 = vector.shape_cast %109 : vector<1x8x32xf32> to vector<8x32xf32>
    %cst_72 = arith.constant dense<0.000000e+00> : vector<512x32xf32>
    %111 = tpu.matmul %108, %110, %cst_72 {dimension_numbers = #tpu.dot_dimension_numbers<[1], [0], [0], [1], [0, 0, 1, 1], [], []>} : vector<512x8xf32>, vector<8x32xf32>, vector<512x32xf32> -> vector<512x32xf32>
    %112 = arith.addf %106, %111 : vector<512x32xf32>
    %113 = vector.broadcast %0 : vector<1x32xf32> to vector<512x32xf32>
    %114 = arith.addf %112, %113 : vector<512x32xf32>
    %cst_73 = arith.constant 0.000000e+00 : f32
    %115 = vector.broadcast %cst_73 : f32 to vector<512x32xf32>
    %116 = arith.maximumf %114, %115 : vector<512x32xf32>
    %117 = vector.extract_strided_slice %58 {offsets = [0, 0], sizes = [256, 32], strides = [1, 1]} : vector<512x32xf32> to vector<256x32xf32>
    %cst_74 = arith.constant dense<0.000000e+00> : vector<32xf32>
    %118 = vector.multi_reduction <add>, %117, %cst_74 [0] : vector<256x32xf32> to vector<32xf32>
    %119 = vector.shape_cast %118 : vector<32xf32> to vector<1x32xf32>
    %cst_75 = arith.constant 3.906250e-03 : f32
    %120 = vector.broadcast %cst_75 : f32 to vector<1x32xf32>
    %121 = arith.mulf %119, %120 : vector<1x32xf32>
    %c0_76 = arith.constant 0 : index
    %c0_77 = arith.constant 0 : index
    %122 = vector.load %arg12[%c0_76, %c0_77] : memref<10x32xf32, #tpu.memory_space<vmem>>, vector<1x32xf32>
    tpu.vector_store %arg12[%c0_76, %c0_77], %121 {strides = array<i32>} : memref<10x32xf32, #tpu.memory_space<vmem>>, vector<1x32xf32>,
    %123 = vector.extract_strided_slice %58 {offsets = [256, 0], sizes = [256, 32], strides = [1, 1]} : vector<512x32xf32> to vector<256x32xf32>
    %cst_78 = arith.constant dense<0.000000e+00> : vector<32xf32>
    %124 = vector.multi_reduction <add>, %123, %cst_78 [0] : vector<256x32xf32> to vector<32xf32>
    %125 = vector.shape_cast %124 : vector<32xf32> to vector<1x32xf32>
    %cst_79 = arith.constant 3.906250e-03 : f32
    %126 = vector.broadcast %cst_79 : f32 to vector<1x32xf32>
    %127 = arith.mulf %125, %126 : vector<1x32xf32>
    %c1_80 = arith.constant 1 : index
    %c0_81 = arith.constant 0 : index
    %128 = vector.load %arg12[%c1_80, %c0_81] : memref<10x32xf32, #tpu.memory_space<vmem>>, vector<1x32xf32>
    tpu.vector_store %arg12[%c1_80, %c0_81], %127 {strides = array<i32>} : memref<10x32xf32, #tpu.memory_space<vmem>>, vector<1x32xf32>,
    %129 = vector.extract_strided_slice %116 {offsets = [0, 0], sizes = [64, 32], strides = [1, 1]} : vector<512x32xf32> to vector<64x32xf32>
    %cst_82 = arith.constant dense<0.000000e+00> : vector<32xf32>
    %130 = vector.multi_reduction <add>, %129, %cst_82 [0] : vector<64x32xf32> to vector<32xf32>
    %131 = vector.shape_cast %130 : vector<32xf32> to vector<1x32xf32>
    %cst_83 = arith.constant 1.562500e-02 : f32
    %132 = vector.broadcast %cst_83 : f32 to vector<1x32xf32>
    %133 = arith.mulf %131, %132 : vector<1x32xf32>
    %c2_84 = arith.constant 2 : index
    %c0_85 = arith.constant 0 : index
    %134 = vector.load %arg12[%c2_84, %c0_85] : memref<10x32xf32, #tpu.memory_space<vmem>>, vector<1x32xf32>
    tpu.vector_store %arg12[%c2_84, %c0_85], %133 {strides = array<i32>} : memref<10x32xf32, #tpu.memory_space<vmem>>, vector<1x32xf32>,
    %135 = vector.extract_strided_slice %116 {offsets = [64, 0], sizes = [64, 32], strides = [1, 1]} : vector<512x32xf32> to vector<64x32xf32>
    %cst_86 = arith.constant dense<0.000000e+00> : vector<32xf32>
    %136 = vector.multi_reduction <add>, %135, %cst_86 [0] : vector<64x32xf32> to vector<32xf32>
    %137 = vector.shape_cast %136 : vector<32xf32> to vector<1x32xf32>
    %cst_87 = arith.constant 1.562500e-02 : f32
    %138 = vector.broadcast %cst_87 : f32 to vector<1x32xf32>
    %139 = arith.mulf %137, %138 : vector<1x32xf32>
    %c3_88 = arith.constant 3 : index
    %c0_89 = arith.constant 0 : index
    %140 = vector.load %arg12[%c3_88, %c0_89] : memref<10x32xf32, #tpu.memory_space<vmem>>, vector<1x32xf32>
    tpu.vector_store %arg12[%c3_88, %c0_89], %139 {strides = array<i32>} : memref<10x32xf32, #tpu.memory_space<vmem>>, vector<1x32xf32>,
    %141 = vector.extract_strided_slice %116 {offsets = [128, 0], sizes = [64, 32], strides = [1, 1]} : vector<512x32xf32> to vector<64x32xf32>
    %cst_90 = arith.constant dense<0.000000e+00> : vector<32xf32>
    %142 = vector.multi_reduction <add>, %141, %cst_90 [0] : vector<64x32xf32> to vector<32xf32>
    %143 = vector.shape_cast %142 : vector<32xf32> to vector<1x32xf32>
    %cst_91 = arith.constant 1.562500e-02 : f32
    %144 = vector.broadcast %cst_91 : f32 to vector<1x32xf32>
    %145 = arith.mulf %143, %144 : vector<1x32xf32>
    %c4_92 = arith.constant 4 : index
    %c0_93 = arith.constant 0 : index
    %146 = vector.load %arg12[%c4_92, %c0_93] : memref<10x32xf32, #tpu.memory_space<vmem>>, vector<1x32xf32>
    tpu.vector_store %arg12[%c4_92, %c0_93], %145 {strides = array<i32>} : memref<10x32xf32, #tpu.memory_space<vmem>>, vector<1x32xf32>,
    %147 = vector.extract_strided_slice %116 {offsets = [192, 0], sizes = [64, 32], strides = [1, 1]} : vector<512x32xf32> to vector<64x32xf32>
    %cst_94 = arith.constant dense<0.000000e+00> : vector<32xf32>
    %148 = vector.multi_reduction <add>, %147, %cst_94 [0] : vector<64x32xf32> to vector<32xf32>
    %149 = vector.shape_cast %148 : vector<32xf32> to vector<1x32xf32>
    %cst_95 = arith.constant 1.562500e-02 : f32
    %150 = vector.broadcast %cst_95 : f32 to vector<1x32xf32>
    %151 = arith.mulf %149, %150 : vector<1x32xf32>
    %c5_96 = arith.constant 5 : index
    %c0_97 = arith.constant 0 : index
    %152 = vector.load %arg12[%c5_96, %c0_97] : memref<10x32xf32, #tpu.memory_space<vmem>>, vector<1x32xf32>
    tpu.vector_store %arg12[%c5_96, %c0_97], %151 {strides = array<i32>} : memref<10x32xf32, #tpu.memory_space<vmem>>, vector<1x32xf32>,
    %153 = vector.extract_strided_slice %116 {offsets = [256, 0], sizes = [64, 32], strides = [1, 1]} : vector<512x32xf32> to vector<64x32xf32>
    %cst_98 = arith.constant dense<0.000000e+00> : vector<32xf32>
    %154 = vector.multi_reduction <add>, %153, %cst_98 [0] : vector<64x32xf32> to vector<32xf32>
    %155 = vector.shape_cast %154 : vector<32xf32> to vector<1x32xf32>
    %cst_99 = arith.constant 1.562500e-02 : f32
    %156 = vector.broadcast %cst_99 : f32 to vector<1x32xf32>
    %157 = arith.mulf %155, %156 : vector<1x32xf32>
    %c6_100 = arith.constant 6 : index
    %c0_101 = arith.constant 0 : index
    %158 = vector.load %arg12[%c6_100, %c0_101] : memref<10x32xf32, #tpu.memory_space<vmem>>, vector<1x32xf32>
    tpu.vector_store %arg12[%c6_100, %c0_101], %157 {strides = array<i32>} : memref<10x32xf32, #tpu.memory_space<vmem>>, vector<1x32xf32>,
    %159 = vector.extract_strided_slice %116 {offsets = [320, 0], sizes = [64, 32], strides = [1, 1]} : vector<512x32xf32> to vector<64x32xf32>
    %cst_102 = arith.constant dense<0.000000e+00> : vector<32xf32>
    %160 = vector.multi_reduction <add>, %159, %cst_102 [0] : vector<64x32xf32> to vector<32xf32>
    %161 = vector.shape_cast %160 : vector<32xf32> to vector<1x32xf32>
    %cst_103 = arith.constant 1.562500e-02 : f32
    %162 = vector.broadcast %cst_103 : f32 to vector<1x32xf32>
    %163 = arith.mulf %161, %162 : vector<1x32xf32>
    %c7_104 = arith.constant 7 : index
    %c0_105 = arith.constant 0 : index
    %164 = vector.load %arg12[%c7_104, %c0_105] : memref<10x32xf32, #tpu.memory_space<vmem>>, vector<1x32xf32>
    tpu.vector_store %arg12[%c7_104, %c0_105], %163 {strides = array<i32>} : memref<10x32xf32, #tpu.memory_space<vmem>>, vector<1x32xf32>,
    %165 = vector.extract_strided_slice %116 {offsets = [384, 0], sizes = [64, 32], strides = [1, 1]} : vector<512x32xf32> to vector<64x32xf32>
    %cst_106 = arith.constant dense<0.000000e+00> : vector<32xf32>
    %166 = vector.multi_reduction <add>, %165, %cst_106 [0] : vector<64x32xf32> to vector<32xf32>
    %167 = vector.shape_cast %166 : vector<32xf32> to vector<1x32xf32>
    %cst_107 = arith.constant 1.562500e-02 : f32
    %168 = vector.broadcast %cst_107 : f32 to vector<1x32xf32>
    %169 = arith.mulf %167, %168 : vector<1x32xf32>
    %c8_108 = arith.constant 8 : index
    %c0_109 = arith.constant 0 : index
    %170 = vector.load %arg12[%c8_108, %c0_109] : memref<10x32xf32, #tpu.memory_space<vmem>>, vector<1x32xf32>
    tpu.vector_store %arg12[%c8_108, %c0_109], %169 {strides = array<i32>} : memref<10x32xf32, #tpu.memory_space<vmem>>, vector<1x32xf32>,
    %171 = vector.extract_strided_slice %116 {offsets = [448, 0], sizes = [64, 32], strides = [1, 1]} : vector<512x32xf32> to vector<64x32xf32>
    %cst_110 = arith.constant dense<0.000000e+00> : vector<32xf32>
    %172 = vector.multi_reduction <add>, %171, %cst_110 [0] : vector<64x32xf32> to vector<32xf32>
    %173 = vector.shape_cast %172 : vector<32xf32> to vector<1x32xf32>
    %cst_111 = arith.constant 1.562500e-02 : f32
    %174 = vector.broadcast %cst_111 : f32 to vector<1x32xf32>
    %175 = arith.mulf %173, %174 : vector<1x32xf32>
    %c9 = arith.constant 9 : index
    %c0_112 = arith.constant 0 : index
    %176 = vector.load %arg12[%c9, %c0_112] : memref<10x32xf32, #tpu.memory_space<vmem>>, vector<1x32xf32>
    tpu.vector_store %arg12[%c9, %c0_112], %175 {strides = array<i32>} : memref<10x32xf32, #tpu.memory_space<vmem>>, vector<1x32xf32>,
    %c0_113 = arith.constant 0 : index
    %c0_114 = arith.constant 0 : index
    %177 = vector.load %arg12[%c0_113, %c0_114] : memref<10x32xf32, #tpu.memory_space<vmem>>, vector<10x32xf32>
    %c0_115 = arith.constant 0 : index
    %c0_116 = arith.constant 0 : index
    %178 = vector.load %arg4[%c0_115, %c0_116] : memref<32x32xf32, #tpu.memory_space<vmem>>, vector<32x32xf32>
    %cst_117 = arith.constant dense<0.000000e+00> : vector<10x32xf32>
    %179 = tpu.matmul %177, %178, %cst_117 {dimension_numbers = #tpu.dot_dimension_numbers<[1], [0], [0], [1], [0, 0, 1, 1], [], []>} : vector<10x32xf32>, vector<32x32xf32>, vector<10x32xf32> -> vector<10x32xf32>
    %c0_118 = arith.constant 0 : index
    %c0_119 = arith.constant 0 : index
    %180 = vector.load %arg5[%c0_118, %c0_119] : memref<1x32xf32, #tpu.memory_space<vmem>>, vector<1x32xf32>
    %181 = vector.broadcast %180 : vector<1x32xf32> to vector<10x32xf32>
    %182 = arith.addf %179, %181 : vector<10x32xf32>
    %183 = arith.mulf %182, %182 : vector<10x32xf32>
    %cst_120 = arith.constant dense<0.000000e+00> : vector<10xf32>
    %184 = vector.multi_reduction <add>, %183, %cst_120 [1] : vector<10x32xf32> to vector<10xf32>
    %185 = vector.shape_cast %184 : vector<10xf32> to vector<10x1xf32>
    %cst_121 = arith.constant 1.000000e-24 : f32
    %186 = vector.broadcast %cst_121 : f32 to vector<10x1xf32>
    %187 = arith.maximumf %185, %186 : vector<10x1xf32>
    %188 = math.rsqrt %187 : vector<10x1xf32>
    %189 = vector.broadcast %188 : vector<10x1xf32> to vector<10x32xf32>
    %190 = arith.mulf %182, %189 : vector<10x32xf32>
    %c0_122 = arith.constant 0 : index
    %c0_123 = arith.constant 0 : index
    %191 = vector.load %arg10[%c0_122, %c0_123] : memref<10x32xf32, #tpu.memory_space<vmem>>, vector<10x32xf32>
    tpu.vector_store %arg10[%c0_122, %c0_123], %190 {strides = array<i32>} : memref<10x32xf32, #tpu.memory_space<vmem>>, vector<10x32xf32>,
    %cst_124 = arith.constant 0.000000e+00 : f32
    %192 = vector.broadcast %cst_124 : f32 to vector<1x1xf32>
    %193 = vector.extract_strided_slice %190 {offsets = [0, 0], sizes = [1, 32], strides = [1, 1]} : vector<10x32xf32> to vector<1x32xf32>
    %c0_125 = arith.constant 0 : index
    %c0_126 = arith.constant 0 : index
    %194 = vector.load %arg6[%c0_125, %c0_126] : memref<2x32xf32, #tpu.memory_space<vmem>>, vector<1x32xf32>
    %c0_127 = arith.constant 0 : index
    %c0_128 = arith.constant 0 : index
    %c0_129 = arith.constant 0 : index
    %195 = vector.load %arg7[%c0_127, %c0_128, %c0_129] : memref<2x16x32xf32, #tpu.memory_space<vmem>>, vector<1x16x32xf32>
    %196 = vector.shape_cast %195 : vector<1x16x32xf32> to vector<16x32xf32>
    %197 = arith.mulf %194, %193 : vector<1x32xf32>
    %cst_130 = arith.constant dense<0.000000e+00> : vector<1xf32>
    %198 = vector.multi_reduction <add>, %197, %cst_130 [1] : vector<1x32xf32> to vector<1xf32>
    %199 = vector.shape_cast %198 : vector<1xf32> to vector<1x1xf32>
    %cst_131 = arith.constant 14.2857141 : f32
    %200 = vector.broadcast %cst_131 : f32 to vector<1x1xf32>
    %201 = arith.mulf %199, %200 : vector<1x1xf32>
    %202 = vector.broadcast %193 : vector<1x32xf32> to vector<16x32xf32>
    %203 = arith.mulf %196, %202 : vector<16x32xf32>
    %cst_132 = arith.constant dense<0.000000e+00> : vector<16xf32>
    %204 = vector.multi_reduction <add>, %203, %cst_132 [1] : vector<16x32xf32> to vector<16xf32>
    %205 = vector.shape_cast %204 : vector<16xf32> to vector<16x1xf32>
    %cst_133 = arith.constant 14.2857141 : f32
    %206 = vector.broadcast %cst_133 : f32 to vector<16x1xf32>
    %207 = arith.mulf %205, %206 : vector<16x1xf32>
    %cst_134 = arith.constant dense<0xFF800000> : vector<1xf32>
    %208 = vector.multi_reduction <maximumf>, %207, %cst_134 [0] : vector<16x1xf32> to vector<1xf32>
    %209 = vector.shape_cast %208 : vector<1xf32> to vector<1x1xf32>
    %210 = arith.maximumf %201, %209 : vector<1x1xf32>
    %211 = arith.subf %201, %210 : vector<1x1xf32>
    %212 = math.exp %211 : vector<1x1xf32>
    %213 = vector.broadcast %210 : vector<1x1xf32> to vector<16x1xf32>
    %214 = arith.subf %207, %213 : vector<16x1xf32>
    %215 = math.exp %214 : vector<16x1xf32>
    %cst_135 = arith.constant dense<0.000000e+00> : vector<1xf32>
    %216 = vector.multi_reduction <add>, %215, %cst_135 [0] : vector<16x1xf32> to vector<1xf32>
    %217 = vector.shape_cast %216 : vector<1xf32> to vector<1x1xf32>
    %218 = arith.addf %212, %217 : vector<1x1xf32>
    %219 = math.log %218 : vector<1x1xf32>
    %220 = arith.addf %210, %219 : vector<1x1xf32>
    %221 = arith.subf %220, %201 : vector<1x1xf32>
    %222 = arith.addf %192, %221 : vector<1x1xf32>
    %223 = vector.extract_strided_slice %190 {offsets = [1, 0], sizes = [1, 32], strides = [1, 1]} : vector<10x32xf32> to vector<1x32xf32>
    %c1_136 = arith.constant 1 : index
    %c0_137 = arith.constant 0 : index
    %224 = vector.load %arg6[%c1_136, %c0_137] : memref<2x32xf32, #tpu.memory_space<vmem>>, vector<1x32xf32>
    %c1_138 = arith.constant 1 : index
    %c0_139 = arith.constant 0 : index
    %c0_140 = arith.constant 0 : index
    %225 = vector.load %arg7[%c1_138, %c0_139, %c0_140] : memref<2x16x32xf32, #tpu.memory_space<vmem>>, vector<1x16x32xf32>
    %226 = vector.shape_cast %225 : vector<1x16x32xf32> to vector<16x32xf32>
    %227 = arith.mulf %224, %223 : vector<1x32xf32>
    %cst_141 = arith.constant dense<0.000000e+00> : vector<1xf32>
    %228 = vector.multi_reduction <add>, %227, %cst_141 [1] : vector<1x32xf32> to vector<1xf32>
    %229 = vector.shape_cast %228 : vector<1xf32> to vector<1x1xf32>
    %cst_142 = arith.constant 14.2857141 : f32
    %230 = vector.broadcast %cst_142 : f32 to vector<1x1xf32>
    %231 = arith.mulf %229, %230 : vector<1x1xf32>
    %232 = vector.broadcast %223 : vector<1x32xf32> to vector<16x32xf32>
    %233 = arith.mulf %226, %232 : vector<16x32xf32>
    %cst_143 = arith.constant dense<0.000000e+00> : vector<16xf32>
    %234 = vector.multi_reduction <add>, %233, %cst_143 [1] : vector<16x32xf32> to vector<16xf32>
    %235 = vector.shape_cast %234 : vector<16xf32> to vector<16x1xf32>
    %cst_144 = arith.constant 14.2857141 : f32
    %236 = vector.broadcast %cst_144 : f32 to vector<16x1xf32>
    %237 = arith.mulf %235, %236 : vector<16x1xf32>
    %cst_145 = arith.constant dense<0xFF800000> : vector<1xf32>
    %238 = vector.multi_reduction <maximumf>, %237, %cst_145 [0] : vector<16x1xf32> to vector<1xf32>
    %239 = vector.shape_cast %238 : vector<1xf32> to vector<1x1xf32>
    %240 = arith.maximumf %231, %239 : vector<1x1xf32>
    %241 = arith.subf %231, %240 : vector<1x1xf32>
    %242 = math.exp %241 : vector<1x1xf32>
    %243 = vector.broadcast %240 : vector<1x1xf32> to vector<16x1xf32>
    %244 = arith.subf %237, %243 : vector<16x1xf32>
    %245 = math.exp %244 : vector<16x1xf32>
    %cst_146 = arith.constant dense<0.000000e+00> : vector<1xf32>
    %246 = vector.multi_reduction <add>, %245, %cst_146 [0] : vector<16x1xf32> to vector<1xf32>
    %247 = vector.shape_cast %246 : vector<1xf32> to vector<1x1xf32>
    %248 = arith.addf %242, %247 : vector<1x1xf32>
    %249 = math.log %248 : vector<1x1xf32>
    %250 = arith.addf %240, %249 : vector<1x1xf32>
    %251 = arith.subf %250, %231 : vector<1x1xf32>
    %252 = arith.addf %222, %251 : vector<1x1xf32>
    %cst_147 = arith.constant 0.000000e+00 : f32
    %253 = vector.broadcast %cst_147 : f32 to vector<1x1xf32>
    %254 = vector.extract_strided_slice %190 {offsets = [2, 0], sizes = [1, 32], strides = [1, 1]} : vector<10x32xf32> to vector<1x32xf32>
    %c0_148 = arith.constant 0 : index
    %c0_149 = arith.constant 0 : index
    %255 = vector.load %arg8[%c0_148, %c0_149] : memref<8x32xf32, #tpu.memory_space<vmem>>, vector<1x32xf32>
    %c0_150 = arith.constant 0 : index
    %c0_151 = arith.constant 0 : index
    %c0_152 = arith.constant 0 : index
    %256 = vector.load %arg9[%c0_150, %c0_151, %c0_152] : memref<8x16x32xf32, #tpu.memory_space<vmem>>, vector<1x16x32xf32>
    %257 = vector.shape_cast %256 : vector<1x16x32xf32> to vector<16x32xf32>
    %258 = arith.mulf %255, %254 : vector<1x32xf32>
    %cst_153 = arith.constant dense<0.000000e+00> : vector<1xf32>
    %259 = vector.multi_reduction <add>, %258, %cst_153 [1] : vector<1x32xf32> to vector<1xf32>
    %260 = vector.shape_cast %259 : vector<1xf32> to vector<1x1xf32>
    %cst_154 = arith.constant 14.2857141 : f32
    %261 = vector.broadcast %cst_154 : f32 to vector<1x1xf32>
    %262 = arith.mulf %260, %261 : vector<1x1xf32>
    %263 = vector.broadcast %254 : vector<1x32xf32> to vector<16x32xf32>
    %264 = arith.mulf %257, %263 : vector<16x32xf32>
    %cst_155 = arith.constant dense<0.000000e+00> : vector<16xf32>
    %265 = vector.multi_reduction <add>, %264, %cst_155 [1] : vector<16x32xf32> to vector<16xf32>
    %266 = vector.shape_cast %265 : vector<16xf32> to vector<16x1xf32>
    %cst_156 = arith.constant 14.2857141 : f32
    %267 = vector.broadcast %cst_156 : f32 to vector<16x1xf32>
    %268 = arith.mulf %266, %267 : vector<16x1xf32>
    %cst_157 = arith.constant dense<0xFF800000> : vector<1xf32>
    %269 = vector.multi_reduction <maximumf>, %268, %cst_157 [0] : vector<16x1xf32> to vector<1xf32>
    %270 = vector.shape_cast %269 : vector<1xf32> to vector<1x1xf32>
    %271 = arith.maximumf %262, %270 : vector<1x1xf32>
    %272 = arith.subf %262, %271 : vector<1x1xf32>
    %273 = math.exp %272 : vector<1x1xf32>
    %274 = vector.broadcast %271 : vector<1x1xf32> to vector<16x1xf32>
    %275 = arith.subf %268, %274 : vector<16x1xf32>
    %276 = math.exp %275 : vector<16x1xf32>
    %cst_158 = arith.constant dense<0.000000e+00> : vector<1xf32>
    %277 = vector.multi_reduction <add>, %276, %cst_158 [0] : vector<16x1xf32> to vector<1xf32>
    %278 = vector.shape_cast %277 : vector<1xf32> to vector<1x1xf32>
    %279 = arith.addf %273, %278 : vector<1x1xf32>
    %280 = math.log %279 : vector<1x1xf32>
    %281 = arith.addf %271, %280 : vector<1x1xf32>
    %282 = arith.subf %281, %262 : vector<1x1xf32>
    %283 = arith.addf %253, %282 : vector<1x1xf32>
    %284 = vector.extract_strided_slice %190 {offsets = [3, 0], sizes = [1, 32], strides = [1, 1]} : vector<10x32xf32> to vector<1x32xf32>
    %c1_159 = arith.constant 1 : index
    %c0_160 = arith.constant 0 : index
    %285 = vector.load %arg8[%c1_159, %c0_160] : memref<8x32xf32, #tpu.memory_space<vmem>>, vector<1x32xf32>
    %c1_161 = arith.constant 1 : index
    %c0_162 = arith.constant 0 : index
    %c0_163 = arith.constant 0 : index
    %286 = vector.load %arg9[%c1_161, %c0_162, %c0_163] : memref<8x16x32xf32, #tpu.memory_space<vmem>>, vector<1x16x32xf32>
    %287 = vector.shape_cast %286 : vector<1x16x32xf32> to vector<16x32xf32>
    %288 = arith.mulf %285, %284 : vector<1x32xf32>
    %cst_164 = arith.constant dense<0.000000e+00> : vector<1xf32>
    %289 = vector.multi_reduction <add>, %288, %cst_164 [1] : vector<1x32xf32> to vector<1xf32>
    %290 = vector.shape_cast %289 : vector<1xf32> to vector<1x1xf32>
    %cst_165 = arith.constant 14.2857141 : f32
    %291 = vector.broadcast %cst_165 : f32 to vector<1x1xf32>
    %292 = arith.mulf %290, %291 : vector<1x1xf32>
    %293 = vector.broadcast %284 : vector<1x32xf32> to vector<16x32xf32>
    %294 = arith.mulf %287, %293 : vector<16x32xf32>
    %cst_166 = arith.constant dense<0.000000e+00> : vector<16xf32>
    %295 = vector.multi_reduction <add>, %294, %cst_166 [1] : vector<16x32xf32> to vector<16xf32>
    %296 = vector.shape_cast %295 : vector<16xf32> to vector<16x1xf32>
    %cst_167 = arith.constant 14.2857141 : f32
    %297 = vector.broadcast %cst_167 : f32 to vector<16x1xf32>
    %298 = arith.mulf %296, %297 : vector<16x1xf32>
    %cst_168 = arith.constant dense<0xFF800000> : vector<1xf32>
    %299 = vector.multi_reduction <maximumf>, %298, %cst_168 [0] : vector<16x1xf32> to vector<1xf32>
    %300 = vector.shape_cast %299 : vector<1xf32> to vector<1x1xf32>
    %301 = arith.maximumf %292, %300 : vector<1x1xf32>
    %302 = arith.subf %292, %301 : vector<1x1xf32>
    %303 = math.exp %302 : vector<1x1xf32>
    %304 = vector.broadcast %301 : vector<1x1xf32> to vector<16x1xf32>
    %305 = arith.subf %298, %304 : vector<16x1xf32>
    %306 = math.exp %305 : vector<16x1xf32>
    %cst_169 = arith.constant dense<0.000000e+00> : vector<1xf32>
    %307 = vector.multi_reduction <add>, %306, %cst_169 [0] : vector<16x1xf32> to vector<1xf32>
    %308 = vector.shape_cast %307 : vector<1xf32> to vector<1x1xf32>
    %309 = arith.addf %303, %308 : vector<1x1xf32>
    %310 = math.log %309 : vector<1x1xf32>
    %311 = arith.addf %301, %310 : vector<1x1xf32>
    %312 = arith.subf %311, %292 : vector<1x1xf32>
    %313 = arith.addf %283, %312 : vector<1x1xf32>
    %314 = vector.extract_strided_slice %190 {offsets = [4, 0], sizes = [1, 32], strides = [1, 1]} : vector<10x32xf32> to vector<1x32xf32>
    %c2_170 = arith.constant 2 : index
    %c0_171 = arith.constant 0 : index
    %315 = vector.load %arg8[%c2_170, %c0_171] : memref<8x32xf32, #tpu.memory_space<vmem>>, vector<1x32xf32>
    %c2_172 = arith.constant 2 : index
    %c0_173 = arith.constant 0 : index
    %c0_174 = arith.constant 0 : index
    %316 = vector.load %arg9[%c2_172, %c0_173, %c0_174] : memref<8x16x32xf32, #tpu.memory_space<vmem>>, vector<1x16x32xf32>
    %317 = vector.shape_cast %316 : vector<1x16x32xf32> to vector<16x32xf32>
    %318 = arith.mulf %315, %314 : vector<1x32xf32>
    %cst_175 = arith.constant dense<0.000000e+00> : vector<1xf32>
    %319 = vector.multi_reduction <add>, %318, %cst_175 [1] : vector<1x32xf32> to vector<1xf32>
    %320 = vector.shape_cast %319 : vector<1xf32> to vector<1x1xf32>
    %cst_176 = arith.constant 14.2857141 : f32
    %321 = vector.broadcast %cst_176 : f32 to vector<1x1xf32>
    %322 = arith.mulf %320, %321 : vector<1x1xf32>
    %323 = vector.broadcast %314 : vector<1x32xf32> to vector<16x32xf32>
    %324 = arith.mulf %317, %323 : vector<16x32xf32>
    %cst_177 = arith.constant dense<0.000000e+00> : vector<16xf32>
    %325 = vector.multi_reduction <add>, %324, %cst_177 [1] : vector<16x32xf32> to vector<16xf32>
    %326 = vector.shape_cast %325 : vector<16xf32> to vector<16x1xf32>
    %cst_178 = arith.constant 14.2857141 : f32
    %327 = vector.broadcast %cst_178 : f32 to vector<16x1xf32>
    %328 = arith.mulf %326, %327 : vector<16x1xf32>
    %cst_179 = arith.constant dense<0xFF800000> : vector<1xf32>
    %329 = vector.multi_reduction <maximumf>, %328, %cst_179 [0] : vector<16x1xf32> to vector<1xf32>
    %330 = vector.shape_cast %329 : vector<1xf32> to vector<1x1xf32>
    %331 = arith.maximumf %322, %330 : vector<1x1xf32>
    %332 = arith.subf %322, %331 : vector<1x1xf32>
    %333 = math.exp %332 : vector<1x1xf32>
    %334 = vector.broadcast %331 : vector<1x1xf32> to vector<16x1xf32>
    %335 = arith.subf %328, %334 : vector<16x1xf32>
    %336 = math.exp %335 : vector<16x1xf32>
    %cst_180 = arith.constant dense<0.000000e+00> : vector<1xf32>
    %337 = vector.multi_reduction <add>, %336, %cst_180 [0] : vector<16x1xf32> to vector<1xf32>
    %338 = vector.shape_cast %337 : vector<1xf32> to vector<1x1xf32>
    %339 = arith.addf %333, %338 : vector<1x1xf32>
    %340 = math.log %339 : vector<1x1xf32>
    %341 = arith.addf %331, %340 : vector<1x1xf32>
    %342 = arith.subf %341, %322 : vector<1x1xf32>
    %343 = arith.addf %313, %342 : vector<1x1xf32>
    %344 = vector.extract_strided_slice %190 {offsets = [5, 0], sizes = [1, 32], strides = [1, 1]} : vector<10x32xf32> to vector<1x32xf32>
    %c3_181 = arith.constant 3 : index
    %c0_182 = arith.constant 0 : index
    %345 = vector.load %arg8[%c3_181, %c0_182] : memref<8x32xf32, #tpu.memory_space<vmem>>, vector<1x32xf32>
    %c3_183 = arith.constant 3 : index
    %c0_184 = arith.constant 0 : index
    %c0_185 = arith.constant 0 : index
    %346 = vector.load %arg9[%c3_183, %c0_184, %c0_185] : memref<8x16x32xf32, #tpu.memory_space<vmem>>, vector<1x16x32xf32>
    %347 = vector.shape_cast %346 : vector<1x16x32xf32> to vector<16x32xf32>
    %348 = arith.mulf %345, %344 : vector<1x32xf32>
    %cst_186 = arith.constant dense<0.000000e+00> : vector<1xf32>
    %349 = vector.multi_reduction <add>, %348, %cst_186 [1] : vector<1x32xf32> to vector<1xf32>
    %350 = vector.shape_cast %349 : vector<1xf32> to vector<1x1xf32>
    %cst_187 = arith.constant 14.2857141 : f32
    %351 = vector.broadcast %cst_187 : f32 to vector<1x1xf32>
    %352 = arith.mulf %350, %351 : vector<1x1xf32>
    %353 = vector.broadcast %344 : vector<1x32xf32> to vector<16x32xf32>
    %354 = arith.mulf %347, %353 : vector<16x32xf32>
    %cst_188 = arith.constant dense<0.000000e+00> : vector<16xf32>
    %355 = vector.multi_reduction <add>, %354, %cst_188 [1] : vector<16x32xf32> to vector<16xf32>
    %356 = vector.shape_cast %355 : vector<16xf32> to vector<16x1xf32>
    %cst_189 = arith.constant 14.2857141 : f32
    %357 = vector.broadcast %cst_189 : f32 to vector<16x1xf32>
    %358 = arith.mulf %356, %357 : vector<16x1xf32>
    %cst_190 = arith.constant dense<0xFF800000> : vector<1xf32>
    %359 = vector.multi_reduction <maximumf>, %358, %cst_190 [0] : vector<16x1xf32> to vector<1xf32>
    %360 = vector.shape_cast %359 : vector<1xf32> to vector<1x1xf32>
    %361 = arith.maximumf %352, %360 : vector<1x1xf32>
    %362 = arith.subf %352, %361 : vector<1x1xf32>
    %363 = math.exp %362 : vector<1x1xf32>
    %364 = vector.broadcast %361 : vector<1x1xf32> to vector<16x1xf32>
    %365 = arith.subf %358, %364 : vector<16x1xf32>
    %366 = math.exp %365 : vector<16x1xf32>
    %cst_191 = arith.constant dense<0.000000e+00> : vector<1xf32>
    %367 = vector.multi_reduction <add>, %366, %cst_191 [0] : vector<16x1xf32> to vector<1xf32>
    %368 = vector.shape_cast %367 : vector<1xf32> to vector<1x1xf32>
    %369 = arith.addf %363, %368 : vector<1x1xf32>
    %370 = math.log %369 : vector<1x1xf32>
    %371 = arith.addf %361, %370 : vector<1x1xf32>
    %372 = arith.subf %371, %352 : vector<1x1xf32>
    %373 = arith.addf %343, %372 : vector<1x1xf32>
    %374 = vector.extract_strided_slice %190 {offsets = [6, 0], sizes = [1, 32], strides = [1, 1]} : vector<10x32xf32> to vector<1x32xf32>
    %c4_192 = arith.constant 4 : index
    %c0_193 = arith.constant 0 : index
    %375 = vector.load %arg8[%c4_192, %c0_193] : memref<8x32xf32, #tpu.memory_space<vmem>>, vector<1x32xf32>
    %c4_194 = arith.constant 4 : index
    %c0_195 = arith.constant 0 : index
    %c0_196 = arith.constant 0 : index
    %376 = vector.load %arg9[%c4_194, %c0_195, %c0_196] : memref<8x16x32xf32, #tpu.memory_space<vmem>>, vector<1x16x32xf32>
    %377 = vector.shape_cast %376 : vector<1x16x32xf32> to vector<16x32xf32>
    %378 = arith.mulf %375, %374 : vector<1x32xf32>
    %cst_197 = arith.constant dense<0.000000e+00> : vector<1xf32>
    %379 = vector.multi_reduction <add>, %378, %cst_197 [1] : vector<1x32xf32> to vector<1xf32>
    %380 = vector.shape_cast %379 : vector<1xf32> to vector<1x1xf32>
    %cst_198 = arith.constant 14.2857141 : f32
    %381 = vector.broadcast %cst_198 : f32 to vector<1x1xf32>
    %382 = arith.mulf %380, %381 : vector<1x1xf32>
    %383 = vector.broadcast %374 : vector<1x32xf32> to vector<16x32xf32>
    %384 = arith.mulf %377, %383 : vector<16x32xf32>
    %cst_199 = arith.constant dense<0.000000e+00> : vector<16xf32>
    %385 = vector.multi_reduction <add>, %384, %cst_199 [1] : vector<16x32xf32> to vector<16xf32>
    %386 = vector.shape_cast %385 : vector<16xf32> to vector<16x1xf32>
    %cst_200 = arith.constant 14.2857141 : f32
    %387 = vector.broadcast %cst_200 : f32 to vector<16x1xf32>
    %388 = arith.mulf %386, %387 : vector<16x1xf32>
    %cst_201 = arith.constant dense<0xFF800000> : vector<1xf32>
    %389 = vector.multi_reduction <maximumf>, %388, %cst_201 [0] : vector<16x1xf32> to vector<1xf32>
    %390 = vector.shape_cast %389 : vector<1xf32> to vector<1x1xf32>
    %391 = arith.maximumf %382, %390 : vector<1x1xf32>
    %392 = arith.subf %382, %391 : vector<1x1xf32>
    %393 = math.exp %392 : vector<1x1xf32>
    %394 = vector.broadcast %391 : vector<1x1xf32> to vector<16x1xf32>
    %395 = arith.subf %388, %394 : vector<16x1xf32>
    %396 = math.exp %395 : vector<16x1xf32>
    %cst_202 = arith.constant dense<0.000000e+00> : vector<1xf32>
    %397 = vector.multi_reduction <add>, %396, %cst_202 [0] : vector<16x1xf32> to vector<1xf32>
    %398 = vector.shape_cast %397 : vector<1xf32> to vector<1x1xf32>
    %399 = arith.addf %393, %398 : vector<1x1xf32>
    %400 = math.log %399 : vector<1x1xf32>
    %401 = arith.addf %391, %400 : vector<1x1xf32>
    %402 = arith.subf %401, %382 : vector<1x1xf32>
    %403 = arith.addf %373, %402 : vector<1x1xf32>
    %404 = vector.extract_strided_slice %190 {offsets = [7, 0], sizes = [1, 32], strides = [1, 1]} : vector<10x32xf32> to vector<1x32xf32>
    %c5_203 = arith.constant 5 : index
    %c0_204 = arith.constant 0 : index
    %405 = vector.load %arg8[%c5_203, %c0_204] : memref<8x32xf32, #tpu.memory_space<vmem>>, vector<1x32xf32>
    %c5_205 = arith.constant 5 : index
    %c0_206 = arith.constant 0 : index
    %c0_207 = arith.constant 0 : index
    %406 = vector.load %arg9[%c5_205, %c0_206, %c0_207] : memref<8x16x32xf32, #tpu.memory_space<vmem>>, vector<1x16x32xf32>
    %407 = vector.shape_cast %406 : vector<1x16x32xf32> to vector<16x32xf32>
    %408 = arith.mulf %405, %404 : vector<1x32xf32>
    %cst_208 = arith.constant dense<0.000000e+00> : vector<1xf32>
    %409 = vector.multi_reduction <add>, %408, %cst_208 [1] : vector<1x32xf32> to vector<1xf32>
    %410 = vector.shape_cast %409 : vector<1xf32> to vector<1x1xf32>
    %cst_209 = arith.constant 14.2857141 : f32
    %411 = vector.broadcast %cst_209 : f32 to vector<1x1xf32>
    %412 = arith.mulf %410, %411 : vector<1x1xf32>
    %413 = vector.broadcast %404 : vector<1x32xf32> to vector<16x32xf32>
    %414 = arith.mulf %407, %413 : vector<16x32xf32>
    %cst_210 = arith.constant dense<0.000000e+00> : vector<16xf32>
    %415 = vector.multi_reduction <add>, %414, %cst_210 [1] : vector<16x32xf32> to vector<16xf32>
    %416 = vector.shape_cast %415 : vector<16xf32> to vector<16x1xf32>
    %cst_211 = arith.constant 14.2857141 : f32
    %417 = vector.broadcast %cst_211 : f32 to vector<16x1xf32>
    %418 = arith.mulf %416, %417 : vector<16x1xf32>
    %cst_212 = arith.constant dense<0xFF800000> : vector<1xf32>
    %419 = vector.multi_reduction <maximumf>, %418, %cst_212 [0] : vector<16x1xf32> to vector<1xf32>
    %420 = vector.shape_cast %419 : vector<1xf32> to vector<1x1xf32>
    %421 = arith.maximumf %412, %420 : vector<1x1xf32>
    %422 = arith.subf %412, %421 : vector<1x1xf32>
    %423 = math.exp %422 : vector<1x1xf32>
    %424 = vector.broadcast %421 : vector<1x1xf32> to vector<16x1xf32>
    %425 = arith.subf %418, %424 : vector<16x1xf32>
    %426 = math.exp %425 : vector<16x1xf32>
    %cst_213 = arith.constant dense<0.000000e+00> : vector<1xf32>
    %427 = vector.multi_reduction <add>, %426, %cst_213 [0] : vector<16x1xf32> to vector<1xf32>
    %428 = vector.shape_cast %427 : vector<1xf32> to vector<1x1xf32>
    %429 = arith.addf %423, %428 : vector<1x1xf32>
    %430 = math.log %429 : vector<1x1xf32>
    %431 = arith.addf %421, %430 : vector<1x1xf32>
    %432 = arith.subf %431, %412 : vector<1x1xf32>
    %433 = arith.addf %403, %432 : vector<1x1xf32>
    %434 = vector.extract_strided_slice %190 {offsets = [8, 0], sizes = [1, 32], strides = [1, 1]} : vector<10x32xf32> to vector<1x32xf32>
    %c6_214 = arith.constant 6 : index
    %c0_215 = arith.constant 0 : index
    %435 = vector.load %arg8[%c6_214, %c0_215] : memref<8x32xf32, #tpu.memory_space<vmem>>, vector<1x32xf32>
    %c6_216 = arith.constant 6 : index
    %c0_217 = arith.constant 0 : index
    %c0_218 = arith.constant 0 : index
    %436 = vector.load %arg9[%c6_216, %c0_217, %c0_218] : memref<8x16x32xf32, #tpu.memory_space<vmem>>, vector<1x16x32xf32>
    %437 = vector.shape_cast %436 : vector<1x16x32xf32> to vector<16x32xf32>
    %438 = arith.mulf %435, %434 : vector<1x32xf32>
    %cst_219 = arith.constant dense<0.000000e+00> : vector<1xf32>
    %439 = vector.multi_reduction <add>, %438, %cst_219 [1] : vector<1x32xf32> to vector<1xf32>
    %440 = vector.shape_cast %439 : vector<1xf32> to vector<1x1xf32>
    %cst_220 = arith.constant 14.2857141 : f32
    %441 = vector.broadcast %cst_220 : f32 to vector<1x1xf32>
    %442 = arith.mulf %440, %441 : vector<1x1xf32>
    %443 = vector.broadcast %434 : vector<1x32xf32> to vector<16x32xf32>
    %444 = arith.mulf %437, %443 : vector<16x32xf32>
    %cst_221 = arith.constant dense<0.000000e+00> : vector<16xf32>
    %445 = vector.multi_reduction <add>, %444, %cst_221 [1] : vector<16x32xf32> to vector<16xf32>
    %446 = vector.shape_cast %445 : vector<16xf32> to vector<16x1xf32>
    %cst_222 = arith.constant 14.2857141 : f32
    %447 = vector.broadcast %cst_222 : f32 to vector<16x1xf32>
    %448 = arith.mulf %446, %447 : vector<16x1xf32>
    %cst_223 = arith.constant dense<0xFF800000> : vector<1xf32>
    %449 = vector.multi_reduction <maximumf>, %448, %cst_223 [0] : vector<16x1xf32> to vector<1xf32>
    %450 = vector.shape_cast %449 : vector<1xf32> to vector<1x1xf32>
    %451 = arith.maximumf %442, %450 : vector<1x1xf32>
    %452 = arith.subf %442, %451 : vector<1x1xf32>
    %453 = math.exp %452 : vector<1x1xf32>
    %454 = vector.broadcast %451 : vector<1x1xf32> to vector<16x1xf32>
    %455 = arith.subf %448, %454 : vector<16x1xf32>
    %456 = math.exp %455 : vector<16x1xf32>
    %cst_224 = arith.constant dense<0.000000e+00> : vector<1xf32>
    %457 = vector.multi_reduction <add>, %456, %cst_224 [0] : vector<16x1xf32> to vector<1xf32>
    %458 = vector.shape_cast %457 : vector<1xf32> to vector<1x1xf32>
    %459 = arith.addf %453, %458 : vector<1x1xf32>
    %460 = math.log %459 : vector<1x1xf32>
    %461 = arith.addf %451, %460 : vector<1x1xf32>
    %462 = arith.subf %461, %442 : vector<1x1xf32>
    %463 = arith.addf %433, %462 : vector<1x1xf32>
    %464 = vector.extract_strided_slice %190 {offsets = [9, 0], sizes = [1, 32], strides = [1, 1]} : vector<10x32xf32> to vector<1x32xf32>
    %c7_225 = arith.constant 7 : index
    %c0_226 = arith.constant 0 : index
    %465 = vector.load %arg8[%c7_225, %c0_226] : memref<8x32xf32, #tpu.memory_space<vmem>>, vector<1x32xf32>
    %c7_227 = arith.constant 7 : index
    %c0_228 = arith.constant 0 : index
    %c0_229 = arith.constant 0 : index
    %466 = vector.load %arg9[%c7_227, %c0_228, %c0_229] : memref<8x16x32xf32, #tpu.memory_space<vmem>>, vector<1x16x32xf32>
    %467 = vector.shape_cast %466 : vector<1x16x32xf32> to vector<16x32xf32>
    %468 = arith.mulf %465, %464 : vector<1x32xf32>
    %cst_230 = arith.constant dense<0.000000e+00> : vector<1xf32>
    %469 = vector.multi_reduction <add>, %468, %cst_230 [1] : vector<1x32xf32> to vector<1xf32>
    %470 = vector.shape_cast %469 : vector<1xf32> to vector<1x1xf32>
    %cst_231 = arith.constant 14.2857141 : f32
    %471 = vector.broadcast %cst_231 : f32 to vector<1x1xf32>
    %472 = arith.mulf %470, %471 : vector<1x1xf32>
    %473 = vector.broadcast %464 : vector<1x32xf32> to vector<16x32xf32>
    %474 = arith.mulf %467, %473 : vector<16x32xf32>
    %cst_232 = arith.constant dense<0.000000e+00> : vector<16xf32>
    %475 = vector.multi_reduction <add>, %474, %cst_232 [1] : vector<16x32xf32> to vector<16xf32>
    %476 = vector.shape_cast %475 : vector<16xf32> to vector<16x1xf32>
    %cst_233 = arith.constant 14.2857141 : f32
    %477 = vector.broadcast %cst_233 : f32 to vector<16x1xf32>
    %478 = arith.mulf %476, %477 : vector<16x1xf32>
    %cst_234 = arith.constant dense<0xFF800000> : vector<1xf32>
    %479 = vector.multi_reduction <maximumf>, %478, %cst_234 [0] : vector<16x1xf32> to vector<1xf32>
    %480 = vector.shape_cast %479 : vector<1xf32> to vector<1x1xf32>
    %481 = arith.maximumf %472, %480 : vector<1x1xf32>
    %482 = arith.subf %472, %481 : vector<1x1xf32>
    %483 = math.exp %482 : vector<1x1xf32>
    %484 = vector.broadcast %481 : vector<1x1xf32> to vector<16x1xf32>
    %485 = arith.subf %478, %484 : vector<16x1xf32>
    %486 = math.exp %485 : vector<16x1xf32>
    %cst_235 = arith.constant dense<0.000000e+00> : vector<1xf32>
    %487 = vector.multi_reduction <add>, %486, %cst_235 [0] : vector<16x1xf32> to vector<1xf32>
    %488 = vector.shape_cast %487 : vector<1xf32> to vector<1x1xf32>
    %489 = arith.addf %483, %488 : vector<1x1xf32>
    %490 = math.log %489 : vector<1x1xf32>
    %491 = arith.addf %481, %490 : vector<1x1xf32>
    %492 = arith.subf %491, %472 : vector<1x1xf32>
    %493 = arith.addf %463, %492 : vector<1x1xf32>
    %cst_236 = arith.constant 5.000000e-01 : f32
    %494 = vector.broadcast %cst_236 : f32 to vector<1x1xf32>
    %495 = arith.mulf %252, %494 : vector<1x1xf32>
    %c0_237 = arith.constant 0 : index
    %c0_238 = arith.constant 0 : index
    %496 = vector.load %arg11[%c0_237, %c0_238] : memref<2x1xf32, #tpu.memory_space<vmem>>, vector<1x1xf32>
    tpu.vector_store %arg11[%c0_237, %c0_238], %495 {strides = array<i32>} : memref<2x1xf32, #tpu.memory_space<vmem>>, vector<1x1xf32>,
    %cst_239 = arith.constant 1.250000e-01 : f32
    %497 = vector.broadcast %cst_239 : f32 to vector<1x1xf32>
    %498 = arith.mulf %493, %497 : vector<1x1xf32>
    %c1_240 = arith.constant 1 : index
    %c0_241 = arith.constant 0 : index
    %499 = vector.load %arg11[%c1_240, %c0_241] : memref<2x1xf32, #tpu.memory_space<vmem>>, vector<1x1xf32>
    tpu.vector_store %arg11[%c1_240, %c0_241], %498 {strides = array<i32>} : memref<2x1xf32, #tpu.memory_space<vmem>>, vector<1x1xf32>,
    return
  }
}

</mosaic_0001>

<llo_original>
// kernel: forward_train.1
$region0: #{forward_train.1}
  #allocation0 [shape = 'u32[]', space=smem, size = 0x4, offset = 0x4, fixed_abs, tag = 'smem constant byte address 0x4 - core index']
  #allocation1 [shape = 'u32[72,128]{1,0:T(1,128)}', space=vmem, size = 0x9000, scoped, tag = 'internal scratch']
  #allocation2 [shape = 'f32[10,32]{1,0:T(8,128)}', space=vmem, size = 0x2000, scoped, tag = 'scratch operand']
  %s0 = inlined_call_operand.vmem [shape: f32[2,18,18,8], index: 0, kind: input, shape index: {}]
  %s1 = inlined_call_operand.vmem [shape: f32[8,10,10,8], index: 1, kind: input, shape index: {}]
  %s2 = inlined_call_operand.vmem [shape: f32[9,8,32], index: 2, kind: input, shape index: {}]
  %s3 = inlined_call_operand.vmem [shape: f32[1,32], index: 3, kind: input, shape index: {}]
  %s4 = inlined_call_operand.vmem [shape: f32[32,32], index: 4, kind: input, shape index: {}]
  %s5 = inlined_call_operand.vmem [shape: f32[1,32], index: 5, kind: input, shape index: {}]
  %s6 = inlined_call_operand.vmem [shape: f32[2,32], index: 6, kind: input, shape index: {}]
  %s7 = inlined_call_operand.vmem [shape: f32[2,16,32], index: 7, kind: input, shape index: {}]
  %s8 = inlined_call_operand.vmem [shape: f32[8,32], index: 8, kind: input, shape index: {}]
  %s9 = inlined_call_operand.vmem [shape: f32[8,16,32], index: 9, kind: input, shape index: {}]
  %s10 = inlined_call_operand.vmem [shape: f32[10,32], index: 10, kind: output, shape index: {0}]
  %s11 = inlined_call_operand.vmem [shape: f32[2,1], index: 11, kind: output, shape index: {1}]
  %12 = xla_tuple %s10, %s11
  %s13 = sld [smem:[#allocation0]]
  $region58: #{forward_train.1} parent=0
    _
  %s15 = ssub.s32 1, %s13
  %s16 = scalar_select 0, %s15, %s13
  // Predicated region
  $region2: #{forward_train.1} parent=0 // pred_check
    _
  $region3: #{forward_train.1} parent=0 // pred_check_branch
    %18 = sbr.rel (0) target = $region5
  $region4: #{forward_train.1} parent=0 // pred_region
    _
  $region5: #{forward_train.1} parent=0 // pred_fallthru
    _
  // Predicated region
  $region6: #{forward_train.1} parent=0 // pred_check
    _
  $region7: #{forward_train.1} parent=0 // pred_check_branch
    %20 = sbr.rel (0) target = $region9
  $region8: #{forward_train.1} parent=0 // pred_region
    _
  $region9: #{forward_train.1} parent=0 // pred_fallthru
    _
  // Predicated region
  $region10: #{forward_train.1} parent=0 // pred_check
    _
  $region11: #{forward_train.1} parent=0 // pred_check_branch
    %22 = sbr.rel (0) target = $region13
  $region12: #{forward_train.1} parent=0 // pred_region
    _
  $region13: #{forward_train.1} parent=0 // pred_fallthru
    _
  // Predicated region
  $region14: #{forward_train.1} parent=0 // pred_check
    _
  $region15: #{forward_train.1} parent=0 // pred_check_branch
    %24 = sbr.rel (0) target = $region17
  $region16: #{forward_train.1} parent=0 // pred_region
    _
  $region17: #{forward_train.1} parent=0 // pred_fallthru
    _
  // Predicated region
  $region18: #{forward_train.1} parent=0 // pred_check
    _
  $region19: #{forward_train.1} parent=0 // pred_check_branch
    %26 = sbr.rel (0) target = $region21
  $region20: #{forward_train.1} parent=0 // pred_region
    _
  $region21: #{forward_train.1} parent=0 // pred_fallthru
    _
  // Predicated region
  $region22: #{forward_train.1} parent=0 // pred_check
    _
  $region23: #{forward_train.1} parent=0 // pred_check_branch
    %28 = sbr.rel (0) target = $region25
  $region24: #{forward_train.1} parent=0 // pred_region
    _
  $region25: #{forward_train.1} parent=0 // pred_fallthru
    _
  // Predicated region
  $region26: #{forward_train.1} parent=0 // pred_check
    _
  $region27: #{forward_train.1} parent=0 // pred_check_branch
    %30 = sbr.rel (0) target = $region29
  $region28: #{forward_train.1} parent=0 // pred_region
    _
  $region29: #{forward_train.1} parent=0 // pred_fallthru
    _
  // Predicated region
  $region30: #{forward_train.1} parent=0 // pred_check
    _
  $region31: #{forward_train.1} parent=0 // pred_check_branch
    %32 = sbr.rel (0) target = $region33
  $region32: #{forward_train.1} parent=0 // pred_region
    _
  $region33: #{forward_train.1} parent=0 // pred_fallthru
    _
  // Predicated region
  $region34: #{forward_train.1} parent=0 // pred_check
    _
  $region35: #{forward_train.1} parent=0 // pred_check_branch
    %34 = sbr.rel (0) target = $region37
  $region36: #{forward_train.1} parent=0 // pred_region
    _
  $region37: #{forward_train.1} parent=0 // pred_fallthru
    _
  // Predicated region
  $region38: #{forward_train.1} parent=0 // pred_check
    _
  $region39: #{forward_train.1} parent=0 // pred_check_branch
    %36 = sbr.rel (0) target = $region41
  $region40: #{forward_train.1} parent=0 // pred_region
    _
  $region41: #{forward_train.1} parent=0 // pred_fallthru
    _
  %v37 = vld [vmem:[%s3] sm:$0x1]
  %v38 = vld [vmem:[%s0] sm:$0xff]
  %v39 = vld [vmem:[%s0 + $0x8] sm:$0xff]
  %v40 = vld [vmem:[%s0 + $0x10] sm:$0x3]
  %v41 = vld [vmem:[%s0 + $0x18] sm:$0xff]
  %v42 = vld [vmem:[%s0 + $0x20] sm:$0xff]
  %v43 = vld [vmem:[%s0 + $0x28] sm:$0x3]
  %v44 = vld [vmem:[%s0 + $0x30] sm:$0xff]
  %v45 = vld [vmem:[%s0 + $0x38] sm:$0xff]
  %v46 = vld [vmem:[%s0 + $0x40] sm:$0x3]
  %v47 = vld [vmem:[%s0 + $0x48] sm:$0xff]
  %v48 = vld [vmem:[%s0 + $0x50] sm:$0xff]
  %v49 = vld [vmem:[%s0 + $0x58] sm:$0x3]
  %v50 = vld [vmem:[%s0 + $0x60] sm:$0xff]
  %v51 = vld [vmem:[%s0 + $0x68] sm:$0xff]
  %v52 = vld [vmem:[%s0 + $0x70] sm:$0x3]
  %v53 = vld [vmem:[%s0 + $0x78] sm:$0xff]
  %v54 = vld [vmem:[%s0 + $0x80] sm:$0xff]
  %v55 = vld [vmem:[%s0 + $0x88] sm:$0x3]
  %v56 = vld [vmem:[%s0 + $0x90] sm:$0xff]
  %v57 = vld [vmem:[%s0 + $0x98] sm:$0xff]
  %v58 = vld [vmem:[%s0 + $0xa0] sm:$0x3]
  %v59 = vld [vmem:[%s0 + $0xa8] sm:$0xff]
  %v60 = vld [vmem:[%s0 + $0xb0] sm:$0xff]
  %v61 = vld [vmem:[%s0 + $0xb8] sm:$0x3]
  %v62 = vld [vmem:[%s0 + $0xc0] sm:$0xff]
  %v63 = vld [vmem:[%s0 + $0xc8] sm:$0xff]
  %v64 = vld [vmem:[%s0 + $0xd0] sm:$0x3]
  %v65 = vld [vmem:[%s0 + $0xd8] sm:$0xff]
  %v66 = vld [vmem:[%s0 + $0xe0] sm:$0xff]
  %v67 = vld [vmem:[%s0 + $0xe8] sm:$0x3]
  %v68 = vld [vmem:[%s0 + $0xf0] sm:$0xff]
  %v69 = vld [vmem:[%s0 + $0xf8] sm:$0xff]
  %v70 = vld [vmem:[%s0 + $0x100] sm:$0x3]
  %v71 = vld [vmem:[%s0 + $0x108] sm:$0xff]
  %v72 = vld [vmem:[%s0 + $0x110] sm:$0xff]
  %v73 = vld [vmem:[%s0 + $0x118] sm:$0x3]
  %v74 = vld [vmem:[%s0 + $0x120] sm:$0xff]
  %v75 = vld [vmem:[%s0 + $0x128] sm:$0xff]
  %v76 = vld [vmem:[%s0 + $0x130] sm:$0x3]
  %v77 = vld [vmem:[%s0 + $0x138] sm:$0xff]
  %v78 = vld [vmem:[%s0 + $0x140] sm:$0xff]
  %v79 = vld [vmem:[%s0 + $0x148] sm:$0x3]
  %v80 = vld [vmem:[%s0 + $0x150] sm:$0xff]
  %v81 = vld [vmem:[%s0 + $0x158] sm:$0xff]
  %v82 = vld [vmem:[%s0 + $0x160] sm:$0x3]
  %v83 = vld [vmem:[%s0 + $0x168] sm:$0xff]
  %v84 = vld [vmem:[%s0 + $0x170] sm:$0xff]
  %v85 = vld [vmem:[%s0 + $0x178] sm:$0x3]
  %v86 = vld [vmem:[%s0 + $0x180] sm:$0xff]
  %v87 = vld [vmem:[%s0 + $0x188] sm:$0xff]
  %v88 = vld [vmem:[%s0 + $0x190] sm:$0x3]
  %v89 = vld [vmem:[%s0 + $0x198] sm:$0xff]
  %v90 = vld [vmem:[%s0 + $0x1a0] sm:$0xff]
  %v91 = vld [vmem:[%s0 + $0x1a8] sm:$0x3]
  %v92 = vld [vmem:[%s0 + $0x1b0] sm:$0xff]
  %v93 = vld [vmem:[%s0 + $0x1b8] sm:$0xff]
  %v94 = vld [vmem:[%s0 + $0x1c0] sm:$0x3]
  %v95 = vld [vmem:[%s0 + $0x1c8] sm:$0xff]
  %v96 = vld [vmem:[%s0 + $0x1d0] sm:$0xff]
  %v97 = vld [vmem:[%s0 + $0x1d8] sm:$0x3]
  %v98 = vld [vmem:[%s0 + $0x1e0] sm:$0xff]
  %v99 = vld [vmem:[%s0 + $0x1e8] sm:$0xff]
  %v100 = vld [vmem:[%s0 + $0x1f0] sm:$0x3]
  %v101 = vld [vmem:[%s0 + $0x1f8] sm:$0xff]
  %v102 = vld [vmem:[%s0 + $0x200] sm:$0xff]
  %v103 = vld [vmem:[%s0 + $0x208] sm:$0x3]
  %v104 = vld [vmem:[%s0 + $0x210] sm:$0xff]
  %v105 = vld [vmem:[%s0 + $0x218] sm:$0xff]
  %v106 = vld [vmem:[%s0 + $0x220] sm:$0x3]
  %v107 = vld [vmem:[%s0 + $0x228] sm:$0xff]
  %v108 = vld [vmem:[%s0 + $0x230] sm:$0xff]
  %v109 = vld [vmem:[%s0 + $0x238] sm:$0x3]
  %v110 = vld [vmem:[%s0 + $0x240] sm:$0xff]
  %v111 = vld [vmem:[%s0 + $0x248] sm:$0xff]
  %v112 = vld [vmem:[%s0 + $0x250] sm:$0x3]
  %v113 = vld [vmem:[%s0 + $0x258] sm:$0xff]
  %v114 = vld [vmem:[%s0 + $0x260] sm:$0xff]
  %v115 = vld [vmem:[%s0 + $0x268] sm:$0x3]
  %v116 = vld [vmem:[%s0 + $0x270] sm:$0xff]
  %v117 = vld [vmem:[%s0 + $0x278] sm:$0xff]
  %v118 = vld [vmem:[%s0 + $0x280] sm:$0x3]
  %v119 = vld [vmem:[%s0 + $0x288] sm:$0xff]
  %v120 = vld [vmem:[%s0 + $0x290] sm:$0xff]
  %v121 = vld [vmem:[%s0 + $0x298] sm:$0x3]
  %v122 = vld [vmem:[%s0 + $0x2a0] sm:$0xff]
  %v123 = vld [vmem:[%s0 + $0x2a8] sm:$0xff]
  %v124 = vld [vmem:[%s0 + $0x2b0] sm:$0x3]
  %v125 = vld [vmem:[%s0 + $0x2b8] sm:$0xff]
  %v126 = vld [vmem:[%s0 + $0x2c0] sm:$0xff]
  %v127 = vld [vmem:[%s0 + $0x2c8] sm:$0x3]
  %v128 = vld [vmem:[%s0 + $0x2d0] sm:$0xff]
  %v129 = vld [vmem:[%s0 + $0x2d8] sm:$0xff]
  %v130 = vld [vmem:[%s0 + $0x2e0] sm:$0x3]
  %v131 = vld [vmem:[%s0 + $0x2e8] sm:$0xff]
  %v132 = vld [vmem:[%s0 + $0x2f0] sm:$0xff]
  %v133 = vld [vmem:[%s0 + $0x2f8] sm:$0x3]
  %v134 = vld [vmem:[%s0 + $0x300] sm:$0xff]
  %v135 = vld [vmem:[%s0 + $0x308] sm:$0xff]
  %v136 = vld [vmem:[%s0 + $0x310] sm:$0x3]
  %v137 = vld [vmem:[%s0 + $0x318] sm:$0xff]
  %v138 = vld [vmem:[%s0 + $0x320] sm:$0xff]
  %v139 = vld [vmem:[%s0 + $0x328] sm:$0x3]
  %v140 = vld [vmem:[%s0 + $0x330] sm:$0xff]
  %v141 = vld [vmem:[%s0 + $0x338] sm:$0xff]
  %v142 = vld [vmem:[%s0 + $0x340] sm:$0x3]
  %v143 = vld [vmem:[%s0 + $0x348] sm:$0xff]
  %v144 = vld [vmem:[%s0 + $0x350] sm:$0xff]
  %v145 = vld [vmem:[%s0 + $0x358] sm:$0x3]
  %v146 = vld [vmem:[%s2] sm:$0xff]
  %vm243 = vcmask 1046528
  %v244 = vrot.slane %v38, 1
  %v245 = vrot.slane %v39, 1
  %v246 = vsel %vm243, %v244, %v245
  %v247 = vrot.slane %v40, 1
  %v248 = vsel %vm243, %v245, %v247
  %v249 = vrot.slane %v41, 1
  %v250 = vrot.slane %v42, 1
  %v251 = vsel %vm243, %v249, %v250
  %v252 = vrot.slane %v43, 1
  %v253 = vsel %vm243, %v250, %v252
  %v254 = vrot.slane %v44, 1
  %v255 = vrot.slane %v45, 1
  %v256 = vsel %vm243, %v254, %v255
  %v257 = vrot.slane %v46, 1
  %v258 = vsel %vm243, %v255, %v257
  %v259 = vrot.slane %v47, 1
  %v260 = vrot.slane %v48, 1
  %v261 = vsel %vm243, %v259, %v260
  %v262 = vrot.slane %v49, 1
  %v263 = vsel %vm243, %v260, %v262
  %v264 = vrot.slane %v50, 1
  %v265 = vrot.slane %v51, 1
  %v266 = vsel %vm243, %v264, %v265
  %v267 = vrot.slane %v52, 1
  %v268 = vsel %vm243, %v265, %v267
  %v269 = vrot.slane %v53, 1
  %v270 = vrot.slane %v54, 1
  %v271 = vsel %vm243, %v269, %v270
  %v272 = vrot.slane %v55, 1
  %v273 = vsel %vm243, %v270, %v272
  %v274 = vrot.slane %v56, 1
  %v275 = vrot.slane %v57, 1
  %v276 = vsel %vm243, %v274, %v275
  %v277 = vrot.slane %v58, 1
  %v278 = vsel %vm243, %v275, %v277
  %v279 = vrot.slane %v59, 1
  %v280 = vrot.slane %v60, 1
  %v281 = vsel %vm243, %v279, %v280
  %v282 = vrot.slane %v61, 1
  %v283 = vsel %vm243, %v280, %v282
  %v284 = vrot.slane %v62, 1
  %v285 = vrot.slane %v63, 1
  %v286 = vsel %vm243, %v284, %v285
  %v287 = vrot.slane %v64, 1
  %v288 = vsel %vm243, %v285, %v287
  %v289 = vrot.slane %v65, 1
  %v290 = vrot.slane %v66, 1
  %v291 = vsel %vm243, %v289, %v290
  %v292 = vrot.slane %v67, 1
  %v293 = vsel %vm243, %v290, %v292
  %v294 = vrot.slane %v68, 1
  %v295 = vrot.slane %v69, 1
  %v296 = vsel %vm243, %v294, %v295
  %v297 = vrot.slane %v70, 1
  %v298 = vsel %vm243, %v295, %v297
  %v299 = vrot.slane %v71, 1
  %v300 = vrot.slane %v72, 1
  %v301 = vsel %vm243, %v299, %v300
  %v302 = vrot.slane %v73, 1
  %v303 = vsel %vm243, %v300, %v302
  %v304 = vrot.slane %v74, 1
  %v305 = vrot.slane %v75, 1
  %v306 = vsel %vm243, %v304, %v305
  %v307 = vrot.slane %v76, 1
  %v308 = vsel %vm243, %v305, %v307
  %v309 = vrot.slane %v77, 1
  %v310 = vrot.slane %v78, 1
  %v311 = vsel %vm243, %v309, %v310
  %v312 = vrot.slane %v79, 1
  %v313 = vsel %vm243, %v310, %v312
  %v314 = vrot.slane %v80, 1
  %v315 = vrot.slane %v81, 1
  %v316 = vsel %vm243, %v314, %v315
  %v317 = vrot.slane %v82, 1
  %v318 = vsel %vm243, %v315, %v317
  %v319 = vrot.slane %v83, 1
  %v320 = vrot.slane %v84, 1
  %v321 = vsel %vm243, %v319, %v320
  %v322 = vrot.slane %v85, 1
  %v323 = vsel %vm243, %v320, %v322
  %v324 = vrot.slane %v92, 1
  %v325 = vrot.slane %v93, 1
  %v326 = vsel %vm243, %v324, %v325
  %v327 = vrot.slane %v94, 1
  %v328 = vsel %vm243, %v325, %v327
  %v329 = vrot.slane %v95, 1
  %v330 = vrot.slane %v96, 1
  %v331 = vsel %vm243, %v329, %v330
  %v332 = vrot.slane %v97, 1
  %v333 = vsel %vm243, %v330, %v332
  %v334 = vrot.slane %v98, 1
  %v335 = vrot.slane %v99, 1
  %v336 = vsel %vm243, %v334, %v335
  %v337 = vrot.slane %v100, 1
  %v338 = vsel %vm243, %v335, %v337
  %v339 = vrot.slane %v101, 1
  %v340 = vrot.slane %v102, 1
  %v341 = vsel %vm243, %v339, %v340
  %v342 = vrot.slane %v103, 1
  %v343 = vsel %vm243, %v340, %v342
  %v344 = vrot.slane %v104, 1
  %v345 = vrot.slane %v105, 1
  %v346 = vsel %vm243, %v344, %v345
  %v347 = vrot.slane %v106, 1
  %v348 = vsel %vm243, %v345, %v347
  %v349 = vrot.slane %v107, 1
  %v350 = vrot.slane %v108, 1
  %v351 = vsel %vm243, %v349, %v350
  %v352 = vrot.slane %v109, 1
  %v353 = vsel %vm243, %v350, %v352
  %v354 = vrot.slane %v110, 1
  %v355 = vrot.slane %v111, 1
  %v356 = vsel %vm243, %v354, %v355
  %v357 = vrot.slane %v112, 1
  %v358 = vsel %vm243, %v355, %v357
  %v359 = vrot.slane %v113, 1
  %v360 = vrot.slane %v114, 1
  %v361 = vsel %vm243, %v359, %v360
  %v362 = vrot.slane %v115, 1
  %v363 = vsel %vm243, %v360, %v362
  %v364 = vrot.slane %v116, 1
  %v365 = vrot.slane %v117, 1
  %v366 = vsel %vm243, %v364, %v365
  %v367 = vrot.slane %v118, 1
  %v368 = vsel %vm243, %v365, %v367
  %v369 = vrot.slane %v119, 1
  %v370 = vrot.slane %v120, 1
  %v371 = vsel %vm243, %v369, %v370
  %v372 = vrot.slane %v121, 1
  %v373 = vsel %vm243, %v370, %v372
  %v374 = vrot.slane %v122, 1
  %v375 = vrot.slane %v123, 1
  %v376 = vsel %vm243, %v374, %v375
  %v377 = vrot.slane %v124, 1
  %v378 = vsel %vm243, %v375, %v377
  %v379 = vrot.slane %v125, 1
  %v380 = vrot.slane %v126, 1
  %v381 = vsel %vm243, %v379, %v380
  %v382 = vrot.slane %v127, 1
  %v383 = vsel %vm243, %v380, %v382
  %v384 = vrot.slane %v128, 1
  %v385 = vrot.slane %v129, 1
  %v386 = vsel %vm243, %v384, %v385
  %v387 = vrot.slane %v130, 1
  %v388 = vsel %vm243, %v385, %v387
  %v389 = vrot.slane %v131, 1
  %v390 = vrot.slane %v132, 1
  %v391 = vsel %vm243, %v389, %v390
  %v392 = vrot.slane %v133, 1
  %v393 = vsel %vm243, %v390, %v392
  %v394 = vrot.slane %v134, 1
  %v395 = vrot.slane %v135, 1
  %v396 = vsel %vm243, %v394, %v395
  %v397 = vrot.slane %v136, 1
  %v398 = vsel %vm243, %v395, %v397
  %v399 = vrot.slane %v137, 1
  %v400 = vrot.slane %v138, 1
  %v401 = vsel %vm243, %v399, %v400
  %v402 = vrot.slane %v139, 1
  %v403 = vsel %vm243, %v400, %v402
  %s404 = scalar_lea.vmem %s2, 8
  %v405 = vld [vmem:[%s404] sm:$0xff]
  %vm406 = vcmask 64512
  %v407 = vsel %vm406, %v246, 0
  %v409 = vsel %vm406, %v248, 0
  %v411 = vsel %vm406, %v251, 0
  %v413 = vsel %vm406, %v253, 0
  %v415 = vsel %vm406, %v256, 0
  %v417 = vsel %vm406, %v258, 0
  %v419 = vsel %vm406, %v261, 0
  %v421 = vsel %vm406, %v263, 0
  %v423 = vsel %vm406, %v266, 0
  %v425 = vsel %vm406, %v268, 0
  %v427 = vsel %vm406, %v271, 0
  %v429 = vsel %vm406, %v273, 0
  %v431 = vsel %vm406, %v276, 0
  %v433 = vsel %vm406, %v278, 0
  %v435 = vsel %vm406, %v281, 0
  %v437 = vsel %vm406, %v283, 0
  %v439 = vsel %vm406, %v286, 0
  %v441 = vsel %vm406, %v288, 0
  %v443 = vsel %vm406, %v291, 0
  %v445 = vsel %vm406, %v293, 0
  %v447 = vsel %vm406, %v296, 0
  %v449 = vsel %vm406, %v298, 0
  %v451 = vsel %vm406, %v301, 0
  %v453 = vsel %vm406, %v303, 0
  %v455 = vsel %vm406, %v306, 0
  %v457 = vsel %vm406, %v308, 0
  %v459 = vsel %vm406, %v311, 0
  %v461 = vsel %vm406, %v313, 0
  %v463 = vsel %vm406, %v316, 0
  %v465 = vsel %vm406, %v318, 0
  %v467 = vsel %vm406, %v321, 0
  %v469 = vsel %vm406, %v323, 0
  %v471 = vsel %vm406, %v326, 0
  %v473 = vsel %vm406, %v328, 0
  %v475 = vsel %vm406, %v331, 0
  %v477 = vsel %vm406, %v333, 0
  %v479 = vsel %vm406, %v336, 0
  %v481 = vsel %vm406, %v338, 0
  %v483 = vsel %vm406, %v341, 0
  %v485 = vsel %vm406, %v343, 0
  %v487 = vsel %vm406, %v346, 0
  %v489 = vsel %vm406, %v348, 0
  %v491 = vsel %vm406, %v351, 0
  %v493 = vsel %vm406, %v353, 0
  %v495 = vsel %vm406, %v356, 0
  %v497 = vsel %vm406, %v358, 0
  %v499 = vsel %vm406, %v361, 0
  %v501 = vsel %vm406, %v363, 0
  %v503 = vsel %vm406, %v366, 0
  %v505 = vsel %vm406, %v368, 0
  %v507 = vsel %vm406, %v371, 0
  %v509 = vsel %vm406, %v373, 0
  %v511 = vsel %vm406, %v376, 0
  %v513 = vsel %vm406, %v378, 0
  %v515 = vsel %vm406, %v381, 0
  %v517 = vsel %vm406, %v383, 0
  %v519 = vsel %vm406, %v386, 0
  %v521 = vsel %vm406, %v388, 0
  %v523 = vsel %vm406, %v391, 0
  %v525 = vsel %vm406, %v393, 0
  %v527 = vsel %vm406, %v396, 0
  %v529 = vsel %vm406, %v398, 0
  %v531 = vsel %vm406, %v401, 0
  %v533 = vsel %vm406, %v403, 0
  %535 = vmatpush.msra.mxu0 0.0
  %536 = vmatpush.msra.mxu0 0.0
  %537 = vmatpush.msra.mxu0 0.0
  %538 = vmatpush.msra.mxu0 0.0
  %539 = vmatpush.msra.mxu0 0.0
  %540 = vmatpush.msra.mxu0 0.0
  %541 = vmatpush.msra.mxu0 0.0
  %542 = vmatpush.msra.mxu0 0.0
  %543 = vmatpush.msra.mxu0 0.0
  %544 = vmatpush.msra.mxu0 0.0
  %545 = vmatpush.msra.mxu0 0.0
  %546 = vmatpush.msra.mxu0 0.0
  %547 = vmatpush.msra.mxu0 0.0
  %548 = vmatpush.msra.mxu0 0.0
  %549 = vmatpush.msra.mxu0 0.0
  %550 = vmatpush.msra.mxu0 %v405
  %551 = vmatmul.f32.gmra.mxu0 %v407
  %v552 = vpop.f32.mrf.mxu0
  %v553 = vadd.f32 0.0, %v552
  %554 = vmatmul.f32.gmra.mxu0 %v409
  %v555 = vpop.f32.mrf.mxu0
  %v556 = vadd.f32 0.0, %v555
  %557 = vmatmul.f32.gmra.mxu0 %v411
  %v558 = vpop.f32.mrf.mxu0
  %v559 = vadd.f32 0.0, %v558
  %560 = vmatmul.f32.gmra.mxu0 %v413
  %v561 = vpop.f32.mrf.mxu0
  %v562 = vadd.f32 0.0, %v561
  %563 = vmatmul.f32.gmra.mxu0 %v415
  %v564 = vpop.f32.mrf.mxu0
  %v565 = vadd.f32 0.0, %v564
  %566 = vmatmul.f32.gmra.mxu0 %v417
  %v567 = vpop.f32.mrf.mxu0
  %v568 = vadd.f32 0.0, %v567
  %569 = vmatmul.f32.gmra.mxu0 %v419
  %v570 = vpop.f32.mrf.mxu0
  %v571 = vadd.f32 0.0, %v570
  %572 = vmatmul.f32.gmra.mxu0 %v421
  %v573 = vpop.f32.mrf.mxu0
  %v574 = vadd.f32 0.0, %v573
  %575 = vmatmul.f32.gmra.mxu0 %v423
  %v576 = vpop.f32.mrf.mxu0
  %v577 = vadd.f32 0.0, %v576
  %578 = vmatmul.f32.gmra.mxu0 %v425
  %v579 = vpop.f32.mrf.mxu0
  %v580 = vadd.f32 0.0, %v579
  %581 = vmatmul.f32.gmra.mxu0 %v427
  %v582 = vpop.f32.mrf.mxu0
  %v583 = vadd.f32 0.0, %v582
  %584 = vmatmul.f32.gmra.mxu0 %v429
  %v585 = vpop.f32.mrf.mxu0
  %v586 = vadd.f32 0.0, %v585
  %587 = vmatmul.f32.gmra.mxu0 %v431
  %v588 = vpop.f32.mrf.mxu0
  %v589 = vadd.f32 0.0, %v588
  %590 = vmatmul.f32.gmra.mxu0 %v433
  %v591 = vpop.f32.mrf.mxu0
  %v592 = vadd.f32 0.0, %v591
  %593 = vmatmul.f32.gmra.mxu0 %v435
  %v594 = vpop.f32.mrf.mxu0
  %v595 = vadd.f32 0.0, %v594
  %596 = vmatmul.f32.gmra.mxu0 %v437
  %v597 = vpop.f32.mrf.mxu0
  %v598 = vadd.f32 0.0, %v597
  %599 = vmatmul.f32.gmra.mxu0 %v439
  %v600 = vpop.f32.mrf.mxu0
  %v601 = vadd.f32 0.0, %v600
  %602 = vmatmul.f32.gmra.mxu0 %v441
  %v603 = vpop.f32.mrf.mxu0
  %v604 = vadd.f32 0.0, %v603
  %605 = vmatmul.f32.gmra.mxu0 %v443
  %v606 = vpop.f32.mrf.mxu0
  %v607 = vadd.f32 0.0, %v606
  %608 = vmatmul.f32.gmra.mxu0 %v445
  %v609 = vpop.f32.mrf.mxu0
  %v610 = vadd.f32 0.0, %v609
  %611 = vmatmul.f32.gmra.mxu0 %v447
  %v612 = vpop.f32.mrf.mxu0
  %v613 = vadd.f32 0.0, %v612
  %614 = vmatmul.f32.gmra.mxu0 %v449
  %v615 = vpop.f32.mrf.mxu0
  %v616 = vadd.f32 0.0, %v615
  %617 = vmatmul.f32.gmra.mxu0 %v451
  %v618 = vpop.f32.mrf.mxu0
  %v619 = vadd.f32 0.0, %v618
  %620 = vmatmul.f32.gmra.mxu0 %v453
  %v621 = vpop.f32.mrf.mxu0
  %v622 = vadd.f32 0.0, %v621
  %623 = vmatmul.f32.gmra.mxu0 %v455
  %v624 = vpop.f32.mrf.mxu0
  %v625 = vadd.f32 0.0, %v624
  %626 = vmatmul.f32.gmra.mxu0 %v457
  %v627 = vpop.f32.mrf.mxu0
  %v628 = vadd.f32 0.0, %v627
  %629 = vmatmul.f32.gmra.mxu0 %v459
  %v630 = vpop.f32.mrf.mxu0
  %v631 = vadd.f32 0.0, %v630
  %632 = vmatmul.f32.gmra.mxu0 %v461
  %v633 = vpop.f32.mrf.mxu0
  %v634 = vadd.f32 0.0, %v633
  %635 = vmatmul.f32.gmra.mxu0 %v463
  %v636 = vpop.f32.mrf.mxu0
  %v637 = vadd.f32 0.0, %v636
  %638 = vmatmul.f32.gmra.mxu0 %v465
  %v639 = vpop.f32.mrf.mxu0
  %v640 = vadd.f32 0.0, %v639
  %641 = vmatmul.f32.gmra.mxu0 %v467
  %v642 = vpop.f32.mrf.mxu0
  %v643 = vadd.f32 0.0, %v642
  %644 = vmatmul.f32.gmra.mxu0 %v469
  %v645 = vpop.f32.mrf.mxu0
  %v646 = vadd.f32 0.0, %v645
  %647 = vmatmul.f32.gmra.mxu0 %v471
  %v648 = vpop.f32.mrf.mxu0
  %v649 = vadd.f32 0.0, %v648
  %650 = vmatmul.f32.gmra.mxu0 %v473
  %v651 = vpop.f32.mrf.mxu0
  %v652 = vadd.f32 0.0, %v651
  %653 = vmatmul.f32.gmra.mxu0 %v475
  %v654 = vpop.f32.mrf.mxu0
  %v655 = vadd.f32 0.0, %v654
  %656 = vmatmul.f32.gmra.mxu0 %v477
  %v657 = vpop.f32.mrf.mxu0
  %v658 = vadd.f32 0.0, %v657
  %659 = vmatmul.f32.gmra.mxu0 %v479
  %v660 = vpop.f32.mrf.mxu0
  %v661 = vadd.f32 0.0, %v660
  %662 = vmatmul.f32.gmra.mxu0 %v481
  %v663 = vpop.f32.mrf.mxu0
  %v664 = vadd.f32 0.0, %v663
  %665 = vmatmul.f32.gmra.mxu0 %v483
  %v666 = vpop.f32.mrf.mxu0
  %v667 = vadd.f32 0.0, %v666
  %668 = vmatmul.f32.gmra.mxu0 %v485
  %v669 = vpop.f32.mrf.mxu0
  %v670 = vadd.f32 0.0, %v669
  %671 = vmatmul.f32.gmra.mxu0 %v487
  %v672 = vpop.f32.mrf.mxu0
  %v673 = vadd.f32 0.0, %v672
  %674 = vmatmul.f32.gmra.mxu0 %v489
  %v675 = vpop.f32.mrf.mxu0
  %v676 = vadd.f32 0.0, %v675
  %677 = vmatmul.f32.gmra.mxu0 %v491
  %v678 = vpop.f32.mrf.mxu0
  %v679 = vadd.f32 0.0, %v678
  %680 = vmatmul.f32.gmra.mxu0 %v493
  %v681 = vpop.f32.mrf.mxu0
  %v682 = vadd.f32 0.0, %v681
  %683 = vmatmul.f32.gmra.mxu0 %v495
  %v684 = vpop.f32.mrf.mxu0
  %v685 = vadd.f32 0.0, %v684
  %686 = vmatmul.f32.gmra.mxu0 %v497
  %v687 = vpop.f32.mrf.mxu0
  %v688 = vadd.f32 0.0, %v687
  %689 = vmatmul.f32.gmra.mxu0 %v499
  %v690 = vpop.f32.mrf.mxu0
  %v691 = vadd.f32 0.0, %v690
  %692 = vmatmul.f32.gmra.mxu0 %v501
  %v693 = vpop.f32.mrf.mxu0
  %v694 = vadd.f32 0.0, %v693
  %695 = vmatmul.f32.gmra.mxu0 %v503
  %v696 = vpop.f32.mrf.mxu0
  %v697 = vadd.f32 0.0, %v696
  %698 = vmatmul.f32.gmra.mxu0 %v505
  %v699 = vpop.f32.mrf.mxu0
  %v700 = vadd.f32 0.0, %v699
  %701 = vmatmul.f32.gmra.mxu0 %v507
  %v702 = vpop.f32.mrf.mxu0
  %v703 = vadd.f32 0.0, %v702
  %704 = vmatmul.f32.gmra.mxu0 %v509
  %v705 = vpop.f32.mrf.mxu0
  %v706 = vadd.f32 0.0, %v705
  %707 = vmatmul.f32.gmra.mxu0 %v511
  %v708 = vpop.f32.mrf.mxu0
  %v709 = vadd.f32 0.0, %v708
  %710 = vmatmul.f32.gmra.mxu0 %v513
  %v711 = vpop.f32.mrf.mxu0
  %v712 = vadd.f32 0.0, %v711
  %713 = vmatmul.f32.gmra.mxu0 %v515
  %v714 = vpop.f32.mrf.mxu0
  %v715 = vadd.f32 0.0, %v714
  %716 = vmatmul.f32.gmra.mxu0 %v517
  %v717 = vpop.f32.mrf.mxu0
  %v718 = vadd.f32 0.0, %v717
  %719 = vmatmul.f32.gmra.mxu0 %v519
  %v720 = vpop.f32.mrf.mxu0
  %v721 = vadd.f32 0.0, %v720
  %722 = vmatmul.f32.gmra.mxu0 %v521
  %v723 = vpop.f32.mrf.mxu0
  %v724 = vadd.f32 0.0, %v723
  %725 = vmatmul.f32.gmra.mxu0 %v523
  %v726 = vpop.f32.mrf.mxu0
  %v727 = vadd.f32 0.0, %v726
  %728 = vmatmul.f32.gmra.mxu0 %v525
  %v729 = vpop.f32.mrf.mxu0
  %v730 = vadd.f32 0.0, %v729
  %731 = vmatmul.f32.gmra.mxu0 %v527
  %v732 = vpop.f32.mrf.mxu0
  %v733 = vadd.f32 0.0, %v732
  %734 = vmatmul.f32.gmra.mxu0 %v529
  %v735 = vpop.f32.mrf.mxu0
  %v736 = vadd.f32 0.0, %v735
  %737 = vmatmul.f32.gmra.mxu0 %v531
  %v738 = vpop.f32.mrf.mxu0
  %v739 = vadd.f32 0.0, %v738
  %740 = vmatmul.f32.gmra.mxu0 %v533
  %v741 = vpop.f32.mrf.mxu0
  %v742 = vadd.f32 0.0, %v741
  %743 = vdwg.mxu0
  %v744 = vsel %vm406, %v38, 0
  %v746 = vsel %vm406, %v39, 0
  %v748 = vsel %vm406, %v41, 0
  %v750 = vsel %vm406, %v42, 0
  %v752 = vsel %vm406, %v44, 0
  %v754 = vsel %vm406, %v45, 0
  %v756 = vsel %vm406, %v47, 0
  %v758 = vsel %vm406, %v48, 0
  %v760 = vsel %vm406, %v50, 0
  %v762 = vsel %vm406, %v51, 0
  %v764 = vsel %vm406, %v53, 0
  %v766 = vsel %vm406, %v54, 0
  %v768 = vsel %vm406, %v56, 0
  %v770 = vsel %vm406, %v57, 0
  %v772 = vsel %vm406, %v59, 0
  %v774 = vsel %vm406, %v60, 0
  %v776 = vsel %vm406, %v62, 0
  %v778 = vsel %vm406, %v63, 0
  %v780 = vsel %vm406, %v65, 0
  %v782 = vsel %vm406, %v66, 0
  %v784 = vsel %vm406, %v68, 0
  %v786 = vsel %vm406, %v69, 0
  %v788 = vsel %vm406, %v71, 0
  %v790 = vsel %vm406, %v72, 0
  %v792 = vsel %vm406, %v74, 0
  %v794 = vsel %vm406, %v75, 0
  %v796 = vsel %vm406, %v77, 0
  %v798 = vsel %vm406, %v78, 0
  %v800 = vsel %vm406, %v80, 0
  %v802 = vsel %vm406, %v81, 0
  %v804 = vsel %vm406, %v83, 0
  %v806 = vsel %vm406, %v84, 0
  %v808 = vsel %vm406, %v92, 0
  %v810 = vsel %vm406, %v93, 0
  %v812 = vsel %vm406, %v95, 0
  %v814 = vsel %vm406, %v96, 0
  %v816 = vsel %vm406, %v98, 0
  %v818 = vsel %vm406, %v99, 0
  %v820 = vsel %vm406, %v101, 0
  %v822 = vsel %vm406, %v102, 0
  %v824 = vsel %vm406, %v104, 0
  %v826 = vsel %vm406, %v105, 0
  %v828 = vsel %vm406, %v107, 0
  %v830 = vsel %vm406, %v108, 0
  %v832 = vsel %vm406, %v110, 0
  %v834 = vsel %vm406, %v111, 0
  %v836 = vsel %vm406, %v113, 0
  %v838 = vsel %vm406, %v114, 0
  %v840 = vsel %vm406, %v116, 0
  %v842 = vsel %vm406, %v117, 0
  %v844 = vsel %vm406, %v119, 0
  %v846 = vsel %vm406, %v120, 0
  %v848 = vsel %vm406, %v122, 0
  %v850 = vsel %vm406, %v123, 0
  %v852 = vsel %vm406, %v125, 0
  %v854 = vsel %vm406, %v126, 0
  %v856 = vsel %vm406, %v128, 0
  %v858 = vsel %vm406, %v129, 0
  %v860 = vsel %vm406, %v131, 0
  %v862 = vsel %vm406, %v132, 0
  %v864 = vsel %vm406, %v134, 0
  %v866 = vsel %vm406, %v135, 0
  %v868 = vsel %vm406, %v137, 0
  %v870 = vsel %vm406, %v138, 0
  %872 = vmatpush.msra.mxu0 0.0
  %873 = vmatpush.msra.mxu0 0.0
  %874 = vmatpush.msra.mxu0 0.0
  %875 = vmatpush.msra.mxu0 0.0
  %876 = vmatpush.msra.mxu0 0.0
  %877 = vmatpush.msra.mxu0 0.0
  %878 = vmatpush.msra.mxu0 0.0
  %879 = vmatpush.msra.mxu0 0.0
  %880 = vmatpush.msra.mxu0 0.0
  %881 = vmatpush.msra.mxu0 0.0
  %882 = vmatpush.msra.mxu0 0.0
  %883 = vmatpush.msra.mxu0 0.0
  %884 = vmatpush.msra.mxu0 0.0
  %885 = vmatpush.msra.mxu0 0.0
  %886 = vmatpush.msra.mxu0 0.0
  %887 = vmatpush.msra.mxu0 %v146
  %888 = vmatmul.f32.gmra.mxu0 %v744
  %v889 = vpop.f32.mrf.mxu0
  %v890 = vadd.f32 %v553, %v889
  %891 = vmatmul.f32.gmra.mxu0 %v746
  %v892 = vpop.f32.mrf.mxu0
  %v893 = vadd.f32 %v556, %v892
  %894 = vmatmul.f32.gmra.mxu0 %v748
  %v895 = vpop.f32.mrf.mxu0
  %v896 = vadd.f32 %v559, %v895
  %897 = vmatmul.f32.gmra.mxu0 %v750
  %v898 = vpop.f32.mrf.mxu0
  %v899 = vadd.f32 %v562, %v898
  %900 = vmatmul.f32.gmra.mxu0 %v752
  %v901 = vpop.f32.mrf.mxu0
  %v902 = vadd.f32 %v565, %v901
  %903 = vmatmul.f32.gmra.mxu0 %v754
  %v904 = vpop.f32.mrf.mxu0
  %v905 = vadd.f32 %v568, %v904
  %906 = vmatmul.f32.gmra.mxu0 %v756
  %v907 = vpop.f32.mrf.mxu0
  %v908 = vadd.f32 %v571, %v907
  %909 = vmatmul.f32.gmra.mxu0 %v758
  %v910 = vpop.f32.mrf.mxu0
  %v911 = vadd.f32 %v574, %v910
  %912 = vmatmul.f32.gmra.mxu0 %v760
  %v913 = vpop.f32.mrf.mxu0
  %v914 = vadd.f32 %v577, %v913
  %915 = vmatmul.f32.gmra.mxu0 %v762
  %v916 = vpop.f32.mrf.mxu0
  %v917 = vadd.f32 %v580, %v916
  %918 = vmatmul.f32.gmra.mxu0 %v764
  %v919 = vpop.f32.mrf.mxu0
  %v920 = vadd.f32 %v583, %v919
  %921 = vmatmul.f32.gmra.mxu0 %v766
  %v922 = vpop.f32.mrf.mxu0
  %v923 = vadd.f32 %v586, %v922
  %924 = vmatmul.f32.gmra.mxu0 %v768
  %v925 = vpop.f32.mrf.mxu0
  %v926 = vadd.f32 %v589, %v925
  %927 = vmatmul.f32.gmra.mxu0 %v770
  %v928 = vpop.f32.mrf.mxu0
  %v929 = vadd.f32 %v592, %v928
  %930 = vmatmul.f32.gmra.mxu0 %v772
  %v931 = vpop.f32.mrf.mxu0
  %v932 = vadd.f32 %v595, %v931
  %933 = vmatmul.f32.gmra.mxu0 %v774
  %v934 = vpop.f32.mrf.mxu0
  %v935 = vadd.f32 %v598, %v934
  %936 = vmatmul.f32.gmra.mxu0 %v776
  %v937 = vpop.f32.mrf.mxu0
  %v938 = vadd.f32 %v601, %v937
  %939 = vmatmul.f32.gmra.mxu0 %v778
  %v940 = vpop.f32.mrf.mxu0
  %v941 = vadd.f32 %v604, %v940
  %942 = vmatmul.f32.gmra.mxu0 %v780
  %v943 = vpop.f32.mrf.mxu0
  %v944 = vadd.f32 %v607, %v943
  %945 = vmatmul.f32.gmra.mxu0 %v782
  %v946 = vpop.f32.mrf.mxu0
  %v947 = vadd.f32 %v610, %v946
  %948 = vmatmul.f32.gmra.mxu0 %v784
  %v949 = vpop.f32.mrf.mxu0
  %v950 = vadd.f32 %v613, %v949
  %951 = vmatmul.f32.gmra.mxu0 %v786
  %v952 = vpop.f32.mrf.mxu0
  %v953 = vadd.f32 %v616, %v952
  %954 = vmatmul.f32.gmra.mxu0 %v788
  %v955 = vpop.f32.mrf.mxu0
  %v956 = vadd.f32 %v619, %v955
  %957 = vmatmul.f32.gmra.mxu0 %v790
  %v958 = vpop.f32.mrf.mxu0
  %v959 = vadd.f32 %v622, %v958
  %960 = vmatmul.f32.gmra.mxu0 %v792
  %v961 = vpop.f32.mrf.mxu0
  %v962 = vadd.f32 %v625, %v961
  %963 = vmatmul.f32.gmra.mxu0 %v794
  %v964 = vpop.f32.mrf.mxu0
  %v965 = vadd.f32 %v628, %v964
  %966 = vmatmul.f32.gmra.mxu0 %v796
  %v967 = vpop.f32.mrf.mxu0
  %v968 = vadd.f32 %v631, %v967
  %969 = vmatmul.f32.gmra.mxu0 %v798
  %v970 = vpop.f32.mrf.mxu0
  %v971 = vadd.f32 %v634, %v970
  %972 = vmatmul.f32.gmra.mxu0 %v800
  %v973 = vpop.f32.mrf.mxu0
  %v974 = vadd.f32 %v637, %v973
  %975 = vmatmul.f32.gmra.mxu0 %v802
  %v976 = vpop.f32.mrf.mxu0
  %v977 = vadd.f32 %v640, %v976
  %978 = vmatmul.f32.gmra.mxu0 %v804
  %v979 = vpop.f32.mrf.mxu0
  %v980 = vadd.f32 %v643, %v979
  %981 = vmatmul.f32.gmra.mxu0 %v806
  %v982 = vpop.f32.mrf.mxu0
  %v983 = vadd.f32 %v646, %v982
  %984 = vmatmul.f32.gmra.mxu0 %v808
  %v985 = vpop.f32.mrf.mxu0
  %v986 = vadd.f32 %v649, %v985
  %987 = vmatmul.f32.gmra.mxu0 %v810
  %v988 = vpop.f32.mrf.mxu0
  %v989 = vadd.f32 %v652, %v988
  %990 = vmatmul.f32.gmra.mxu0 %v812
  %v991 = vpop.f32.mrf.mxu0
  %v992 = vadd.f32 %v655, %v991
  %993 = vmatmul.f32.gmra.mxu0 %v814
  %v994 = vpop.f32.mrf.mxu0
  %v995 = vadd.f32 %v658, %v994
  %996 = vmatmul.f32.gmra.mxu0 %v816
  %v997 = vpop.f32.mrf.mxu0
  %v998 = vadd.f32 %v661, %v997
  %999 = vmatmul.f32.gmra.mxu0 %v818
  %v1000 = vpop.f32.mrf.mxu0
  %v1001 = vadd.f32 %v664, %v1000
  %1002 = vmatmul.f32.gmra.mxu0 %v820
  %v1003 = vpop.f32.mrf.mxu0
  %v1004 = vadd.f32 %v667, %v1003
  %1005 = vmatmul.f32.gmra.mxu0 %v822
  %v1006 = vpop.f32.mrf.mxu0
  %v1007 = vadd.f32 %v670, %v1006
  %1008 = vmatmul.f32.gmra.mxu0 %v824
  %v1009 = vpop.f32.mrf.mxu0
  %v1010 = vadd.f32 %v673, %v1009
  %1011 = vmatmul.f32.gmra.mxu0 %v826
  %v1012 = vpop.f32.mrf.mxu0
  %v1013 = vadd.f32 %v676, %v1012
  %1014 = vmatmul.f32.gmra.mxu0 %v828
  %v1015 = vpop.f32.mrf.mxu0
  %v1016 = vadd.f32 %v679, %v1015
  %1017 = vmatmul.f32.gmra.mxu0 %v830
  %v1018 = vpop.f32.mrf.mxu0
  %v1019 = vadd.f32 %v682, %v1018
  %1020 = vmatmul.f32.gmra.mxu0 %v832
  %v1021 = vpop.f32.mrf.mxu0
  %v1022 = vadd.f32 %v685, %v1021
  %1023 = vmatmul.f32.gmra.mxu0 %v834
  %v1024 = vpop.f32.mrf.mxu0
  %v1025 = vadd.f32 %v688, %v1024
  %1026 = vmatmul.f32.gmra.mxu0 %v836
  %v1027 = vpop.f32.mrf.mxu0
  %v1028 = vadd.f32 %v691, %v1027
  %1029 = vmatmul.f32.gmra.mxu0 %v838
  %v1030 = vpop.f32.mrf.mxu0
  %v1031 = vadd.f32 %v694, %v1030
  %1032 = vmatmul.f32.gmra.mxu0 %v840
  %v1033 = vpop.f32.mrf.mxu0
  %v1034 = vadd.f32 %v697, %v1033
  %1035 = vmatmul.f32.gmra.mxu0 %v842
  %v1036 = vpop.f32.mrf.mxu0
  %v1037 = vadd.f32 %v700, %v1036
  %1038 = vmatmul.f32.gmra.mxu0 %v844
  %v1039 = vpop.f32.mrf.mxu0
  %v1040 = vadd.f32 %v703, %v1039
  %1041 = vmatmul.f32.gmra.mxu0 %v846
  %v1042 = vpop.f32.mrf.mxu0
  %v1043 = vadd.f32 %v706, %v1042
  %1044 = vmatmul.f32.gmra.mxu0 %v848
  %v1045 = vpop.f32.mrf.mxu0
  %v1046 = vadd.f32 %v709, %v1045
  %1047 = vmatmul.f32.gmra.mxu0 %v850
  %v1048 = vpop.f32.mrf.mxu0
  %v1049 = vadd.f32 %v712, %v1048
  %1050 = vmatmul.f32.gmra.mxu0 %v852
  %v1051 = vpop.f32.mrf.mxu0
  %v1052 = vadd.f32 %v715, %v1051
  %1053 = vmatmul.f32.gmra.mxu0 %v854
  %v1054 = vpop.f32.mrf.mxu0
  %v1055 = vadd.f32 %v718, %v1054
  %1056 = vmatmul.f32.gmra.mxu0 %v856
  %v1057 = vpop.f32.mrf.mxu0
  %v1058 = vadd.f32 %v721, %v1057
  %1059 = vmatmul.f32.gmra.mxu0 %v858
  %v1060 = vpop.f32.mrf.mxu0
  %v1061 = vadd.f32 %v724, %v1060
  %1062 = vmatmul.f32.gmra.mxu0 %v860
  %v1063 = vpop.f32.mrf.mxu0
  %v1064 = vadd.f32 %v727, %v1063
  %1065 = vmatmul.f32.gmra.mxu0 %v862
  %v1066 = vpop.f32.mrf.mxu0
  %v1067 = vadd.f32 %v730, %v1066
  %1068 = vmatmul.f32.gmra.mxu0 %v864
  %v1069 = vpop.f32.mrf.mxu0
  %v1070 = vadd.f32 %v733, %v1069
  %1071 = vmatmul.f32.gmra.mxu0 %v866
  %v1072 = vpop.f32.mrf.mxu0
  %v1073 = vadd.f32 %v736, %v1072
  %1074 = vmatmul.f32.gmra.mxu0 %v868
  %v1075 = vpop.f32.mrf.mxu0
  %v1076 = vadd.f32 %v739, %v1075
  %1077 = vmatmul.f32.gmra.mxu0 %v870
  %v1078 = vpop.f32.mrf.mxu0
  %v1079 = vadd.f32 %v742, %v1078
  %1080 = vdwg.mxu0
  %vm1081 = vcmask 1045504
  %v1082 = vrot.slane %v38, 2
  %v1083 = vrot.slane %v39, 2
  %v1084 = vsel %vm1081, %v1082, %v1083
  %v1085 = vrot.slane %v40, 2
  %v1086 = vsel %vm1081, %v1083, %v1085
  %v1087 = vrot.slane %v41, 2
  %v1088 = vrot.slane %v42, 2
  %v1089 = vsel %vm1081, %v1087, %v1088
  %v1090 = vrot.slane %v43, 2
  %v1091 = vsel %vm1081, %v1088, %v1090
  %v1092 = vrot.slane %v44, 2
  %v1093 = vrot.slane %v45, 2
  %v1094 = vsel %vm1081, %v1092, %v1093
  %v1095 = vrot.slane %v46, 2
  %v1096 = vsel %vm1081, %v1093, %v1095
  %v1097 = vrot.slane %v47, 2
  %v1098 = vrot.slane %v48, 2
  %v1099 = vsel %vm1081, %v1097, %v1098
  %v1100 = vrot.slane %v49, 2
  %v1101 = vsel %vm1081, %v1098, %v1100
  %v1102 = vrot.slane %v50, 2
  %v1103 = vrot.slane %v51, 2
  %v1104 = vsel %vm1081, %v1102, %v1103
  %v1105 = vrot.slane %v52, 2
  %v1106 = vsel %vm1081, %v1103, %v1105
  %v1107 = vrot.slane %v53, 2
  %v1108 = vrot.slane %v54, 2
  %v1109 = vsel %vm1081, %v1107, %v1108
  %v1110 = vrot.slane %v55, 2
  %v1111 = vsel %vm1081, %v1108, %v1110
  %v1112 = vrot.slane %v56, 2
  %v1113 = vrot.slane %v57, 2
  %v1114 = vsel %vm1081, %v1112, %v1113
  %v1115 = vrot.slane %v58, 2
  %v1116 = vsel %vm1081, %v1113, %v1115
  %v1117 = vrot.slane %v59, 2
  %v1118 = vrot.slane %v60, 2
  %v1119 = vsel %vm1081, %v1117, %v1118
  %v1120 = vrot.slane %v61, 2
  %v1121 = vsel %vm1081, %v1118, %v1120
  %v1122 = vrot.slane %v62, 2
  %v1123 = vrot.slane %v63, 2
  %v1124 = vsel %vm1081, %v1122, %v1123
  %v1125 = vrot.slane %v64, 2
  %v1126 = vsel %vm1081, %v1123, %v1125
  %v1127 = vrot.slane %v65, 2
  %v1128 = vrot.slane %v66, 2
  %v1129 = vsel %vm1081, %v1127, %v1128
  %v1130 = vrot.slane %v67, 2
  %v1131 = vsel %vm1081, %v1128, %v1130
  %v1132 = vrot.slane %v68, 2
  %v1133 = vrot.slane %v69, 2
  %v1134 = vsel %vm1081, %v1132, %v1133
  %v1135 = vrot.slane %v70, 2
  %v1136 = vsel %vm1081, %v1133, %v1135
  %v1137 = vrot.slane %v71, 2
  %v1138 = vrot.slane %v72, 2
  %v1139 = vsel %vm1081, %v1137, %v1138
  %v1140 = vrot.slane %v73, 2
  %v1141 = vsel %vm1081, %v1138, %v1140
  %v1142 = vrot.slane %v74, 2
  %v1143 = vrot.slane %v75, 2
  %v1144 = vsel %vm1081, %v1142, %v1143
  %v1145 = vrot.slane %v76, 2
  %v1146 = vsel %vm1081, %v1143, %v1145
  %v1147 = vrot.slane %v77, 2
  %v1148 = vrot.slane %v78, 2
  %v1149 = vsel %vm1081, %v1147, %v1148
  %v1150 = vrot.slane %v79, 2
  %v1151 = vsel %vm1081, %v1148, %v1150
  %v1152 = vrot.slane %v80, 2
  %v1153 = vrot.slane %v81, 2
  %v1154 = vsel %vm1081, %v1152, %v1153
  %v1155 = vrot.slane %v82, 2
  %v1156 = vsel %vm1081, %v1153, %v1155
  %v1157 = vrot.slane %v83, 2
  %v1158 = vrot.slane %v84, 2
  %v1159 = vsel %vm1081, %v1157, %v1158
  %v1160 = vrot.slane %v85, 2
  %v1161 = vsel %vm1081, %v1158, %v1160
  %v1162 = vrot.slane %v92, 2
  %v1163 = vrot.slane %v93, 2
  %v1164 = vsel %vm1081, %v1162, %v1163
  %v1165 = vrot.slane %v94, 2
  %v1166 = vsel %vm1081, %v1163, %v1165
  %v1167 = vrot.slane %v95, 2
  %v1168 = vrot.slane %v96, 2
  %v1169 = vsel %vm1081, %v1167, %v1168
  %v1170 = vrot.slane %v97, 2
  %v1171 = vsel %vm1081, %v1168, %v1170
  %v1172 = vrot.slane %v98, 2
  %v1173 = vrot.slane %v99, 2
  %v1174 = vsel %vm1081, %v1172, %v1173
  %v1175 = vrot.slane %v100, 2
  %v1176 = vsel %vm1081, %v1173, %v1175
  %v1177 = vrot.slane %v101, 2
  %v1178 = vrot.slane %v102, 2
  %v1179 = vsel %vm1081, %v1177, %v1178
  %v1180 = vrot.slane %v103, 2
  %v1181 = vsel %vm1081, %v1178, %v1180
  %v1182 = vrot.slane %v104, 2
  %v1183 = vrot.slane %v105, 2
  %v1184 = vsel %vm1081, %v1182, %v1183
  %v1185 = vrot.slane %v106, 2
  %v1186 = vsel %vm1081, %v1183, %v1185
  %v1187 = vrot.slane %v107, 2
  %v1188 = vrot.slane %v108, 2
  %v1189 = vsel %vm1081, %v1187, %v1188
  %v1190 = vrot.slane %v109, 2
  %v1191 = vsel %vm1081, %v1188, %v1190
  %v1192 = vrot.slane %v110, 2
  %v1193 = vrot.slane %v111, 2
  %v1194 = vsel %vm1081, %v1192, %v1193
  %v1195 = vrot.slane %v112, 2
  %v1196 = vsel %vm1081, %v1193, %v1195
  %v1197 = vrot.slane %v113, 2
  %v1198 = vrot.slane %v114, 2
  %v1199 = vsel %vm1081, %v1197, %v1198
  %v1200 = vrot.slane %v115, 2
  %v1201 = vsel %vm1081, %v1198, %v1200
  %v1202 = vrot.slane %v116, 2
  %v1203 = vrot.slane %v117, 2
  %v1204 = vsel %vm1081, %v1202, %v1203
  %v1205 = vrot.slane %v118, 2
  %v1206 = vsel %vm1081, %v1203, %v1205
  %v1207 = vrot.slane %v119, 2
  %v1208 = vrot.slane %v120, 2
  %v1209 = vsel %vm1081, %v1207, %v1208
  %v1210 = vrot.slane %v121, 2
  %v1211 = vsel %vm1081, %v1208, %v1210
  %v1212 = vrot.slane %v122, 2
  %v1213 = vrot.slane %v123, 2
  %v1214 = vsel %vm1081, %v1212, %v1213
  %v1215 = vrot.slane %v124, 2
  %v1216 = vsel %vm1081, %v1213, %v1215
  %v1217 = vrot.slane %v125, 2
  %v1218 = vrot.slane %v126, 2
  %v1219 = vsel %vm1081, %v1217, %v1218
  %v1220 = vrot.slane %v127, 2
  %v1221 = vsel %vm1081, %v1218, %v1220
  %v1222 = vrot.slane %v128, 2
  %v1223 = vrot.slane %v129, 2
  %v1224 = vsel %vm1081, %v1222, %v1223
  %v1225 = vrot.slane %v130, 2
  %v1226 = vsel %vm1081, %v1223, %v1225
  %v1227 = vrot.slane %v131, 2
  %v1228 = vrot.slane %v132, 2
  %v1229 = vsel %vm1081, %v1227, %v1228
  %v1230 = vrot.slane %v133, 2
  %v1231 = vsel %vm1081, %v1228, %v1230
  %v1232 = vrot.slane %v134, 2
  %v1233 = vrot.slane %v135, 2
  %v1234 = vsel %vm1081, %v1232, %v1233
  %v1235 = vrot.slane %v136, 2
  %v1236 = vsel %vm1081, %v1233, %v1235
  %v1237 = vrot.slane %v137, 2
  %v1238 = vrot.slane %v138, 2
  %v1239 = vsel %vm1081, %v1237, %v1238
  %v1240 = vrot.slane %v139, 2
  %v1241 = vsel %vm1081, %v1238, %v1240
  %s1242 = scalar_lea.vmem %s2, 16
  %v1243 = vld [vmem:[%s1242] sm:$0xff]
  %v1244 = vsel %vm406, %v1084, 0
  %v1246 = vsel %vm406, %v1086, 0
  %v1248 = vsel %vm406, %v1089, 0
  %v1250 = vsel %vm406, %v1091, 0
  %v1252 = vsel %vm406, %v1094, 0
  %v1254 = vsel %vm406, %v1096, 0
  %v1256 = vsel %vm406, %v1099, 0
  %v1258 = vsel %vm406, %v1101, 0
  %v1260 = vsel %vm406, %v1104, 0
  %v1262 = vsel %vm406, %v1106, 0
  %v1264 = vsel %vm406, %v1109, 0
  %v1266 = vsel %vm406, %v1111, 0
  %v1268 = vsel %vm406, %v1114, 0
  %v1270 = vsel %vm406, %v1116, 0
  %v1272 = vsel %vm406, %v1119, 0
  %v1274 = vsel %vm406, %v1121, 0
  %v1276 = vsel %vm406, %v1124, 0
  %v1278 = vsel %vm406, %v1126, 0
  %v1280 = vsel %vm406, %v1129, 0
  %v1282 = vsel %vm406, %v1131, 0
  %v1284 = vsel %vm406, %v1134, 0
  %v1286 = vsel %vm406, %v1136, 0
  %v1288 = vsel %vm406, %v1139, 0
  %v1290 = vsel %vm406, %v1141, 0
  %v1292 = vsel %vm406, %v1144, 0
  %v1294 = vsel %vm406, %v1146, 0
  %v1296 = vsel %vm406, %v1149, 0
  %v1298 = vsel %vm406, %v1151, 0
  %v1300 = vsel %vm406, %v1154, 0
  %v1302 = vsel %vm406, %v1156, 0
  %v1304 = vsel %vm406, %v1159, 0
  %v1306 = vsel %vm406, %v1161, 0
  %v1308 = vsel %vm406, %v1164, 0
  %v1310 = vsel %vm406, %v1166, 0
  %v1312 = vsel %vm406, %v1169, 0
  %v1314 = vsel %vm406, %v1171, 0
  %v1316 = vsel %vm406, %v1174, 0
  %v1318 = vsel %vm406, %v1176, 0
  %v1320 = vsel %vm406, %v1179, 0
  %v1322 = vsel %vm406, %v1181, 0
  %v1324 = vsel %vm406, %v1184, 0
  %v1326 = vsel %vm406, %v1186, 0
  %v1328 = vsel %vm406, %v1189, 0
  %v1330 = vsel %vm406, %v1191, 0
  %v1332 = vsel %vm406, %v1194, 0
  %v1334 = vsel %vm406, %v1196, 0
  %v1336 = vsel %vm406, %v1199, 0
  %v1338 = vsel %vm406, %v1201, 0
  %v1340 = vsel %vm406, %v1204, 0
  %v1342 = vsel %vm406, %v1206, 0
  %v1344 = vsel %vm406, %v1209, 0
  %v1346 = vsel %vm406, %v1211, 0
  %v1348 = vsel %vm406, %v1214, 0
  %v1350 = vsel %vm406, %v1216, 0
  %v1352 = vsel %vm406, %v1219, 0
  %v1354 = vsel %vm406, %v1221, 0
  %v1356 = vsel %vm406, %v1224, 0
  %v1358 = vsel %vm406, %v1226, 0
  %v1360 = vsel %vm406, %v1229, 0
  %v1362 = vsel %vm406, %v1231, 0
  %v1364 = vsel %vm406, %v1234, 0
  %v1366 = vsel %vm406, %v1236, 0
  %v1368 = vsel %vm406, %v1239, 0
  %v1370 = vsel %vm406, %v1241, 0
  %1372 = vmatpush.msra.mxu0 0.0
  %1373 = vmatpush.msra.mxu0 0.0
  %1374 = vmatpush.msra.mxu0 0.0
  %1375 = vmatpush.msra.mxu0 0.0
  %1376 = vmatpush.msra.mxu0 0.0
  %1377 = vmatpush.msra.mxu0 0.0
  %1378 = vmatpush.msra.mxu0 0.0
  %1379 = vmatpush.msra.mxu0 0.0
  %1380 = vmatpush.msra.mxu0 0.0
  %1381 = vmatpush.msra.mxu0 0.0
  %1382 = vmatpush.msra.mxu0 0.0
  %1383 = vmatpush.msra.mxu0 0.0
  %1384 = vmatpush.msra.mxu0 0.0
  %1385 = vmatpush.msra.mxu0 0.0
  %1386 = vmatpush.msra.mxu0 0.0
  %1387 = vmatpush.msra.mxu0 %v1243
  %1388 = vmatmul.f32.gmra.mxu0 %v1244
  %v1389 = vpop.f32.mrf.mxu0
  %v1390 = vadd.f32 0.0, %v1389
  %1391 = vmatmul.f32.gmra.mxu0 %v1246
  %v1392 = vpop.f32.mrf.mxu0
  %v1393 = vadd.f32 0.0, %v1392
  %1394 = vmatmul.f32.gmra.mxu0 %v1248
  %v1395 = vpop.f32.mrf.mxu0
  %v1396 = vadd.f32 0.0, %v1395
  %1397 = vmatmul.f32.gmra.mxu0 %v1250
  %v1398 = vpop.f32.mrf.mxu0
  %v1399 = vadd.f32 0.0, %v1398
  %1400 = vmatmul.f32.gmra.mxu0 %v1252
  %v1401 = vpop.f32.mrf.mxu0
  %v1402 = vadd.f32 0.0, %v1401
  %1403 = vmatmul.f32.gmra.mxu0 %v1254
  %v1404 = vpop.f32.mrf.mxu0
  %v1405 = vadd.f32 0.0, %v1404
  %1406 = vmatmul.f32.gmra.mxu0 %v1256
  %v1407 = vpop.f32.mrf.mxu0
  %v1408 = vadd.f32 0.0, %v1407
  %1409 = vmatmul.f32.gmra.mxu0 %v1258
  %v1410 = vpop.f32.mrf.mxu0
  %v1411 = vadd.f32 0.0, %v1410
  %1412 = vmatmul.f32.gmra.mxu0 %v1260
  %v1413 = vpop.f32.mrf.mxu0
  %v1414 = vadd.f32 0.0, %v1413
  %1415 = vmatmul.f32.gmra.mxu0 %v1262
  %v1416 = vpop.f32.mrf.mxu0
  %v1417 = vadd.f32 0.0, %v1416
  %1418 = vmatmul.f32.gmra.mxu0 %v1264
  %v1419 = vpop.f32.mrf.mxu0
  %v1420 = vadd.f32 0.0, %v1419
  %1421 = vmatmul.f32.gmra.mxu0 %v1266
  %v1422 = vpop.f32.mrf.mxu0
  %v1423 = vadd.f32 0.0, %v1422
  %1424 = vmatmul.f32.gmra.mxu0 %v1268
  %v1425 = vpop.f32.mrf.mxu0
  %v1426 = vadd.f32 0.0, %v1425
  %1427 = vmatmul.f32.gmra.mxu0 %v1270
  %v1428 = vpop.f32.mrf.mxu0
  %v1429 = vadd.f32 0.0, %v1428
  %1430 = vmatmul.f32.gmra.mxu0 %v1272
  %v1431 = vpop.f32.mrf.mxu0
  %v1432 = vadd.f32 0.0, %v1431
  %1433 = vmatmul.f32.gmra.mxu0 %v1274
  %v1434 = vpop.f32.mrf.mxu0
  %v1435 = vadd.f32 0.0, %v1434
  %1436 = vmatmul.f32.gmra.mxu0 %v1276
  %v1437 = vpop.f32.mrf.mxu0
  %v1438 = vadd.f32 0.0, %v1437
  %1439 = vmatmul.f32.gmra.mxu0 %v1278
  %v1440 = vpop.f32.mrf.mxu0
  %v1441 = vadd.f32 0.0, %v1440
  %1442 = vmatmul.f32.gmra.mxu0 %v1280
  %v1443 = vpop.f32.mrf.mxu0
  %v1444 = vadd.f32 0.0, %v1443
  %1445 = vmatmul.f32.gmra.mxu0 %v1282
  %v1446 = vpop.f32.mrf.mxu0
  %v1447 = vadd.f32 0.0, %v1446
  %1448 = vmatmul.f32.gmra.mxu0 %v1284
  %v1449 = vpop.f32.mrf.mxu0
  %v1450 = vadd.f32 0.0, %v1449
  %1451 = vmatmul.f32.gmra.mxu0 %v1286
  %v1452 = vpop.f32.mrf.mxu0
  %v1453 = vadd.f32 0.0, %v1452
  %1454 = vmatmul.f32.gmra.mxu0 %v1288
  %v1455 = vpop.f32.mrf.mxu0
  %v1456 = vadd.f32 0.0, %v1455
  %1457 = vmatmul.f32.gmra.mxu0 %v1290
  %v1458 = vpop.f32.mrf.mxu0
  %v1459 = vadd.f32 0.0, %v1458
  %1460 = vmatmul.f32.gmra.mxu0 %v1292
  %v1461 = vpop.f32.mrf.mxu0
  %v1462 = vadd.f32 0.0, %v1461
  %1463 = vmatmul.f32.gmra.mxu0 %v1294
  %v1464 = vpop.f32.mrf.mxu0
  %v1465 = vadd.f32 0.0, %v1464
  %1466 = vmatmul.f32.gmra.mxu0 %v1296
  %v1467 = vpop.f32.mrf.mxu0
  %v1468 = vadd.f32 0.0, %v1467
  %1469 = vmatmul.f32.gmra.mxu0 %v1298
  %v1470 = vpop.f32.mrf.mxu0
  %v1471 = vadd.f32 0.0, %v1470
  %1472 = vmatmul.f32.gmra.mxu0 %v1300
  %v1473 = vpop.f32.mrf.mxu0
  %v1474 = vadd.f32 0.0, %v1473
  %1475 = vmatmul.f32.gmra.mxu0 %v1302
  %v1476 = vpop.f32.mrf.mxu0
  %v1477 = vadd.f32 0.0, %v1476
  %1478 = vmatmul.f32.gmra.mxu0 %v1304
  %v1479 = vpop.f32.mrf.mxu0
  %v1480 = vadd.f32 0.0, %v1479
  %1481 = vmatmul.f32.gmra.mxu0 %v1306
  %v1482 = vpop.f32.mrf.mxu0
  %v1483 = vadd.f32 0.0, %v1482
  %1484 = vmatmul.f32.gmra.mxu0 %v1308
  %v1485 = vpop.f32.mrf.mxu0
  %v1486 = vadd.f32 0.0, %v1485
  %1487 = vmatmul.f32.gmra.mxu0 %v1310
  %v1488 = vpop.f32.mrf.mxu0
  %v1489 = vadd.f32 0.0, %v1488
  %1490 = vmatmul.f32.gmra.mxu0 %v1312
  %v1491 = vpop.f32.mrf.mxu0
  %v1492 = vadd.f32 0.0, %v1491
  %1493 = vmatmul.f32.gmra.mxu0 %v1314
  %v1494 = vpop.f32.mrf.mxu0
  %v1495 = vadd.f32 0.0, %v1494
  %1496 = vmatmul.f32.gmra.mxu0 %v1316
  %v1497 = vpop.f32.mrf.mxu0
  %v1498 = vadd.f32 0.0, %v1497
  %1499 = vmatmul.f32.gmra.mxu0 %v1318
  %v1500 = vpop.f32.mrf.mxu0
  %v1501 = vadd.f32 0.0, %v1500
  %1502 = vmatmul.f32.gmra.mxu0 %v1320
  %v1503 = vpop.f32.mrf.mxu0
  %v1504 = vadd.f32 0.0, %v1503
  %1505 = vmatmul.f32.gmra.mxu0 %v1322
  %v1506 = vpop.f32.mrf.mxu0
  %v1507 = vadd.f32 0.0, %v1506
  %1508 = vmatmul.f32.gmra.mxu0 %v1324
  %v1509 = vpop.f32.mrf.mxu0
  %v1510 = vadd.f32 0.0, %v1509
  %1511 = vmatmul.f32.gmra.mxu0 %v1326
  %v1512 = vpop.f32.mrf.mxu0
  %v1513 = vadd.f32 0.0, %v1512
  %1514 = vmatmul.f32.gmra.mxu0 %v1328
  %v1515 = vpop.f32.mrf.mxu0
  %v1516 = vadd.f32 0.0, %v1515
  %1517 = vmatmul.f32.gmra.mxu0 %v1330
  %v1518 = vpop.f32.mrf.mxu0
  %v1519 = vadd.f32 0.0, %v1518
  %1520 = vmatmul.f32.gmra.mxu0 %v1332
  %v1521 = vpop.f32.mrf.mxu0
  %v1522 = vadd.f32 0.0, %v1521
  %1523 = vmatmul.f32.gmra.mxu0 %v1334
  %v1524 = vpop.f32.mrf.mxu0
  %v1525 = vadd.f32 0.0, %v1524
  %1526 = vmatmul.f32.gmra.mxu0 %v1336
  %v1527 = vpop.f32.mrf.mxu0
  %v1528 = vadd.f32 0.0, %v1527
  %1529 = vmatmul.f32.gmra.mxu0 %v1338
  %v1530 = vpop.f32.mrf.mxu0
  %v1531 = vadd.f32 0.0, %v1530
  %1532 = vmatmul.f32.gmra.mxu0 %v1340
  %v1533 = vpop.f32.mrf.mxu0
  %v1534 = vadd.f32 0.0, %v1533
  %1535 = vmatmul.f32.gmra.mxu0 %v1342
  %v1536 = vpop.f32.mrf.mxu0
  %v1537 = vadd.f32 0.0, %v1536
  %1538 = vmatmul.f32.gmra.mxu0 %v1344
  %v1539 = vpop.f32.mrf.mxu0
  %v1540 = vadd.f32 0.0, %v1539
  %1541 = vmatmul.f32.gmra.mxu0 %v1346
  %v1542 = vpop.f32.mrf.mxu0
  %v1543 = vadd.f32 0.0, %v1542
  %1544 = vmatmul.f32.gmra.mxu0 %v1348
  %v1545 = vpop.f32.mrf.mxu0
  %v1546 = vadd.f32 0.0, %v1545
  %1547 = vmatmul.f32.gmra.mxu0 %v1350
  %v1548 = vpop.f32.mrf.mxu0
  %v1549 = vadd.f32 0.0, %v1548
  %1550 = vmatmul.f32.gmra.mxu0 %v1352
  %v1551 = vpop.f32.mrf.mxu0
  %v1552 = vadd.f32 0.0, %v1551
  %1553 = vmatmul.f32.gmra.mxu0 %v1354
  %v1554 = vpop.f32.mrf.mxu0
  %v1555 = vadd.f32 0.0, %v1554
  %1556 = vmatmul.f32.gmra.mxu0 %v1356
  %v1557 = vpop.f32.mrf.mxu0
  %v1558 = vadd.f32 0.0, %v1557
  %1559 = vmatmul.f32.gmra.mxu0 %v1358
  %v1560 = vpop.f32.mrf.mxu0
  %v1561 = vadd.f32 0.0, %v1560
  %1562 = vmatmul.f32.gmra.mxu0 %v1360
  %v1563 = vpop.f32.mrf.mxu0
  %v1564 = vadd.f32 0.0, %v1563
  %1565 = vmatmul.f32.gmra.mxu0 %v1362
  %v1566 = vpop.f32.mrf.mxu0
  %v1567 = vadd.f32 0.0, %v1566
  %1568 = vmatmul.f32.gmra.mxu0 %v1364
  %v1569 = vpop.f32.mrf.mxu0
  %v1570 = vadd.f32 0.0, %v1569
  %1571 = vmatmul.f32.gmra.mxu0 %v1366
  %v1572 = vpop.f32.mrf.mxu0
  %v1573 = vadd.f32 0.0, %v1572
  %1574 = vmatmul.f32.gmra.mxu0 %v1368
  %v1575 = vpop.f32.mrf.mxu0
  %v1576 = vadd.f32 0.0, %v1575
  %1577 = vmatmul.f32.gmra.mxu0 %v1370
  %v1578 = vpop.f32.mrf.mxu0
  %v1579 = vadd.f32 0.0, %v1578
  %1580 = vdwg.mxu0
  %v1581 = vadd.f32 %v890, %v1390
  %v1582 = vadd.f32 %v893, %v1393
  %v1583 = vadd.f32 %v896, %v1396
  %v1584 = vadd.f32 %v899, %v1399
  %v1585 = vadd.f32 %v902, %v1402
  %v1586 = vadd.f32 %v905, %v1405
  %v1587 = vadd.f32 %v908, %v1408
  %v1588 = vadd.f32 %v911, %v1411
  %v1589 = vadd.f32 %v914, %v1414
  %v1590 = vadd.f32 %v917, %v1417
  %v1591 = vadd.f32 %v920, %v1420
  %v1592 = vadd.f32 %v923, %v1423
  %v1593 = vadd.f32 %v926, %v1426
  %v1594 = vadd.f32 %v929, %v1429
  %v1595 = vadd.f32 %v932, %v1432
  %v1596 = vadd.f32 %v935, %v1435
  %v1597 = vadd.f32 %v938, %v1438
  %v1598 = vadd.f32 %v941, %v1441
  %v1599 = vadd.f32 %v944, %v1444
  %v1600 = vadd.f32 %v947, %v1447
  %v1601 = vadd.f32 %v950, %v1450
  %v1602 = vadd.f32 %v953, %v1453
  %v1603 = vadd.f32 %v956, %v1456
  %v1604 = vadd.f32 %v959, %v1459
  %v1605 = vadd.f32 %v962, %v1462
  %v1606 = vadd.f32 %v965, %v1465
  %v1607 = vadd.f32 %v968, %v1468
  %v1608 = vadd.f32 %v971, %v1471
  %v1609 = vadd.f32 %v974, %v1474
  %v1610 = vadd.f32 %v977, %v1477
  %v1611 = vadd.f32 %v980, %v1480
  %v1612 = vadd.f32 %v983, %v1483
  %v1613 = vadd.f32 %v986, %v1486
  %v1614 = vadd.f32 %v989, %v1489
  %v1615 = vadd.f32 %v992, %v1492
  %v1616 = vadd.f32 %v995, %v1495
  %v1617 = vadd.f32 %v998, %v1498
  %v1618 = vadd.f32 %v1001, %v1501
  %v1619 = vadd.f32 %v1004, %v1504
  %v1620 = vadd.f32 %v1007, %v1507
  %v1621 = vadd.f32 %v1010, %v1510
  %v1622 = vadd.f32 %v1013, %v1513
  %v1623 = vadd.f32 %v1016, %v1516
  %v1624 = vadd.f32 %v1019, %v1519
  %v1625 = vadd.f32 %v1022, %v1522
  %v1626 = vadd.f32 %v1025, %v1525
  %v1627 = vadd.f32 %v1028, %v1528
  %v1628 = vadd.f32 %v1031, %v1531
  %v1629 = vadd.f32 %v1034, %v1534
  %v1630 = vadd.f32 %v1037, %v1537
  %v1631 = vadd.f32 %v1040, %v1540
  %v1632 = vadd.f32 %v1043, %v1543
  %v1633 = vadd.f32 %v1046, %v1546
  %v1634 = vadd.f32 %v1049, %v1549
  %v1635 = vadd.f32 %v1052, %v1552
  %v1636 = vadd.f32 %v1055, %v1555
  %v1637 = vadd.f32 %v1058, %v1558
  %v1638 = vadd.f32 %v1061, %v1561
  %v1639 = vadd.f32 %v1064, %v1564
  %v1640 = vadd.f32 %v1067, %v1567
  %v1641 = vadd.f32 %v1070, %v1570
  %v1642 = vadd.f32 %v1073, %v1573
  %v1643 = vadd.f32 %v1076, %v1576
  %v1644 = vadd.f32 %v1079, %v1579
  %s1645 = scalar_lea.vmem %s2, 24
  %v1646 = vld [vmem:[%s1645] sm:$0xff]
  %v1648 = vsel %vm406, %v86, 0
  %v1651 = vsel %vm406, %v87, 0
  %v1654 = vsel %vm406, %v140, 0
  %v1657 = vsel %vm406, %v141, 0
  %1659 = vmatpush.msra.mxu0 0.0
  %1660 = vmatpush.msra.mxu0 0.0
  %1661 = vmatpush.msra.mxu0 0.0
  %1662 = vmatpush.msra.mxu0 0.0
  %1663 = vmatpush.msra.mxu0 0.0
  %1664 = vmatpush.msra.mxu0 0.0
  %1665 = vmatpush.msra.mxu0 0.0
  %1666 = vmatpush.msra.mxu0 0.0
  %1667 = vmatpush.msra.mxu0 0.0
  %1668 = vmatpush.msra.mxu0 0.0
  %1669 = vmatpush.msra.mxu0 0.0
  %1670 = vmatpush.msra.mxu0 0.0
  %1671 = vmatpush.msra.mxu0 0.0
  %1672 = vmatpush.msra.mxu0 0.0
  %1673 = vmatpush.msra.mxu0 0.0
  %1674 = vmatpush.msra.mxu0 %v1646
  %1675 = vmatmul.f32.gmra.mxu0 %v748
  %v1676 = vpop.f32.mrf.mxu0
  %v1677 = vadd.f32 0.0, %v1676
  %1678 = vmatmul.f32.gmra.mxu0 %v750
  %v1679 = vpop.f32.mrf.mxu0
  %v1680 = vadd.f32 0.0, %v1679
  %1681 = vmatmul.f32.gmra.mxu0 %v752
  %v1682 = vpop.f32.mrf.mxu0
  %v1683 = vadd.f32 0.0, %v1682
  %1684 = vmatmul.f32.gmra.mxu0 %v754
  %v1685 = vpop.f32.mrf.mxu0
  %v1686 = vadd.f32 0.0, %v1685
  %1687 = vmatmul.f32.gmra.mxu0 %v756
  %v1688 = vpop.f32.mrf.mxu0
  %v1689 = vadd.f32 0.0, %v1688
  %1690 = vmatmul.f32.gmra.mxu0 %v758
  %v1691 = vpop.f32.mrf.mxu0
  %v1692 = vadd.f32 0.0, %v1691
  %1693 = vmatmul.f32.gmra.mxu0 %v760
  %v1694 = vpop.f32.mrf.mxu0
  %v1695 = vadd.f32 0.0, %v1694
  %1696 = vmatmul.f32.gmra.mxu0 %v762
  %v1697 = vpop.f32.mrf.mxu0
  %v1698 = vadd.f32 0.0, %v1697
  %1699 = vmatmul.f32.gmra.mxu0 %v764
  %v1700 = vpop.f32.mrf.mxu0
  %v1701 = vadd.f32 0.0, %v1700
  %1702 = vmatmul.f32.gmra.mxu0 %v766
  %v1703 = vpop.f32.mrf.mxu0
  %v1704 = vadd.f32 0.0, %v1703
  %1705 = vmatmul.f32.gmra.mxu0 %v768
  %v1706 = vpop.f32.mrf.mxu0
  %v1707 = vadd.f32 0.0, %v1706
  %1708 = vmatmul.f32.gmra.mxu0 %v770
  %v1709 = vpop.f32.mrf.mxu0
  %v1710 = vadd.f32 0.0, %v1709
  %1711 = vmatmul.f32.gmra.mxu0 %v772
  %v1712 = vpop.f32.mrf.mxu0
  %v1713 = vadd.f32 0.0, %v1712
  %1714 = vmatmul.f32.gmra.mxu0 %v774
  %v1715 = vpop.f32.mrf.mxu0
  %v1716 = vadd.f32 0.0, %v1715
  %1717 = vmatmul.f32.gmra.mxu0 %v776
  %v1718 = vpop.f32.mrf.mxu0
  %v1719 = vadd.f32 0.0, %v1718
  %1720 = vmatmul.f32.gmra.mxu0 %v778
  %v1721 = vpop.f32.mrf.mxu0
  %v1722 = vadd.f32 0.0, %v1721
  %1723 = vmatmul.f32.gmra.mxu0 %v780
  %v1724 = vpop.f32.mrf.mxu0
  %v1725 = vadd.f32 0.0, %v1724
  %1726 = vmatmul.f32.gmra.mxu0 %v782
  %v1727 = vpop.f32.mrf.mxu0
  %v1728 = vadd.f32 0.0, %v1727
  %1729 = vmatmul.f32.gmra.mxu0 %v784
  %v1730 = vpop.f32.mrf.mxu0
  %v1731 = vadd.f32 0.0, %v1730
  %1732 = vmatmul.f32.gmra.mxu0 %v786
  %v1733 = vpop.f32.mrf.mxu0
  %v1734 = vadd.f32 0.0, %v1733
  %1735 = vmatmul.f32.gmra.mxu0 %v788
  %v1736 = vpop.f32.mrf.mxu0
  %v1737 = vadd.f32 0.0, %v1736
  %1738 = vmatmul.f32.gmra.mxu0 %v790
  %v1739 = vpop.f32.mrf.mxu0
  %v1740 = vadd.f32 0.0, %v1739
  %1741 = vmatmul.f32.gmra.mxu0 %v792
  %v1742 = vpop.f32.mrf.mxu0
  %v1743 = vadd.f32 0.0, %v1742
  %1744 = vmatmul.f32.gmra.mxu0 %v794
  %v1745 = vpop.f32.mrf.mxu0
  %v1746 = vadd.f32 0.0, %v1745
  %1747 = vmatmul.f32.gmra.mxu0 %v796
  %v1748 = vpop.f32.mrf.mxu0
  %v1749 = vadd.f32 0.0, %v1748
  %1750 = vmatmul.f32.gmra.mxu0 %v798
  %v1751 = vpop.f32.mrf.mxu0
  %v1752 = vadd.f32 0.0, %v1751
  %1753 = vmatmul.f32.gmra.mxu0 %v800
  %v1754 = vpop.f32.mrf.mxu0
  %v1755 = vadd.f32 0.0, %v1754
  %1756 = vmatmul.f32.gmra.mxu0 %v802
  %v1757 = vpop.f32.mrf.mxu0
  %v1758 = vadd.f32 0.0, %v1757
  %1759 = vmatmul.f32.gmra.mxu0 %v804
  %v1760 = vpop.f32.mrf.mxu0
  %v1761 = vadd.f32 0.0, %v1760
  %1762 = vmatmul.f32.gmra.mxu0 %v806
  %v1763 = vpop.f32.mrf.mxu0
  %v1764 = vadd.f32 0.0, %v1763
  %1765 = vmatmul.f32.gmra.mxu0 %v1648
  %v1766 = vpop.f32.mrf.mxu0
  %v1767 = vadd.f32 0.0, %v1766
  %1768 = vmatmul.f32.gmra.mxu0 %v1651
  %v1769 = vpop.f32.mrf.mxu0
  %v1770 = vadd.f32 0.0, %v1769
  %1771 = vmatmul.f32.gmra.mxu0 %v812
  %v1772 = vpop.f32.mrf.mxu0
  %v1773 = vadd.f32 0.0, %v1772
  %1774 = vmatmul.f32.gmra.mxu0 %v814
  %v1775 = vpop.f32.mrf.mxu0
  %v1776 = vadd.f32 0.0, %v1775
  %1777 = vmatmul.f32.gmra.mxu0 %v816
  %v1778 = vpop.f32.mrf.mxu0
  %v1779 = vadd.f32 0.0, %v1778
  %1780 = vmatmul.f32.gmra.mxu0 %v818
  %v1781 = vpop.f32.mrf.mxu0
  %v1782 = vadd.f32 0.0, %v1781
  %1783 = vmatmul.f32.gmra.mxu0 %v820
  %v1784 = vpop.f32.mrf.mxu0
  %v1785 = vadd.f32 0.0, %v1784
  %1786 = vmatmul.f32.gmra.mxu0 %v822
  %v1787 = vpop.f32.mrf.mxu0
  %v1788 = vadd.f32 0.0, %v1787
  %1789 = vmatmul.f32.gmra.mxu0 %v824
  %v1790 = vpop.f32.mrf.mxu0
  %v1791 = vadd.f32 0.0, %v1790
  %1792 = vmatmul.f32.gmra.mxu0 %v826
  %v1793 = vpop.f32.mrf.mxu0
  %v1794 = vadd.f32 0.0, %v1793
  %1795 = vmatmul.f32.gmra.mxu0 %v828
  %v1796 = vpop.f32.mrf.mxu0
  %v1797 = vadd.f32 0.0, %v1796
  %1798 = vmatmul.f32.gmra.mxu0 %v830
  %v1799 = vpop.f32.mrf.mxu0
  %v1800 = vadd.f32 0.0, %v1799
  %1801 = vmatmul.f32.gmra.mxu0 %v832
  %v1802 = vpop.f32.mrf.mxu0
  %v1803 = vadd.f32 0.0, %v1802
  %1804 = vmatmul.f32.gmra.mxu0 %v834
  %v1805 = vpop.f32.mrf.mxu0
  %v1806 = vadd.f32 0.0, %v1805
  %1807 = vmatmul.f32.gmra.mxu0 %v836
  %v1808 = vpop.f32.mrf.mxu0
  %v1809 = vadd.f32 0.0, %v1808
  %1810 = vmatmul.f32.gmra.mxu0 %v838
  %v1811 = vpop.f32.mrf.mxu0
  %v1812 = vadd.f32 0.0, %v1811
  %1813 = vmatmul.f32.gmra.mxu0 %v840
  %v1814 = vpop.f32.mrf.mxu0
  %v1815 = vadd.f32 0.0, %v1814
  %1816 = vmatmul.f32.gmra.mxu0 %v842
  %v1817 = vpop.f32.mrf.mxu0
  %v1818 = vadd.f32 0.0, %v1817
  %1819 = vmatmul.f32.gmra.mxu0 %v844
  %v1820 = vpop.f32.mrf.mxu0
  %v1821 = vadd.f32 0.0, %v1820
  %1822 = vmatmul.f32.gmra.mxu0 %v846
  %v1823 = vpop.f32.mrf.mxu0
  %v1824 = vadd.f32 0.0, %v1823
  %1825 = vmatmul.f32.gmra.mxu0 %v848
  %v1826 = vpop.f32.mrf.mxu0
  %v1827 = vadd.f32 0.0, %v1826
  %1828 = vmatmul.f32.gmra.mxu0 %v850
  %v1829 = vpop.f32.mrf.mxu0
  %v1830 = vadd.f32 0.0, %v1829
  %1831 = vmatmul.f32.gmra.mxu0 %v852
  %v1832 = vpop.f32.mrf.mxu0
  %v1833 = vadd.f32 0.0, %v1832
  %1834 = vmatmul.f32.gmra.mxu0 %v854
  %v1835 = vpop.f32.mrf.mxu0
  %v1836 = vadd.f32 0.0, %v1835
  %1837 = vmatmul.f32.gmra.mxu0 %v856
  %v1838 = vpop.f32.mrf.mxu0
  %v1839 = vadd.f32 0.0, %v1838
  %1840 = vmatmul.f32.gmra.mxu0 %v858
  %v1841 = vpop.f32.mrf.mxu0
  %v1842 = vadd.f32 0.0, %v1841
  %1843 = vmatmul.f32.gmra.mxu0 %v860
  %v1844 = vpop.f32.mrf.mxu0
  %v1845 = vadd.f32 0.0, %v1844
  %1846 = vmatmul.f32.gmra.mxu0 %v862
  %v1847 = vpop.f32.mrf.mxu0
  %v1848 = vadd.f32 0.0, %v1847
  %1849 = vmatmul.f32.gmra.mxu0 %v864
  %v1850 = vpop.f32.mrf.mxu0
  %v1851 = vadd.f32 0.0, %v1850
  %1852 = vmatmul.f32.gmra.mxu0 %v866
  %v1853 = vpop.f32.mrf.mxu0
  %v1854 = vadd.f32 0.0, %v1853
  %1855 = vmatmul.f32.gmra.mxu0 %v868
  %v1856 = vpop.f32.mrf.mxu0
  %v1857 = vadd.f32 0.0, %v1856
  %1858 = vmatmul.f32.gmra.mxu0 %v870
  %v1859 = vpop.f32.mrf.mxu0
  %v1860 = vadd.f32 0.0, %v1859
  %1861 = vmatmul.f32.gmra.mxu0 %v1654
  %v1862 = vpop.f32.mrf.mxu0
  %v1863 = vadd.f32 0.0, %v1862
  %1864 = vmatmul.f32.gmra.mxu0 %v1657
  %v1865 = vpop.f32.mrf.mxu0
  %v1866 = vadd.f32 0.0, %v1865
  %1867 = vdwg.mxu0
  %v1868 = vadd.f32 %v1581, %v1677
  %v1869 = vadd.f32 %v1582, %v1680
  %v1870 = vadd.f32 %v1583, %v1683
  %v1871 = vadd.f32 %v1584, %v1686
  %v1872 = vadd.f32 %v1585, %v1689
  %v1873 = vadd.f32 %v1586, %v1692
  %v1874 = vadd.f32 %v1587, %v1695
  %v1875 = vadd.f32 %v1588, %v1698
  %v1876 = vadd.f32 %v1589, %v1701
  %v1877 = vadd.f32 %v1590, %v1704
  %v1878 = vadd.f32 %v1591, %v1707
  %v1879 = vadd.f32 %v1592, %v1710
  %v1880 = vadd.f32 %v1593, %v1713
  %v1881 = vadd.f32 %v1594, %v1716
  %v1882 = vadd.f32 %v1595, %v1719
  %v1883 = vadd.f32 %v1596, %v1722
  %v1884 = vadd.f32 %v1597, %v1725
  %v1885 = vadd.f32 %v1598, %v1728
  %v1886 = vadd.f32 %v1599, %v1731
  %v1887 = vadd.f32 %v1600, %v1734
  %v1888 = vadd.f32 %v1601, %v1737
  %v1889 = vadd.f32 %v1602, %v1740
  %v1890 = vadd.f32 %v1603, %v1743
  %v1891 = vadd.f32 %v1604, %v1746
  %v1892 = vadd.f32 %v1605, %v1749
  %v1893 = vadd.f32 %v1606, %v1752
  %v1894 = vadd.f32 %v1607, %v1755
  %v1895 = vadd.f32 %v1608, %v1758
  %v1896 = vadd.f32 %v1609, %v1761
  %v1897 = vadd.f32 %v1610, %v1764
  %v1898 = vadd.f32 %v1611, %v1767
  %v1899 = vadd.f32 %v1612, %v1770
  %v1900 = vadd.f32 %v1613, %v1773
  %v1901 = vadd.f32 %v1614, %v1776
  %v1902 = vadd.f32 %v1615, %v1779
  %v1903 = vadd.f32 %v1616, %v1782
  %v1904 = vadd.f32 %v1617, %v1785
  %v1905 = vadd.f32 %v1618, %v1788
  %v1906 = vadd.f32 %v1619, %v1791
  %v1907 = vadd.f32 %v1620, %v1794
  %v1908 = vadd.f32 %v1621, %v1797
  %v1909 = vadd.f32 %v1622, %v1800
  %v1910 = vadd.f32 %v1623, %v1803
  %v1911 = vadd.f32 %v1624, %v1806
  %v1912 = vadd.f32 %v1625, %v1809
  %v1913 = vadd.f32 %v1626, %v1812
  %v1914 = vadd.f32 %v1627, %v1815
  %v1915 = vadd.f32 %v1628, %v1818
  %v1916 = vadd.f32 %v1629, %v1821
  %v1917 = vadd.f32 %v1630, %v1824
  %v1918 = vadd.f32 %v1631, %v1827
  %v1919 = vadd.f32 %v1632, %v1830
  %v1920 = vadd.f32 %v1633, %v1833
  %v1921 = vadd.f32 %v1634, %v1836
  %v1922 = vadd.f32 %v1635, %v1839
  %v1923 = vadd.f32 %v1636, %v1842
  %v1924 = vadd.f32 %v1637, %v1845
  %v1925 = vadd.f32 %v1638, %v1848
  %v1926 = vadd.f32 %v1639, %v1851
  %v1927 = vadd.f32 %v1640, %v1854
  %v1928 = vadd.f32 %v1641, %v1857
  %v1929 = vadd.f32 %v1642, %v1860
  %v1930 = vadd.f32 %v1643, %v1863
  %v1931 = vadd.f32 %v1644, %v1866
  %v1934 = vrot.slane %v86, 1
  %v1935 = vrot.slane %v87, 1
  %v1936 = vsel %vm243, %v1934, %v1935
  %v1937 = vrot.slane %v88, 1
  %v1938 = vsel %vm243, %v1935, %v1937
  %v1939 = vrot.slane %v140, 1
  %v1940 = vrot.slane %v141, 1
  %v1941 = vsel %vm243, %v1939, %v1940
  %v1942 = vrot.slane %v142, 1
  %v1943 = vsel %vm243, %v1940, %v1942
  %s1944 = scalar_lea.vmem %s2, 32
  %v1945 = vld [vmem:[%s1944] sm:$0xff]
  %v1946 = vsel %vm406, %v1936, 0
  %v1948 = vsel %vm406, %v1938, 0
  %v1950 = vsel %vm406, %v1941, 0
  %v1952 = vsel %vm406, %v1943, 0
  %1954 = vmatpush.msra.mxu0 0.0
  %1955 = vmatpush.msra.mxu0 0.0
  %1956 = vmatpush.msra.mxu0 0.0
  %1957 = vmatpush.msra.mxu0 0.0
  %1958 = vmatpush.msra.mxu0 0.0
  %1959 = vmatpush.msra.mxu0 0.0
  %1960 = vmatpush.msra.mxu0 0.0
  %1961 = vmatpush.msra.mxu0 0.0
  %1962 = vmatpush.msra.mxu0 0.0
  %1963 = vmatpush.msra.mxu0 0.0
  %1964 = vmatpush.msra.mxu0 0.0
  %1965 = vmatpush.msra.mxu0 0.0
  %1966 = vmatpush.msra.mxu0 0.0
  %1967 = vmatpush.msra.mxu0 0.0
  %1968 = vmatpush.msra.mxu0 0.0
  %1969 = vmatpush.msra.mxu0 %v1945
  %1970 = vmatmul.f32.gmra.mxu0 %v411
  %v1971 = vpop.f32.mrf.mxu0
  %v1972 = vadd.f32 0.0, %v1971
  %1973 = vmatmul.f32.gmra.mxu0 %v413
  %v1974 = vpop.f32.mrf.mxu0
  %v1975 = vadd.f32 0.0, %v1974
  %1976 = vmatmul.f32.gmra.mxu0 %v415
  %v1977 = vpop.f32.mrf.mxu0
  %v1978 = vadd.f32 0.0, %v1977
  %1979 = vmatmul.f32.gmra.mxu0 %v417
  %v1980 = vpop.f32.mrf.mxu0
  %v1981 = vadd.f32 0.0, %v1980
  %1982 = vmatmul.f32.gmra.mxu0 %v419
  %v1983 = vpop.f32.mrf.mxu0
  %v1984 = vadd.f32 0.0, %v1983
  %1985 = vmatmul.f32.gmra.mxu0 %v421
  %v1986 = vpop.f32.mrf.mxu0
  %v1987 = vadd.f32 0.0, %v1986
  %1988 = vmatmul.f32.gmra.mxu0 %v423
  %v1989 = vpop.f32.mrf.mxu0
  %v1990 = vadd.f32 0.0, %v1989
  %1991 = vmatmul.f32.gmra.mxu0 %v425
  %v1992 = vpop.f32.mrf.mxu0
  %v1993 = vadd.f32 0.0, %v1992
  %1994 = vmatmul.f32.gmra.mxu0 %v427
  %v1995 = vpop.f32.mrf.mxu0
  %v1996 = vadd.f32 0.0, %v1995
  %1997 = vmatmul.f32.gmra.mxu0 %v429
  %v1998 = vpop.f32.mrf.mxu0
  %v1999 = vadd.f32 0.0, %v1998
  %2000 = vmatmul.f32.gmra.mxu0 %v431
  %v2001 = vpop.f32.mrf.mxu0
  %v2002 = vadd.f32 0.0, %v2001
  %2003 = vmatmul.f32.gmra.mxu0 %v433
  %v2004 = vpop.f32.mrf.mxu0
  %v2005 = vadd.f32 0.0, %v2004
  %2006 = vmatmul.f32.gmra.mxu0 %v435
  %v2007 = vpop.f32.mrf.mxu0
  %v2008 = vadd.f32 0.0, %v2007
  %2009 = vmatmul.f32.gmra.mxu0 %v437
  %v2010 = vpop.f32.mrf.mxu0
  %v2011 = vadd.f32 0.0, %v2010
  %2012 = vmatmul.f32.gmra.mxu0 %v439
  %v2013 = vpop.f32.mrf.mxu0
  %v2014 = vadd.f32 0.0, %v2013
  %2015 = vmatmul.f32.gmra.mxu0 %v441
  %v2016 = vpop.f32.mrf.mxu0
  %v2017 = vadd.f32 0.0, %v2016
  %2018 = vmatmul.f32.gmra.mxu0 %v443
  %v2019 = vpop.f32.mrf.mxu0
  %v2020 = vadd.f32 0.0, %v2019
  %2021 = vmatmul.f32.gmra.mxu0 %v445
  %v2022 = vpop.f32.mrf.mxu0
  %v2023 = vadd.f32 0.0, %v2022
  %2024 = vmatmul.f32.gmra.mxu0 %v447
  %v2025 = vpop.f32.mrf.mxu0
  %v2026 = vadd.f32 0.0, %v2025
  %2027 = vmatmul.f32.gmra.mxu0 %v449
  %v2028 = vpop.f32.mrf.mxu0
  %v2029 = vadd.f32 0.0, %v2028
  %2030 = vmatmul.f32.gmra.mxu0 %v451
  %v2031 = vpop.f32.mrf.mxu0
  %v2032 = vadd.f32 0.0, %v2031
  %2033 = vmatmul.f32.gmra.mxu0 %v453
  %v2034 = vpop.f32.mrf.mxu0
  %v2035 = vadd.f32 0.0, %v2034
  %2036 = vmatmul.f32.gmra.mxu0 %v455
  %v2037 = vpop.f32.mrf.mxu0
  %v2038 = vadd.f32 0.0, %v2037
  %2039 = vmatmul.f32.gmra.mxu0 %v457
  %v2040 = vpop.f32.mrf.mxu0
  %v2041 = vadd.f32 0.0, %v2040
  %2042 = vmatmul.f32.gmra.mxu0 %v459
  %v2043 = vpop.f32.mrf.mxu0
  %v2044 = vadd.f32 0.0, %v2043
  %2045 = vmatmul.f32.gmra.mxu0 %v461
  %v2046 = vpop.f32.mrf.mxu0
  %v2047 = vadd.f32 0.0, %v2046
  %2048 = vmatmul.f32.gmra.mxu0 %v463
  %v2049 = vpop.f32.mrf.mxu0
  %v2050 = vadd.f32 0.0, %v2049
  %2051 = vmatmul.f32.gmra.mxu0 %v465
  %v2052 = vpop.f32.mrf.mxu0
  %v2053 = vadd.f32 0.0, %v2052
  %2054 = vmatmul.f32.gmra.mxu0 %v467
  %v2055 = vpop.f32.mrf.mxu0
  %v2056 = vadd.f32 0.0, %v2055
  %2057 = vmatmul.f32.gmra.mxu0 %v469
  %v2058 = vpop.f32.mrf.mxu0
  %v2059 = vadd.f32 0.0, %v2058
  %2060 = vmatmul.f32.gmra.mxu0 %v1946
  %v2061 = vpop.f32.mrf.mxu0
  %v2062 = vadd.f32 0.0, %v2061
  %2063 = vmatmul.f32.gmra.mxu0 %v1948
  %v2064 = vpop.f32.mrf.mxu0
  %v2065 = vadd.f32 0.0, %v2064
  %2066 = vmatmul.f32.gmra.mxu0 %v475
  %v2067 = vpop.f32.mrf.mxu0
  %v2068 = vadd.f32 0.0, %v2067
  %2069 = vmatmul.f32.gmra.mxu0 %v477
  %v2070 = vpop.f32.mrf.mxu0
  %v2071 = vadd.f32 0.0, %v2070
  %2072 = vmatmul.f32.gmra.mxu0 %v479
  %v2073 = vpop.f32.mrf.mxu0
  %v2074 = vadd.f32 0.0, %v2073
  %2075 = vmatmul.f32.gmra.mxu0 %v481
  %v2076 = vpop.f32.mrf.mxu0
  %v2077 = vadd.f32 0.0, %v2076
  %2078 = vmatmul.f32.gmra.mxu0 %v483
  %v2079 = vpop.f32.mrf.mxu0
  %v2080 = vadd.f32 0.0, %v2079
  %2081 = vmatmul.f32.gmra.mxu0 %v485
  %v2082 = vpop.f32.mrf.mxu0
  %v2083 = vadd.f32 0.0, %v2082
  %2084 = vmatmul.f32.gmra.mxu0 %v487
  %v2085 = vpop.f32.mrf.mxu0
  %v2086 = vadd.f32 0.0, %v2085
  %2087 = vmatmul.f32.gmra.mxu0 %v489
  %v2088 = vpop.f32.mrf.mxu0
  %v2089 = vadd.f32 0.0, %v2088
  %2090 = vmatmul.f32.gmra.mxu0 %v491
  %v2091 = vpop.f32.mrf.mxu0
  %v2092 = vadd.f32 0.0, %v2091
  %2093 = vmatmul.f32.gmra.mxu0 %v493
  %v2094 = vpop.f32.mrf.mxu0
  %v2095 = vadd.f32 0.0, %v2094
  %2096 = vmatmul.f32.gmra.mxu0 %v495
  %v2097 = vpop.f32.mrf.mxu0
  %v2098 = vadd.f32 0.0, %v2097
  %2099 = vmatmul.f32.gmra.mxu0 %v497
  %v2100 = vpop.f32.mrf.mxu0
  %v2101 = vadd.f32 0.0, %v2100
  %2102 = vmatmul.f32.gmra.mxu0 %v499
  %v2103 = vpop.f32.mrf.mxu0
  %v2104 = vadd.f32 0.0, %v2103
  %2105 = vmatmul.f32.gmra.mxu0 %v501
  %v2106 = vpop.f32.mrf.mxu0
  %v2107 = vadd.f32 0.0, %v2106
  %2108 = vmatmul.f32.gmra.mxu0 %v503
  %v2109 = vpop.f32.mrf.mxu0
  %v2110 = vadd.f32 0.0, %v2109
  %2111 = vmatmul.f32.gmra.mxu0 %v505
  %v2112 = vpop.f32.mrf.mxu0
  %v2113 = vadd.f32 0.0, %v2112
  %2114 = vmatmul.f32.gmra.mxu0 %v507
  %v2115 = vpop.f32.mrf.mxu0
  %v2116 = vadd.f32 0.0, %v2115
  %2117 = vmatmul.f32.gmra.mxu0 %v509
  %v2118 = vpop.f32.mrf.mxu0
  %v2119 = vadd.f32 0.0, %v2118
  %2120 = vmatmul.f32.gmra.mxu0 %v511
  %v2121 = vpop.f32.mrf.mxu0
  %v2122 = vadd.f32 0.0, %v2121
  %2123 = vmatmul.f32.gmra.mxu0 %v513
  %v2124 = vpop.f32.mrf.mxu0
  %v2125 = vadd.f32 0.0, %v2124
  %2126 = vmatmul.f32.gmra.mxu0 %v515
  %v2127 = vpop.f32.mrf.mxu0
  %v2128 = vadd.f32 0.0, %v2127
  %2129 = vmatmul.f32.gmra.mxu0 %v517
  %v2130 = vpop.f32.mrf.mxu0
  %v2131 = vadd.f32 0.0, %v2130
  %2132 = vmatmul.f32.gmra.mxu0 %v519
  %v2133 = vpop.f32.mrf.mxu0
  %v2134 = vadd.f32 0.0, %v2133
  %2135 = vmatmul.f32.gmra.mxu0 %v521
  %v2136 = vpop.f32.mrf.mxu0
  %v2137 = vadd.f32 0.0, %v2136
  %2138 = vmatmul.f32.gmra.mxu0 %v523
  %v2139 = vpop.f32.mrf.mxu0
  %v2140 = vadd.f32 0.0, %v2139
  %2141 = vmatmul.f32.gmra.mxu0 %v525
  %v2142 = vpop.f32.mrf.mxu0
  %v2143 = vadd.f32 0.0, %v2142
  %2144 = vmatmul.f32.gmra.mxu0 %v527
  %v2145 = vpop.f32.mrf.mxu0
  %v2146 = vadd.f32 0.0, %v2145
  %2147 = vmatmul.f32.gmra.mxu0 %v529
  %v2148 = vpop.f32.mrf.mxu0
  %v2149 = vadd.f32 0.0, %v2148
  %2150 = vmatmul.f32.gmra.mxu0 %v531
  %v2151 = vpop.f32.mrf.mxu0
  %v2152 = vadd.f32 0.0, %v2151
  %2153 = vmatmul.f32.gmra.mxu0 %v533
  %v2154 = vpop.f32.mrf.mxu0
  %v2155 = vadd.f32 0.0, %v2154
  %2156 = vmatmul.f32.gmra.mxu0 %v1950
  %v2157 = vpop.f32.mrf.mxu0
  %v2158 = vadd.f32 0.0, %v2157
  %2159 = vmatmul.f32.gmra.mxu0 %v1952
  %v2160 = vpop.f32.mrf.mxu0
  %v2161 = vadd.f32 0.0, %v2160
  %2162 = vdwg.mxu0
  %v2163 = vadd.f32 %v1868, %v1972
  %v2164 = vadd.f32 %v1869, %v1975
  %v2165 = vadd.f32 %v1870, %v1978
  %v2166 = vadd.f32 %v1871, %v1981
  %v2167 = vadd.f32 %v1872, %v1984
  %v2168 = vadd.f32 %v1873, %v1987
  %v2169 = vadd.f32 %v1874, %v1990
  %v2170 = vadd.f32 %v1875, %v1993
  %v2171 = vadd.f32 %v1876, %v1996
  %v2172 = vadd.f32 %v1877, %v1999
  %v2173 = vadd.f32 %v1878, %v2002
  %v2174 = vadd.f32 %v1879, %v2005
  %v2175 = vadd.f32 %v1880, %v2008
  %v2176 = vadd.f32 %v1881, %v2011
  %v2177 = vadd.f32 %v1882, %v2014
  %v2178 = vadd.f32 %v1883, %v2017
  %v2179 = vadd.f32 %v1884, %v2020
  %v2180 = vadd.f32 %v1885, %v2023
  %v2181 = vadd.f32 %v1886, %v2026
  %v2182 = vadd.f32 %v1887, %v2029
  %v2183 = vadd.f32 %v1888, %v2032
  %v2184 = vadd.f32 %v1889, %v2035
  %v2185 = vadd.f32 %v1890, %v2038
  %v2186 = vadd.f32 %v1891, %v2041
  %v2187 = vadd.f32 %v1892, %v2044
  %v2188 = vadd.f32 %v1893, %v2047
  %v2189 = vadd.f32 %v1894, %v2050
  %v2190 = vadd.f32 %v1895, %v2053
  %v2191 = vadd.f32 %v1896, %v2056
  %v2192 = vadd.f32 %v1897, %v2059
  %v2193 = vadd.f32 %v1898, %v2062
  %v2194 = vadd.f32 %v1899, %v2065
  %v2195 = vadd.f32 %v1900, %v2068
  %v2196 = vadd.f32 %v1901, %v2071
  %v2197 = vadd.f32 %v1902, %v2074
  %v2198 = vadd.f32 %v1903, %v2077
  %v2199 = vadd.f32 %v1904, %v2080
  %v2200 = vadd.f32 %v1905, %v2083
  %v2201 = vadd.f32 %v1906, %v2086
  %v2202 = vadd.f32 %v1907, %v2089
  %v2203 = vadd.f32 %v1908, %v2092
  %v2204 = vadd.f32 %v1909, %v2095
  %v2205 = vadd.f32 %v1910, %v2098
  %v2206 = vadd.f32 %v1911, %v2101
  %v2207 = vadd.f32 %v1912, %v2104
  %v2208 = vadd.f32 %v1913, %v2107
  %v2209 = vadd.f32 %v1914, %v2110
  %v2210 = vadd.f32 %v1915, %v2113
  %v2211 = vadd.f32 %v1916, %v2116
  %v2212 = vadd.f32 %v1917, %v2119
  %v2213 = vadd.f32 %v1918, %v2122
  %v2214 = vadd.f32 %v1919, %v2125
  %v2215 = vadd.f32 %v1920, %v2128
  %v2216 = vadd.f32 %v1921, %v2131
  %v2217 = vadd.f32 %v1922, %v2134
  %v2218 = vadd.f32 %v1923, %v2137
  %v2219 = vadd.f32 %v1924, %v2140
  %v2220 = vadd.f32 %v1925, %v2143
  %v2221 = vadd.f32 %v1926, %v2146
  %v2222 = vadd.f32 %v1927, %v2149
  %v2223 = vadd.f32 %v1928, %v2152
  %v2224 = vadd.f32 %v1929, %v2155
  %v2225 = vadd.f32 %v1930, %v2158
  %v2226 = vadd.f32 %v1931, %v2161
  %v2227 = vrot.slane %v86, 2
  %v2228 = vrot.slane %v87, 2
  %v2229 = vsel %vm1081, %v2227, %v2228
  %v2230 = vrot.slane %v88, 2
  %v2231 = vsel %vm1081, %v2228, %v2230
  %v2232 = vrot.slane %v140, 2
  %v2233 = vrot.slane %v141, 2
  %v2234 = vsel %vm1081, %v2232, %v2233
  %v2235 = vrot.slane %v142, 2
  %v2236 = vsel %vm1081, %v2233, %v2235
  %s2237 = scalar_lea.vmem %s2, 40
  %v2238 = vld [vmem:[%s2237] sm:$0xff]
  %v2239 = vsel %vm406, %v2229, 0
  %v2241 = vsel %vm406, %v2231, 0
  %v2243 = vsel %vm406, %v2234, 0
  %v2245 = vsel %vm406, %v2236, 0
  %2247 = vmatpush.msra.mxu0 0.0
  %2248 = vmatpush.msra.mxu0 0.0
  %2249 = vmatpush.msra.mxu0 0.0
  %2250 = vmatpush.msra.mxu0 0.0
  %2251 = vmatpush.msra.mxu0 0.0
  %2252 = vmatpush.msra.mxu0 0.0
  %2253 = vmatpush.msra.mxu0 0.0
  %2254 = vmatpush.msra.mxu0 0.0
  %2255 = vmatpush.msra.mxu0 0.0
  %2256 = vmatpush.msra.mxu0 0.0
  %2257 = vmatpush.msra.mxu0 0.0
  %2258 = vmatpush.msra.mxu0 0.0
  %2259 = vmatpush.msra.mxu0 0.0
  %2260 = vmatpush.msra.mxu0 0.0
  %2261 = vmatpush.msra.mxu0 0.0
  %2262 = vmatpush.msra.mxu0 %v2238
  %2263 = vmatmul.f32.gmra.mxu0 %v1248
  %v2264 = vpop.f32.mrf.mxu0
  %v2265 = vadd.f32 0.0, %v2264
  %2266 = vmatmul.f32.gmra.mxu0 %v1250
  %v2267 = vpop.f32.mrf.mxu0
  %v2268 = vadd.f32 0.0, %v2267
  %2269 = vmatmul.f32.gmra.mxu0 %v1252
  %v2270 = vpop.f32.mrf.mxu0
  %v2271 = vadd.f32 0.0, %v2270
  %2272 = vmatmul.f32.gmra.mxu0 %v1254
  %v2273 = vpop.f32.mrf.mxu0
  %v2274 = vadd.f32 0.0, %v2273
  %2275 = vmatmul.f32.gmra.mxu0 %v1256
  %v2276 = vpop.f32.mrf.mxu0
  %v2277 = vadd.f32 0.0, %v2276
  %2278 = vmatmul.f32.gmra.mxu0 %v1258
  %v2279 = vpop.f32.mrf.mxu0
  %v2280 = vadd.f32 0.0, %v2279
  %2281 = vmatmul.f32.gmra.mxu0 %v1260
  %v2282 = vpop.f32.mrf.mxu0
  %v2283 = vadd.f32 0.0, %v2282
  %2284 = vmatmul.f32.gmra.mxu0 %v1262
  %v2285 = vpop.f32.mrf.mxu0
  %v2286 = vadd.f32 0.0, %v2285
  %2287 = vmatmul.f32.gmra.mxu0 %v1264
  %v2288 = vpop.f32.mrf.mxu0
  %v2289 = vadd.f32 0.0, %v2288
  %2290 = vmatmul.f32.gmra.mxu0 %v1266
  %v2291 = vpop.f32.mrf.mxu0
  %v2292 = vadd.f32 0.0, %v2291
  %2293 = vmatmul.f32.gmra.mxu0 %v1268
  %v2294 = vpop.f32.mrf.mxu0
  %v2295 = vadd.f32 0.0, %v2294
  %2296 = vmatmul.f32.gmra.mxu0 %v1270
  %v2297 = vpop.f32.mrf.mxu0
  %v2298 = vadd.f32 0.0, %v2297
  %2299 = vmatmul.f32.gmra.mxu0 %v1272
  %v2300 = vpop.f32.mrf.mxu0
  %v2301 = vadd.f32 0.0, %v2300
  %2302 = vmatmul.f32.gmra.mxu0 %v1274
  %v2303 = vpop.f32.mrf.mxu0
  %v2304 = vadd.f32 0.0, %v2303
  %2305 = vmatmul.f32.gmra.mxu0 %v1276
  %v2306 = vpop.f32.mrf.mxu0
  %v2307 = vadd.f32 0.0, %v2306
  %2308 = vmatmul.f32.gmra.mxu0 %v1278
  %v2309 = vpop.f32.mrf.mxu0
  %v2310 = vadd.f32 0.0, %v2309
  %2311 = vmatmul.f32.gmra.mxu0 %v1280
  %v2312 = vpop.f32.mrf.mxu0
  %v2313 = vadd.f32 0.0, %v2312
  %2314 = vmatmul.f32.gmra.mxu0 %v1282
  %v2315 = vpop.f32.mrf.mxu0
  %v2316 = vadd.f32 0.0, %v2315
  %2317 = vmatmul.f32.gmra.mxu0 %v1284
  %v2318 = vpop.f32.mrf.mxu0
  %v2319 = vadd.f32 0.0, %v2318
  %2320 = vmatmul.f32.gmra.mxu0 %v1286
  %v2321 = vpop.f32.mrf.mxu0
  %v2322 = vadd.f32 0.0, %v2321
  %2323 = vmatmul.f32.gmra.mxu0 %v1288
  %v2324 = vpop.f32.mrf.mxu0
  %v2325 = vadd.f32 0.0, %v2324
  %2326 = vmatmul.f32.gmra.mxu0 %v1290
  %v2327 = vpop.f32.mrf.mxu0
  %v2328 = vadd.f32 0.0, %v2327
  %2329 = vmatmul.f32.gmra.mxu0 %v1292
  %v2330 = vpop.f32.mrf.mxu0
  %v2331 = vadd.f32 0.0, %v2330
  %2332 = vmatmul.f32.gmra.mxu0 %v1294
  %v2333 = vpop.f32.mrf.mxu0
  %v2334 = vadd.f32 0.0, %v2333
  %2335 = vmatmul.f32.gmra.mxu0 %v1296
  %v2336 = vpop.f32.mrf.mxu0
  %v2337 = vadd.f32 0.0, %v2336
  %2338 = vmatmul.f32.gmra.mxu0 %v1298
  %v2339 = vpop.f32.mrf.mxu0
  %v2340 = vadd.f32 0.0, %v2339
  %2341 = vmatmul.f32.gmra.mxu0 %v1300
  %v2342 = vpop.f32.mrf.mxu0
  %v2343 = vadd.f32 0.0, %v2342
  %2344 = vmatmul.f32.gmra.mxu0 %v1302
  %v2345 = vpop.f32.mrf.mxu0
  %v2346 = vadd.f32 0.0, %v2345
  %2347 = vmatmul.f32.gmra.mxu0 %v1304
  %v2348 = vpop.f32.mrf.mxu0
  %v2349 = vadd.f32 0.0, %v2348
  %2350 = vmatmul.f32.gmra.mxu0 %v1306
  %v2351 = vpop.f32.mrf.mxu0
  %v2352 = vadd.f32 0.0, %v2351
  %2353 = vmatmul.f32.gmra.mxu0 %v2239
  %v2354 = vpop.f32.mrf.mxu0
  %v2355 = vadd.f32 0.0, %v2354
  %2356 = vmatmul.f32.gmra.mxu0 %v2241
  %v2357 = vpop.f32.mrf.mxu0
  %v2358 = vadd.f32 0.0, %v2357
  %2359 = vmatmul.f32.gmra.mxu0 %v1312
  %v2360 = vpop.f32.mrf.mxu0
  %v2361 = vadd.f32 0.0, %v2360
  %2362 = vmatmul.f32.gmra.mxu0 %v1314
  %v2363 = vpop.f32.mrf.mxu0
  %v2364 = vadd.f32 0.0, %v2363
  %2365 = vmatmul.f32.gmra.mxu0 %v1316
  %v2366 = vpop.f32.mrf.mxu0
  %v2367 = vadd.f32 0.0, %v2366
  %2368 = vmatmul.f32.gmra.mxu0 %v1318
  %v2369 = vpop.f32.mrf.mxu0
  %v2370 = vadd.f32 0.0, %v2369
  %2371 = vmatmul.f32.gmra.mxu0 %v1320
  %v2372 = vpop.f32.mrf.mxu0
  %v2373 = vadd.f32 0.0, %v2372
  %2374 = vmatmul.f32.gmra.mxu0 %v1322
  %v2375 = vpop.f32.mrf.mxu0
  %v2376 = vadd.f32 0.0, %v2375
  %2377 = vmatmul.f32.gmra.mxu0 %v1324
  %v2378 = vpop.f32.mrf.mxu0
  %v2379 = vadd.f32 0.0, %v2378
  %2380 = vmatmul.f32.gmra.mxu0 %v1326
  %v2381 = vpop.f32.mrf.mxu0
  %v2382 = vadd.f32 0.0, %v2381
  %2383 = vmatmul.f32.gmra.mxu0 %v1328
  %v2384 = vpop.f32.mrf.mxu0
  %v2385 = vadd.f32 0.0, %v2384
  %2386 = vmatmul.f32.gmra.mxu0 %v1330
  %v2387 = vpop.f32.mrf.mxu0
  %v2388 = vadd.f32 0.0, %v2387
  %2389 = vmatmul.f32.gmra.mxu0 %v1332
  %v2390 = vpop.f32.mrf.mxu0
  %v2391 = vadd.f32 0.0, %v2390
  %2392 = vmatmul.f32.gmra.mxu0 %v1334
  %v2393 = vpop.f32.mrf.mxu0
  %v2394 = vadd.f32 0.0, %v2393
  %2395 = vmatmul.f32.gmra.mxu0 %v1336
  %v2396 = vpop.f32.mrf.mxu0
  %v2397 = vadd.f32 0.0, %v2396
  %2398 = vmatmul.f32.gmra.mxu0 %v1338
  %v2399 = vpop.f32.mrf.mxu0
  %v2400 = vadd.f32 0.0, %v2399
  %2401 = vmatmul.f32.gmra.mxu0 %v1340
  %v2402 = vpop.f32.mrf.mxu0
  %v2403 = vadd.f32 0.0, %v2402
  %2404 = vmatmul.f32.gmra.mxu0 %v1342
  %v2405 = vpop.f32.mrf.mxu0
  %v2406 = vadd.f32 0.0, %v2405
  %2407 = vmatmul.f32.gmra.mxu0 %v1344
  %v2408 = vpop.f32.mrf.mxu0
  %v2409 = vadd.f32 0.0, %v2408
  %2410 = vmatmul.f32.gmra.mxu0 %v1346
  %v2411 = vpop.f32.mrf.mxu0
  %v2412 = vadd.f32 0.0, %v2411
  %2413 = vmatmul.f32.gmra.mxu0 %v1348
  %v2414 = vpop.f32.mrf.mxu0
  %v2415 = vadd.f32 0.0, %v2414
  %2416 = vmatmul.f32.gmra.mxu0 %v1350
  %v2417 = vpop.f32.mrf.mxu0
  %v2418 = vadd.f32 0.0, %v2417
  %2419 = vmatmul.f32.gmra.mxu0 %v1352
  %v2420 = vpop.f32.mrf.mxu0
  %v2421 = vadd.f32 0.0, %v2420
  %2422 = vmatmul.f32.gmra.mxu0 %v1354
  %v2423 = vpop.f32.mrf.mxu0
  %v2424 = vadd.f32 0.0, %v2423
  %2425 = vmatmul.f32.gmra.mxu0 %v1356
  %v2426 = vpop.f32.mrf.mxu0
  %v2427 = vadd.f32 0.0, %v2426
  %2428 = vmatmul.f32.gmra.mxu0 %v1358
  %v2429 = vpop.f32.mrf.mxu0
  %v2430 = vadd.f32 0.0, %v2429
  %2431 = vmatmul.f32.gmra.mxu0 %v1360
  %v2432 = vpop.f32.mrf.mxu0
  %v2433 = vadd.f32 0.0, %v2432
  %2434 = vmatmul.f32.gmra.mxu0 %v1362
  %v2435 = vpop.f32.mrf.mxu0
  %v2436 = vadd.f32 0.0, %v2435
  %2437 = vmatmul.f32.gmra.mxu0 %v1364
  %v2438 = vpop.f32.mrf.mxu0
  %v2439 = vadd.f32 0.0, %v2438
  %2440 = vmatmul.f32.gmra.mxu0 %v1366
  %v2441 = vpop.f32.mrf.mxu0
  %v2442 = vadd.f32 0.0, %v2441
  %2443 = vmatmul.f32.gmra.mxu0 %v1368
  %v2444 = vpop.f32.mrf.mxu0
  %v2445 = vadd.f32 0.0, %v2444
  %2446 = vmatmul.f32.gmra.mxu0 %v1370
  %v2447 = vpop.f32.mrf.mxu0
  %v2448 = vadd.f32 0.0, %v2447
  %2449 = vmatmul.f32.gmra.mxu0 %v2243
  %v2450 = vpop.f32.mrf.mxu0
  %v2451 = vadd.f32 0.0, %v2450
  %2452 = vmatmul.f32.gmra.mxu0 %v2245
  %v2453 = vpop.f32.mrf.mxu0
  %v2454 = vadd.f32 0.0, %v2453
  %2455 = vdwg.mxu0
  %v2456 = vadd.f32 %v2163, %v2265
  %v2457 = vadd.f32 %v2164, %v2268
  %v2458 = vadd.f32 %v2165, %v2271
  %v2459 = vadd.f32 %v2166, %v2274
  %v2460 = vadd.f32 %v2167, %v2277
  %v2461 = vadd.f32 %v2168, %v2280
  %v2462 = vadd.f32 %v2169, %v2283
  %v2463 = vadd.f32 %v2170, %v2286
  %v2464 = vadd.f32 %v2171, %v2289
  %v2465 = vadd.f32 %v2172, %v2292
  %v2466 = vadd.f32 %v2173, %v2295
  %v2467 = vadd.f32 %v2174, %v2298
  %v2468 = vadd.f32 %v2175, %v2301
  %v2469 = vadd.f32 %v2176, %v2304
  %v2470 = vadd.f32 %v2177, %v2307
  %v2471 = vadd.f32 %v2178, %v2310
  %v2472 = vadd.f32 %v2179, %v2313
  %v2473 = vadd.f32 %v2180, %v2316
  %v2474 = vadd.f32 %v2181, %v2319
  %v2475 = vadd.f32 %v2182, %v2322
  %v2476 = vadd.f32 %v2183, %v2325
  %v2477 = vadd.f32 %v2184, %v2328
  %v2478 = vadd.f32 %v2185, %v2331
  %v2479 = vadd.f32 %v2186, %v2334
  %v2480 = vadd.f32 %v2187, %v2337
  %v2481 = vadd.f32 %v2188, %v2340
  %v2482 = vadd.f32 %v2189, %v2343
  %v2483 = vadd.f32 %v2190, %v2346
  %v2484 = vadd.f32 %v2191, %v2349
  %v2485 = vadd.f32 %v2192, %v2352
  %v2486 = vadd.f32 %v2193, %v2355
  %v2487 = vadd.f32 %v2194, %v2358
  %v2488 = vadd.f32 %v2195, %v2361
  %v2489 = vadd.f32 %v2196, %v2364
  %v2490 = vadd.f32 %v2197, %v2367
  %v2491 = vadd.f32 %v2198, %v2370
  %v2492 = vadd.f32 %v2199, %v2373
  %v2493 = vadd.f32 %v2200, %v2376
  %v2494 = vadd.f32 %v2201, %v2379
  %v2495 = vadd.f32 %v2202, %v2382
  %v2496 = vadd.f32 %v2203, %v2385
  %v2497 = vadd.f32 %v2204, %v2388
  %v2498 = vadd.f32 %v2205, %v2391
  %v2499 = vadd.f32 %v2206, %v2394
  %v2500 = vadd.f32 %v2207, %v2397
  %v2501 = vadd.f32 %v2208, %v2400
  %v2502 = vadd.f32 %v2209, %v2403
  %v2503 = vadd.f32 %v2210, %v2406
  %v2504 = vadd.f32 %v2211, %v2409
  %v2505 = vadd.f32 %v2212, %v2412
  %v2506 = vadd.f32 %v2213, %v2415
  %v2507 = vadd.f32 %v2214, %v2418
  %v2508 = vadd.f32 %v2215, %v2421
  %v2509 = vadd.f32 %v2216, %v2424
  %v2510 = vadd.f32 %v2217, %v2427
  %v2511 = vadd.f32 %v2218, %v2430
  %v2512 = vadd.f32 %v2219, %v2433
  %v2513 = vadd.f32 %v2220, %v2436
  %v2514 = vadd.f32 %v2221, %v2439
  %v2515 = vadd.f32 %v2222, %v2442
  %v2516 = vadd.f32 %v2223, %v2445
  %v2517 = vadd.f32 %v2224, %v2448
  %v2518 = vadd.f32 %v2225, %v2451
  %v2519 = vadd.f32 %v2226, %v2454
  %s2520 = scalar_lea.vmem %s2, 48
  %v2521 = vld [vmem:[%s2520] sm:$0xff]
  %v2523 = vsel %vm406, %v89, 0
  %v2526 = vsel %vm406, %v90, 0
  %v2529 = vsel %vm406, %v143, 0
  %v2532 = vsel %vm406, %v144, 0
  %2534 = vmatpush.msra.mxu0 0.0
  %2535 = vmatpush.msra.mxu0 0.0
  %2536 = vmatpush.msra.mxu0 0.0
  %2537 = vmatpush.msra.mxu0 0.0
  %2538 = vmatpush.msra.mxu0 0.0
  %2539 = vmatpush.msra.mxu0 0.0
  %2540 = vmatpush.msra.mxu0 0.0
  %2541 = vmatpush.msra.mxu0 0.0
  %2542 = vmatpush.msra.mxu0 0.0
  %2543 = vmatpush.msra.mxu0 0.0
  %2544 = vmatpush.msra.mxu0 0.0
  %2545 = vmatpush.msra.mxu0 0.0
  %2546 = vmatpush.msra.mxu0 0.0
  %2547 = vmatpush.msra.mxu0 0.0
  %2548 = vmatpush.msra.mxu0 0.0
  %2549 = vmatpush.msra.mxu0 %v2521
  %2550 = vmatmul.f32.gmra.mxu0 %v752
  %v2551 = vpop.f32.mrf.mxu0
  %v2552 = vadd.f32 0.0, %v2551
  %2553 = vmatmul.f32.gmra.mxu0 %v754
  %v2554 = vpop.f32.mrf.mxu0
  %v2555 = vadd.f32 0.0, %v2554
  %2556 = vmatmul.f32.gmra.mxu0 %v756
  %v2557 = vpop.f32.mrf.mxu0
  %v2558 = vadd.f32 0.0, %v2557
  %2559 = vmatmul.f32.gmra.mxu0 %v758
  %v2560 = vpop.f32.mrf.mxu0
  %v2561 = vadd.f32 0.0, %v2560
  %2562 = vmatmul.f32.gmra.mxu0 %v760
  %v2563 = vpop.f32.mrf.mxu0
  %v2564 = vadd.f32 0.0, %v2563
  %2565 = vmatmul.f32.gmra.mxu0 %v762
  %v2566 = vpop.f32.mrf.mxu0
  %v2567 = vadd.f32 0.0, %v2566
  %2568 = vmatmul.f32.gmra.mxu0 %v764
  %v2569 = vpop.f32.mrf.mxu0
  %v2570 = vadd.f32 0.0, %v2569
  %2571 = vmatmul.f32.gmra.mxu0 %v766
  %v2572 = vpop.f32.mrf.mxu0
  %v2573 = vadd.f32 0.0, %v2572
  %2574 = vmatmul.f32.gmra.mxu0 %v768
  %v2575 = vpop.f32.mrf.mxu0
  %v2576 = vadd.f32 0.0, %v2575
  %2577 = vmatmul.f32.gmra.mxu0 %v770
  %v2578 = vpop.f32.mrf.mxu0
  %v2579 = vadd.f32 0.0, %v2578
  %2580 = vmatmul.f32.gmra.mxu0 %v772
  %v2581 = vpop.f32.mrf.mxu0
  %v2582 = vadd.f32 0.0, %v2581
  %2583 = vmatmul.f32.gmra.mxu0 %v774
  %v2584 = vpop.f32.mrf.mxu0
  %v2585 = vadd.f32 0.0, %v2584
  %2586 = vmatmul.f32.gmra.mxu0 %v776
  %v2587 = vpop.f32.mrf.mxu0
  %v2588 = vadd.f32 0.0, %v2587
  %2589 = vmatmul.f32.gmra.mxu0 %v778
  %v2590 = vpop.f32.mrf.mxu0
  %v2591 = vadd.f32 0.0, %v2590
  %2592 = vmatmul.f32.gmra.mxu0 %v780
  %v2593 = vpop.f32.mrf.mxu0
  %v2594 = vadd.f32 0.0, %v2593
  %2595 = vmatmul.f32.gmra.mxu0 %v782
  %v2596 = vpop.f32.mrf.mxu0
  %v2597 = vadd.f32 0.0, %v2596
  %2598 = vmatmul.f32.gmra.mxu0 %v784
  %v2599 = vpop.f32.mrf.mxu0
  %v2600 = vadd.f32 0.0, %v2599
  %2601 = vmatmul.f32.gmra.mxu0 %v786
  %v2602 = vpop.f32.mrf.mxu0
  %v2603 = vadd.f32 0.0, %v2602
  %2604 = vmatmul.f32.gmra.mxu0 %v788
  %v2605 = vpop.f32.mrf.mxu0
  %v2606 = vadd.f32 0.0, %v2605
  %2607 = vmatmul.f32.gmra.mxu0 %v790
  %v2608 = vpop.f32.mrf.mxu0
  %v2609 = vadd.f32 0.0, %v2608
  %2610 = vmatmul.f32.gmra.mxu0 %v792
  %v2611 = vpop.f32.mrf.mxu0
  %v2612 = vadd.f32 0.0, %v2611
  %2613 = vmatmul.f32.gmra.mxu0 %v794
  %v2614 = vpop.f32.mrf.mxu0
  %v2615 = vadd.f32 0.0, %v2614
  %2616 = vmatmul.f32.gmra.mxu0 %v796
  %v2617 = vpop.f32.mrf.mxu0
  %v2618 = vadd.f32 0.0, %v2617
  %2619 = vmatmul.f32.gmra.mxu0 %v798
  %v2620 = vpop.f32.mrf.mxu0
  %v2621 = vadd.f32 0.0, %v2620
  %2622 = vmatmul.f32.gmra.mxu0 %v800
  %v2623 = vpop.f32.mrf.mxu0
  %v2624 = vadd.f32 0.0, %v2623
  %2625 = vmatmul.f32.gmra.mxu0 %v802
  %v2626 = vpop.f32.mrf.mxu0
  %v2627 = vadd.f32 0.0, %v2626
  %2628 = vmatmul.f32.gmra.mxu0 %v804
  %v2629 = vpop.f32.mrf.mxu0
  %v2630 = vadd.f32 0.0, %v2629
  %2631 = vmatmul.f32.gmra.mxu0 %v806
  %v2632 = vpop.f32.mrf.mxu0
  %v2633 = vadd.f32 0.0, %v2632
  %2634 = vmatmul.f32.gmra.mxu0 %v1648
  %v2635 = vpop.f32.mrf.mxu0
  %v2636 = vadd.f32 0.0, %v2635
  %2637 = vmatmul.f32.gmra.mxu0 %v1651
  %v2638 = vpop.f32.mrf.mxu0
  %v2639 = vadd.f32 0.0, %v2638
  %2640 = vmatmul.f32.gmra.mxu0 %v2523
  %v2641 = vpop.f32.mrf.mxu0
  %v2642 = vadd.f32 0.0, %v2641
  %2643 = vmatmul.f32.gmra.mxu0 %v2526
  %v2644 = vpop.f32.mrf.mxu0
  %v2645 = vadd.f32 0.0, %v2644
  %2646 = vmatmul.f32.gmra.mxu0 %v816
  %v2647 = vpop.f32.mrf.mxu0
  %v2648 = vadd.f32 0.0, %v2647
  %2649 = vmatmul.f32.gmra.mxu0 %v818
  %v2650 = vpop.f32.mrf.mxu0
  %v2651 = vadd.f32 0.0, %v2650
  %2652 = vmatmul.f32.gmra.mxu0 %v820
  %v2653 = vpop.f32.mrf.mxu0
  %v2654 = vadd.f32 0.0, %v2653
  %2655 = vmatmul.f32.gmra.mxu0 %v822
  %v2656 = vpop.f32.mrf.mxu0
  %v2657 = vadd.f32 0.0, %v2656
  %2658 = vmatmul.f32.gmra.mxu0 %v824
  %v2659 = vpop.f32.mrf.mxu0
  %v2660 = vadd.f32 0.0, %v2659
  %2661 = vmatmul.f32.gmra.mxu0 %v826
  %v2662 = vpop.f32.mrf.mxu0
  %v2663 = vadd.f32 0.0, %v2662
  %2664 = vmatmul.f32.gmra.mxu0 %v828
  %v2665 = vpop.f32.mrf.mxu0
  %v2666 = vadd.f32 0.0, %v2665
  %2667 = vmatmul.f32.gmra.mxu0 %v830
  %v2668 = vpop.f32.mrf.mxu0
  %v2669 = vadd.f32 0.0, %v2668
  %2670 = vmatmul.f32.gmra.mxu0 %v832
  %v2671 = vpop.f32.mrf.mxu0
  %v2672 = vadd.f32 0.0, %v2671
  %2673 = vmatmul.f32.gmra.mxu0 %v834
  %v2674 = vpop.f32.mrf.mxu0
  %v2675 = vadd.f32 0.0, %v2674
  %2676 = vmatmul.f32.gmra.mxu0 %v836
  %v2677 = vpop.f32.mrf.mxu0
  %v2678 = vadd.f32 0.0, %v2677
  %2679 = vmatmul.f32.gmra.mxu0 %v838
  %v2680 = vpop.f32.mrf.mxu0
  %v2681 = vadd.f32 0.0, %v2680
  %2682 = vmatmul.f32.gmra.mxu0 %v840
  %v2683 = vpop.f32.mrf.mxu0
  %v2684 = vadd.f32 0.0, %v2683
  %2685 = vmatmul.f32.gmra.mxu0 %v842
  %v2686 = vpop.f32.mrf.mxu0
  %v2687 = vadd.f32 0.0, %v2686
  %2688 = vmatmul.f32.gmra.mxu0 %v844
  %v2689 = vpop.f32.mrf.mxu0
  %v2690 = vadd.f32 0.0, %v2689
  %2691 = vmatmul.f32.gmra.mxu0 %v846
  %v2692 = vpop.f32.mrf.mxu0
  %v2693 = vadd.f32 0.0, %v2692
  %2694 = vmatmul.f32.gmra.mxu0 %v848
  %v2695 = vpop.f32.mrf.mxu0
  %v2696 = vadd.f32 0.0, %v2695
  %2697 = vmatmul.f32.gmra.mxu0 %v850
  %v2698 = vpop.f32.mrf.mxu0
  %v2699 = vadd.f32 0.0, %v2698
  %2700 = vmatmul.f32.gmra.mxu0 %v852
  %v2701 = vpop.f32.mrf.mxu0
  %v2702 = vadd.f32 0.0, %v2701
  %2703 = vmatmul.f32.gmra.mxu0 %v854
  %v2704 = vpop.f32.mrf.mxu0
  %v2705 = vadd.f32 0.0, %v2704
  %2706 = vmatmul.f32.gmra.mxu0 %v856
  %v2707 = vpop.f32.mrf.mxu0
  %v2708 = vadd.f32 0.0, %v2707
  %2709 = vmatmul.f32.gmra.mxu0 %v858
  %v2710 = vpop.f32.mrf.mxu0
  %v2711 = vadd.f32 0.0, %v2710
  %2712 = vmatmul.f32.gmra.mxu0 %v860
  %v2713 = vpop.f32.mrf.mxu0
  %v2714 = vadd.f32 0.0, %v2713
  %2715 = vmatmul.f32.gmra.mxu0 %v862
  %v2716 = vpop.f32.mrf.mxu0
  %v2717 = vadd.f32 0.0, %v2716
  %2718 = vmatmul.f32.gmra.mxu0 %v864
  %v2719 = vpop.f32.mrf.mxu0
  %v2720 = vadd.f32 0.0, %v2719
  %2721 = vmatmul.f32.gmra.mxu0 %v866
  %v2722 = vpop.f32.mrf.mxu0
  %v2723 = vadd.f32 0.0, %v2722
  %2724 = vmatmul.f32.gmra.mxu0 %v868
  %v2725 = vpop.f32.mrf.mxu0
  %v2726 = vadd.f32 0.0, %v2725
  %2727 = vmatmul.f32.gmra.mxu0 %v870
  %v2728 = vpop.f32.mrf.mxu0
  %v2729 = vadd.f32 0.0, %v2728
  %2730 = vmatmul.f32.gmra.mxu0 %v1654
  %v2731 = vpop.f32.mrf.mxu0
  %v2732 = vadd.f32 0.0, %v2731
  %2733 = vmatmul.f32.gmra.mxu0 %v1657
  %v2734 = vpop.f32.mrf.mxu0
  %v2735 = vadd.f32 0.0, %v2734
  %2736 = vmatmul.f32.gmra.mxu0 %v2529
  %v2737 = vpop.f32.mrf.mxu0
  %v2738 = vadd.f32 0.0, %v2737
  %2739 = vmatmul.f32.gmra.mxu0 %v2532
  %v2740 = vpop.f32.mrf.mxu0
  %v2741 = vadd.f32 0.0, %v2740
  %2742 = vdwg.mxu0
  %v2743 = vadd.f32 %v2456, %v2552
  %v2744 = vadd.f32 %v2457, %v2555
  %v2745 = vadd.f32 %v2458, %v2558
  %v2746 = vadd.f32 %v2459, %v2561
  %v2747 = vadd.f32 %v2460, %v2564
  %v2748 = vadd.f32 %v2461, %v2567
  %v2749 = vadd.f32 %v2462, %v2570
  %v2750 = vadd.f32 %v2463, %v2573
  %v2751 = vadd.f32 %v2464, %v2576
  %v2752 = vadd.f32 %v2465, %v2579
  %v2753 = vadd.f32 %v2466, %v2582
  %v2754 = vadd.f32 %v2467, %v2585
  %v2755 = vadd.f32 %v2468, %v2588
  %v2756 = vadd.f32 %v2469, %v2591
  %v2757 = vadd.f32 %v2470, %v2594
  %v2758 = vadd.f32 %v2471, %v2597
  %v2759 = vadd.f32 %v2472, %v2600
  %v2760 = vadd.f32 %v2473, %v2603
  %v2761 = vadd.f32 %v2474, %v2606
  %v2762 = vadd.f32 %v2475, %v2609
  %v2763 = vadd.f32 %v2476, %v2612
  %v2764 = vadd.f32 %v2477, %v2615
  %v2765 = vadd.f32 %v2478, %v2618
  %v2766 = vadd.f32 %v2479, %v2621
  %v2767 = vadd.f32 %v2480, %v2624
  %v2768 = vadd.f32 %v2481, %v2627
  %v2769 = vadd.f32 %v2482, %v2630
  %v2770 = vadd.f32 %v2483, %v2633
  %v2771 = vadd.f32 %v2484, %v2636
  %v2772 = vadd.f32 %v2485, %v2639
  %v2773 = vadd.f32 %v2486, %v2642
  %v2774 = vadd.f32 %v2487, %v2645
  %v2775 = vadd.f32 %v2488, %v2648
  %v2776 = vadd.f32 %v2489, %v2651
  %v2777 = vadd.f32 %v2490, %v2654
  %v2778 = vadd.f32 %v2491, %v2657
  %v2779 = vadd.f32 %v2492, %v2660
  %v2780 = vadd.f32 %v2493, %v2663
  %v2781 = vadd.f32 %v2494, %v2666
  %v2782 = vadd.f32 %v2495, %v2669
  %v2783 = vadd.f32 %v2496, %v2672
  %v2784 = vadd.f32 %v2497, %v2675
  %v2785 = vadd.f32 %v2498, %v2678
  %v2786 = vadd.f32 %v2499, %v2681
  %v2787 = vadd.f32 %v2500, %v2684
  %v2788 = vadd.f32 %v2501, %v2687
  %v2789 = vadd.f32 %v2502, %v2690
  %v2790 = vadd.f32 %v2503, %v2693
  %v2791 = vadd.f32 %v2504, %v2696
  %v2792 = vadd.f32 %v2505, %v2699
  %v2793 = vadd.f32 %v2506, %v2702
  %v2794 = vadd.f32 %v2507, %v2705
  %v2795 = vadd.f32 %v2508, %v2708
  %v2796 = vadd.f32 %v2509, %v2711
  %v2797 = vadd.f32 %v2510, %v2714
  %v2798 = vadd.f32 %v2511, %v2717
  %v2799 = vadd.f32 %v2512, %v2720
  %v2800 = vadd.f32 %v2513, %v2723
  %v2801 = vadd.f32 %v2514, %v2726
  %v2802 = vadd.f32 %v2515, %v2729
  %v2803 = vadd.f32 %v2516, %v2732
  %v2804 = vadd.f32 %v2517, %v2735
  %v2805 = vadd.f32 %v2518, %v2738
  %v2806 = vadd.f32 %v2519, %v2741
  %v2809 = vrot.slane %v89, 1
  %v2810 = vrot.slane %v90, 1
  %v2811 = vsel %vm243, %v2809, %v2810
  %v2812 = vrot.slane %v91, 1
  %v2813 = vsel %vm243, %v2810, %v2812
  %v2814 = vrot.slane %v143, 1
  %v2815 = vrot.slane %v144, 1
  %v2816 = vsel %vm243, %v2814, %v2815
  %v2817 = vrot.slane %v145, 1
  %v2818 = vsel %vm243, %v2815, %v2817
  %s2819 = scalar_lea.vmem %s2, 56
  %v2820 = vld [vmem:[%s2819] sm:$0xff]
  %v2821 = vsel %vm406, %v2811, 0
  %v2823 = vsel %vm406, %v2813, 0
  %v2825 = vsel %vm406, %v2816, 0
  %v2827 = vsel %vm406, %v2818, 0
  %2829 = vmatpush.msra.mxu0 0.0
  %2830 = vmatpush.msra.mxu0 0.0
  %2831 = vmatpush.msra.mxu0 0.0
  %2832 = vmatpush.msra.mxu0 0.0
  %2833 = vmatpush.msra.mxu0 0.0
  %2834 = vmatpush.msra.mxu0 0.0
  %2835 = vmatpush.msra.mxu0 0.0
  %2836 = vmatpush.msra.mxu0 0.0
  %2837 = vmatpush.msra.mxu0 0.0
  %2838 = vmatpush.msra.mxu0 0.0
  %2839 = vmatpush.msra.mxu0 0.0
  %2840 = vmatpush.msra.mxu0 0.0
  %2841 = vmatpush.msra.mxu0 0.0
  %2842 = vmatpush.msra.mxu0 0.0
  %2843 = vmatpush.msra.mxu0 0.0
  %2844 = vmatpush.msra.mxu0 %v2820
  %2845 = vmatmul.f32.gmra.mxu0 %v415
  %v2846 = vpop.f32.mrf.mxu0
  %v2847 = vadd.f32 0.0, %v2846
  %2848 = vmatmul.f32.gmra.mxu0 %v417
  %v2849 = vpop.f32.mrf.mxu0
  %v2850 = vadd.f32 0.0, %v2849
  %2851 = vmatmul.f32.gmra.mxu0 %v419
  %v2852 = vpop.f32.mrf.mxu0
  %v2853 = vadd.f32 0.0, %v2852
  %2854 = vmatmul.f32.gmra.mxu0 %v421
  %v2855 = vpop.f32.mrf.mxu0
  %v2856 = vadd.f32 0.0, %v2855
  %2857 = vmatmul.f32.gmra.mxu0 %v423
  %v2858 = vpop.f32.mrf.mxu0
  %v2859 = vadd.f32 0.0, %v2858
  %2860 = vmatmul.f32.gmra.mxu0 %v425
  %v2861 = vpop.f32.mrf.mxu0
  %v2862 = vadd.f32 0.0, %v2861
  %2863 = vmatmul.f32.gmra.mxu0 %v427
  %v2864 = vpop.f32.mrf.mxu0
  %v2865 = vadd.f32 0.0, %v2864
  %2866 = vmatmul.f32.gmra.mxu0 %v429
  %v2867 = vpop.f32.mrf.mxu0
  %v2868 = vadd.f32 0.0, %v2867
  %2869 = vmatmul.f32.gmra.mxu0 %v431
  %v2870 = vpop.f32.mrf.mxu0
  %v2871 = vadd.f32 0.0, %v2870
  %2872 = vmatmul.f32.gmra.mxu0 %v433
  %v2873 = vpop.f32.mrf.mxu0
  %v2874 = vadd.f32 0.0, %v2873
  %2875 = vmatmul.f32.gmra.mxu0 %v435
  %v2876 = vpop.f32.mrf.mxu0
  %v2877 = vadd.f32 0.0, %v2876
  %2878 = vmatmul.f32.gmra.mxu0 %v437
  %v2879 = vpop.f32.mrf.mxu0
  %v2880 = vadd.f32 0.0, %v2879
  %2881 = vmatmul.f32.gmra.mxu0 %v439
  %v2882 = vpop.f32.mrf.mxu0
  %v2883 = vadd.f32 0.0, %v2882
  %2884 = vmatmul.f32.gmra.mxu0 %v441
  %v2885 = vpop.f32.mrf.mxu0
  %v2886 = vadd.f32 0.0, %v2885
  %2887 = vmatmul.f32.gmra.mxu0 %v443
  %v2888 = vpop.f32.mrf.mxu0
  %v2889 = vadd.f32 0.0, %v2888
  %2890 = vmatmul.f32.gmra.mxu0 %v445
  %v2891 = vpop.f32.mrf.mxu0
  %v2892 = vadd.f32 0.0, %v2891
  %2893 = vmatmul.f32.gmra.mxu0 %v447
  %v2894 = vpop.f32.mrf.mxu0
  %v2895 = vadd.f32 0.0, %v2894
  %2896 = vmatmul.f32.gmra.mxu0 %v449
  %v2897 = vpop.f32.mrf.mxu0
  %v2898 = vadd.f32 0.0, %v2897
  %2899 = vmatmul.f32.gmra.mxu0 %v451
  %v2900 = vpop.f32.mrf.mxu0
  %v2901 = vadd.f32 0.0, %v2900
  %2902 = vmatmul.f32.gmra.mxu0 %v453
  %v2903 = vpop.f32.mrf.mxu0
  %v2904 = vadd.f32 0.0, %v2903
  %2905 = vmatmul.f32.gmra.mxu0 %v455
  %v2906 = vpop.f32.mrf.mxu0
  %v2907 = vadd.f32 0.0, %v2906
  %2908 = vmatmul.f32.gmra.mxu0 %v457
  %v2909 = vpop.f32.mrf.mxu0
  %v2910 = vadd.f32 0.0, %v2909
  %2911 = vmatmul.f32.gmra.mxu0 %v459
  %v2912 = vpop.f32.mrf.mxu0
  %v2913 = vadd.f32 0.0, %v2912
  %2914 = vmatmul.f32.gmra.mxu0 %v461
  %v2915 = vpop.f32.mrf.mxu0
  %v2916 = vadd.f32 0.0, %v2915
  %2917 = vmatmul.f32.gmra.mxu0 %v463
  %v2918 = vpop.f32.mrf.mxu0
  %v2919 = vadd.f32 0.0, %v2918
  %2920 = vmatmul.f32.gmra.mxu0 %v465
  %v2921 = vpop.f32.mrf.mxu0
  %v2922 = vadd.f32 0.0, %v2921
  %2923 = vmatmul.f32.gmra.mxu0 %v467
  %v2924 = vpop.f32.mrf.mxu0
  %v2925 = vadd.f32 0.0, %v2924
  %2926 = vmatmul.f32.gmra.mxu0 %v469
  %v2927 = vpop.f32.mrf.mxu0
  %v2928 = vadd.f32 0.0, %v2927
  %2929 = vmatmul.f32.gmra.mxu0 %v1946
  %v2930 = vpop.f32.mrf.mxu0
  %v2931 = vadd.f32 0.0, %v2930
  %2932 = vmatmul.f32.gmra.mxu0 %v1948
  %v2933 = vpop.f32.mrf.mxu0
  %v2934 = vadd.f32 0.0, %v2933
  %2935 = vmatmul.f32.gmra.mxu0 %v2821
  %v2936 = vpop.f32.mrf.mxu0
  %v2937 = vadd.f32 0.0, %v2936
  %2938 = vmatmul.f32.gmra.mxu0 %v2823
  %v2939 = vpop.f32.mrf.mxu0
  %v2940 = vadd.f32 0.0, %v2939
  %2941 = vmatmul.f32.gmra.mxu0 %v479
  %v2942 = vpop.f32.mrf.mxu0
  %v2943 = vadd.f32 0.0, %v2942
  %2944 = vmatmul.f32.gmra.mxu0 %v481
  %v2945 = vpop.f32.mrf.mxu0
  %v2946 = vadd.f32 0.0, %v2945
  %2947 = vmatmul.f32.gmra.mxu0 %v483
  %v2948 = vpop.f32.mrf.mxu0
  %v2949 = vadd.f32 0.0, %v2948
  %2950 = vmatmul.f32.gmra.mxu0 %v485
  %v2951 = vpop.f32.mrf.mxu0
  %v2952 = vadd.f32 0.0, %v2951
  %2953 = vmatmul.f32.gmra.mxu0 %v487
  %v2954 = vpop.f32.mrf.mxu0
  %v2955 = vadd.f32 0.0, %v2954
  %2956 = vmatmul.f32.gmra.mxu0 %v489
  %v2957 = vpop.f32.mrf.mxu0
  %v2958 = vadd.f32 0.0, %v2957
  %2959 = vmatmul.f32.gmra.mxu0 %v491
  %v2960 = vpop.f32.mrf.mxu0
  %v2961 = vadd.f32 0.0, %v2960
  %2962 = vmatmul.f32.gmra.mxu0 %v493
  %v2963 = vpop.f32.mrf.mxu0
  %v2964 = vadd.f32 0.0, %v2963
  %2965 = vmatmul.f32.gmra.mxu0 %v495
  %v2966 = vpop.f32.mrf.mxu0
  %v2967 = vadd.f32 0.0, %v2966
  %2968 = vmatmul.f32.gmra.mxu0 %v497
  %v2969 = vpop.f32.mrf.mxu0
  %v2970 = vadd.f32 0.0, %v2969
  %2971 = vmatmul.f32.gmra.mxu0 %v499
  %v2972 = vpop.f32.mrf.mxu0
  %v2973 = vadd.f32 0.0, %v2972
  %2974 = vmatmul.f32.gmra.mxu0 %v501
  %v2975 = vpop.f32.mrf.mxu0
  %v2976 = vadd.f32 0.0, %v2975
  %2977 = vmatmul.f32.gmra.mxu0 %v503
  %v2978 = vpop.f32.mrf.mxu0
  %v2979 = vadd.f32 0.0, %v2978
  %2980 = vmatmul.f32.gmra.mxu0 %v505
  %v2981 = vpop.f32.mrf.mxu0
  %v2982 = vadd.f32 0.0, %v2981
  %2983 = vmatmul.f32.gmra.mxu0 %v507
  %v2984 = vpop.f32.mrf.mxu0
  %v2985 = vadd.f32 0.0, %v2984
  %2986 = vmatmul.f32.gmra.mxu0 %v509
  %v2987 = vpop.f32.mrf.mxu0
  %v2988 = vadd.f32 0.0, %v2987
  %2989 = vmatmul.f32.gmra.mxu0 %v511
  %v2990 = vpop.f32.mrf.mxu0
  %v2991 = vadd.f32 0.0, %v2990
  %2992 = vmatmul.f32.gmra.mxu0 %v513
  %v2993 = vpop.f32.mrf.mxu0
  %v2994 = vadd.f32 0.0, %v2993
  %2995 = vmatmul.f32.gmra.mxu0 %v515
  %v2996 = vpop.f32.mrf.mxu0
  %v2997 = vadd.f32 0.0, %v2996
  %2998 = vmatmul.f32.gmra.mxu0 %v517
  %v2999 = vpop.f32.mrf.mxu0
  %v3000 = vadd.f32 0.0, %v2999
  %3001 = vmatmul.f32.gmra.mxu0 %v519
  %v3002 = vpop.f32.mrf.mxu0
  %v3003 = vadd.f32 0.0, %v3002
  %3004 = vmatmul.f32.gmra.mxu0 %v521
  %v3005 = vpop.f32.mrf.mxu0
  %v3006 = vadd.f32 0.0, %v3005
  %3007 = vmatmul.f32.gmra.mxu0 %v523
  %v3008 = vpop.f32.mrf.mxu0
  %v3009 = vadd.f32 0.0, %v3008
  %3010 = vmatmul.f32.gmra.mxu0 %v525
  %v3011 = vpop.f32.mrf.mxu0
  %v3012 = vadd.f32 0.0, %v3011
  %3013 = vmatmul.f32.gmra.mxu0 %v527
  %v3014 = vpop.f32.mrf.mxu0
  %v3015 = vadd.f32 0.0, %v3014
  %3016 = vmatmul.f32.gmra.mxu0 %v529
  %v3017 = vpop.f32.mrf.mxu0
  %v3018 = vadd.f32 0.0, %v3017
  %3019 = vmatmul.f32.gmra.mxu0 %v531
  %v3020 = vpop.f32.mrf.mxu0
  %v3021 = vadd.f32 0.0, %v3020
  %3022 = vmatmul.f32.gmra.mxu0 %v533
  %v3023 = vpop.f32.mrf.mxu0
  %v3024 = vadd.f32 0.0, %v3023
  %3025 = vmatmul.f32.gmra.mxu0 %v1950
  %v3026 = vpop.f32.mrf.mxu0
  %v3027 = vadd.f32 0.0, %v3026
  %3028 = vmatmul.f32.gmra.mxu0 %v1952
  %v3029 = vpop.f32.mrf.mxu0
  %v3030 = vadd.f32 0.0, %v3029
  %3031 = vmatmul.f32.gmra.mxu0 %v2825
  %v3032 = vpop.f32.mrf.mxu0
  %v3033 = vadd.f32 0.0, %v3032
  %3034 = vmatmul.f32.gmra.mxu0 %v2827
  %v3035 = vpop.f32.mrf.mxu0
  %v3036 = vadd.f32 0.0, %v3035
  %3037 = vdwg.mxu0
  %v3038 = vadd.f32 %v2743, %v2847
  %v3039 = vadd.f32 %v2744, %v2850
  %v3040 = vadd.f32 %v2745, %v2853
  %v3041 = vadd.f32 %v2746, %v2856
  %v3042 = vadd.f32 %v2747, %v2859
  %v3043 = vadd.f32 %v2748, %v2862
  %v3044 = vadd.f32 %v2749, %v2865
  %v3045 = vadd.f32 %v2750, %v2868
  %v3046 = vadd.f32 %v2751, %v2871
  %v3047 = vadd.f32 %v2752, %v2874
  %v3048 = vadd.f32 %v2753, %v2877
  %v3049 = vadd.f32 %v2754, %v2880
  %v3050 = vadd.f32 %v2755, %v2883
  %v3051 = vadd.f32 %v2756, %v2886
  %v3052 = vadd.f32 %v2757, %v2889
  %v3053 = vadd.f32 %v2758, %v2892
  %v3054 = vadd.f32 %v2759, %v2895
  %v3055 = vadd.f32 %v2760, %v2898
  %v3056 = vadd.f32 %v2761, %v2901
  %v3057 = vadd.f32 %v2762, %v2904
  %v3058 = vadd.f32 %v2763, %v2907
  %v3059 = vadd.f32 %v2764, %v2910
  %v3060 = vadd.f32 %v2765, %v2913
  %v3061 = vadd.f32 %v2766, %v2916
  %v3062 = vadd.f32 %v2767, %v2919
  %v3063 = vadd.f32 %v2768, %v2922
  %v3064 = vadd.f32 %v2769, %v2925
  %v3065 = vadd.f32 %v2770, %v2928
  %v3066 = vadd.f32 %v2771, %v2931
  %v3067 = vadd.f32 %v2772, %v2934
  %v3068 = vadd.f32 %v2773, %v2937
  %v3069 = vadd.f32 %v2774, %v2940
  %v3070 = vadd.f32 %v2775, %v2943
  %v3071 = vadd.f32 %v2776, %v2946
  %v3072 = vadd.f32 %v2777, %v2949
  %v3073 = vadd.f32 %v2778, %v2952
  %v3074 = vadd.f32 %v2779, %v2955
  %v3075 = vadd.f32 %v2780, %v2958
  %v3076 = vadd.f32 %v2781, %v2961
  %v3077 = vadd.f32 %v2782, %v2964
  %v3078 = vadd.f32 %v2783, %v2967
  %v3079 = vadd.f32 %v2784, %v2970
  %v3080 = vadd.f32 %v2785, %v2973
  %v3081 = vadd.f32 %v2786, %v2976
  %v3082 = vadd.f32 %v2787, %v2979
  %v3083 = vadd.f32 %v2788, %v2982
  %v3084 = vadd.f32 %v2789, %v2985
  %v3085 = vadd.f32 %v2790, %v2988
  %v3086 = vadd.f32 %v2791, %v2991
  %v3087 = vadd.f32 %v2792, %v2994
  %v3088 = vadd.f32 %v2793, %v2997
  %v3089 = vadd.f32 %v2794, %v3000
  %v3090 = vadd.f32 %v2795, %v3003
  %v3091 = vadd.f32 %v2796, %v3006
  %v3092 = vadd.f32 %v2797, %v3009
  %v3093 = vadd.f32 %v2798, %v3012
  %v3094 = vadd.f32 %v2799, %v3015
  %v3095 = vadd.f32 %v2800, %v3018
  %v3096 = vadd.f32 %v2801, %v3021
  %v3097 = vadd.f32 %v2802, %v3024
  %v3098 = vadd.f32 %v2803, %v3027
  %v3099 = vadd.f32 %v2804, %v3030
  %v3100 = vadd.f32 %v2805, %v3033
  %v3101 = vadd.f32 %v2806, %v3036
  %v3102 = vrot.slane %v89, 2
  %v3103 = vrot.slane %v90, 2
  %v3104 = vsel %vm1081, %v3102, %v3103
  %v3105 = vrot.slane %v91, 2
  %v3106 = vsel %vm1081, %v3103, %v3105
  %v3107 = vrot.slane %v143, 2
  %v3108 = vrot.slane %v144, 2
  %v3109 = vsel %vm1081, %v3107, %v3108
  %v3110 = vrot.slane %v145, 2
  %v3111 = vsel %vm1081, %v3108, %v3110
  %s3112 = scalar_lea.vmem %s2, 64
  %v3113 = vld [vmem:[%s3112] sm:$0xff]
  %v3114 = vsel %vm406, %v3104, 0
  %v3116 = vsel %vm406, %v3106, 0
  %v3118 = vsel %vm406, %v3109, 0
  %v3120 = vsel %vm406, %v3111, 0
  %3122 = vmatpush.msra.mxu0 0.0
  %3123 = vmatpush.msra.mxu0 0.0
  %3124 = vmatpush.msra.mxu0 0.0
  %3125 = vmatpush.msra.mxu0 0.0
  %3126 = vmatpush.msra.mxu0 0.0
  %3127 = vmatpush.msra.mxu0 0.0
  %3128 = vmatpush.msra.mxu0 0.0
  %3129 = vmatpush.msra.mxu0 0.0
  %3130 = vmatpush.msra.mxu0 0.0
  %3131 = vmatpush.msra.mxu0 0.0
  %3132 = vmatpush.msra.mxu0 0.0
  %3133 = vmatpush.msra.mxu0 0.0
  %3134 = vmatpush.msra.mxu0 0.0
  %3135 = vmatpush.msra.mxu0 0.0
  %3136 = vmatpush.msra.mxu0 0.0
  %3137 = vmatpush.msra.mxu0 %v3113
  %3138 = vmatmul.f32.gmra.mxu0 %v1252
  %v3139 = vpop.f32.mrf.mxu0
  %v3140 = vadd.f32 0.0, %v3139
  %3141 = vmatmul.f32.gmra.mxu0 %v1254
  %v3142 = vpop.f32.mrf.mxu0
  %v3143 = vadd.f32 0.0, %v3142
  %3144 = vmatmul.f32.gmra.mxu0 %v1256
  %v3145 = vpop.f32.mrf.mxu0
  %v3146 = vadd.f32 0.0, %v3145
  %3147 = vmatmul.f32.gmra.mxu0 %v1258
  %v3148 = vpop.f32.mrf.mxu0
  %v3149 = vadd.f32 0.0, %v3148
  %3150 = vmatmul.f32.gmra.mxu0 %v1260
  %v3151 = vpop.f32.mrf.mxu0
  %v3152 = vadd.f32 0.0, %v3151
  %3153 = vmatmul.f32.gmra.mxu0 %v1262
  %v3154 = vpop.f32.mrf.mxu0
  %v3155 = vadd.f32 0.0, %v3154
  %3156 = vmatmul.f32.gmra.mxu0 %v1264
  %v3157 = vpop.f32.mrf.mxu0
  %v3158 = vadd.f32 0.0, %v3157
  %3159 = vmatmul.f32.gmra.mxu0 %v1266
  %v3160 = vpop.f32.mrf.mxu0
  %v3161 = vadd.f32 0.0, %v3160
  %3162 = vmatmul.f32.gmra.mxu0 %v1268
  %v3163 = vpop.f32.mrf.mxu0
  %v3164 = vadd.f32 0.0, %v3163
  %3165 = vmatmul.f32.gmra.mxu0 %v1270
  %v3166 = vpop.f32.mrf.mxu0
  %v3167 = vadd.f32 0.0, %v3166
  %3168 = vmatmul.f32.gmra.mxu0 %v1272
  %v3169 = vpop.f32.mrf.mxu0
  %v3170 = vadd.f32 0.0, %v3169
  %3171 = vmatmul.f32.gmra.mxu0 %v1274
  %v3172 = vpop.f32.mrf.mxu0
  %v3173 = vadd.f32 0.0, %v3172
  %3174 = vmatmul.f32.gmra.mxu0 %v1276
  %v3175 = vpop.f32.mrf.mxu0
  %v3176 = vadd.f32 0.0, %v3175
  %3177 = vmatmul.f32.gmra.mxu0 %v1278
  %v3178 = vpop.f32.mrf.mxu0
  %v3179 = vadd.f32 0.0, %v3178
  %3180 = vmatmul.f32.gmra.mxu0 %v1280
  %v3181 = vpop.f32.mrf.mxu0
  %v3182 = vadd.f32 0.0, %v3181
  %3183 = vmatmul.f32.gmra.mxu0 %v1282
  %v3184 = vpop.f32.mrf.mxu0
  %v3185 = vadd.f32 0.0, %v3184
  %3186 = vmatmul.f32.gmra.mxu0 %v1284
  %v3187 = vpop.f32.mrf.mxu0
  %v3188 = vadd.f32 0.0, %v3187
  %3189 = vmatmul.f32.gmra.mxu0 %v1286
  %v3190 = vpop.f32.mrf.mxu0
  %v3191 = vadd.f32 0.0, %v3190
  %3192 = vmatmul.f32.gmra.mxu0 %v1288
  %v3193 = vpop.f32.mrf.mxu0
  %v3194 = vadd.f32 0.0, %v3193
  %3195 = vmatmul.f32.gmra.mxu0 %v1290
  %v3196 = vpop.f32.mrf.mxu0
  %v3197 = vadd.f32 0.0, %v3196
  %3198 = vmatmul.f32.gmra.mxu0 %v1292
  %v3199 = vpop.f32.mrf.mxu0
  %v3200 = vadd.f32 0.0, %v3199
  %3201 = vmatmul.f32.gmra.mxu0 %v1294
  %v3202 = vpop.f32.mrf.mxu0
  %v3203 = vadd.f32 0.0, %v3202
  %3204 = vmatmul.f32.gmra.mxu0 %v1296
  %v3205 = vpop.f32.mrf.mxu0
  %v3206 = vadd.f32 0.0, %v3205
  %3207 = vmatmul.f32.gmra.mxu0 %v1298
  %v3208 = vpop.f32.mrf.mxu0
  %v3209 = vadd.f32 0.0, %v3208
  %3210 = vmatmul.f32.gmra.mxu0 %v1300
  %v3211 = vpop.f32.mrf.mxu0
  %v3212 = vadd.f32 0.0, %v3211
  %3213 = vmatmul.f32.gmra.mxu0 %v1302
  %v3214 = vpop.f32.mrf.mxu0
  %v3215 = vadd.f32 0.0, %v3214
  %3216 = vmatmul.f32.gmra.mxu0 %v1304
  %v3217 = vpop.f32.mrf.mxu0
  %v3218 = vadd.f32 0.0, %v3217
  %3219 = vmatmul.f32.gmra.mxu0 %v1306
  %v3220 = vpop.f32.mrf.mxu0
  %v3221 = vadd.f32 0.0, %v3220
  %3222 = vmatmul.f32.gmra.mxu0 %v2239
  %v3223 = vpop.f32.mrf.mxu0
  %v3224 = vadd.f32 0.0, %v3223
  %3225 = vmatmul.f32.gmra.mxu0 %v2241
  %v3226 = vpop.f32.mrf.mxu0
  %v3227 = vadd.f32 0.0, %v3226
  %3228 = vmatmul.f32.gmra.mxu0 %v3114
  %v3229 = vpop.f32.mrf.mxu0
  %v3230 = vadd.f32 0.0, %v3229
  %3231 = vmatmul.f32.gmra.mxu0 %v3116
  %v3232 = vpop.f32.mrf.mxu0
  %v3233 = vadd.f32 0.0, %v3232
  %3234 = vmatmul.f32.gmra.mxu0 %v1316
  %v3235 = vpop.f32.mrf.mxu0
  %v3236 = vadd.f32 0.0, %v3235
  %3237 = vmatmul.f32.gmra.mxu0 %v1318
  %v3238 = vpop.f32.mrf.mxu0
  %v3239 = vadd.f32 0.0, %v3238
  %3240 = vmatmul.f32.gmra.mxu0 %v1320
  %v3241 = vpop.f32.mrf.mxu0
  %v3242 = vadd.f32 0.0, %v3241
  %3243 = vmatmul.f32.gmra.mxu0 %v1322
  %v3244 = vpop.f32.mrf.mxu0
  %v3245 = vadd.f32 0.0, %v3244
  %3246 = vmatmul.f32.gmra.mxu0 %v1324
  %v3247 = vpop.f32.mrf.mxu0
  %v3248 = vadd.f32 0.0, %v3247
  %3249 = vmatmul.f32.gmra.mxu0 %v1326
  %v3250 = vpop.f32.mrf.mxu0
  %v3251 = vadd.f32 0.0, %v3250
  %3252 = vmatmul.f32.gmra.mxu0 %v1328
  %v3253 = vpop.f32.mrf.mxu0
  %v3254 = vadd.f32 0.0, %v3253
  %3255 = vmatmul.f32.gmra.mxu0 %v1330
  %v3256 = vpop.f32.mrf.mxu0
  %v3257 = vadd.f32 0.0, %v3256
  %3258 = vmatmul.f32.gmra.mxu0 %v1332
  %v3259 = vpop.f32.mrf.mxu0
  %v3260 = vadd.f32 0.0, %v3259
  %3261 = vmatmul.f32.gmra.mxu0 %v1334
  %v3262 = vpop.f32.mrf.mxu0
  %v3263 = vadd.f32 0.0, %v3262
  %3264 = vmatmul.f32.gmra.mxu0 %v1336
  %v3265 = vpop.f32.mrf.mxu0
  %v3266 = vadd.f32 0.0, %v3265
  %3267 = vmatmul.f32.gmra.mxu0 %v1338
  %v3268 = vpop.f32.mrf.mxu0
  %v3269 = vadd.f32 0.0, %v3268
  %3270 = vmatmul.f32.gmra.mxu0 %v1340
  %v3271 = vpop.f32.mrf.mxu0
  %v3272 = vadd.f32 0.0, %v3271
  %3273 = vmatmul.f32.gmra.mxu0 %v1342
  %v3274 = vpop.f32.mrf.mxu0
  %v3275 = vadd.f32 0.0, %v3274
  %3276 = vmatmul.f32.gmra.mxu0 %v1344
  %v3277 = vpop.f32.mrf.mxu0
  %v3278 = vadd.f32 0.0, %v3277
  %3279 = vmatmul.f32.gmra.mxu0 %v1346
  %v3280 = vpop.f32.mrf.mxu0
  %v3281 = vadd.f32 0.0, %v3280
  %3282 = vmatmul.f32.gmra.mxu0 %v1348
  %v3283 = vpop.f32.mrf.mxu0
  %v3284 = vadd.f32 0.0, %v3283
  %3285 = vmatmul.f32.gmra.mxu0 %v1350
  %v3286 = vpop.f32.mrf.mxu0
  %v3287 = vadd.f32 0.0, %v3286
  %3288 = vmatmul.f32.gmra.mxu0 %v1352
  %v3289 = vpop.f32.mrf.mxu0
  %v3290 = vadd.f32 0.0, %v3289
  %3291 = vmatmul.f32.gmra.mxu0 %v1354
  %v3292 = vpop.f32.mrf.mxu0
  %v3293 = vadd.f32 0.0, %v3292
  %3294 = vmatmul.f32.gmra.mxu0 %v1356
  %v3295 = vpop.f32.mrf.mxu0
  %v3296 = vadd.f32 0.0, %v3295
  %3297 = vmatmul.f32.gmra.mxu0 %v1358
  %v3298 = vpop.f32.mrf.mxu0
  %v3299 = vadd.f32 0.0, %v3298
  %3300 = vmatmul.f32.gmra.mxu0 %v1360
  %v3301 = vpop.f32.mrf.mxu0
  %v3302 = vadd.f32 0.0, %v3301
  %3303 = vmatmul.f32.gmra.mxu0 %v1362
  %v3304 = vpop.f32.mrf.mxu0
  %v3305 = vadd.f32 0.0, %v3304
  %3306 = vmatmul.f32.gmra.mxu0 %v1364
  %v3307 = vpop.f32.mrf.mxu0
  %v3308 = vadd.f32 0.0, %v3307
  %3309 = vmatmul.f32.gmra.mxu0 %v1366
  %v3310 = vpop.f32.mrf.mxu0
  %v3311 = vadd.f32 0.0, %v3310
  %3312 = vmatmul.f32.gmra.mxu0 %v1368
  %v3313 = vpop.f32.mrf.mxu0
  %v3314 = vadd.f32 0.0, %v3313
  %3315 = vmatmul.f32.gmra.mxu0 %v1370
  %v3316 = vpop.f32.mrf.mxu0
  %v3317 = vadd.f32 0.0, %v3316
  %3318 = vmatmul.f32.gmra.mxu0 %v2243
  %v3319 = vpop.f32.mrf.mxu0
  %v3320 = vadd.f32 0.0, %v3319
  %3321 = vmatmul.f32.gmra.mxu0 %v2245
  %v3322 = vpop.f32.mrf.mxu0
  %v3323 = vadd.f32 0.0, %v3322
  %3324 = vmatmul.f32.gmra.mxu0 %v3118
  %v3325 = vpop.f32.mrf.mxu0
  %v3326 = vadd.f32 0.0, %v3325
  %3327 = vmatmul.f32.gmra.mxu0 %v3120
  %v3328 = vpop.f32.mrf.mxu0
  %v3329 = vadd.f32 0.0, %v3328
  %3330 = vdwg.mxu0
  %v3331 = vadd.f32 %v3038, %v3140
  %v3332 = vadd.f32 %v3039, %v3143
  %v3333 = vadd.f32 %v3040, %v3146
  %v3334 = vadd.f32 %v3041, %v3149
  %v3335 = vadd.f32 %v3042, %v3152
  %v3336 = vadd.f32 %v3043, %v3155
  %v3337 = vadd.f32 %v3044, %v3158
  %v3338 = vadd.f32 %v3045, %v3161
  %v3339 = vadd.f32 %v3046, %v3164
  %v3340 = vadd.f32 %v3047, %v3167
  %v3341 = vadd.f32 %v3048, %v3170
  %v3342 = vadd.f32 %v3049, %v3173
  %v3343 = vadd.f32 %v3050, %v3176
  %v3344 = vadd.f32 %v3051, %v3179
  %v3345 = vadd.f32 %v3052, %v3182
  %v3346 = vadd.f32 %v3053, %v3185
  %v3347 = vadd.f32 %v3054, %v3188
  %v3348 = vadd.f32 %v3055, %v3191
  %v3349 = vadd.f32 %v3056, %v3194
  %v3350 = vadd.f32 %v3057, %v3197
  %v3351 = vadd.f32 %v3058, %v3200
  %v3352 = vadd.f32 %v3059, %v3203
  %v3353 = vadd.f32 %v3060, %v3206
  %v3354 = vadd.f32 %v3061, %v3209
  %v3355 = vadd.f32 %v3062, %v3212
  %v3356 = vadd.f32 %v3063, %v3215
  %v3357 = vadd.f32 %v3064, %v3218
  %v3358 = vadd.f32 %v3065, %v3221
  %v3359 = vadd.f32 %v3066, %v3224
  %v3360 = vadd.f32 %v3067, %v3227
  %v3361 = vadd.f32 %v3068, %v3230
  %v3362 = vadd.f32 %v3069, %v3233
  %v3363 = vadd.f32 %v3070, %v3236
  %v3364 = vadd.f32 %v3071, %v3239
  %v3365 = vadd.f32 %v3072, %v3242
  %v3366 = vadd.f32 %v3073, %v3245
  %v3367 = vadd.f32 %v3074, %v3248
  %v3368 = vadd.f32 %v3075, %v3251
  %v3369 = vadd.f32 %v3076, %v3254
  %v3370 = vadd.f32 %v3077, %v3257
  %v3371 = vadd.f32 %v3078, %v3260
  %v3372 = vadd.f32 %v3079, %v3263
  %v3373 = vadd.f32 %v3080, %v3266
  %v3374 = vadd.f32 %v3081, %v3269
  %v3375 = vadd.f32 %v3082, %v3272
  %v3376 = vadd.f32 %v3083, %v3275
  %v3377 = vadd.f32 %v3084, %v3278
  %v3378 = vadd.f32 %v3085, %v3281
  %v3379 = vadd.f32 %v3086, %v3284
  %v3380 = vadd.f32 %v3087, %v3287
  %v3381 = vadd.f32 %v3088, %v3290
  %v3382 = vadd.f32 %v3089, %v3293
  %v3383 = vadd.f32 %v3090, %v3296
  %v3384 = vadd.f32 %v3091, %v3299
  %v3385 = vadd.f32 %v3092, %v3302
  %v3386 = vadd.f32 %v3093, %v3305
  %v3387 = vadd.f32 %v3094, %v3308
  %v3388 = vadd.f32 %v3095, %v3311
  %v3389 = vadd.f32 %v3096, %v3314
  %v3390 = vadd.f32 %v3097, %v3317
  %v3391 = vadd.f32 %v3098, %v3320
  %v3392 = vadd.f32 %v3099, %v3323
  %v3393 = vadd.f32 %v3100, %v3326
  %v3394 = vadd.f32 %v3101, %v3329
  %v3396 = vperm.slane %v37, 0
  %v3398 = vadd.f32 %v3331, %v3396
  %v3399 = vadd.f32 %v3332, %v3396
  %v3400 = vadd.f32 %v3333, %v3396
  %v3401 = vadd.f32 %v3334, %v3396
  %v3402 = vadd.f32 %v3335, %v3396
  %v3403 = vadd.f32 %v3336, %v3396
  %v3404 = vadd.f32 %v3337, %v3396
  %v3405 = vadd.f32 %v3338, %v3396
  %v3406 = vadd.f32 %v3339, %v3396
  %v3407 = vadd.f32 %v3340, %v3396
  %v3408 = vadd.f32 %v3341, %v3396
  %v3409 = vadd.f32 %v3342, %v3396
  %v3410 = vadd.f32 %v3343, %v3396
  %v3411 = vadd.f32 %v3344, %v3396
  %v3412 = vadd.f32 %v3345, %v3396
  %v3413 = vadd.f32 %v3346, %v3396
  %v3414 = vadd.f32 %v3347, %v3396
  %v3415 = vadd.f32 %v3348, %v3396
  %v3416 = vadd.f32 %v3349, %v3396
  %v3417 = vadd.f32 %v3350, %v3396
  %v3418 = vadd.f32 %v3351, %v3396
  %v3419 = vadd.f32 %v3352, %v3396
  %v3420 = vadd.f32 %v3353, %v3396
  %v3421 = vadd.f32 %v3354, %v3396
  %v3422 = vadd.f32 %v3355, %v3396
  %v3423 = vadd.f32 %v3356, %v3396
  %v3424 = vadd.f32 %v3357, %v3396
  %v3425 = vadd.f32 %v3358, %v3396
  %v3426 = vadd.f32 %v3359, %v3396
  %v3427 = vadd.f32 %v3360, %v3396
  %v3428 = vadd.f32 %v3361, %v3396
  %v3429 = vadd.f32 %v3362, %v3396
  %v3430 = vadd.f32 %v3363, %v3396
  %v3431 = vadd.f32 %v3364, %v3396
  %v3432 = vadd.f32 %v3365, %v3396
  %v3433 = vadd.f32 %v3366, %v3396
  %v3434 = vadd.f32 %v3367, %v3396
  %v3435 = vadd.f32 %v3368, %v3396
  %v3436 = vadd.f32 %v3369, %v3396
  %v3437 = vadd.f32 %v3370, %v3396
  %v3438 = vadd.f32 %v3371, %v3396
  %v3439 = vadd.f32 %v3372, %v3396
  %v3440 = vadd.f32 %v3373, %v3396
  %v3441 = vadd.f32 %v3374, %v3396
  %v3442 = vadd.f32 %v3375, %v3396
  %v3443 = vadd.f32 %v3376, %v3396
  %v3444 = vadd.f32 %v3377, %v3396
  %v3445 = vadd.f32 %v3378, %v3396
  %v3446 = vadd.f32 %v3379, %v3396
  %v3447 = vadd.f32 %v3380, %v3396
  %v3448 = vadd.f32 %v3381, %v3396
  %v3449 = vadd.f32 %v3382, %v3396
  %v3450 = vadd.f32 %v3383, %v3396
  %v3451 = vadd.f32 %v3384, %v3396
  %v3452 = vadd.f32 %v3385, %v3396
  %v3453 = vadd.f32 %v3386, %v3396
  %v3454 = vadd.f32 %v3387, %v3396
  %v3455 = vadd.f32 %v3388, %v3396
  %v3456 = vadd.f32 %v3389, %v3396
  %v3457 = vadd.f32 %v3390, %v3396
  %v3458 = vadd.f32 %v3391, %v3396
  %v3459 = vadd.f32 %v3392, %v3396
  %v3460 = vadd.f32 %v3393, %v3396
  %v3461 = vadd.f32 %v3394, %v3396
  %v3462 = vmax.f32 %v3398, 0.0
  %v3463 = vmax.f32 %v3399, 0.0
  %v3464 = vmax.f32 %v3400, 0.0
  %v3465 = vmax.f32 %v3401, 0.0
  %v3466 = vmax.f32 %v3402, 0.0
  %v3467 = vmax.f32 %v3403, 0.0
  %v3468 = vmax.f32 %v3404, 0.0
  %v3469 = vmax.f32 %v3405, 0.0
  %v3470 = vmax.f32 %v3406, 0.0
  %v3471 = vmax.f32 %v3407, 0.0
  %v3472 = vmax.f32 %v3408, 0.0
  %v3473 = vmax.f32 %v3409, 0.0
  %v3474 = vmax.f32 %v3410, 0.0
  %v3475 = vmax.f32 %v3411, 0.0
  %v3476 = vmax.f32 %v3412, 0.0
  %v3477 = vmax.f32 %v3413, 0.0
  %v3478 = vmax.f32 %v3414, 0.0
  %v3479 = vmax.f32 %v3415, 0.0
  %v3480 = vmax.f32 %v3416, 0.0
  %v3481 = vmax.f32 %v3417, 0.0
  %v3482 = vmax.f32 %v3418, 0.0
  %v3483 = vmax.f32 %v3419, 0.0
  %v3484 = vmax.f32 %v3420, 0.0
  %v3485 = vmax.f32 %v3421, 0.0
  %v3486 = vmax.f32 %v3422, 0.0
  %v3487 = vmax.f32 %v3423, 0.0
  %v3488 = vmax.f32 %v3424, 0.0
  %v3489 = vmax.f32 %v3425, 0.0
  %v3490 = vmax.f32 %v3426, 0.0
  %v3491 = vmax.f32 %v3427, 0.0
  %v3492 = vmax.f32 %v3428, 0.0
  %v3493 = vmax.f32 %v3429, 0.0
  %v3494 = vmax.f32 %v3430, 0.0
  %v3495 = vmax.f32 %v3431, 0.0
  %v3496 = vmax.f32 %v3432, 0.0
  %v3497 = vmax.f32 %v3433, 0.0
  %v3498 = vmax.f32 %v3434, 0.0
  %v3499 = vmax.f32 %v3435, 0.0
  %v3500 = vmax.f32 %v3436, 0.0
  %v3501 = vmax.f32 %v3437, 0.0
  %v3502 = vmax.f32 %v3438, 0.0
  %v3503 = vmax.f32 %v3439, 0.0
  %v3504 = vmax.f32 %v3440, 0.0
  %v3505 = vmax.f32 %v3441, 0.0
  %v3506 = vmax.f32 %v3442, 0.0
  %v3507 = vmax.f32 %v3443, 0.0
  %v3508 = vmax.f32 %v3444, 0.0
  %v3509 = vmax.f32 %v3445, 0.0
  %v3510 = vmax.f32 %v3446, 0.0
  %v3511 = vmax.f32 %v3447, 0.0
  %v3512 = vmax.f32 %v3448, 0.0
  %v3513 = vmax.f32 %v3449, 0.0
  %v3514 = vmax.f32 %v3450, 0.0
  %v3515 = vmax.f32 %v3451, 0.0
  %v3516 = vmax.f32 %v3452, 0.0
  %v3517 = vmax.f32 %v3453, 0.0
  %v3518 = vmax.f32 %v3454, 0.0
  %v3519 = vmax.f32 %v3455, 0.0
  %v3520 = vmax.f32 %v3456, 0.0
  %v3521 = vmax.f32 %v3457, 0.0
  %v3522 = vmax.f32 %v3458, 0.0
  %v3523 = vmax.f32 %v3459, 0.0
  %v3524 = vmax.f32 %v3460, 0.0
  %v3525 = vmax.f32 %v3461, 0.0
  %v3526 = vld [vmem:[%s1] sm:$0xff]
  %v3527 = vld [vmem:[%s1 + $0x8] sm:$0x3]
  %v3528 = vld [vmem:[%s1 + $0x10] sm:$0xff]
  %v3529 = vld [vmem:[%s1 + $0x18] sm:$0x3]
  %v3530 = vld [vmem:[%s1 + $0x20] sm:$0xff]
  %v3531 = vld [vmem:[%s1 + $0x28] sm:$0x3]
  %v3532 = vld [vmem:[%s1 + $0x30] sm:$0xff]
  %v3533 = vld [vmem:[%s1 + $0x38] sm:$0x3]
  %v3534 = vld [vmem:[%s1 + $0x40] sm:$0xff]
  %v3535 = vld [vmem:[%s1 + $0x48] sm:$0x3]
  %v3536 = vld [vmem:[%s1 + $0x50] sm:$0xff]
  %v3537 = vld [vmem:[%s1 + $0x58] sm:$0x3]
  %v3538 = vld [vmem:[%s1 + $0x60] sm:$0xff]
  %v3539 = vld [vmem:[%s1 + $0x68] sm:$0x3]
  %v3540 = vld [vmem:[%s1 + $0x70] sm:$0xff]
  %v3541 = vld [vmem:[%s1 + $0x78] sm:$0x3]
  %v3542 = vld [vmem:[%s1 + $0x80] sm:$0xff]
  %v3543 = vld [vmem:[%s1 + $0x88] sm:$0x3]
  %v3544 = vld [vmem:[%s1 + $0x90] sm:$0xff]
  %v3545 = vld [vmem:[%s1 + $0x98] sm:$0x3]
  %v3546 = vld [vmem:[%s1 + $0xa0] sm:$0xff]
  %v3547 = vld [vmem:[%s1 + $0xa8] sm:$0x3]
  %v3548 = vld [vmem:[%s1 + $0xb0] sm:$0xff]
  %v3549 = vld [vmem:[%s1 + $0xb8] sm:$0x3]
  %v3550 = vld [vmem:[%s1 + $0xc0] sm:$0xff]
  %v3551 = vld [vmem:[%s1 + $0xc8] sm:$0x3]
  %v3552 = vld [vmem:[%s1 + $0xd0] sm:$0xff]
  %v3553 = vld [vmem:[%s1 + $0xd8] sm:$0x3]
  %v3554 = vld [vmem:[%s1 + $0xe0] sm:$0xff]
  %v3555 = vld [vmem:[%s1 + $0xe8] sm:$0x3]
  %v3556 = vld [vmem:[%s1 + $0xf0] sm:$0xff]
  %v3557 = vld [vmem:[%s1 + $0xf8] sm:$0x3]
  %v3558 = vld [vmem:[%s1 + $0x100] sm:$0xff]
  %v3559 = vld [vmem:[%s1 + $0x108] sm:$0x3]
  %v3560 = vld [vmem:[%s1 + $0x110] sm:$0xff]
  %v3561 = vld [vmem:[%s1 + $0x118] sm:$0x3]
  %v3562 = vld [vmem:[%s1 + $0x120] sm:$0xff]
  %v3563 = vld [vmem:[%s1 + $0x128] sm:$0x3]
  %v3564 = vld [vmem:[%s1 + $0x130] sm:$0xff]
  %v3565 = vld [vmem:[%s1 + $0x138] sm:$0x3]
  %v3566 = vld [vmem:[%s1 + $0x140] sm:$0xff]
  %v3567 = vld [vmem:[%s1 + $0x148] sm:$0x3]
  %v3568 = vld [vmem:[%s1 + $0x150] sm:$0xff]
  %v3569 = vld [vmem:[%s1 + $0x158] sm:$0x3]
  %v3570 = vld [vmem:[%s1 + $0x160] sm:$0xff]
  %v3571 = vld [vmem:[%s1 + $0x168] sm:$0x3]
  %v3572 = vld [vmem:[%s1 + $0x170] sm:$0xff]
  %v3573 = vld [vmem:[%s1 + $0x178] sm:$0x3]
  %v3574 = vld [vmem:[%s1 + $0x180] sm:$0xff]
  %v3575 = vld [vmem:[%s1 + $0x188] sm:$0x3]
  %v3576 = vld [vmem:[%s1 + $0x190] sm:$0xff]
  %v3577 = vld [vmem:[%s1 + $0x198] sm:$0x3]
  %v3578 = vld [vmem:[%s1 + $0x1a0] sm:$0xff]
  %v3579 = vld [vmem:[%s1 + $0x1a8] sm:$0x3]
  %v3580 = vld [vmem:[%s1 + $0x1b0] sm:$0xff]
  %v3581 = vld [vmem:[%s1 + $0x1b8] sm:$0x3]
  %v3582 = vld [vmem:[%s1 + $0x1c0] sm:$0xff]
  %v3583 = vld [vmem:[%s1 + $0x1c8] sm:$0x3]
  %v3584 = vld [vmem:[%s1 + $0x1d0] sm:$0xff]
  %v3585 = vld [vmem:[%s1 + $0x1d8] sm:$0x3]
  %v3586 = vld [vmem:[%s1 + $0x1e0] sm:$0xff]
  %v3587 = vld [vmem:[%s1 + $0x1e8] sm:$0x3]
  %v3588 = vld [vmem:[%s1 + $0x1f0] sm:$0xff]
  %v3589 = vld [vmem:[%s1 + $0x1f8] sm:$0x3]
  %v3590 = vld [vmem:[%s1 + $0x200] sm:$0xff]
  %v3591 = vld [vmem:[%s1 + $0x208] sm:$0x3]
  %v3592 = vld [vmem:[%s1 + $0x210] sm:$0xff]
  %v3593 = vld [vmem:[%s1 + $0x218] sm:$0x3]
  %v3594 = vld [vmem:[%s1 + $0x220] sm:$0xff]
  %v3595 = vld [vmem:[%s1 + $0x228] sm:$0x3]
  %v3596 = vld [vmem:[%s1 + $0x230] sm:$0xff]
  %v3597 = vld [vmem:[%s1 + $0x238] sm:$0x3]
  %v3598 = vld [vmem:[%s1 + $0x240] sm:$0xff]
  %v3599 = vld [vmem:[%s1 + $0x248] sm:$0x3]
  %v3600 = vld [vmem:[%s1 + $0x250] sm:$0xff]
  %v3601 = vld [vmem:[%s1 + $0x258] sm:$0x3]
  %v3602 = vld [vmem:[%s1 + $0x260] sm:$0xff]
  %v3603 = vld [vmem:[%s1 + $0x268] sm:$0x3]
  %v3604 = vld [vmem:[%s1 + $0x270] sm:$0xff]
  %v3605 = vld [vmem:[%s1 + $0x278] sm:$0x3]
  %v3606 = vld [vmem:[%s1 + $0x280] sm:$0xff]
  %v3607 = vld [vmem:[%s1 + $0x288] sm:$0x3]
  %v3608 = vld [vmem:[%s1 + $0x290] sm:$0xff]
  %v3609 = vld [vmem:[%s1 + $0x298] sm:$0x3]
  %v3610 = vld [vmem:[%s1 + $0x2a0] sm:$0xff]
  %v3611 = vld [vmem:[%s1 + $0x2a8] sm:$0x3]
  %v3612 = vld [vmem:[%s1 + $0x2b0] sm:$0xff]
  %v3613 = vld [vmem:[%s1 + $0x2b8] sm:$0x3]
  %v3614 = vld [vmem:[%s1 + $0x2c0] sm:$0xff]
  %v3615 = vld [vmem:[%s1 + $0x2c8] sm:$0x3]
  %v3616 = vld [vmem:[%s1 + $0x2d0] sm:$0xff]
  %v3617 = vld [vmem:[%s1 + $0x2d8] sm:$0x3]
  %v3618 = vld [vmem:[%s1 + $0x2e0] sm:$0xff]
  %v3619 = vld [vmem:[%s1 + $0x2e8] sm:$0x3]
  %v3620 = vld [vmem:[%s1 + $0x2f0] sm:$0xff]
  %v3621 = vld [vmem:[%s1 + $0x2f8] sm:$0x3]
  %v3622 = vld [vmem:[%s1 + $0x300] sm:$0xff]
  %v3623 = vld [vmem:[%s1 + $0x308] sm:$0x3]
  %v3624 = vld [vmem:[%s1 + $0x310] sm:$0xff]
  %v3625 = vld [vmem:[%s1 + $0x318] sm:$0x3]
  %v3626 = vld [vmem:[%s1 + $0x320] sm:$0xff]
  %v3627 = vld [vmem:[%s1 + $0x328] sm:$0x3]
  %v3628 = vld [vmem:[%s1 + $0x330] sm:$0xff]
  %v3629 = vld [vmem:[%s1 + $0x338] sm:$0x3]
  %v3630 = vld [vmem:[%s1 + $0x340] sm:$0xff]
  %v3631 = vld [vmem:[%s1 + $0x348] sm:$0x3]
  %v3632 = vld [vmem:[%s1 + $0x350] sm:$0xff]
  %v3633 = vld [vmem:[%s1 + $0x358] sm:$0x3]
  %v3634 = vld [vmem:[%s1 + $0x360] sm:$0xff]
  %v3635 = vld [vmem:[%s1 + $0x368] sm:$0x3]
  %v3636 = vld [vmem:[%s1 + $0x370] sm:$0xff]
  %v3637 = vld [vmem:[%s1 + $0x378] sm:$0x3]
  %v3638 = vld [vmem:[%s1 + $0x380] sm:$0xff]
  %v3639 = vld [vmem:[%s1 + $0x388] sm:$0x3]
  %v3640 = vld [vmem:[%s1 + $0x390] sm:$0xff]
  %v3641 = vld [vmem:[%s1 + $0x398] sm:$0x3]
  %v3642 = vld [vmem:[%s1 + $0x3a0] sm:$0xff]
  %v3643 = vld [vmem:[%s1 + $0x3a8] sm:$0x3]
  %v3644 = vld [vmem:[%s1 + $0x3b0] sm:$0xff]
  %v3645 = vld [vmem:[%s1 + $0x3b8] sm:$0x3]
  %v3646 = vld [vmem:[%s1 + $0x3c0] sm:$0xff]
  %v3647 = vld [vmem:[%s1 + $0x3c8] sm:$0x3]
  %v3648 = vld [vmem:[%s1 + $0x3d0] sm:$0xff]
  %v3649 = vld [vmem:[%s1 + $0x3d8] sm:$0x3]
  %v3650 = vld [vmem:[%s1 + $0x3e0] sm:$0xff]
  %v3651 = vld [vmem:[%s1 + $0x3e8] sm:$0x3]
  %v3652 = vld [vmem:[%s1 + $0x3f0] sm:$0xff]
  %v3653 = vld [vmem:[%s1 + $0x3f8] sm:$0x3]
  %v3654 = vld [vmem:[%s1 + $0x400] sm:$0xff]
  %v3655 = vld [vmem:[%s1 + $0x408] sm:$0x3]
  %v3656 = vld [vmem:[%s1 + $0x410] sm:$0xff]
  %v3657 = vld [vmem:[%s1 + $0x418] sm:$0x3]
  %v3658 = vld [vmem:[%s1 + $0x420] sm:$0xff]
  %v3659 = vld [vmem:[%s1 + $0x428] sm:$0x3]
  %v3660 = vld [vmem:[%s1 + $0x430] sm:$0xff]
  %v3661 = vld [vmem:[%s1 + $0x438] sm:$0x3]
  %v3662 = vld [vmem:[%s1 + $0x440] sm:$0xff]
  %v3663 = vld [vmem:[%s1 + $0x448] sm:$0x3]
  %v3664 = vld [vmem:[%s1 + $0x450] sm:$0xff]
  %v3665 = vld [vmem:[%s1 + $0x458] sm:$0x3]
  %v3666 = vld [vmem:[%s1 + $0x460] sm:$0xff]
  %v3667 = vld [vmem:[%s1 + $0x468] sm:$0x3]
  %v3668 = vld [vmem:[%s1 + $0x470] sm:$0xff]
  %v3669 = vld [vmem:[%s1 + $0x478] sm:$0x3]
  %v3670 = vld [vmem:[%s1 + $0x480] sm:$0xff]
  %v3671 = vld [vmem:[%s1 + $0x488] sm:$0x3]
  %v3672 = vld [vmem:[%s1 + $0x490] sm:$0xff]
  %v3673 = vld [vmem:[%s1 + $0x498] sm:$0x3]
  %v3674 = vld [vmem:[%s1 + $0x4a0] sm:$0xff]
  %v3675 = vld [vmem:[%s1 + $0x4a8] sm:$0x3]
  %v3676 = vld [vmem:[%s1 + $0x4b0] sm:$0xff]
  %v3677 = vld [vmem:[%s1 + $0x4b8] sm:$0x3]
  %v3678 = vld [vmem:[%s1 + $0x4c0] sm:$0xff]
  %v3679 = vld [vmem:[%s1 + $0x4c8] sm:$0x3]
  %v3680 = vld [vmem:[%s1 + $0x4d0] sm:$0xff]
  %v3681 = vld [vmem:[%s1 + $0x4d8] sm:$0x3]
  %v3682 = vld [vmem:[%s1 + $0x4e0] sm:$0xff]
  %v3683 = vld [vmem:[%s1 + $0x4e8] sm:$0x3]
  %v3684 = vld [vmem:[%s1 + $0x4f0] sm:$0xff]
  %v3685 = vld [vmem:[%s1 + $0x4f8] sm:$0x3]
  %v3814 = vrot.slane %v3526, 1
  %v3815 = vrot.slane %v3527, 1
  %v3816 = vsel %vm243, %v3814, %v3815
  %v3817 = vrot.slane %v3528, 1
  %v3818 = vrot.slane %v3529, 1
  %v3819 = vsel %vm243, %v3817, %v3818
  %v3820 = vrot.slane %v3530, 1
  %v3821 = vrot.slane %v3531, 1
  %v3822 = vsel %vm243, %v3820, %v3821
  %v3823 = vrot.slane %v3532, 1
  %v3824 = vrot.slane %v3533, 1
  %v3825 = vsel %vm243, %v3823, %v3824
  %v3826 = vrot.slane %v3534, 1
  %v3827 = vrot.slane %v3535, 1
  %v3828 = vsel %vm243, %v3826, %v3827
  %v3829 = vrot.slane %v3536, 1
  %v3830 = vrot.slane %v3537, 1
  %v3831 = vsel %vm243, %v3829, %v3830
  %v3832 = vrot.slane %v3538, 1
  %v3833 = vrot.slane %v3539, 1
  %v3834 = vsel %vm243, %v3832, %v3833
  %v3835 = vrot.slane %v3540, 1
  %v3836 = vrot.slane %v3541, 1
  %v3837 = vsel %vm243, %v3835, %v3836
  %v3838 = vrot.slane %v3546, 1
  %v3839 = vrot.slane %v3547, 1
  %v3840 = vsel %vm243, %v3838, %v3839
  %v3841 = vrot.slane %v3548, 1
  %v3842 = vrot.slane %v3549, 1
  %v3843 = vsel %vm243, %v3841, %v3842
  %v3844 = vrot.slane %v3550, 1
  %v3845 = vrot.slane %v3551, 1
  %v3846 = vsel %vm243, %v3844, %v3845
  %v3847 = vrot.slane %v3552, 1
  %v3848 = vrot.slane %v3553, 1
  %v3849 = vsel %vm243, %v3847, %v3848
  %v3850 = vrot.slane %v3554, 1
  %v3851 = vrot.slane %v3555, 1
  %v3852 = vsel %vm243, %v3850, %v3851
  %v3853 = vrot.slane %v3556, 1
  %v3854 = vrot.slane %v3557, 1
  %v3855 = vsel %vm243, %v3853, %v3854
  %v3856 = vrot.slane %v3558, 1
  %v3857 = vrot.slane %v3559, 1
  %v3858 = vsel %vm243, %v3856, %v3857
  %v3859 = vrot.slane %v3560, 1
  %v3860 = vrot.slane %v3561, 1
  %v3861 = vsel %vm243, %v3859, %v3860
  %v3862 = vrot.slane %v3566, 1
  %v3863 = vrot.slane %v3567, 1
  %v3864 = vsel %vm243, %v3862, %v3863
  %v3865 = vrot.slane %v3568, 1
  %v3866 = vrot.slane %v3569, 1
  %v3867 = vsel %vm243, %v3865, %v3866
  %v3868 = vrot.slane %v3570, 1
  %v3869 = vrot.slane %v3571, 1
  %v3870 = vsel %vm243, %v3868, %v3869
  %v3871 = vrot.slane %v3572, 1
  %v3872 = vrot.slane %v3573, 1
  %v3873 = vsel %vm243, %v3871, %v3872
  %v3874 = vrot.slane %v3574, 1
  %v3875 = vrot.slane %v3575, 1
  %v3876 = vsel %vm243, %v3874, %v3875
  %v3877 = vrot.slane %v3576, 1
  %v3878 = vrot.slane %v3577, 1
  %v3879 = vsel %vm243, %v3877, %v3878
  %v3880 = vrot.slane %v3578, 1
  %v3881 = vrot.slane %v3579, 1
  %v3882 = vsel %vm243, %v3880, %v3881
  %v3883 = vrot.slane %v3580, 1
  %v3884 = vrot.slane %v3581, 1
  %v3885 = vsel %vm243, %v3883, %v3884
  %v3886 = vrot.slane %v3586, 1
  %v3887 = vrot.slane %v3587, 1
  %v3888 = vsel %vm243, %v3886, %v3887
  %v3889 = vrot.slane %v3588, 1
  %v3890 = vrot.slane %v3589, 1
  %v3891 = vsel %vm243, %v3889, %v3890
  %v3892 = vrot.slane %v3590, 1
  %v3893 = vrot.slane %v3591, 1
  %v3894 = vsel %vm243, %v3892, %v3893
  %v3895 = vrot.slane %v3592, 1
  %v3896 = vrot.slane %v3593, 1
  %v3897 = vsel %vm243, %v3895, %v3896
  %v3898 = vrot.slane %v3594, 1
  %v3899 = vrot.slane %v3595, 1
  %v3900 = vsel %vm243, %v3898, %v3899
  %v3901 = vrot.slane %v3596, 1
  %v3902 = vrot.slane %v3597, 1
  %v3903 = vsel %vm243, %v3901, %v3902
  %v3904 = vrot.slane %v3598, 1
  %v3905 = vrot.slane %v3599, 1
  %v3906 = vsel %vm243, %v3904, %v3905
  %v3907 = vrot.slane %v3600, 1
  %v3908 = vrot.slane %v3601, 1
  %v3909 = vsel %vm243, %v3907, %v3908
  %v3910 = vrot.slane %v3606, 1
  %v3911 = vrot.slane %v3607, 1
  %v3912 = vsel %vm243, %v3910, %v3911
  %v3913 = vrot.slane %v3608, 1
  %v3914 = vrot.slane %v3609, 1
  %v3915 = vsel %vm243, %v3913, %v3914
  %v3916 = vrot.slane %v3610, 1
  %v3917 = vrot.slane %v3611, 1
  %v3918 = vsel %vm243, %v3916, %v3917
  %v3919 = vrot.slane %v3612, 1
  %v3920 = vrot.slane %v3613, 1
  %v3921 = vsel %vm243, %v3919, %v3920
  %v3922 = vrot.slane %v3614, 1
  %v3923 = vrot.slane %v3615, 1
  %v3924 = vsel %vm243, %v3922, %v3923
  %v3925 = vrot.slane %v3616, 1
  %v3926 = vrot.slane %v3617, 1
  %v3927 = vsel %vm243, %v3925, %v3926
  %v3928 = vrot.slane %v3618, 1
  %v3929 = vrot.slane %v3619, 1
  %v3930 = vsel %vm243, %v3928, %v3929
  %v3931 = vrot.slane %v3620, 1
  %v3932 = vrot.slane %v3621, 1
  %v3933 = vsel %vm243, %v3931, %v3932
  %v3934 = vrot.slane %v3626, 1
  %v3935 = vrot.slane %v3627, 1
  %v3936 = vsel %vm243, %v3934, %v3935
  %v3937 = vrot.slane %v3628, 1
  %v3938 = vrot.slane %v3629, 1
  %v3939 = vsel %vm243, %v3937, %v3938
  %v3940 = vrot.slane %v3630, 1
  %v3941 = vrot.slane %v3631, 1
  %v3942 = vsel %vm243, %v3940, %v3941
  %v3943 = vrot.slane %v3632, 1
  %v3944 = vrot.slane %v3633, 1
  %v3945 = vsel %vm243, %v3943, %v3944
  %v3946 = vrot.slane %v3634, 1
  %v3947 = vrot.slane %v3635, 1
  %v3948 = vsel %vm243, %v3946, %v3947
  %v3949 = vrot.slane %v3636, 1
  %v3950 = vrot.slane %v3637, 1
  %v3951 = vsel %vm243, %v3949, %v3950
  %v3952 = vrot.slane %v3638, 1
  %v3953 = vrot.slane %v3639, 1
  %v3954 = vsel %vm243, %v3952, %v3953
  %v3955 = vrot.slane %v3640, 1
  %v3956 = vrot.slane %v3641, 1
  %v3957 = vsel %vm243, %v3955, %v3956
  %v3958 = vrot.slane %v3646, 1
  %v3959 = vrot.slane %v3647, 1
  %v3960 = vsel %vm243, %v3958, %v3959
  %v3961 = vrot.slane %v3648, 1
  %v3962 = vrot.slane %v3649, 1
  %v3963 = vsel %vm243, %v3961, %v3962
  %v3964 = vrot.slane %v3650, 1
  %v3965 = vrot.slane %v3651, 1
  %v3966 = vsel %vm243, %v3964, %v3965
  %v3967 = vrot.slane %v3652, 1
  %v3968 = vrot.slane %v3653, 1
  %v3969 = vsel %vm243, %v3967, %v3968
  %v3970 = vrot.slane %v3654, 1
  %v3971 = vrot.slane %v3655, 1
  %v3972 = vsel %vm243, %v3970, %v3971
  %v3973 = vrot.slane %v3656, 1
  %v3974 = vrot.slane %v3657, 1
  %v3975 = vsel %vm243, %v3973, %v3974
  %v3976 = vrot.slane %v3658, 1
  %v3977 = vrot.slane %v3659, 1
  %v3978 = vsel %vm243, %v3976, %v3977
  %v3979 = vrot.slane %v3660, 1
  %v3980 = vrot.slane %v3661, 1
  %v3981 = vsel %vm243, %v3979, %v3980
  %v3982 = vrot.slane %v3666, 1
  %v3983 = vrot.slane %v3667, 1
  %v3984 = vsel %vm243, %v3982, %v3983
  %v3985 = vrot.slane %v3668, 1
  %v3986 = vrot.slane %v3669, 1
  %v3987 = vsel %vm243, %v3985, %v3986
  %v3988 = vrot.slane %v3670, 1
  %v3989 = vrot.slane %v3671, 1
  %v3990 = vsel %vm243, %v3988, %v3989
  %v3991 = vrot.slane %v3672, 1
  %v3992 = vrot.slane %v3673, 1
  %v3993 = vsel %vm243, %v3991, %v3992
  %v3994 = vrot.slane %v3674, 1
  %v3995 = vrot.slane %v3675, 1
  %v3996 = vsel %vm243, %v3994, %v3995
  %v3997 = vrot.slane %v3676, 1
  %v3998 = vrot.slane %v3677, 1
  %v3999 = vsel %vm243, %v3997, %v3998
  %v4000 = vrot.slane %v3678, 1
  %v4001 = vrot.slane %v3679, 1
  %v4002 = vsel %vm243, %v4000, %v4001
  %v4003 = vrot.slane %v3680, 1
  %v4004 = vrot.slane %v3681, 1
  %v4005 = vsel %vm243, %v4003, %v4004
  %v4006 = vsel %vm406, %v3816, 0
  %v4008 = vsel %vm406, %v3819, 0
  %v4010 = vsel %vm406, %v3822, 0
  %v4012 = vsel %vm406, %v3825, 0
  %v4014 = vsel %vm406, %v3828, 0
  %v4016 = vsel %vm406, %v3831, 0
  %v4018 = vsel %vm406, %v3834, 0
  %v4020 = vsel %vm406, %v3837, 0
  %v4022 = vsel %vm406, %v3840, 0
  %v4024 = vsel %vm406, %v3843, 0
  %v4026 = vsel %vm406, %v3846, 0
  %v4028 = vsel %vm406, %v3849, 0
  %v4030 = vsel %vm406, %v3852, 0
  %v4032 = vsel %vm406, %v3855, 0
  %v4034 = vsel %vm406, %v3858, 0
  %v4036 = vsel %vm406, %v3861, 0
  %v4038 = vsel %vm406, %v3864, 0
  %v4040 = vsel %vm406, %v3867, 0
  %v4042 = vsel %vm406, %v3870, 0
  %v4044 = vsel %vm406, %v3873, 0
  %v4046 = vsel %vm406, %v3876, 0
  %v4048 = vsel %vm406, %v3879, 0
  %v4050 = vsel %vm406, %v3882, 0
  %v4052 = vsel %vm406, %v3885, 0
  %v4054 = vsel %vm406, %v3888, 0
  %v4056 = vsel %vm406, %v3891, 0
  %v4058 = vsel %vm406, %v3894, 0
  %v4060 = vsel %vm406, %v3897, 0
  %v4062 = vsel %vm406, %v3900, 0
  %v4064 = vsel %vm406, %v3903, 0
  %v4066 = vsel %vm406, %v3906, 0
  %v4068 = vsel %vm406, %v3909, 0
  %v4070 = vsel %vm406, %v3912, 0
  %v4072 = vsel %vm406, %v3915, 0
  %v4074 = vsel %vm406, %v3918, 0
  %v4076 = vsel %vm406, %v3921, 0
  %v4078 = vsel %vm406, %v3924, 0
  %v4080 = vsel %vm406, %v3927, 0
  %v4082 = vsel %vm406, %v3930, 0
  %v4084 = vsel %vm406, %v3933, 0
  %v4086 = vsel %vm406, %v3936, 0
  %v4088 = vsel %vm406, %v3939, 0
  %v4090 = vsel %vm406, %v3942, 0
  %v4092 = vsel %vm406, %v3945, 0
  %v4094 = vsel %vm406, %v3948, 0
  %v4096 = vsel %vm406, %v3951, 0
  %v4098 = vsel %vm406, %v3954, 0
  %v4100 = vsel %vm406, %v3957, 0
  %v4102 = vsel %vm406, %v3960, 0
  %v4104 = vsel %vm406, %v3963, 0
  %v4106 = vsel %vm406, %v3966, 0
  %v4108 = vsel %vm406, %v3969, 0
  %v4110 = vsel %vm406, %v3972, 0
  %v4112 = vsel %vm406, %v3975, 0
  %v4114 = vsel %vm406, %v3978, 0
  %v4116 = vsel %vm406, %v3981, 0
  %v4118 = vsel %vm406, %v3984, 0
  %v4120 = vsel %vm406, %v3987, 0
  %v4122 = vsel %vm406, %v3990, 0
  %v4124 = vsel %vm406, %v3993, 0
  %v4126 = vsel %vm406, %v3996, 0
  %v4128 = vsel %vm406, %v3999, 0
  %v4130 = vsel %vm406, %v4002, 0
  %v4132 = vsel %vm406, %v4005, 0
  %4134 = vmatpush.msra.mxu0 0.0
  %4135 = vmatpush.msra.mxu0 0.0
  %4136 = vmatpush.msra.mxu0 0.0
  %4137 = vmatpush.msra.mxu0 0.0
  %4138 = vmatpush.msra.mxu0 0.0
  %4139 = vmatpush.msra.mxu0 0.0
  %4140 = vmatpush.msra.mxu0 0.0
  %4141 = vmatpush.msra.mxu0 0.0
  %4142 = vmatpush.msra.mxu0 0.0
  %4143 = vmatpush.msra.mxu0 0.0
  %4144 = vmatpush.msra.mxu0 0.0
  %4145 = vmatpush.msra.mxu0 0.0
  %4146 = vmatpush.msra.mxu0 0.0
  %4147 = vmatpush.msra.mxu0 0.0
  %4148 = vmatpush.msra.mxu0 0.0
  %4149 = vmatpush.msra.mxu0 %v405
  %4150 = vmatmul.f32.gmra.mxu0 %v4006
  %v4151 = vpop.f32.mrf.mxu0
  %v4152 = vadd.f32 0.0, %v4151
  %4153 = vmatmul.f32.gmra.mxu0 %v4008
  %v4154 = vpop.f32.mrf.mxu0
  %v4155 = vadd.f32 0.0, %v4154
  %4156 = vmatmul.f32.gmra.mxu0 %v4010
  %v4157 = vpop.f32.mrf.mxu0
  %v4158 = vadd.f32 0.0, %v4157
  %4159 = vmatmul.f32.gmra.mxu0 %v4012
  %v4160 = vpop.f32.mrf.mxu0
  %v4161 = vadd.f32 0.0, %v4160
  %4162 = vmatmul.f32.gmra.mxu0 %v4014
  %v4163 = vpop.f32.mrf.mxu0
  %v4164 = vadd.f32 0.0, %v4163
  %4165 = vmatmul.f32.gmra.mxu0 %v4016
  %v4166 = vpop.f32.mrf.mxu0
  %v4167 = vadd.f32 0.0, %v4166
  %4168 = vmatmul.f32.gmra.mxu0 %v4018
  %v4169 = vpop.f32.mrf.mxu0
  %v4170 = vadd.f32 0.0, %v4169
  %4171 = vmatmul.f32.gmra.mxu0 %v4020
  %v4172 = vpop.f32.mrf.mxu0
  %v4173 = vadd.f32 0.0, %v4172
  %4174 = vmatmul.f32.gmra.mxu0 %v4022
  %v4175 = vpop.f32.mrf.mxu0
  %v4176 = vadd.f32 0.0, %v4175
  %4177 = vmatmul.f32.gmra.mxu0 %v4024
  %v4178 = vpop.f32.mrf.mxu0
  %v4179 = vadd.f32 0.0, %v4178
  %4180 = vmatmul.f32.gmra.mxu0 %v4026
  %v4181 = vpop.f32.mrf.mxu0
  %v4182 = vadd.f32 0.0, %v4181
  %4183 = vmatmul.f32.gmra.mxu0 %v4028
  %v4184 = vpop.f32.mrf.mxu0
  %v4185 = vadd.f32 0.0, %v4184
  %4186 = vmatmul.f32.gmra.mxu0 %v4030
  %v4187 = vpop.f32.mrf.mxu0
  %v4188 = vadd.f32 0.0, %v4187
  %4189 = vmatmul.f32.gmra.mxu0 %v4032
  %v4190 = vpop.f32.mrf.mxu0
  %v4191 = vadd.f32 0.0, %v4190
  %4192 = vmatmul.f32.gmra.mxu0 %v4034
  %v4193 = vpop.f32.mrf.mxu0
  %v4194 = vadd.f32 0.0, %v4193
  %4195 = vmatmul.f32.gmra.mxu0 %v4036
  %v4196 = vpop.f32.mrf.mxu0
  %v4197 = vadd.f32 0.0, %v4196
  %4198 = vmatmul.f32.gmra.mxu0 %v4038
  %v4199 = vpop.f32.mrf.mxu0
  %v4200 = vadd.f32 0.0, %v4199
  %4201 = vmatmul.f32.gmra.mxu0 %v4040
  %v4202 = vpop.f32.mrf.mxu0
  %v4203 = vadd.f32 0.0, %v4202
  %4204 = vmatmul.f32.gmra.mxu0 %v4042
  %v4205 = vpop.f32.mrf.mxu0
  %v4206 = vadd.f32 0.0, %v4205
  %4207 = vmatmul.f32.gmra.mxu0 %v4044
  %v4208 = vpop.f32.mrf.mxu0
  %v4209 = vadd.f32 0.0, %v4208
  %4210 = vmatmul.f32.gmra.mxu0 %v4046
  %v4211 = vpop.f32.mrf.mxu0
  %v4212 = vadd.f32 0.0, %v4211
  %4213 = vmatmul.f32.gmra.mxu0 %v4048
  %v4214 = vpop.f32.mrf.mxu0
  %v4215 = vadd.f32 0.0, %v4214
  %4216 = vmatmul.f32.gmra.mxu0 %v4050
  %v4217 = vpop.f32.mrf.mxu0
  %v4218 = vadd.f32 0.0, %v4217
  %4219 = vmatmul.f32.gmra.mxu0 %v4052
  %v4220 = vpop.f32.mrf.mxu0
  %v4221 = vadd.f32 0.0, %v4220
  %4222 = vmatmul.f32.gmra.mxu0 %v4054
  %v4223 = vpop.f32.mrf.mxu0
  %v4224 = vadd.f32 0.0, %v4223
  %4225 = vmatmul.f32.gmra.mxu0 %v4056
  %v4226 = vpop.f32.mrf.mxu0
  %v4227 = vadd.f32 0.0, %v4226
  %4228 = vmatmul.f32.gmra.mxu0 %v4058
  %v4229 = vpop.f32.mrf.mxu0
  %v4230 = vadd.f32 0.0, %v4229
  %4231 = vmatmul.f32.gmra.mxu0 %v4060
  %v4232 = vpop.f32.mrf.mxu0
  %v4233 = vadd.f32 0.0, %v4232
  %4234 = vmatmul.f32.gmra.mxu0 %v4062
  %v4235 = vpop.f32.mrf.mxu0
  %v4236 = vadd.f32 0.0, %v4235
  %4237 = vmatmul.f32.gmra.mxu0 %v4064
  %v4238 = vpop.f32.mrf.mxu0
  %v4239 = vadd.f32 0.0, %v4238
  %4240 = vmatmul.f32.gmra.mxu0 %v4066
  %v4241 = vpop.f32.mrf.mxu0
  %v4242 = vadd.f32 0.0, %v4241
  %4243 = vmatmul.f32.gmra.mxu0 %v4068
  %v4244 = vpop.f32.mrf.mxu0
  %v4245 = vadd.f32 0.0, %v4244
  %4246 = vmatmul.f32.gmra.mxu0 %v4070
  %v4247 = vpop.f32.mrf.mxu0
  %v4248 = vadd.f32 0.0, %v4247
  %4249 = vmatmul.f32.gmra.mxu0 %v4072
  %v4250 = vpop.f32.mrf.mxu0
  %v4251 = vadd.f32 0.0, %v4250
  %4252 = vmatmul.f32.gmra.mxu0 %v4074
  %v4253 = vpop.f32.mrf.mxu0
  %v4254 = vadd.f32 0.0, %v4253
  %4255 = vmatmul.f32.gmra.mxu0 %v4076
  %v4256 = vpop.f32.mrf.mxu0
  %v4257 = vadd.f32 0.0, %v4256
  %4258 = vmatmul.f32.gmra.mxu0 %v4078
  %v4259 = vpop.f32.mrf.mxu0
  %v4260 = vadd.f32 0.0, %v4259
  %4261 = vmatmul.f32.gmra.mxu0 %v4080
  %v4262 = vpop.f32.mrf.mxu0
  %v4263 = vadd.f32 0.0, %v4262
  %4264 = vmatmul.f32.gmra.mxu0 %v4082
  %v4265 = vpop.f32.mrf.mxu0
  %v4266 = vadd.f32 0.0, %v4265
  %4267 = vmatmul.f32.gmra.mxu0 %v4084
  %v4268 = vpop.f32.mrf.mxu0
  %v4269 = vadd.f32 0.0, %v4268
  %4270 = vmatmul.f32.gmra.mxu0 %v4086
  %v4271 = vpop.f32.mrf.mxu0
  %v4272 = vadd.f32 0.0, %v4271
  %4273 = vmatmul.f32.gmra.mxu0 %v4088
  %v4274 = vpop.f32.mrf.mxu0
  %v4275 = vadd.f32 0.0, %v4274
  %4276 = vmatmul.f32.gmra.mxu0 %v4090
  %v4277 = vpop.f32.mrf.mxu0
  %v4278 = vadd.f32 0.0, %v4277
  %4279 = vmatmul.f32.gmra.mxu0 %v4092
  %v4280 = vpop.f32.mrf.mxu0
  %v4281 = vadd.f32 0.0, %v4280
  %4282 = vmatmul.f32.gmra.mxu0 %v4094
  %v4283 = vpop.f32.mrf.mxu0
  %v4284 = vadd.f32 0.0, %v4283
  %4285 = vmatmul.f32.gmra.mxu0 %v4096
  %v4286 = vpop.f32.mrf.mxu0
  %v4287 = vadd.f32 0.0, %v4286
  %4288 = vmatmul.f32.gmra.mxu0 %v4098
  %v4289 = vpop.f32.mrf.mxu0
  %v4290 = vadd.f32 0.0, %v4289
  %4291 = vmatmul.f32.gmra.mxu0 %v4100
  %v4292 = vpop.f32.mrf.mxu0
  %v4293 = vadd.f32 0.0, %v4292
  %4294 = vmatmul.f32.gmra.mxu0 %v4102
  %v4295 = vpop.f32.mrf.mxu0
  %v4296 = vadd.f32 0.0, %v4295
  %4297 = vmatmul.f32.gmra.mxu0 %v4104
  %v4298 = vpop.f32.mrf.mxu0
  %v4299 = vadd.f32 0.0, %v4298
  %4300 = vmatmul.f32.gmra.mxu0 %v4106
  %v4301 = vpop.f32.mrf.mxu0
  %v4302 = vadd.f32 0.0, %v4301
  %4303 = vmatmul.f32.gmra.mxu0 %v4108
  %v4304 = vpop.f32.mrf.mxu0
  %v4305 = vadd.f32 0.0, %v4304
  %4306 = vmatmul.f32.gmra.mxu0 %v4110
  %v4307 = vpop.f32.mrf.mxu0
  %v4308 = vadd.f32 0.0, %v4307
  %4309 = vmatmul.f32.gmra.mxu0 %v4112
  %v4310 = vpop.f32.mrf.mxu0
  %v4311 = vadd.f32 0.0, %v4310
  %4312 = vmatmul.f32.gmra.mxu0 %v4114
  %v4313 = vpop.f32.mrf.mxu0
  %v4314 = vadd.f32 0.0, %v4313
  %4315 = vmatmul.f32.gmra.mxu0 %v4116
  %v4316 = vpop.f32.mrf.mxu0
  %v4317 = vadd.f32 0.0, %v4316
  %4318 = vmatmul.f32.gmra.mxu0 %v4118
  %v4319 = vpop.f32.mrf.mxu0
  %v4320 = vadd.f32 0.0, %v4319
  %4321 = vmatmul.f32.gmra.mxu0 %v4120
  %v4322 = vpop.f32.mrf.mxu0
  %v4323 = vadd.f32 0.0, %v4322
  %4324 = vmatmul.f32.gmra.mxu0 %v4122
  %v4325 = vpop.f32.mrf.mxu0
  %v4326 = vadd.f32 0.0, %v4325
  %4327 = vmatmul.f32.gmra.mxu0 %v4124
  %v4328 = vpop.f32.mrf.mxu0
  %v4329 = vadd.f32 0.0, %v4328
  %4330 = vmatmul.f32.gmra.mxu0 %v4126
  %v4331 = vpop.f32.mrf.mxu0
  %v4332 = vadd.f32 0.0, %v4331
  %4333 = vmatmul.f32.gmra.mxu0 %v4128
  %v4334 = vpop.f32.mrf.mxu0
  %v4335 = vadd.f32 0.0, %v4334
  %4336 = vmatmul.f32.gmra.mxu0 %v4130
  %v4337 = vpop.f32.mrf.mxu0
  %v4338 = vadd.f32 0.0, %v4337
  %4339 = vmatmul.f32.gmra.mxu0 %v4132
  %v4340 = vpop.f32.mrf.mxu0
  %v4341 = vadd.f32 0.0, %v4340
  %4342 = vdwg.mxu0
  %v4343 = vsel %vm406, %v3526, 0
  %v4345 = vsel %vm406, %v3528, 0
  %v4347 = vsel %vm406, %v3530, 0
  %v4349 = vsel %vm406, %v3532, 0
  %v4351 = vsel %vm406, %v3534, 0
  %v4353 = vsel %vm406, %v3536, 0
  %v4355 = vsel %vm406, %v3538, 0
  %v4357 = vsel %vm406, %v3540, 0
  %v4359 = vsel %vm406, %v3546, 0
  %v4361 = vsel %vm406, %v3548, 0
  %v4363 = vsel %vm406, %v3550, 0
  %v4365 = vsel %vm406, %v3552, 0
  %v4367 = vsel %vm406, %v3554, 0
  %v4369 = vsel %vm406, %v3556, 0
  %v4371 = vsel %vm406, %v3558, 0
  %v4373 = vsel %vm406, %v3560, 0
  %v4375 = vsel %vm406, %v3566, 0
  %v4377 = vsel %vm406, %v3568, 0
  %v4379 = vsel %vm406, %v3570, 0
  %v4381 = vsel %vm406, %v3572, 0
  %v4383 = vsel %vm406, %v3574, 0
  %v4385 = vsel %vm406, %v3576, 0
  %v4387 = vsel %vm406, %v3578, 0
  %v4389 = vsel %vm406, %v3580, 0
  %v4391 = vsel %vm406, %v3586, 0
  %v4393 = vsel %vm406, %v3588, 0
  %v4395 = vsel %vm406, %v3590, 0
  %v4397 = vsel %vm406, %v3592, 0
  %v4399 = vsel %vm406, %v3594, 0
  %v4401 = vsel %vm406, %v3596, 0
  %v4403 = vsel %vm406, %v3598, 0
  %v4405 = vsel %vm406, %v3600, 0
  %v4407 = vsel %vm406, %v3606, 0
  %v4409 = vsel %vm406, %v3608, 0
  %v4411 = vsel %vm406, %v3610, 0
  %v4413 = vsel %vm406, %v3612, 0
  %v4415 = vsel %vm406, %v3614, 0
  %v4417 = vsel %vm406, %v3616, 0
  %v4419 = vsel %vm406, %v3618, 0
  %v4421 = vsel %vm406, %v3620, 0
  %v4423 = vsel %vm406, %v3626, 0
  %v4425 = vsel %vm406, %v3628, 0
  %v4427 = vsel %vm406, %v3630, 0
  %v4429 = vsel %vm406, %v3632, 0
  %v4431 = vsel %vm406, %v3634, 0
  %v4433 = vsel %vm406, %v3636, 0
  %v4435 = vsel %vm406, %v3638, 0
  %v4437 = vsel %vm406, %v3640, 0
  %v4439 = vsel %vm406, %v3646, 0
  %v4441 = vsel %vm406, %v3648, 0
  %v4443 = vsel %vm406, %v3650, 0
  %v4445 = vsel %vm406, %v3652, 0
  %v4447 = vsel %vm406, %v3654, 0
  %v4449 = vsel %vm406, %v3656, 0
  %v4451 = vsel %vm406, %v3658, 0
  %v4453 = vsel %vm406, %v3660, 0
  %v4455 = vsel %vm406, %v3666, 0
  %v4457 = vsel %vm406, %v3668, 0
  %v4459 = vsel %vm406, %v3670, 0
  %v4461 = vsel %vm406, %v3672, 0
  %v4463 = vsel %vm406, %v3674, 0
  %v4465 = vsel %vm406, %v3676, 0
  %v4467 = vsel %vm406, %v3678, 0
  %v4469 = vsel %vm406, %v3680, 0
  %4471 = vmatpush.msra.mxu0 0.0
  %4472 = vmatpush.msra.mxu0 0.0
  %4473 = vmatpush.msra.mxu0 0.0
  %4474 = vmatpush.msra.mxu0 0.0
  %4475 = vmatpush.msra.mxu0 0.0
  %4476 = vmatpush.msra.mxu0 0.0
  %4477 = vmatpush.msra.mxu0 0.0
  %4478 = vmatpush.msra.mxu0 0.0
  %4479 = vmatpush.msra.mxu0 0.0
  %4480 = vmatpush.msra.mxu0 0.0
  %4481 = vmatpush.msra.mxu0 0.0
  %4482 = vmatpush.msra.mxu0 0.0
  %4483 = vmatpush.msra.mxu0 0.0
  %4484 = vmatpush.msra.mxu0 0.0
  %4485 = vmatpush.msra.mxu0 0.0
  %4486 = vmatpush.msra.mxu0 %v146
  %4487 = vmatmul.f32.gmra.mxu0 %v4343
  %v4488 = vpop.f32.mrf.mxu0
  %v4489 = vadd.f32 %v4152, %v4488
  %4490 = vmatmul.f32.gmra.mxu0 %v4345
  %v4491 = vpop.f32.mrf.mxu0
  %v4492 = vadd.f32 %v4155, %v4491
  %4493 = vmatmul.f32.gmra.mxu0 %v4347
  %v4494 = vpop.f32.mrf.mxu0
  %v4495 = vadd.f32 %v4158, %v4494
  %4496 = vmatmul.f32.gmra.mxu0 %v4349
  %v4497 = vpop.f32.mrf.mxu0
  %v4498 = vadd.f32 %v4161, %v4497
  %4499 = vmatmul.f32.gmra.mxu0 %v4351
  %v4500 = vpop.f32.mrf.mxu0
  %v4501 = vadd.f32 %v4164, %v4500
  %4502 = vmatmul.f32.gmra.mxu0 %v4353
  %v4503 = vpop.f32.mrf.mxu0
  %v4504 = vadd.f32 %v4167, %v4503
  %4505 = vmatmul.f32.gmra.mxu0 %v4355
  %v4506 = vpop.f32.mrf.mxu0
  %v4507 = vadd.f32 %v4170, %v4506
  %4508 = vmatmul.f32.gmra.mxu0 %v4357
  %v4509 = vpop.f32.mrf.mxu0
  %v4510 = vadd.f32 %v4173, %v4509
  %4511 = vmatmul.f32.gmra.mxu0 %v4359
  %v4512 = vpop.f32.mrf.mxu0
  %v4513 = vadd.f32 %v4176, %v4512
  %4514 = vmatmul.f32.gmra.mxu0 %v4361
  %v4515 = vpop.f32.mrf.mxu0
  %v4516 = vadd.f32 %v4179, %v4515
  %4517 = vmatmul.f32.gmra.mxu0 %v4363
  %v4518 = vpop.f32.mrf.mxu0
  %v4519 = vadd.f32 %v4182, %v4518
  %4520 = vmatmul.f32.gmra.mxu0 %v4365
  %v4521 = vpop.f32.mrf.mxu0
  %v4522 = vadd.f32 %v4185, %v4521
  %4523 = vmatmul.f32.gmra.mxu0 %v4367
  %v4524 = vpop.f32.mrf.mxu0
  %v4525 = vadd.f32 %v4188, %v4524
  %4526 = vmatmul.f32.gmra.mxu0 %v4369
  %v4527 = vpop.f32.mrf.mxu0
  %v4528 = vadd.f32 %v4191, %v4527
  %4529 = vmatmul.f32.gmra.mxu0 %v4371
  %v4530 = vpop.f32.mrf.mxu0
  %v4531 = vadd.f32 %v4194, %v4530
  %4532 = vmatmul.f32.gmra.mxu0 %v4373
  %v4533 = vpop.f32.mrf.mxu0
  %v4534 = vadd.f32 %v4197, %v4533
  %4535 = vmatmul.f32.gmra.mxu0 %v4375
  %v4536 = vpop.f32.mrf.mxu0
  %v4537 = vadd.f32 %v4200, %v4536
  %4538 = vmatmul.f32.gmra.mxu0 %v4377
  %v4539 = vpop.f32.mrf.mxu0
  %v4540 = vadd.f32 %v4203, %v4539
  %4541 = vmatmul.f32.gmra.mxu0 %v4379
  %v4542 = vpop.f32.mrf.mxu0
  %v4543 = vadd.f32 %v4206, %v4542
  %4544 = vmatmul.f32.gmra.mxu0 %v4381
  %v4545 = vpop.f32.mrf.mxu0
  %v4546 = vadd.f32 %v4209, %v4545
  %4547 = vmatmul.f32.gmra.mxu0 %v4383
  %v4548 = vpop.f32.mrf.mxu0
  %v4549 = vadd.f32 %v4212, %v4548
  %4550 = vmatmul.f32.gmra.mxu0 %v4385
  %v4551 = vpop.f32.mrf.mxu0
  %v4552 = vadd.f32 %v4215, %v4551
  %4553 = vmatmul.f32.gmra.mxu0 %v4387
  %v4554 = vpop.f32.mrf.mxu0
  %v4555 = vadd.f32 %v4218, %v4554
  %4556 = vmatmul.f32.gmra.mxu0 %v4389
  %v4557 = vpop.f32.mrf.mxu0
  %v4558 = vadd.f32 %v4221, %v4557
  %4559 = vmatmul.f32.gmra.mxu0 %v4391
  %v4560 = vpop.f32.mrf.mxu0
  %v4561 = vadd.f32 %v4224, %v4560
  %4562 = vmatmul.f32.gmra.mxu0 %v4393
  %v4563 = vpop.f32.mrf.mxu0
  %v4564 = vadd.f32 %v4227, %v4563
  %4565 = vmatmul.f32.gmra.mxu0 %v4395
  %v4566 = vpop.f32.mrf.mxu0
  %v4567 = vadd.f32 %v4230, %v4566
  %4568 = vmatmul.f32.gmra.mxu0 %v4397
  %v4569 = vpop.f32.mrf.mxu0
  %v4570 = vadd.f32 %v4233, %v4569
  %4571 = vmatmul.f32.gmra.mxu0 %v4399
  %v4572 = vpop.f32.mrf.mxu0
  %v4573 = vadd.f32 %v4236, %v4572
  %4574 = vmatmul.f32.gmra.mxu0 %v4401
  %v4575 = vpop.f32.mrf.mxu0
  %v4576 = vadd.f32 %v4239, %v4575
  %4577 = vmatmul.f32.gmra.mxu0 %v4403
  %v4578 = vpop.f32.mrf.mxu0
  %v4579 = vadd.f32 %v4242, %v4578
  %4580 = vmatmul.f32.gmra.mxu0 %v4405
  %v4581 = vpop.f32.mrf.mxu0
  %v4582 = vadd.f32 %v4245, %v4581
  %4583 = vmatmul.f32.gmra.mxu0 %v4407
  %v4584 = vpop.f32.mrf.mxu0
  %v4585 = vadd.f32 %v4248, %v4584
  %4586 = vmatmul.f32.gmra.mxu0 %v4409
  %v4587 = vpop.f32.mrf.mxu0
  %v4588 = vadd.f32 %v4251, %v4587
  %4589 = vmatmul.f32.gmra.mxu0 %v4411
  %v4590 = vpop.f32.mrf.mxu0
  %v4591 = vadd.f32 %v4254, %v4590
  %4592 = vmatmul.f32.gmra.mxu0 %v4413
  %v4593 = vpop.f32.mrf.mxu0
  %v4594 = vadd.f32 %v4257, %v4593
  %4595 = vmatmul.f32.gmra.mxu0 %v4415
  %v4596 = vpop.f32.mrf.mxu0
  %v4597 = vadd.f32 %v4260, %v4596
  %4598 = vmatmul.f32.gmra.mxu0 %v4417
  %v4599 = vpop.f32.mrf.mxu0
  %v4600 = vadd.f32 %v4263, %v4599
  %4601 = vmatmul.f32.gmra.mxu0 %v4419
  %v4602 = vpop.f32.mrf.mxu0
  %v4603 = vadd.f32 %v4266, %v4602
  %4604 = vmatmul.f32.gmra.mxu0 %v4421
  %v4605 = vpop.f32.mrf.mxu0
  %v4606 = vadd.f32 %v4269, %v4605
  %4607 = vmatmul.f32.gmra.mxu0 %v4423
  %v4608 = vpop.f32.mrf.mxu0
  %v4609 = vadd.f32 %v4272, %v4608
  %4610 = vmatmul.f32.gmra.mxu0 %v4425
  %v4611 = vpop.f32.mrf.mxu0
  %v4612 = vadd.f32 %v4275, %v4611
  %4613 = vmatmul.f32.gmra.mxu0 %v4427
  %v4614 = vpop.f32.mrf.mxu0
  %v4615 = vadd.f32 %v4278, %v4614
  %4616 = vmatmul.f32.gmra.mxu0 %v4429
  %v4617 = vpop.f32.mrf.mxu0
  %v4618 = vadd.f32 %v4281, %v4617
  %4619 = vmatmul.f32.gmra.mxu0 %v4431
  %v4620 = vpop.f32.mrf.mxu0
  %v4621 = vadd.f32 %v4284, %v4620
  %4622 = vmatmul.f32.gmra.mxu0 %v4433
  %v4623 = vpop.f32.mrf.mxu0
  %v4624 = vadd.f32 %v4287, %v4623
  %4625 = vmatmul.f32.gmra.mxu0 %v4435
  %v4626 = vpop.f32.mrf.mxu0
  %v4627 = vadd.f32 %v4290, %v4626
  %4628 = vmatmul.f32.gmra.mxu0 %v4437
  %v4629 = vpop.f32.mrf.mxu0
  %v4630 = vadd.f32 %v4293, %v4629
  %4631 = vmatmul.f32.gmra.mxu0 %v4439
  %v4632 = vpop.f32.mrf.mxu0
  %v4633 = vadd.f32 %v4296, %v4632
  %4634 = vmatmul.f32.gmra.mxu0 %v4441
  %v4635 = vpop.f32.mrf.mxu0
  %v4636 = vadd.f32 %v4299, %v4635
  %4637 = vmatmul.f32.gmra.mxu0 %v4443
  %v4638 = vpop.f32.mrf.mxu0
  %v4639 = vadd.f32 %v4302, %v4638
  %4640 = vmatmul.f32.gmra.mxu0 %v4445
  %v4641 = vpop.f32.mrf.mxu0
  %v4642 = vadd.f32 %v4305, %v4641
  %4643 = vmatmul.f32.gmra.mxu0 %v4447
  %v4644 = vpop.f32.mrf.mxu0
  %v4645 = vadd.f32 %v4308, %v4644
  %4646 = vmatmul.f32.gmra.mxu0 %v4449
  %v4647 = vpop.f32.mrf.mxu0
  %v4648 = vadd.f32 %v4311, %v4647
  %4649 = vmatmul.f32.gmra.mxu0 %v4451
  %v4650 = vpop.f32.mrf.mxu0
  %v4651 = vadd.f32 %v4314, %v4650
  %4652 = vmatmul.f32.gmra.mxu0 %v4453
  %v4653 = vpop.f32.mrf.mxu0
  %v4654 = vadd.f32 %v4317, %v4653
  %4655 = vmatmul.f32.gmra.mxu0 %v4455
  %v4656 = vpop.f32.mrf.mxu0
  %v4657 = vadd.f32 %v4320, %v4656
  %4658 = vmatmul.f32.gmra.mxu0 %v4457
  %v4659 = vpop.f32.mrf.mxu0
  %v4660 = vadd.f32 %v4323, %v4659
  %4661 = vmatmul.f32.gmra.mxu0 %v4459
  %v4662 = vpop.f32.mrf.mxu0
  %v4663 = vadd.f32 %v4326, %v4662
  %4664 = vmatmul.f32.gmra.mxu0 %v4461
  %v4665 = vpop.f32.mrf.mxu0
  %v4666 = vadd.f32 %v4329, %v4665
  %4667 = vmatmul.f32.gmra.mxu0 %v4463
  %v4668 = vpop.f32.mrf.mxu0
  %v4669 = vadd.f32 %v4332, %v4668
  %4670 = vmatmul.f32.gmra.mxu0 %v4465
  %v4671 = vpop.f32.mrf.mxu0
  %v4672 = vadd.f32 %v4335, %v4671
  %4673 = vmatmul.f32.gmra.mxu0 %v4467
  %v4674 = vpop.f32.mrf.mxu0
  %v4675 = vadd.f32 %v4338, %v4674
  %4676 = vmatmul.f32.gmra.mxu0 %v4469
  %v4677 = vpop.f32.mrf.mxu0
  %v4678 = vadd.f32 %v4341, %v4677
  %4679 = vdwg.mxu0
  %v4680 = vrot.slane %v3526, 2
  %v4681 = vrot.slane %v3527, 2
  %v4682 = vsel %vm1081, %v4680, %v4681
  %v4683 = vrot.slane %v3528, 2
  %v4684 = vrot.slane %v3529, 2
  %v4685 = vsel %vm1081, %v4683, %v4684
  %v4686 = vrot.slane %v3530, 2
  %v4687 = vrot.slane %v3531, 2
  %v4688 = vsel %vm1081, %v4686, %v4687
  %v4689 = vrot.slane %v3532, 2
  %v4690 = vrot.slane %v3533, 2
  %v4691 = vsel %vm1081, %v4689, %v4690
  %v4692 = vrot.slane %v3534, 2
  %v4693 = vrot.slane %v3535, 2
  %v4694 = vsel %vm1081, %v4692, %v4693
  %v4695 = vrot.slane %v3536, 2
  %v4696 = vrot.slane %v3537, 2
  %v4697 = vsel %vm1081, %v4695, %v4696
  %v4698 = vrot.slane %v3538, 2
  %v4699 = vrot.slane %v3539, 2
  %v4700 = vsel %vm1081, %v4698, %v4699
  %v4701 = vrot.slane %v3540, 2
  %v4702 = vrot.slane %v3541, 2
  %v4703 = vsel %vm1081, %v4701, %v4702
  %v4704 = vrot.slane %v3546, 2
  %v4705 = vrot.slane %v3547, 2
  %v4706 = vsel %vm1081, %v4704, %v4705
  %v4707 = vrot.slane %v3548, 2
  %v4708 = vrot.slane %v3549, 2
  %v4709 = vsel %vm1081, %v4707, %v4708
  %v4710 = vrot.slane %v3550, 2
  %v4711 = vrot.slane %v3551, 2
  %v4712 = vsel %vm1081, %v4710, %v4711
  %v4713 = vrot.slane %v3552, 2
  %v4714 = vrot.slane %v3553, 2
  %v4715 = vsel %vm1081, %v4713, %v4714
  %v4716 = vrot.slane %v3554, 2
  %v4717 = vrot.slane %v3555, 2
  %v4718 = vsel %vm1081, %v4716, %v4717
  %v4719 = vrot.slane %v3556, 2
  %v4720 = vrot.slane %v3557, 2
  %v4721 = vsel %vm1081, %v4719, %v4720
  %v4722 = vrot.slane %v3558, 2
  %v4723 = vrot.slane %v3559, 2
  %v4724 = vsel %vm1081, %v4722, %v4723
  %v4725 = vrot.slane %v3560, 2
  %v4726 = vrot.slane %v3561, 2
  %v4727 = vsel %vm1081, %v4725, %v4726
  %v4728 = vrot.slane %v3566, 2
  %v4729 = vrot.slane %v3567, 2
  %v4730 = vsel %vm1081, %v4728, %v4729
  %v4731 = vrot.slane %v3568, 2
  %v4732 = vrot.slane %v3569, 2
  %v4733 = vsel %vm1081, %v4731, %v4732
  %v4734 = vrot.slane %v3570, 2
  %v4735 = vrot.slane %v3571, 2
  %v4736 = vsel %vm1081, %v4734, %v4735
  %v4737 = vrot.slane %v3572, 2
  %v4738 = vrot.slane %v3573, 2
  %v4739 = vsel %vm1081, %v4737, %v4738
  %v4740 = vrot.slane %v3574, 2
  %v4741 = vrot.slane %v3575, 2
  %v4742 = vsel %vm1081, %v4740, %v4741
  %v4743 = vrot.slane %v3576, 2
  %v4744 = vrot.slane %v3577, 2
  %v4745 = vsel %vm1081, %v4743, %v4744
  %v4746 = vrot.slane %v3578, 2
  %v4747 = vrot.slane %v3579, 2
  %v4748 = vsel %vm1081, %v4746, %v4747
  %v4749 = vrot.slane %v3580, 2
  %v4750 = vrot.slane %v3581, 2
  %v4751 = vsel %vm1081, %v4749, %v4750
  %v4752 = vrot.slane %v3586, 2
  %v4753 = vrot.slane %v3587, 2
  %v4754 = vsel %vm1081, %v4752, %v4753
  %v4755 = vrot.slane %v3588, 2
  %v4756 = vrot.slane %v3589, 2
  %v4757 = vsel %vm1081, %v4755, %v4756
  %v4758 = vrot.slane %v3590, 2
  %v4759 = vrot.slane %v3591, 2
  %v4760 = vsel %vm1081, %v4758, %v4759
  %v4761 = vrot.slane %v3592, 2
  %v4762 = vrot.slane %v3593, 2
  %v4763 = vsel %vm1081, %v4761, %v4762
  %v4764 = vrot.slane %v3594, 2
  %v4765 = vrot.slane %v3595, 2
  %v4766 = vsel %vm1081, %v4764, %v4765
  %v4767 = vrot.slane %v3596, 2
  %v4768 = vrot.slane %v3597, 2
  %v4769 = vsel %vm1081, %v4767, %v4768
  %v4770 = vrot.slane %v3598, 2
  %v4771 = vrot.slane %v3599, 2
  %v4772 = vsel %vm1081, %v4770, %v4771
  %v4773 = vrot.slane %v3600, 2
  %v4774 = vrot.slane %v3601, 2
  %v4775 = vsel %vm1081, %v4773, %v4774
  %v4776 = vrot.slane %v3606, 2
  %v4777 = vrot.slane %v3607, 2
  %v4778 = vsel %vm1081, %v4776, %v4777
  %v4779 = vrot.slane %v3608, 2
  %v4780 = vrot.slane %v3609, 2
  %v4781 = vsel %vm1081, %v4779, %v4780
  %v4782 = vrot.slane %v3610, 2
  %v4783 = vrot.slane %v3611, 2
  %v4784 = vsel %vm1081, %v4782, %v4783
  %v4785 = vrot.slane %v3612, 2
  %v4786 = vrot.slane %v3613, 2
  %v4787 = vsel %vm1081, %v4785, %v4786
  %v4788 = vrot.slane %v3614, 2
  %v4789 = vrot.slane %v3615, 2
  %v4790 = vsel %vm1081, %v4788, %v4789
  %v4791 = vrot.slane %v3616, 2
  %v4792 = vrot.slane %v3617, 2
  %v4793 = vsel %vm1081, %v4791, %v4792
  %v4794 = vrot.slane %v3618, 2
  %v4795 = vrot.slane %v3619, 2
  %v4796 = vsel %vm1081, %v4794, %v4795
  %v4797 = vrot.slane %v3620, 2
  %v4798 = vrot.slane %v3621, 2
  %v4799 = vsel %vm1081, %v4797, %v4798
  %v4800 = vrot.slane %v3626, 2
  %v4801 = vrot.slane %v3627, 2
  %v4802 = vsel %vm1081, %v4800, %v4801
  %v4803 = vrot.slane %v3628, 2
  %v4804 = vrot.slane %v3629, 2
  %v4805 = vsel %vm1081, %v4803, %v4804
  %v4806 = vrot.slane %v3630, 2
  %v4807 = vrot.slane %v3631, 2
  %v4808 = vsel %vm1081, %v4806, %v4807
  %v4809 = vrot.slane %v3632, 2
  %v4810 = vrot.slane %v3633, 2
  %v4811 = vsel %vm1081, %v4809, %v4810
  %v4812 = vrot.slane %v3634, 2
  %v4813 = vrot.slane %v3635, 2
  %v4814 = vsel %vm1081, %v4812, %v4813
  %v4815 = vrot.slane %v3636, 2
  %v4816 = vrot.slane %v3637, 2
  %v4817 = vsel %vm1081, %v4815, %v4816
  %v4818 = vrot.slane %v3638, 2
  %v4819 = vrot.slane %v3639, 2
  %v4820 = vsel %vm1081, %v4818, %v4819
  %v4821 = vrot.slane %v3640, 2
  %v4822 = vrot.slane %v3641, 2
  %v4823 = vsel %vm1081, %v4821, %v4822
  %v4824 = vrot.slane %v3646, 2
  %v4825 = vrot.slane %v3647, 2
  %v4826 = vsel %vm1081, %v4824, %v4825
  %v4827 = vrot.slane %v3648, 2
  %v4828 = vrot.slane %v3649, 2
  %v4829 = vsel %vm1081, %v4827, %v4828
  %v4830 = vrot.slane %v3650, 2
  %v4831 = vrot.slane %v3651, 2
  %v4832 = vsel %vm1081, %v4830, %v4831
  %v4833 = vrot.slane %v3652, 2
  %v4834 = vrot.slane %v3653, 2
  %v4835 = vsel %vm1081, %v4833, %v4834
  %v4836 = vrot.slane %v3654, 2
  %v4837 = vrot.slane %v3655, 2
  %v4838 = vsel %vm1081, %v4836, %v4837
  %v4839 = vrot.slane %v3656, 2
  %v4840 = vrot.slane %v3657, 2
  %v4841 = vsel %vm1081, %v4839, %v4840
  %v4842 = vrot.slane %v3658, 2
  %v4843 = vrot.slane %v3659, 2
  %v4844 = vsel %vm1081, %v4842, %v4843
  %v4845 = vrot.slane %v3660, 2
  %v4846 = vrot.slane %v3661, 2
  %v4847 = vsel %vm1081, %v4845, %v4846
  %v4848 = vrot.slane %v3666, 2
  %v4849 = vrot.slane %v3667, 2
  %v4850 = vsel %vm1081, %v4848, %v4849
  %v4851 = vrot.slane %v3668, 2
  %v4852 = vrot.slane %v3669, 2
  %v4853 = vsel %vm1081, %v4851, %v4852
  %v4854 = vrot.slane %v3670, 2
  %v4855 = vrot.slane %v3671, 2
  %v4856 = vsel %vm1081, %v4854, %v4855
  %v4857 = vrot.slane %v3672, 2
  %v4858 = vrot.slane %v3673, 2
  %v4859 = vsel %vm1081, %v4857, %v4858
  %v4860 = vrot.slane %v3674, 2
  %v4861 = vrot.slane %v3675, 2
  %v4862 = vsel %vm1081, %v4860, %v4861
  %v4863 = vrot.slane %v3676, 2
  %v4864 = vrot.slane %v3677, 2
  %v4865 = vsel %vm1081, %v4863, %v4864
  %v4866 = vrot.slane %v3678, 2
  %v4867 = vrot.slane %v3679, 2
  %v4868 = vsel %vm1081, %v4866, %v4867
  %v4869 = vrot.slane %v3680, 2
  %v4870 = vrot.slane %v3681, 2
  %v4871 = vsel %vm1081, %v4869, %v4870
  %v4872 = vsel %vm406, %v4682, 0
  %v4874 = vsel %vm406, %v4685, 0
  %v4876 = vsel %vm406, %v4688, 0
  %v4878 = vsel %vm406, %v4691, 0
  %v4880 = vsel %vm406, %v4694, 0
  %v4882 = vsel %vm406, %v4697, 0
  %v4884 = vsel %vm406, %v4700, 0
  %v4886 = vsel %vm406, %v4703, 0
  %v4888 = vsel %vm406, %v4706, 0
  %v4890 = vsel %vm406, %v4709, 0
  %v4892 = vsel %vm406, %v4712, 0
  %v4894 = vsel %vm406, %v4715, 0
  %v4896 = vsel %vm406, %v4718, 0
  %v4898 = vsel %vm406, %v4721, 0
  %v4900 = vsel %vm406, %v4724, 0
  %v4902 = vsel %vm406, %v4727, 0
  %v4904 = vsel %vm406, %v4730, 0
  %v4906 = vsel %vm406, %v4733, 0
  %v4908 = vsel %vm406, %v4736, 0
  %v4910 = vsel %vm406, %v4739, 0
  %v4912 = vsel %vm406, %v4742, 0
  %v4914 = vsel %vm406, %v4745, 0
  %v4916 = vsel %vm406, %v4748, 0
  %v4918 = vsel %vm406, %v4751, 0
  %v4920 = vsel %vm406, %v4754, 0
  %v4922 = vsel %vm406, %v4757, 0
  %v4924 = vsel %vm406, %v4760, 0
  %v4926 = vsel %vm406, %v4763, 0
  %v4928 = vsel %vm406, %v4766, 0
  %v4930 = vsel %vm406, %v4769, 0
  %v4932 = vsel %vm406, %v4772, 0
  %v4934 = vsel %vm406, %v4775, 0
  %v4936 = vsel %vm406, %v4778, 0
  %v4938 = vsel %vm406, %v4781, 0
  %v4940 = vsel %vm406, %v4784, 0
  %v4942 = vsel %vm406, %v4787, 0
  %v4944 = vsel %vm406, %v4790, 0
  %v4946 = vsel %vm406, %v4793, 0
  %v4948 = vsel %vm406, %v4796, 0
  %v4950 = vsel %vm406, %v4799, 0
  %v4952 = vsel %vm406, %v4802, 0
  %v4954 = vsel %vm406, %v4805, 0
  %v4956 = vsel %vm406, %v4808, 0
  %v4958 = vsel %vm406, %v4811, 0
  %v4960 = vsel %vm406, %v4814, 0
  %v4962 = vsel %vm406, %v4817, 0
  %v4964 = vsel %vm406, %v4820, 0
  %v4966 = vsel %vm406, %v4823, 0
  %v4968 = vsel %vm406, %v4826, 0
  %v4970 = vsel %vm406, %v4829, 0
  %v4972 = vsel %vm406, %v4832, 0
  %v4974 = vsel %vm406, %v4835, 0
  %v4976 = vsel %vm406, %v4838, 0
  %v4978 = vsel %vm406, %v4841, 0
  %v4980 = vsel %vm406, %v4844, 0
  %v4982 = vsel %vm406, %v4847, 0
  %v4984 = vsel %vm406, %v4850, 0
  %v4986 = vsel %vm406, %v4853, 0
  %v4988 = vsel %vm406, %v4856, 0
  %v4990 = vsel %vm406, %v4859, 0
  %v4992 = vsel %vm406, %v4862, 0
  %v4994 = vsel %vm406, %v4865, 0
  %v4996 = vsel %vm406, %v4868, 0
  %v4998 = vsel %vm406, %v4871, 0
  %5000 = vmatpush.msra.mxu0 0.0
  %5001 = vmatpush.msra.mxu0 0.0
  %5002 = vmatpush.msra.mxu0 0.0
  %5003 = vmatpush.msra.mxu0 0.0
  %5004 = vmatpush.msra.mxu0 0.0
  %5005 = vmatpush.msra.mxu0 0.0
  %5006 = vmatpush.msra.mxu0 0.0
  %5007 = vmatpush.msra.mxu0 0.0
  %5008 = vmatpush.msra.mxu0 0.0
  %5009 = vmatpush.msra.mxu0 0.0
  %5010 = vmatpush.msra.mxu0 0.0
  %5011 = vmatpush.msra.mxu0 0.0
  %5012 = vmatpush.msra.mxu0 0.0
  %5013 = vmatpush.msra.mxu0 0.0
  %5014 = vmatpush.msra.mxu0 0.0
  %5015 = vmatpush.msra.mxu0 %v1243
  %5016 = vmatmul.f32.gmra.mxu0 %v4872
  %v5017 = vpop.f32.mrf.mxu0
  %v5018 = vadd.f32 0.0, %v5017
  %5019 = vmatmul.f32.gmra.mxu0 %v4874
  %v5020 = vpop.f32.mrf.mxu0
  %v5021 = vadd.f32 0.0, %v5020
  %5022 = vmatmul.f32.gmra.mxu0 %v4876
  %v5023 = vpop.f32.mrf.mxu0
  %v5024 = vadd.f32 0.0, %v5023
  %5025 = vmatmul.f32.gmra.mxu0 %v4878
  %v5026 = vpop.f32.mrf.mxu0
  %v5027 = vadd.f32 0.0, %v5026
  %5028 = vmatmul.f32.gmra.mxu0 %v4880
  %v5029 = vpop.f32.mrf.mxu0
  %v5030 = vadd.f32 0.0, %v5029
  %5031 = vmatmul.f32.gmra.mxu0 %v4882
  %v5032 = vpop.f32.mrf.mxu0
  %v5033 = vadd.f32 0.0, %v5032
  %5034 = vmatmul.f32.gmra.mxu0 %v4884
  %v5035 = vpop.f32.mrf.mxu0
  %v5036 = vadd.f32 0.0, %v5035
  %5037 = vmatmul.f32.gmra.mxu0 %v4886
  %v5038 = vpop.f32.mrf.mxu0
  %v5039 = vadd.f32 0.0, %v5038
  %5040 = vmatmul.f32.gmra.mxu0 %v4888
  %v5041 = vpop.f32.mrf.mxu0
  %v5042 = vadd.f32 0.0, %v5041
  %5043 = vmatmul.f32.gmra.mxu0 %v4890
  %v5044 = vpop.f32.mrf.mxu0
  %v5045 = vadd.f32 0.0, %v5044
  %5046 = vmatmul.f32.gmra.mxu0 %v4892
  %v5047 = vpop.f32.mrf.mxu0
  %v5048 = vadd.f32 0.0, %v5047
  %5049 = vmatmul.f32.gmra.mxu0 %v4894
  %v5050 = vpop.f32.mrf.mxu0
  %v5051 = vadd.f32 0.0, %v5050
  %5052 = vmatmul.f32.gmra.mxu0 %v4896
  %v5053 = vpop.f32.mrf.mxu0
  %v5054 = vadd.f32 0.0, %v5053
  %5055 = vmatmul.f32.gmra.mxu0 %v4898
  %v5056 = vpop.f32.mrf.mxu0
  %v5057 = vadd.f32 0.0, %v5056
  %5058 = vmatmul.f32.gmra.mxu0 %v4900
  %v5059 = vpop.f32.mrf.mxu0
  %v5060 = vadd.f32 0.0, %v5059
  %5061 = vmatmul.f32.gmra.mxu0 %v4902
  %v5062 = vpop.f32.mrf.mxu0
  %v5063 = vadd.f32 0.0, %v5062
  %5064 = vmatmul.f32.gmra.mxu0 %v4904
  %v5065 = vpop.f32.mrf.mxu0
  %v5066 = vadd.f32 0.0, %v5065
  %5067 = vmatmul.f32.gmra.mxu0 %v4906
  %v5068 = vpop.f32.mrf.mxu0
  %v5069 = vadd.f32 0.0, %v5068
  %5070 = vmatmul.f32.gmra.mxu0 %v4908
  %v5071 = vpop.f32.mrf.mxu0
  %v5072 = vadd.f32 0.0, %v5071
  %5073 = vmatmul.f32.gmra.mxu0 %v4910
  %v5074 = vpop.f32.mrf.mxu0
  %v5075 = vadd.f32 0.0, %v5074
  %5076 = vmatmul.f32.gmra.mxu0 %v4912
  %v5077 = vpop.f32.mrf.mxu0
  %v5078 = vadd.f32 0.0, %v5077
  %5079 = vmatmul.f32.gmra.mxu0 %v4914
  %v5080 = vpop.f32.mrf.mxu0
  %v5081 = vadd.f32 0.0, %v5080
  %5082 = vmatmul.f32.gmra.mxu0 %v4916
  %v5083 = vpop.f32.mrf.mxu0
  %v5084 = vadd.f32 0.0, %v5083
  %5085 = vmatmul.f32.gmra.mxu0 %v4918
  %v5086 = vpop.f32.mrf.mxu0
  %v5087 = vadd.f32 0.0, %v5086
  %5088 = vmatmul.f32.gmra.mxu0 %v4920
  %v5089 = vpop.f32.mrf.mxu0
  %v5090 = vadd.f32 0.0, %v5089
  %5091 = vmatmul.f32.gmra.mxu0 %v4922
  %v5092 = vpop.f32.mrf.mxu0
  %v5093 = vadd.f32 0.0, %v5092
  %5094 = vmatmul.f32.gmra.mxu0 %v4924
  %v5095 = vpop.f32.mrf.mxu0
  %v5096 = vadd.f32 0.0, %v5095
  %5097 = vmatmul.f32.gmra.mxu0 %v4926
  %v5098 = vpop.f32.mrf.mxu0
  %v5099 = vadd.f32 0.0, %v5098
  %5100 = vmatmul.f32.gmra.mxu0 %v4928
  %v5101 = vpop.f32.mrf.mxu0
  %v5102 = vadd.f32 0.0, %v5101
  %5103 = vmatmul.f32.gmra.mxu0 %v4930
  %v5104 = vpop.f32.mrf.mxu0
  %v5105 = vadd.f32 0.0, %v5104
  %5106 = vmatmul.f32.gmra.mxu0 %v4932
  %v5107 = vpop.f32.mrf.mxu0
  %v5108 = vadd.f32 0.0, %v5107
  %5109 = vmatmul.f32.gmra.mxu0 %v4934
  %v5110 = vpop.f32.mrf.mxu0
  %v5111 = vadd.f32 0.0, %v5110
  %5112 = vmatmul.f32.gmra.mxu0 %v4936
  %v5113 = vpop.f32.mrf.mxu0
  %v5114 = vadd.f32 0.0, %v5113
  %5115 = vmatmul.f32.gmra.mxu0 %v4938
  %v5116 = vpop.f32.mrf.mxu0
  %v5117 = vadd.f32 0.0, %v5116
  %5118 = vmatmul.f32.gmra.mxu0 %v4940
  %v5119 = vpop.f32.mrf.mxu0
  %v5120 = vadd.f32 0.0, %v5119
  %5121 = vmatmul.f32.gmra.mxu0 %v4942
  %v5122 = vpop.f32.mrf.mxu0
  %v5123 = vadd.f32 0.0, %v5122
  %5124 = vmatmul.f32.gmra.mxu0 %v4944
  %v5125 = vpop.f32.mrf.mxu0
  %v5126 = vadd.f32 0.0, %v5125
  %5127 = vmatmul.f32.gmra.mxu0 %v4946
  %v5128 = vpop.f32.mrf.mxu0
  %v5129 = vadd.f32 0.0, %v5128
  %5130 = vmatmul.f32.gmra.mxu0 %v4948
  %v5131 = vpop.f32.mrf.mxu0
  %v5132 = vadd.f32 0.0, %v5131
  %5133 = vmatmul.f32.gmra.mxu0 %v4950
  %v5134 = vpop.f32.mrf.mxu0
  %v5135 = vadd.f32 0.0, %v5134
  %5136 = vmatmul.f32.gmra.mxu0 %v4952
  %v5137 = vpop.f32.mrf.mxu0
  %v5138 = vadd.f32 0.0, %v5137
  %5139 = vmatmul.f32.gmra.mxu0 %v4954
  %v5140 = vpop.f32.mrf.mxu0
  %v5141 = vadd.f32 0.0, %v5140
  %5142 = vmatmul.f32.gmra.mxu0 %v4956
  %v5143 = vpop.f32.mrf.mxu0
  %v5144 = vadd.f32 0.0, %v5143
  %5145 = vmatmul.f32.gmra.mxu0 %v4958
  %v5146 = vpop.f32.mrf.mxu0
  %v5147 = vadd.f32 0.0, %v5146
  %5148 = vmatmul.f32.gmra.mxu0 %v4960
  %v5149 = vpop.f32.mrf.mxu0
  %v5150 = vadd.f32 0.0, %v5149
  %5151 = vmatmul.f32.gmra.mxu0 %v4962
  %v5152 = vpop.f32.mrf.mxu0
  %v5153 = vadd.f32 0.0, %v5152
  %5154 = vmatmul.f32.gmra.mxu0 %v4964
  %v5155 = vpop.f32.mrf.mxu0
  %v5156 = vadd.f32 0.0, %v5155
  %5157 = vmatmul.f32.gmra.mxu0 %v4966
  %v5158 = vpop.f32.mrf.mxu0
  %v5159 = vadd.f32 0.0, %v5158
  %5160 = vmatmul.f32.gmra.mxu0 %v4968
  %v5161 = vpop.f32.mrf.mxu0
  %v5162 = vadd.f32 0.0, %v5161
  %5163 = vmatmul.f32.gmra.mxu0 %v4970
  %v5164 = vpop.f32.mrf.mxu0
  %v5165 = vadd.f32 0.0, %v5164
  %5166 = vmatmul.f32.gmra.mxu0 %v4972
  %v5167 = vpop.f32.mrf.mxu0
  %v5168 = vadd.f32 0.0, %v5167
  %5169 = vmatmul.f32.gmra.mxu0 %v4974
  %v5170 = vpop.f32.mrf.mxu0
  %v5171 = vadd.f32 0.0, %v5170
  %5172 = vmatmul.f32.gmra.mxu0 %v4976
  %v5173 = vpop.f32.mrf.mxu0
  %v5174 = vadd.f32 0.0, %v5173
  %5175 = vmatmul.f32.gmra.mxu0 %v4978
  %v5176 = vpop.f32.mrf.mxu0
  %v5177 = vadd.f32 0.0, %v5176
  %5178 = vmatmul.f32.gmra.mxu0 %v4980
  %v5179 = vpop.f32.mrf.mxu0
  %v5180 = vadd.f32 0.0, %v5179
  %5181 = vmatmul.f32.gmra.mxu0 %v4982
  %v5182 = vpop.f32.mrf.mxu0
  %v5183 = vadd.f32 0.0, %v5182
  %5184 = vmatmul.f32.gmra.mxu0 %v4984
  %v5185 = vpop.f32.mrf.mxu0
  %v5186 = vadd.f32 0.0, %v5185
  %5187 = vmatmul.f32.gmra.mxu0 %v4986
  %v5188 = vpop.f32.mrf.mxu0
  %v5189 = vadd.f32 0.0, %v5188
  %5190 = vmatmul.f32.gmra.mxu0 %v4988
  %v5191 = vpop.f32.mrf.mxu0
  %v5192 = vadd.f32 0.0, %v5191
  %5193 = vmatmul.f32.gmra.mxu0 %v4990
  %v5194 = vpop.f32.mrf.mxu0
  %v5195 = vadd.f32 0.0, %v5194
  %5196 = vmatmul.f32.gmra.mxu0 %v4992
  %v5197 = vpop.f32.mrf.mxu0
  %v5198 = vadd.f32 0.0, %v5197
  %5199 = vmatmul.f32.gmra.mxu0 %v4994
  %v5200 = vpop.f32.mrf.mxu0
  %v5201 = vadd.f32 0.0, %v5200
  %5202 = vmatmul.f32.gmra.mxu0 %v4996
  %v5203 = vpop.f32.mrf.mxu0
  %v5204 = vadd.f32 0.0, %v5203
  %5205 = vmatmul.f32.gmra.mxu0 %v4998
  %v5206 = vpop.f32.mrf.mxu0
  %v5207 = vadd.f32 0.0, %v5206
  %5208 = vdwg.mxu0
  %v5209 = vadd.f32 %v4489, %v5018
  %v5210 = vadd.f32 %v4492, %v5021
  %v5211 = vadd.f32 %v4495, %v5024
  %v5212 = vadd.f32 %v4498, %v5027
  %v5213 = vadd.f32 %v4501, %v5030
  %v5214 = vadd.f32 %v4504, %v5033
  %v5215 = vadd.f32 %v4507, %v5036
  %v5216 = vadd.f32 %v4510, %v5039
  %v5217 = vadd.f32 %v4513, %v5042
  %v5218 = vadd.f32 %v4516, %v5045
  %v5219 = vadd.f32 %v4519, %v5048
  %v5220 = vadd.f32 %v4522, %v5051
  %v5221 = vadd.f32 %v4525, %v5054
  %v5222 = vadd.f32 %v4528, %v5057
  %v5223 = vadd.f32 %v4531, %v5060
  %v5224 = vadd.f32 %v4534, %v5063
  %v5225 = vadd.f32 %v4537, %v5066
  %v5226 = vadd.f32 %v4540, %v5069
  %v5227 = vadd.f32 %v4543, %v5072
  %v5228 = vadd.f32 %v4546, %v5075
  %v5229 = vadd.f32 %v4549, %v5078
  %v5230 = vadd.f32 %v4552, %v5081
  %v5231 = vadd.f32 %v4555, %v5084
  %v5232 = vadd.f32 %v4558, %v5087
  %v5233 = vadd.f32 %v4561, %v5090
  %v5234 = vadd.f32 %v4564, %v5093
  %v5235 = vadd.f32 %v4567, %v5096
  %v5236 = vadd.f32 %v4570, %v5099
  %v5237 = vadd.f32 %v4573, %v5102
  %v5238 = vadd.f32 %v4576, %v5105
  %v5239 = vadd.f32 %v4579, %v5108
  %v5240 = vadd.f32 %v4582, %v5111
  %v5241 = vadd.f32 %v4585, %v5114
  %v5242 = vadd.f32 %v4588, %v5117
  %v5243 = vadd.f32 %v4591, %v5120
  %v5244 = vadd.f32 %v4594, %v5123
  %v5245 = vadd.f32 %v4597, %v5126
  %v5246 = vadd.f32 %v4600, %v5129
  %v5247 = vadd.f32 %v4603, %v5132
  %v5248 = vadd.f32 %v4606, %v5135
  %v5249 = vadd.f32 %v4609, %v5138
  %v5250 = vadd.f32 %v4612, %v5141
  %v5251 = vadd.f32 %v4615, %v5144
  %v5252 = vadd.f32 %v4618, %v5147
  %v5253 = vadd.f32 %v4621, %v5150
  %v5254 = vadd.f32 %v4624, %v5153
  %v5255 = vadd.f32 %v4627, %v5156
  %v5256 = vadd.f32 %v4630, %v5159
  %v5257 = vadd.f32 %v4633, %v5162
  %v5258 = vadd.f32 %v4636, %v5165
  %v5259 = vadd.f32 %v4639, %v5168
  %v5260 = vadd.f32 %v4642, %v5171
  %v5261 = vadd.f32 %v4645, %v5174
  %v5262 = vadd.f32 %v4648, %v5177
  %v5263 = vadd.f32 %v4651, %v5180
  %v5264 = vadd.f32 %v4654, %v5183
  %v5265 = vadd.f32 %v4657, %v5186
  %v5266 = vadd.f32 %v4660, %v5189
  %v5267 = vadd.f32 %v4663, %v5192
  %v5268 = vadd.f32 %v4666, %v5195
  %v5269 = vadd.f32 %v4669, %v5198
  %v5270 = vadd.f32 %v4672, %v5201
  %v5271 = vadd.f32 %v4675, %v5204
  %v5272 = vadd.f32 %v4678, %v5207
  %v5274 = vsel %vm406, %v3542, 0
  %v5277 = vsel %vm406, %v3562, 0
  %v5280 = vsel %vm406, %v3582, 0
  %v5283 = vsel %vm406, %v3602, 0
  %v5286 = vsel %vm406, %v3622, 0
  %v5289 = vsel %vm406, %v3642, 0
  %v5292 = vsel %vm406, %v3662, 0
  %v5295 = vsel %vm406, %v3682, 0
  %5297 = vmatpush.msra.mxu0 0.0
  %5298 = vmatpush.msra.mxu0 0.0
  %5299 = vmatpush.msra.mxu0 0.0
  %5300 = vmatpush.msra.mxu0 0.0
  %5301 = vmatpush.msra.mxu0 0.0
  %5302 = vmatpush.msra.mxu0 0.0
  %5303 = vmatpush.msra.mxu0 0.0
  %5304 = vmatpush.msra.mxu0 0.0
  %5305 = vmatpush.msra.mxu0 0.0
  %5306 = vmatpush.msra.mxu0 0.0
  %5307 = vmatpush.msra.mxu0 0.0
  %5308 = vmatpush.msra.mxu0 0.0
  %5309 = vmatpush.msra.mxu0 0.0
  %5310 = vmatpush.msra.mxu0 0.0
  %5311 = vmatpush.msra.mxu0 0.0
  %5312 = vmatpush.msra.mxu0 %v1646
  %5313 = vmatmul.f32.gmra.mxu0 %v4345
  %v5314 = vpop.f32.mrf.mxu0
  %v5315 = vadd.f32 0.0, %v5314
  %5316 = vmatmul.f32.gmra.mxu0 %v4347
  %v5317 = vpop.f32.mrf.mxu0
  %v5318 = vadd.f32 0.0, %v5317
  %5319 = vmatmul.f32.gmra.mxu0 %v4349
  %v5320 = vpop.f32.mrf.mxu0
  %v5321 = vadd.f32 0.0, %v5320
  %5322 = vmatmul.f32.gmra.mxu0 %v4351
  %v5323 = vpop.f32.mrf.mxu0
  %v5324 = vadd.f32 0.0, %v5323
  %5325 = vmatmul.f32.gmra.mxu0 %v4353
  %v5326 = vpop.f32.mrf.mxu0
  %v5327 = vadd.f32 0.0, %v5326
  %5328 = vmatmul.f32.gmra.mxu0 %v4355
  %v5329 = vpop.f32.mrf.mxu0
  %v5330 = vadd.f32 0.0, %v5329
  %5331 = vmatmul.f32.gmra.mxu0 %v4357
  %v5332 = vpop.f32.mrf.mxu0
  %v5333 = vadd.f32 0.0, %v5332
  %5334 = vmatmul.f32.gmra.mxu0 %v5274
  %v5335 = vpop.f32.mrf.mxu0
  %v5336 = vadd.f32 0.0, %v5335
  %5337 = vmatmul.f32.gmra.mxu0 %v4361
  %v5338 = vpop.f32.mrf.mxu0
  %v5339 = vadd.f32 0.0, %v5338
  %5340 = vmatmul.f32.gmra.mxu0 %v4363
  %v5341 = vpop.f32.mrf.mxu0
  %v5342 = vadd.f32 0.0, %v5341
  %5343 = vmatmul.f32.gmra.mxu0 %v4365
  %v5344 = vpop.f32.mrf.mxu0
  %v5345 = vadd.f32 0.0, %v5344
  %5346 = vmatmul.f32.gmra.mxu0 %v4367
  %v5347 = vpop.f32.mrf.mxu0
  %v5348 = vadd.f32 0.0, %v5347
  %5349 = vmatmul.f32.gmra.mxu0 %v4369
  %v5350 = vpop.f32.mrf.mxu0
  %v5351 = vadd.f32 0.0, %v5350
  %5352 = vmatmul.f32.gmra.mxu0 %v4371
  %v5353 = vpop.f32.mrf.mxu0
  %v5354 = vadd.f32 0.0, %v5353
  %5355 = vmatmul.f32.gmra.mxu0 %v4373
  %v5356 = vpop.f32.mrf.mxu0
  %v5357 = vadd.f32 0.0, %v5356
  %5358 = vmatmul.f32.gmra.mxu0 %v5277
  %v5359 = vpop.f32.mrf.mxu0
  %v5360 = vadd.f32 0.0, %v5359
  %5361 = vmatmul.f32.gmra.mxu0 %v4377
  %v5362 = vpop.f32.mrf.mxu0
  %v5363 = vadd.f32 0.0, %v5362
  %5364 = vmatmul.f32.gmra.mxu0 %v4379
  %v5365 = vpop.f32.mrf.mxu0
  %v5366 = vadd.f32 0.0, %v5365
  %5367 = vmatmul.f32.gmra.mxu0 %v4381
  %v5368 = vpop.f32.mrf.mxu0
  %v5369 = vadd.f32 0.0, %v5368
  %5370 = vmatmul.f32.gmra.mxu0 %v4383
  %v5371 = vpop.f32.mrf.mxu0
  %v5372 = vadd.f32 0.0, %v5371
  %5373 = vmatmul.f32.gmra.mxu0 %v4385
  %v5374 = vpop.f32.mrf.mxu0
  %v5375 = vadd.f32 0.0, %v5374
  %5376 = vmatmul.f32.gmra.mxu0 %v4387
  %v5377 = vpop.f32.mrf.mxu0
  %v5378 = vadd.f32 0.0, %v5377
  %5379 = vmatmul.f32.gmra.mxu0 %v4389
  %v5380 = vpop.f32.mrf.mxu0
  %v5381 = vadd.f32 0.0, %v5380
  %5382 = vmatmul.f32.gmra.mxu0 %v5280
  %v5383 = vpop.f32.mrf.mxu0
  %v5384 = vadd.f32 0.0, %v5383
  %5385 = vmatmul.f32.gmra.mxu0 %v4393
  %v5386 = vpop.f32.mrf.mxu0
  %v5387 = vadd.f32 0.0, %v5386
  %5388 = vmatmul.f32.gmra.mxu0 %v4395
  %v5389 = vpop.f32.mrf.mxu0
  %v5390 = vadd.f32 0.0, %v5389
  %5391 = vmatmul.f32.gmra.mxu0 %v4397
  %v5392 = vpop.f32.mrf.mxu0
  %v5393 = vadd.f32 0.0, %v5392
  %5394 = vmatmul.f32.gmra.mxu0 %v4399
  %v5395 = vpop.f32.mrf.mxu0
  %v5396 = vadd.f32 0.0, %v5395
  %5397 = vmatmul.f32.gmra.mxu0 %v4401
  %v5398 = vpop.f32.mrf.mxu0
  %v5399 = vadd.f32 0.0, %v5398
  %5400 = vmatmul.f32.gmra.mxu0 %v4403
  %v5401 = vpop.f32.mrf.mxu0
  %v5402 = vadd.f32 0.0, %v5401
  %5403 = vmatmul.f32.gmra.mxu0 %v4405
  %v5404 = vpop.f32.mrf.mxu0
  %v5405 = vadd.f32 0.0, %v5404
  %5406 = vmatmul.f32.gmra.mxu0 %v5283
  %v5407 = vpop.f32.mrf.mxu0
  %v5408 = vadd.f32 0.0, %v5407
  %5409 = vmatmul.f32.gmra.mxu0 %v4409
  %v5410 = vpop.f32.mrf.mxu0
  %v5411 = vadd.f32 0.0, %v5410
  %5412 = vmatmul.f32.gmra.mxu0 %v4411
  %v5413 = vpop.f32.mrf.mxu0
  %v5414 = vadd.f32 0.0, %v5413
  %5415 = vmatmul.f32.gmra.mxu0 %v4413
  %v5416 = vpop.f32.mrf.mxu0
  %v5417 = vadd.f32 0.0, %v5416
  %5418 = vmatmul.f32.gmra.mxu0 %v4415
  %v5419 = vpop.f32.mrf.mxu0
  %v5420 = vadd.f32 0.0, %v5419
  %5421 = vmatmul.f32.gmra.mxu0 %v4417
  %v5422 = vpop.f32.mrf.mxu0
  %v5423 = vadd.f32 0.0, %v5422
  %5424 = vmatmul.f32.gmra.mxu0 %v4419
  %v5425 = vpop.f32.mrf.mxu0
  %v5426 = vadd.f32 0.0, %v5425
  %5427 = vmatmul.f32.gmra.mxu0 %v4421
  %v5428 = vpop.f32.mrf.mxu0
  %v5429 = vadd.f32 0.0, %v5428
  %5430 = vmatmul.f32.gmra.mxu0 %v5286
  %v5431 = vpop.f32.mrf.mxu0
  %v5432 = vadd.f32 0.0, %v5431
  %5433 = vmatmul.f32.gmra.mxu0 %v4425
  %v5434 = vpop.f32.mrf.mxu0
  %v5435 = vadd.f32 0.0, %v5434
  %5436 = vmatmul.f32.gmra.mxu0 %v4427
  %v5437 = vpop.f32.mrf.mxu0
  %v5438 = vadd.f32 0.0, %v5437
  %5439 = vmatmul.f32.gmra.mxu0 %v4429
  %v5440 = vpop.f32.mrf.mxu0
  %v5441 = vadd.f32 0.0, %v5440
  %5442 = vmatmul.f32.gmra.mxu0 %v4431
  %v5443 = vpop.f32.mrf.mxu0
  %v5444 = vadd.f32 0.0, %v5443
  %5445 = vmatmul.f32.gmra.mxu0 %v4433
  %v5446 = vpop.f32.mrf.mxu0
  %v5447 = vadd.f32 0.0, %v5446
  %5448 = vmatmul.f32.gmra.mxu0 %v4435
  %v5449 = vpop.f32.mrf.mxu0
  %v5450 = vadd.f32 0.0, %v5449
  %5451 = vmatmul.f32.gmra.mxu0 %v4437
  %v5452 = vpop.f32.mrf.mxu0
  %v5453 = vadd.f32 0.0, %v5452
  %5454 = vmatmul.f32.gmra.mxu0 %v5289
  %v5455 = vpop.f32.mrf.mxu0
  %v5456 = vadd.f32 0.0, %v5455
  %5457 = vmatmul.f32.gmra.mxu0 %v4441
  %v5458 = vpop.f32.mrf.mxu0
  %v5459 = vadd.f32 0.0, %v5458
  %5460 = vmatmul.f32.gmra.mxu0 %v4443
  %v5461 = vpop.f32.mrf.mxu0
  %v5462 = vadd.f32 0.0, %v5461
  %5463 = vmatmul.f32.gmra.mxu0 %v4445
  %v5464 = vpop.f32.mrf.mxu0
  %v5465 = vadd.f32 0.0, %v5464
  %5466 = vmatmul.f32.gmra.mxu0 %v4447
  %v5467 = vpop.f32.mrf.mxu0
  %v5468 = vadd.f32 0.0, %v5467
  %5469 = vmatmul.f32.gmra.mxu0 %v4449
  %v5470 = vpop.f32.mrf.mxu0
  %v5471 = vadd.f32 0.0, %v5470
  %5472 = vmatmul.f32.gmra.mxu0 %v4451
  %v5473 = vpop.f32.mrf.mxu0
  %v5474 = vadd.f32 0.0, %v5473
  %5475 = vmatmul.f32.gmra.mxu0 %v4453
  %v5476 = vpop.f32.mrf.mxu0
  %v5477 = vadd.f32 0.0, %v5476
  %5478 = vmatmul.f32.gmra.mxu0 %v5292
  %v5479 = vpop.f32.mrf.mxu0
  %v5480 = vadd.f32 0.0, %v5479
  %5481 = vmatmul.f32.gmra.mxu0 %v4457
  %v5482 = vpop.f32.mrf.mxu0
  %v5483 = vadd.f32 0.0, %v5482
  %5484 = vmatmul.f32.gmra.mxu0 %v4459
  %v5485 = vpop.f32.mrf.mxu0
  %v5486 = vadd.f32 0.0, %v5485
  %5487 = vmatmul.f32.gmra.mxu0 %v4461
  %v5488 = vpop.f32.mrf.mxu0
  %v5489 = vadd.f32 0.0, %v5488
  %5490 = vmatmul.f32.gmra.mxu0 %v4463
  %v5491 = vpop.f32.mrf.mxu0
  %v5492 = vadd.f32 0.0, %v5491
  %5493 = vmatmul.f32.gmra.mxu0 %v4465
  %v5494 = vpop.f32.mrf.mxu0
  %v5495 = vadd.f32 0.0, %v5494
  %5496 = vmatmul.f32.gmra.mxu0 %v4467
  %v5497 = vpop.f32.mrf.mxu0
  %v5498 = vadd.f32 0.0, %v5497
  %5499 = vmatmul.f32.gmra.mxu0 %v4469
  %v5500 = vpop.f32.mrf.mxu0
  %v5501 = vadd.f32 0.0, %v5500
  %5502 = vmatmul.f32.gmra.mxu0 %v5295
  %v5503 = vpop.f32.mrf.mxu0
  %v5504 = vadd.f32 0.0, %v5503
  %5505 = vdwg.mxu0
  %v5506 = vadd.f32 %v5209, %v5315
  %v5507 = vadd.f32 %v5210, %v5318
  %v5508 = vadd.f32 %v5211, %v5321
  %v5509 = vadd.f32 %v5212, %v5324
  %v5510 = vadd.f32 %v5213, %v5327
  %v5511 = vadd.f32 %v5214, %v5330
  %v5512 = vadd.f32 %v5215, %v5333
  %v5513 = vadd.f32 %v5216, %v5336
  %v5514 = vadd.f32 %v5217, %v5339
  %v5515 = vadd.f32 %v5218, %v5342
  %v5516 = vadd.f32 %v5219, %v5345
  %v5517 = vadd.f32 %v5220, %v5348
  %v5518 = vadd.f32 %v5221, %v5351
  %v5519 = vadd.f32 %v5222, %v5354
  %v5520 = vadd.f32 %v5223, %v5357
  %v5521 = vadd.f32 %v5224, %v5360
  %v5522 = vadd.f32 %v5225, %v5363
  %v5523 = vadd.f32 %v5226, %v5366
  %v5524 = vadd.f32 %v5227, %v5369
  %v5525 = vadd.f32 %v5228, %v5372
  %v5526 = vadd.f32 %v5229, %v5375
  %v5527 = vadd.f32 %v5230, %v5378
  %v5528 = vadd.f32 %v5231, %v5381
  %v5529 = vadd.f32 %v5232, %v5384
  %v5530 = vadd.f32 %v5233, %v5387
  %v5531 = vadd.f32 %v5234, %v5390
  %v5532 = vadd.f32 %v5235, %v5393
  %v5533 = vadd.f32 %v5236, %v5396
  %v5534 = vadd.f32 %v5237, %v5399
  %v5535 = vadd.f32 %v5238, %v5402
  %v5536 = vadd.f32 %v5239, %v5405
  %v5537 = vadd.f32 %v5240, %v5408
  %v5538 = vadd.f32 %v5241, %v5411
  %v5539 = vadd.f32 %v5242, %v5414
  %v5540 = vadd.f32 %v5243, %v5417
  %v5541 = vadd.f32 %v5244, %v5420
  %v5542 = vadd.f32 %v5245, %v5423
  %v5543 = vadd.f32 %v5246, %v5426
  %v5544 = vadd.f32 %v5247, %v5429
  %v5545 = vadd.f32 %v5248, %v5432
  %v5546 = vadd.f32 %v5249, %v5435
  %v5547 = vadd.f32 %v5250, %v5438
  %v5548 = vadd.f32 %v5251, %v5441
  %v5549 = vadd.f32 %v5252, %v5444
  %v5550 = vadd.f32 %v5253, %v5447
  %v5551 = vadd.f32 %v5254, %v5450
  %v5552 = vadd.f32 %v5255, %v5453
  %v5553 = vadd.f32 %v5256, %v5456
  %v5554 = vadd.f32 %v5257, %v5459
  %v5555 = vadd.f32 %v5258, %v5462
  %v5556 = vadd.f32 %v5259, %v5465
  %v5557 = vadd.f32 %v5260, %v5468
  %v5558 = vadd.f32 %v5261, %v5471
  %v5559 = vadd.f32 %v5262, %v5474
  %v5560 = vadd.f32 %v5263, %v5477
  %v5561 = vadd.f32 %v5264, %v5480
  %v5562 = vadd.f32 %v5265, %v5483
  %v5563 = vadd.f32 %v5266, %v5486
  %v5564 = vadd.f32 %v5267, %v5489
  %v5565 = vadd.f32 %v5268, %v5492
  %v5566 = vadd.f32 %v5269, %v5495
  %v5567 = vadd.f32 %v5270, %v5498
  %v5568 = vadd.f32 %v5271, %v5501
  %v5569 = vadd.f32 %v5272, %v5504
  %v5578 = vrot.slane %v3542, 1
  %v5579 = vrot.slane %v3543, 1
  %v5580 = vsel %vm243, %v5578, %v5579
  %v5581 = vrot.slane %v3562, 1
  %v5582 = vrot.slane %v3563, 1
  %v5583 = vsel %vm243, %v5581, %v5582
  %v5584 = vrot.slane %v3582, 1
  %v5585 = vrot.slane %v3583, 1
  %v5586 = vsel %vm243, %v5584, %v5585
  %v5587 = vrot.slane %v3602, 1
  %v5588 = vrot.slane %v3603, 1
  %v5589 = vsel %vm243, %v5587, %v5588
  %v5590 = vrot.slane %v3622, 1
  %v5591 = vrot.slane %v3623, 1
  %v5592 = vsel %vm243, %v5590, %v5591
  %v5593 = vrot.slane %v3642, 1
  %v5594 = vrot.slane %v3643, 1
  %v5595 = vsel %vm243, %v5593, %v5594
  %v5596 = vrot.slane %v3662, 1
  %v5597 = vrot.slane %v3663, 1
  %v5598 = vsel %vm243, %v5596, %v5597
  %v5599 = vrot.slane %v3682, 1
  %v5600 = vrot.slane %v3683, 1
  %v5601 = vsel %vm243, %v5599, %v5600
  %v5602 = vsel %vm406, %v5580, 0
  %v5604 = vsel %vm406, %v5583, 0
  %v5606 = vsel %vm406, %v5586, 0
  %v5608 = vsel %vm406, %v5589, 0
  %v5610 = vsel %vm406, %v5592, 0
  %v5612 = vsel %vm406, %v5595, 0
  %v5614 = vsel %vm406, %v5598, 0
  %v5616 = vsel %vm406, %v5601, 0
  %5618 = vmatpush.msra.mxu0 0.0
  %5619 = vmatpush.msra.mxu0 0.0
  %5620 = vmatpush.msra.mxu0 0.0
  %5621 = vmatpush.msra.mxu0 0.0
  %5622 = vmatpush.msra.mxu0 0.0
  %5623 = vmatpush.msra.mxu0 0.0
  %5624 = vmatpush.msra.mxu0 0.0
  %5625 = vmatpush.msra.mxu0 0.0
  %5626 = vmatpush.msra.mxu0 0.0
  %5627 = vmatpush.msra.mxu0 0.0
  %5628 = vmatpush.msra.mxu0 0.0
  %5629 = vmatpush.msra.mxu0 0.0
  %5630 = vmatpush.msra.mxu0 0.0
  %5631 = vmatpush.msra.mxu0 0.0
  %5632 = vmatpush.msra.mxu0 0.0
  %5633 = vmatpush.msra.mxu0 %v1945
  %5634 = vmatmul.f32.gmra.mxu0 %v4008
  %v5635 = vpop.f32.mrf.mxu0
  %v5636 = vadd.f32 0.0, %v5635
  %5637 = vmatmul.f32.gmra.mxu0 %v4010
  %v5638 = vpop.f32.mrf.mxu0
  %v5639 = vadd.f32 0.0, %v5638
  %5640 = vmatmul.f32.gmra.mxu0 %v4012
  %v5641 = vpop.f32.mrf.mxu0
  %v5642 = vadd.f32 0.0, %v5641
  %5643 = vmatmul.f32.gmra.mxu0 %v4014
  %v5644 = vpop.f32.mrf.mxu0
  %v5645 = vadd.f32 0.0, %v5644
  %5646 = vmatmul.f32.gmra.mxu0 %v4016
  %v5647 = vpop.f32.mrf.mxu0
  %v5648 = vadd.f32 0.0, %v5647
  %5649 = vmatmul.f32.gmra.mxu0 %v4018
  %v5650 = vpop.f32.mrf.mxu0
  %v5651 = vadd.f32 0.0, %v5650
  %5652 = vmatmul.f32.gmra.mxu0 %v4020
  %v5653 = vpop.f32.mrf.mxu0
  %v5654 = vadd.f32 0.0, %v5653
  %5655 = vmatmul.f32.gmra.mxu0 %v5602
  %v5656 = vpop.f32.mrf.mxu0
  %v5657 = vadd.f32 0.0, %v5656
  %5658 = vmatmul.f32.gmra.mxu0 %v4024
  %v5659 = vpop.f32.mrf.mxu0
  %v5660 = vadd.f32 0.0, %v5659
  %5661 = vmatmul.f32.gmra.mxu0 %v4026
  %v5662 = vpop.f32.mrf.mxu0
  %v5663 = vadd.f32 0.0, %v5662
  %5664 = vmatmul.f32.gmra.mxu0 %v4028
  %v5665 = vpop.f32.mrf.mxu0
  %v5666 = vadd.f32 0.0, %v5665
  %5667 = vmatmul.f32.gmra.mxu0 %v4030
  %v5668 = vpop.f32.mrf.mxu0
  %v5669 = vadd.f32 0.0, %v5668
  %5670 = vmatmul.f32.gmra.mxu0 %v4032
  %v5671 = vpop.f32.mrf.mxu0
  %v5672 = vadd.f32 0.0, %v5671
  %5673 = vmatmul.f32.gmra.mxu0 %v4034
  %v5674 = vpop.f32.mrf.mxu0
  %v5675 = vadd.f32 0.0, %v5674
  %5676 = vmatmul.f32.gmra.mxu0 %v4036
  %v5677 = vpop.f32.mrf.mxu0
  %v5678 = vadd.f32 0.0, %v5677
  %5679 = vmatmul.f32.gmra.mxu0 %v5604
  %v5680 = vpop.f32.mrf.mxu0
  %v5681 = vadd.f32 0.0, %v5680
  %5682 = vmatmul.f32.gmra.mxu0 %v4040
  %v5683 = vpop.f32.mrf.mxu0
  %v5684 = vadd.f32 0.0, %v5683
  %5685 = vmatmul.f32.gmra.mxu0 %v4042
  %v5686 = vpop.f32.mrf.mxu0
  %v5687 = vadd.f32 0.0, %v5686
  %5688 = vmatmul.f32.gmra.mxu0 %v4044
  %v5689 = vpop.f32.mrf.mxu0
  %v5690 = vadd.f32 0.0, %v5689
  %5691 = vmatmul.f32.gmra.mxu0 %v4046
  %v5692 = vpop.f32.mrf.mxu0
  %v5693 = vadd.f32 0.0, %v5692
  %5694 = vmatmul.f32.gmra.mxu0 %v4048
  %v5695 = vpop.f32.mrf.mxu0
  %v5696 = vadd.f32 0.0, %v5695
  %5697 = vmatmul.f32.gmra.mxu0 %v4050
  %v5698 = vpop.f32.mrf.mxu0
  %v5699 = vadd.f32 0.0, %v5698
  %5700 = vmatmul.f32.gmra.mxu0 %v4052
  %v5701 = vpop.f32.mrf.mxu0
  %v5702 = vadd.f32 0.0, %v5701
  %5703 = vmatmul.f32.gmra.mxu0 %v5606
  %v5704 = vpop.f32.mrf.mxu0
  %v5705 = vadd.f32 0.0, %v5704
  %5706 = vmatmul.f32.gmra.mxu0 %v4056
  %v5707 = vpop.f32.mrf.mxu0
  %v5708 = vadd.f32 0.0, %v5707
  %5709 = vmatmul.f32.gmra.mxu0 %v4058
  %v5710 = vpop.f32.mrf.mxu0
  %v5711 = vadd.f32 0.0, %v5710
  %5712 = vmatmul.f32.gmra.mxu0 %v4060
  %v5713 = vpop.f32.mrf.mxu0
  %v5714 = vadd.f32 0.0, %v5713
  %5715 = vmatmul.f32.gmra.mxu0 %v4062
  %v5716 = vpop.f32.mrf.mxu0
  %v5717 = vadd.f32 0.0, %v5716
  %5718 = vmatmul.f32.gmra.mxu0 %v4064
  %v5719 = vpop.f32.mrf.mxu0
  %v5720 = vadd.f32 0.0, %v5719
  %5721 = vmatmul.f32.gmra.mxu0 %v4066
  %v5722 = vpop.f32.mrf.mxu0
  %v5723 = vadd.f32 0.0, %v5722
  %5724 = vmatmul.f32.gmra.mxu0 %v4068
  %v5725 = vpop.f32.mrf.mxu0
  %v5726 = vadd.f32 0.0, %v5725
  %5727 = vmatmul.f32.gmra.mxu0 %v5608
  %v5728 = vpop.f32.mrf.mxu0
  %v5729 = vadd.f32 0.0, %v5728
  %5730 = vmatmul.f32.gmra.mxu0 %v4072
  %v5731 = vpop.f32.mrf.mxu0
  %v5732 = vadd.f32 0.0, %v5731
  %5733 = vmatmul.f32.gmra.mxu0 %v4074
  %v5734 = vpop.f32.mrf.mxu0
  %v5735 = vadd.f32 0.0, %v5734
  %5736 = vmatmul.f32.gmra.mxu0 %v4076
  %v5737 = vpop.f32.mrf.mxu0
  %v5738 = vadd.f32 0.0, %v5737
  %5739 = vmatmul.f32.gmra.mxu0 %v4078
  %v5740 = vpop.f32.mrf.mxu0
  %v5741 = vadd.f32 0.0, %v5740
  %5742 = vmatmul.f32.gmra.mxu0 %v4080
  %v5743 = vpop.f32.mrf.mxu0
  %v5744 = vadd.f32 0.0, %v5743
  %5745 = vmatmul.f32.gmra.mxu0 %v4082
  %v5746 = vpop.f32.mrf.mxu0
  %v5747 = vadd.f32 0.0, %v5746
  %5748 = vmatmul.f32.gmra.mxu0 %v4084
  %v5749 = vpop.f32.mrf.mxu0
  %v5750 = vadd.f32 0.0, %v5749
  %5751 = vmatmul.f32.gmra.mxu0 %v5610
  %v5752 = vpop.f32.mrf.mxu0
  %v5753 = vadd.f32 0.0, %v5752
  %5754 = vmatmul.f32.gmra.mxu0 %v4088
  %v5755 = vpop.f32.mrf.mxu0
  %v5756 = vadd.f32 0.0, %v5755
  %5757 = vmatmul.f32.gmra.mxu0 %v4090
  %v5758 = vpop.f32.mrf.mxu0
  %v5759 = vadd.f32 0.0, %v5758
  %5760 = vmatmul.f32.gmra.mxu0 %v4092
  %v5761 = vpop.f32.mrf.mxu0
  %v5762 = vadd.f32 0.0, %v5761
  %5763 = vmatmul.f32.gmra.mxu0 %v4094
  %v5764 = vpop.f32.mrf.mxu0
  %v5765 = vadd.f32 0.0, %v5764
  %5766 = vmatmul.f32.gmra.mxu0 %v4096
  %v5767 = vpop.f32.mrf.mxu0
  %v5768 = vadd.f32 0.0, %v5767
  %5769 = vmatmul.f32.gmra.mxu0 %v4098
  %v5770 = vpop.f32.mrf.mxu0
  %v5771 = vadd.f32 0.0, %v5770
  %5772 = vmatmul.f32.gmra.mxu0 %v4100
  %v5773 = vpop.f32.mrf.mxu0
  %v5774 = vadd.f32 0.0, %v5773
  %5775 = vmatmul.f32.gmra.mxu0 %v5612
  %v5776 = vpop.f32.mrf.mxu0
  %v5777 = vadd.f32 0.0, %v5776
  %5778 = vmatmul.f32.gmra.mxu0 %v4104
  %v5779 = vpop.f32.mrf.mxu0
  %v5780 = vadd.f32 0.0, %v5779
  %5781 = vmatmul.f32.gmra.mxu0 %v4106
  %v5782 = vpop.f32.mrf.mxu0
  %v5783 = vadd.f32 0.0, %v5782
  %5784 = vmatmul.f32.gmra.mxu0 %v4108
  %v5785 = vpop.f32.mrf.mxu0
  %v5786 = vadd.f32 0.0, %v5785
  %5787 = vmatmul.f32.gmra.mxu0 %v4110
  %v5788 = vpop.f32.mrf.mxu0
  %v5789 = vadd.f32 0.0, %v5788
  %5790 = vmatmul.f32.gmra.mxu0 %v4112
  %v5791 = vpop.f32.mrf.mxu0
  %v5792 = vadd.f32 0.0, %v5791
  %5793 = vmatmul.f32.gmra.mxu0 %v4114
  %v5794 = vpop.f32.mrf.mxu0
  %v5795 = vadd.f32 0.0, %v5794
  %5796 = vmatmul.f32.gmra.mxu0 %v4116
  %v5797 = vpop.f32.mrf.mxu0
  %v5798 = vadd.f32 0.0, %v5797
  %5799 = vmatmul.f32.gmra.mxu0 %v5614
  %v5800 = vpop.f32.mrf.mxu0
  %v5801 = vadd.f32 0.0, %v5800
  %5802 = vmatmul.f32.gmra.mxu0 %v4120
  %v5803 = vpop.f32.mrf.mxu0
  %v5804 = vadd.f32 0.0, %v5803
  %5805 = vmatmul.f32.gmra.mxu0 %v4122
  %v5806 = vpop.f32.mrf.mxu0
  %v5807 = vadd.f32 0.0, %v5806
  %5808 = vmatmul.f32.gmra.mxu0 %v4124
  %v5809 = vpop.f32.mrf.mxu0
  %v5810 = vadd.f32 0.0, %v5809
  %5811 = vmatmul.f32.gmra.mxu0 %v4126
  %v5812 = vpop.f32.mrf.mxu0
  %v5813 = vadd.f32 0.0, %v5812
  %5814 = vmatmul.f32.gmra.mxu0 %v4128
  %v5815 = vpop.f32.mrf.mxu0
  %v5816 = vadd.f32 0.0, %v5815
  %5817 = vmatmul.f32.gmra.mxu0 %v4130
  %v5818 = vpop.f32.mrf.mxu0
  %v5819 = vadd.f32 0.0, %v5818
  %5820 = vmatmul.f32.gmra.mxu0 %v4132
  %v5821 = vpop.f32.mrf.mxu0
  %v5822 = vadd.f32 0.0, %v5821
  %5823 = vmatmul.f32.gmra.mxu0 %v5616
  %v5824 = vpop.f32.mrf.mxu0
  %v5825 = vadd.f32 0.0, %v5824
  %5826 = vdwg.mxu0
  %v5827 = vadd.f32 %v5506, %v5636
  %v5828 = vadd.f32 %v5507, %v5639
  %v5829 = vadd.f32 %v5508, %v5642
  %v5830 = vadd.f32 %v5509, %v5645
  %v5831 = vadd.f32 %v5510, %v5648
  %v5832 = vadd.f32 %v5511, %v5651
  %v5833 = vadd.f32 %v5512, %v5654
  %v5834 = vadd.f32 %v5513, %v5657
  %v5835 = vadd.f32 %v5514, %v5660
  %v5836 = vadd.f32 %v5515, %v5663
  %v5837 = vadd.f32 %v5516, %v5666
  %v5838 = vadd.f32 %v5517, %v5669
  %v5839 = vadd.f32 %v5518, %v5672
  %v5840 = vadd.f32 %v5519, %v5675
  %v5841 = vadd.f32 %v5520, %v5678
  %v5842 = vadd.f32 %v5521, %v5681
  %v5843 = vadd.f32 %v5522, %v5684
  %v5844 = vadd.f32 %v5523, %v5687
  %v5845 = vadd.f32 %v5524, %v5690
  %v5846 = vadd.f32 %v5525, %v5693
  %v5847 = vadd.f32 %v5526, %v5696
  %v5848 = vadd.f32 %v5527, %v5699
  %v5849 = vadd.f32 %v5528, %v5702
  %v5850 = vadd.f32 %v5529, %v5705
  %v5851 = vadd.f32 %v5530, %v5708
  %v5852 = vadd.f32 %v5531, %v5711
  %v5853 = vadd.f32 %v5532, %v5714
  %v5854 = vadd.f32 %v5533, %v5717
  %v5855 = vadd.f32 %v5534, %v5720
  %v5856 = vadd.f32 %v5535, %v5723
  %v5857 = vadd.f32 %v5536, %v5726
  %v5858 = vadd.f32 %v5537, %v5729
  %v5859 = vadd.f32 %v5538, %v5732
  %v5860 = vadd.f32 %v5539, %v5735
  %v5861 = vadd.f32 %v5540, %v5738
  %v5862 = vadd.f32 %v5541, %v5741
  %v5863 = vadd.f32 %v5542, %v5744
  %v5864 = vadd.f32 %v5543, %v5747
  %v5865 = vadd.f32 %v5544, %v5750
  %v5866 = vadd.f32 %v5545, %v5753
  %v5867 = vadd.f32 %v5546, %v5756
  %v5868 = vadd.f32 %v5547, %v5759
  %v5869 = vadd.f32 %v5548, %v5762
  %v5870 = vadd.f32 %v5549, %v5765
  %v5871 = vadd.f32 %v5550, %v5768
  %v5872 = vadd.f32 %v5551, %v5771
  %v5873 = vadd.f32 %v5552, %v5774
  %v5874 = vadd.f32 %v5553, %v5777
  %v5875 = vadd.f32 %v5554, %v5780
  %v5876 = vadd.f32 %v5555, %v5783
  %v5877 = vadd.f32 %v5556, %v5786
  %v5878 = vadd.f32 %v5557, %v5789
  %v5879 = vadd.f32 %v5558, %v5792
  %v5880 = vadd.f32 %v5559, %v5795
  %v5881 = vadd.f32 %v5560, %v5798
  %v5882 = vadd.f32 %v5561, %v5801
  %v5883 = vadd.f32 %v5562, %v5804
  %v5884 = vadd.f32 %v5563, %v5807
  %v5885 = vadd.f32 %v5564, %v5810
  %v5886 = vadd.f32 %v5565, %v5813
  %v5887 = vadd.f32 %v5566, %v5816
  %v5888 = vadd.f32 %v5567, %v5819
  %v5889 = vadd.f32 %v5568, %v5822
  %v5890 = vadd.f32 %v5569, %v5825
  %v5891 = vrot.slane %v3542, 2
  %v5892 = vrot.slane %v3543, 2
  %v5893 = vsel %vm1081, %v5891, %v5892
  %v5894 = vrot.slane %v3562, 2
  %v5895 = vrot.slane %v3563, 2
  %v5896 = vsel %vm1081, %v5894, %v5895
  %v5897 = vrot.slane %v3582, 2
  %v5898 = vrot.slane %v3583, 2
  %v5899 = vsel %vm1081, %v5897, %v5898
  %v5900 = vrot.slane %v3602, 2
  %v5901 = vrot.slane %v3603, 2
  %v5902 = vsel %vm1081, %v5900, %v5901
  %v5903 = vrot.slane %v3622, 2
  %v5904 = vrot.slane %v3623, 2
  %v5905 = vsel %vm1081, %v5903, %v5904
  %v5906 = vrot.slane %v3642, 2
  %v5907 = vrot.slane %v3643, 2
  %v5908 = vsel %vm1081, %v5906, %v5907
  %v5909 = vrot.slane %v3662, 2
  %v5910 = vrot.slane %v3663, 2
  %v5911 = vsel %vm1081, %v5909, %v5910
  %v5912 = vrot.slane %v3682, 2
  %v5913 = vrot.slane %v3683, 2
  %v5914 = vsel %vm1081, %v5912, %v5913
  %v5915 = vsel %vm406, %v5893, 0
  %v5917 = vsel %vm406, %v5896, 0
  %v5919 = vsel %vm406, %v5899, 0
  %v5921 = vsel %vm406, %v5902, 0
  %v5923 = vsel %vm406, %v5905, 0
  %v5925 = vsel %vm406, %v5908, 0
  %v5927 = vsel %vm406, %v5911, 0
  %v5929 = vsel %vm406, %v5914, 0
  %5931 = vmatpush.msra.mxu0 0.0
  %5932 = vmatpush.msra.mxu0 0.0
  %5933 = vmatpush.msra.mxu0 0.0
  %5934 = vmatpush.msra.mxu0 0.0
  %5935 = vmatpush.msra.mxu0 0.0
  %5936 = vmatpush.msra.mxu0 0.0
  %5937 = vmatpush.msra.mxu0 0.0
  %5938 = vmatpush.msra.mxu0 0.0
  %5939 = vmatpush.msra.mxu0 0.0
  %5940 = vmatpush.msra.mxu0 0.0
  %5941 = vmatpush.msra.mxu0 0.0
  %5942 = vmatpush.msra.mxu0 0.0
  %5943 = vmatpush.msra.mxu0 0.0
  %5944 = vmatpush.msra.mxu0 0.0
  %5945 = vmatpush.msra.mxu0 0.0
  %5946 = vmatpush.msra.mxu0 %v2238
  %5947 = vmatmul.f32.gmra.mxu0 %v4874
  %v5948 = vpop.f32.mrf.mxu0
  %v5949 = vadd.f32 0.0, %v5948
  %5950 = vmatmul.f32.gmra.mxu0 %v4876
  %v5951 = vpop.f32.mrf.mxu0
  %v5952 = vadd.f32 0.0, %v5951
  %5953 = vmatmul.f32.gmra.mxu0 %v4878
  %v5954 = vpop.f32.mrf.mxu0
  %v5955 = vadd.f32 0.0, %v5954
  %5956 = vmatmul.f32.gmra.mxu0 %v4880
  %v5957 = vpop.f32.mrf.mxu0
  %v5958 = vadd.f32 0.0, %v5957
  %5959 = vmatmul.f32.gmra.mxu0 %v4882
  %v5960 = vpop.f32.mrf.mxu0
  %v5961 = vadd.f32 0.0, %v5960
  %5962 = vmatmul.f32.gmra.mxu0 %v4884
  %v5963 = vpop.f32.mrf.mxu0
  %v5964 = vadd.f32 0.0, %v5963
  %5965 = vmatmul.f32.gmra.mxu0 %v4886
  %v5966 = vpop.f32.mrf.mxu0
  %v5967 = vadd.f32 0.0, %v5966
  %5968 = vmatmul.f32.gmra.mxu0 %v5915
  %v5969 = vpop.f32.mrf.mxu0
  %v5970 = vadd.f32 0.0, %v5969
  %5971 = vmatmul.f32.gmra.mxu0 %v4890
  %v5972 = vpop.f32.mrf.mxu0
  %v5973 = vadd.f32 0.0, %v5972
  %5974 = vmatmul.f32.gmra.mxu0 %v4892
  %v5975 = vpop.f32.mrf.mxu0
  %v5976 = vadd.f32 0.0, %v5975
  %5977 = vmatmul.f32.gmra.mxu0 %v4894
  %v5978 = vpop.f32.mrf.mxu0
  %v5979 = vadd.f32 0.0, %v5978
  %5980 = vmatmul.f32.gmra.mxu0 %v4896
  %v5981 = vpop.f32.mrf.mxu0
  %v5982 = vadd.f32 0.0, %v5981
  %5983 = vmatmul.f32.gmra.mxu0 %v4898
  %v5984 = vpop.f32.mrf.mxu0
  %v5985 = vadd.f32 0.0, %v5984
  %5986 = vmatmul.f32.gmra.mxu0 %v4900
  %v5987 = vpop.f32.mrf.mxu0
  %v5988 = vadd.f32 0.0, %v5987
  %5989 = vmatmul.f32.gmra.mxu0 %v4902
  %v5990 = vpop.f32.mrf.mxu0
  %v5991 = vadd.f32 0.0, %v5990
  %5992 = vmatmul.f32.gmra.mxu0 %v5917
  %v5993 = vpop.f32.mrf.mxu0
  %v5994 = vadd.f32 0.0, %v5993
  %5995 = vmatmul.f32.gmra.mxu0 %v4906
  %v5996 = vpop.f32.mrf.mxu0
  %v5997 = vadd.f32 0.0, %v5996
  %5998 = vmatmul.f32.gmra.mxu0 %v4908
  %v5999 = vpop.f32.mrf.mxu0
  %v6000 = vadd.f32 0.0, %v5999
  %6001 = vmatmul.f32.gmra.mxu0 %v4910
  %v6002 = vpop.f32.mrf.mxu0
  %v6003 = vadd.f32 0.0, %v6002
  %6004 = vmatmul.f32.gmra.mxu0 %v4912
  %v6005 = vpop.f32.mrf.mxu0
  %v6006 = vadd.f32 0.0, %v6005
  %6007 = vmatmul.f32.gmra.mxu0 %v4914
  %v6008 = vpop.f32.mrf.mxu0
  %v6009 = vadd.f32 0.0, %v6008
  %6010 = vmatmul.f32.gmra.mxu0 %v4916
  %v6011 = vpop.f32.mrf.mxu0
  %v6012 = vadd.f32 0.0, %v6011
  %6013 = vmatmul.f32.gmra.mxu0 %v4918
  %v6014 = vpop.f32.mrf.mxu0
  %v6015 = vadd.f32 0.0, %v6014
  %6016 = vmatmul.f32.gmra.mxu0 %v5919
  %v6017 = vpop.f32.mrf.mxu0
  %v6018 = vadd.f32 0.0, %v6017
  %6019 = vmatmul.f32.gmra.mxu0 %v4922
  %v6020 = vpop.f32.mrf.mxu0
  %v6021 = vadd.f32 0.0, %v6020
  %6022 = vmatmul.f32.gmra.mxu0 %v4924
  %v6023 = vpop.f32.mrf.mxu0
  %v6024 = vadd.f32 0.0, %v6023
  %6025 = vmatmul.f32.gmra.mxu0 %v4926
  %v6026 = vpop.f32.mrf.mxu0
  %v6027 = vadd.f32 0.0, %v6026
  %6028 = vmatmul.f32.gmra.mxu0 %v4928
  %v6029 = vpop.f32.mrf.mxu0
  %v6030 = vadd.f32 0.0, %v6029
  %6031 = vmatmul.f32.gmra.mxu0 %v4930
  %v6032 = vpop.f32.mrf.mxu0
  %v6033 = vadd.f32 0.0, %v6032
  %6034 = vmatmul.f32.gmra.mxu0 %v4932
  %v6035 = vpop.f32.mrf.mxu0
  %v6036 = vadd.f32 0.0, %v6035
  %6037 = vmatmul.f32.gmra.mxu0 %v4934
  %v6038 = vpop.f32.mrf.mxu0
  %v6039 = vadd.f32 0.0, %v6038
  %6040 = vmatmul.f32.gmra.mxu0 %v5921
  %v6041 = vpop.f32.mrf.mxu0
  %v6042 = vadd.f32 0.0, %v6041
  %6043 = vmatmul.f32.gmra.mxu0 %v4938
  %v6044 = vpop.f32.mrf.mxu0
  %v6045 = vadd.f32 0.0, %v6044
  %6046 = vmatmul.f32.gmra.mxu0 %v4940
  %v6047 = vpop.f32.mrf.mxu0
  %v6048 = vadd.f32 0.0, %v6047
  %6049 = vmatmul.f32.gmra.mxu0 %v4942
  %v6050 = vpop.f32.mrf.mxu0
  %v6051 = vadd.f32 0.0, %v6050
  %6052 = vmatmul.f32.gmra.mxu0 %v4944
  %v6053 = vpop.f32.mrf.mxu0
  %v6054 = vadd.f32 0.0, %v6053
  %6055 = vmatmul.f32.gmra.mxu0 %v4946
  %v6056 = vpop.f32.mrf.mxu0
  %v6057 = vadd.f32 0.0, %v6056
  %6058 = vmatmul.f32.gmra.mxu0 %v4948
  %v6059 = vpop.f32.mrf.mxu0
  %v6060 = vadd.f32 0.0, %v6059
  %6061 = vmatmul.f32.gmra.mxu0 %v4950
  %v6062 = vpop.f32.mrf.mxu0
  %v6063 = vadd.f32 0.0, %v6062
  %6064 = vmatmul.f32.gmra.mxu0 %v5923
  %v6065 = vpop.f32.mrf.mxu0
  %v6066 = vadd.f32 0.0, %v6065
  %6067 = vmatmul.f32.gmra.mxu0 %v4954
  %v6068 = vpop.f32.mrf.mxu0
  %v6069 = vadd.f32 0.0, %v6068
  %6070 = vmatmul.f32.gmra.mxu0 %v4956
  %v6071 = vpop.f32.mrf.mxu0
  %v6072 = vadd.f32 0.0, %v6071
  %6073 = vmatmul.f32.gmra.mxu0 %v4958
  %v6074 = vpop.f32.mrf.mxu0
  %v6075 = vadd.f32 0.0, %v6074
  %6076 = vmatmul.f32.gmra.mxu0 %v4960
  %v6077 = vpop.f32.mrf.mxu0
  %v6078 = vadd.f32 0.0, %v6077
  %6079 = vmatmul.f32.gmra.mxu0 %v4962
  %v6080 = vpop.f32.mrf.mxu0
  %v6081 = vadd.f32 0.0, %v6080
  %6082 = vmatmul.f32.gmra.mxu0 %v4964
  %v6083 = vpop.f32.mrf.mxu0
  %v6084 = vadd.f32 0.0, %v6083
  %6085 = vmatmul.f32.gmra.mxu0 %v4966
  %v6086 = vpop.f32.mrf.mxu0
  %v6087 = vadd.f32 0.0, %v6086
  %6088 = vmatmul.f32.gmra.mxu0 %v5925
  %v6089 = vpop.f32.mrf.mxu0
  %v6090 = vadd.f32 0.0, %v6089
  %6091 = vmatmul.f32.gmra.mxu0 %v4970
  %v6092 = vpop.f32.mrf.mxu0
  %v6093 = vadd.f32 0.0, %v6092
  %6094 = vmatmul.f32.gmra.mxu0 %v4972
  %v6095 = vpop.f32.mrf.mxu0
  %v6096 = vadd.f32 0.0, %v6095
  %6097 = vmatmul.f32.gmra.mxu0 %v4974
  %v6098 = vpop.f32.mrf.mxu0
  %v6099 = vadd.f32 0.0, %v6098
  %6100 = vmatmul.f32.gmra.mxu0 %v4976
  %v6101 = vpop.f32.mrf.mxu0
  %v6102 = vadd.f32 0.0, %v6101
  %6103 = vmatmul.f32.gmra.mxu0 %v4978
  %v6104 = vpop.f32.mrf.mxu0
  %v6105 = vadd.f32 0.0, %v6104
  %6106 = vmatmul.f32.gmra.mxu0 %v4980
  %v6107 = vpop.f32.mrf.mxu0
  %v6108 = vadd.f32 0.0, %v6107
  %6109 = vmatmul.f32.gmra.mxu0 %v4982
  %v6110 = vpop.f32.mrf.mxu0
  %v6111 = vadd.f32 0.0, %v6110
  %6112 = vmatmul.f32.gmra.mxu0 %v5927
  %v6113 = vpop.f32.mrf.mxu0
  %v6114 = vadd.f32 0.0, %v6113
  %6115 = vmatmul.f32.gmra.mxu0 %v4986
  %v6116 = vpop.f32.mrf.mxu0
  %v6117 = vadd.f32 0.0, %v6116
  %6118 = vmatmul.f32.gmra.mxu0 %v4988
  %v6119 = vpop.f32.mrf.mxu0
  %v6120 = vadd.f32 0.0, %v6119
  %6121 = vmatmul.f32.gmra.mxu0 %v4990
  %v6122 = vpop.f32.mrf.mxu0
  %v6123 = vadd.f32 0.0, %v6122
  %6124 = vmatmul.f32.gmra.mxu0 %v4992
  %v6125 = vpop.f32.mrf.mxu0
  %v6126 = vadd.f32 0.0, %v6125
  %6127 = vmatmul.f32.gmra.mxu0 %v4994
  %v6128 = vpop.f32.mrf.mxu0
  %v6129 = vadd.f32 0.0, %v6128
  %6130 = vmatmul.f32.gmra.mxu0 %v4996
  %v6131 = vpop.f32.mrf.mxu0
  %v6132 = vadd.f32 0.0, %v6131
  %6133 = vmatmul.f32.gmra.mxu0 %v4998
  %v6134 = vpop.f32.mrf.mxu0
  %v6135 = vadd.f32 0.0, %v6134
  %6136 = vmatmul.f32.gmra.mxu0 %v5929
  %v6137 = vpop.f32.mrf.mxu0
  %v6138 = vadd.f32 0.0, %v6137
  %6139 = vdwg.mxu0
  %v6140 = vadd.f32 %v5827, %v5949
  %v6141 = vadd.f32 %v5828, %v5952
  %v6142 = vadd.f32 %v5829, %v5955
  %v6143 = vadd.f32 %v5830, %v5958
  %v6144 = vadd.f32 %v5831, %v5961
  %v6145 = vadd.f32 %v5832, %v5964
  %v6146 = vadd.f32 %v5833, %v5967
  %v6147 = vadd.f32 %v5834, %v5970
  %v6148 = vadd.f32 %v5835, %v5973
  %v6149 = vadd.f32 %v5836, %v5976
  %v6150 = vadd.f32 %v5837, %v5979
  %v6151 = vadd.f32 %v5838, %v5982
  %v6152 = vadd.f32 %v5839, %v5985
  %v6153 = vadd.f32 %v5840, %v5988
  %v6154 = vadd.f32 %v5841, %v5991
  %v6155 = vadd.f32 %v5842, %v5994
  %v6156 = vadd.f32 %v5843, %v5997
  %v6157 = vadd.f32 %v5844, %v6000
  %v6158 = vadd.f32 %v5845, %v6003
  %v6159 = vadd.f32 %v5846, %v6006
  %v6160 = vadd.f32 %v5847, %v6009
  %v6161 = vadd.f32 %v5848, %v6012
  %v6162 = vadd.f32 %v5849, %v6015
  %v6163 = vadd.f32 %v5850, %v6018
  %v6164 = vadd.f32 %v5851, %v6021
  %v6165 = vadd.f32 %v5852, %v6024
  %v6166 = vadd.f32 %v5853, %v6027
  %v6167 = vadd.f32 %v5854, %v6030
  %v6168 = vadd.f32 %v5855, %v6033
  %v6169 = vadd.f32 %v5856, %v6036
  %v6170 = vadd.f32 %v5857, %v6039
  %v6171 = vadd.f32 %v5858, %v6042
  %v6172 = vadd.f32 %v5859, %v6045
  %v6173 = vadd.f32 %v5860, %v6048
  %v6174 = vadd.f32 %v5861, %v6051
  %v6175 = vadd.f32 %v5862, %v6054
  %v6176 = vadd.f32 %v5863, %v6057
  %v6177 = vadd.f32 %v5864, %v6060
  %v6178 = vadd.f32 %v5865, %v6063
  %v6179 = vadd.f32 %v5866, %v6066
  %v6180 = vadd.f32 %v5867, %v6069
  %v6181 = vadd.f32 %v5868, %v6072
  %v6182 = vadd.f32 %v5869, %v6075
  %v6183 = vadd.f32 %v5870, %v6078
  %v6184 = vadd.f32 %v5871, %v6081
  %v6185 = vadd.f32 %v5872, %v6084
  %v6186 = vadd.f32 %v5873, %v6087
  %v6187 = vadd.f32 %v5874, %v6090
  %v6188 = vadd.f32 %v5875, %v6093
  %v6189 = vadd.f32 %v5876, %v6096
  %v6190 = vadd.f32 %v5877, %v6099
  %v6191 = vadd.f32 %v5878, %v6102
  %v6192 = vadd.f32 %v5879, %v6105
  %v6193 = vadd.f32 %v5880, %v6108
  %v6194 = vadd.f32 %v5881, %v6111
  %v6195 = vadd.f32 %v5882, %v6114
  %v6196 = vadd.f32 %v5883, %v6117
  %v6197 = vadd.f32 %v5884, %v6120
  %v6198 = vadd.f32 %v5885, %v6123
  %v6199 = vadd.f32 %v5886, %v6126
  %v6200 = vadd.f32 %v5887, %v6129
  %v6201 = vadd.f32 %v5888, %v6132
  %v6202 = vadd.f32 %v5889, %v6135
  %v6203 = vadd.f32 %v5890, %v6138
  %v6205 = vsel %vm406, %v3544, 0
  %v6208 = vsel %vm406, %v3564, 0
  %v6211 = vsel %vm406, %v3584, 0
  %v6214 = vsel %vm406, %v3604, 0
  %v6217 = vsel %vm406, %v3624, 0
  %v6220 = vsel %vm406, %v3644, 0
  %v6223 = vsel %vm406, %v3664, 0
  %v6226 = vsel %vm406, %v3684, 0
  %6228 = vmatpush.msra.mxu0 0.0
  %6229 = vmatpush.msra.mxu0 0.0
  %6230 = vmatpush.msra.mxu0 0.0
  %6231 = vmatpush.msra.mxu0 0.0
  %6232 = vmatpush.msra.mxu0 0.0
  %6233 = vmatpush.msra.mxu0 0.0
  %6234 = vmatpush.msra.mxu0 0.0
  %6235 = vmatpush.msra.mxu0 0.0
  %6236 = vmatpush.msra.mxu0 0.0
  %6237 = vmatpush.msra.mxu0 0.0
  %6238 = vmatpush.msra.mxu0 0.0
  %6239 = vmatpush.msra.mxu0 0.0
  %6240 = vmatpush.msra.mxu0 0.0
  %6241 = vmatpush.msra.mxu0 0.0
  %6242 = vmatpush.msra.mxu0 0.0
  %6243 = vmatpush.msra.mxu0 %v2521
  %6244 = vmatmul.f32.gmra.mxu0 %v4347
  %v6245 = vpop.f32.mrf.mxu0
  %v6246 = vadd.f32 0.0, %v6245
  %6247 = vmatmul.f32.gmra.mxu0 %v4349
  %v6248 = vpop.f32.mrf.mxu0
  %v6249 = vadd.f32 0.0, %v6248
  %6250 = vmatmul.f32.gmra.mxu0 %v4351
  %v6251 = vpop.f32.mrf.mxu0
  %v6252 = vadd.f32 0.0, %v6251
  %6253 = vmatmul.f32.gmra.mxu0 %v4353
  %v6254 = vpop.f32.mrf.mxu0
  %v6255 = vadd.f32 0.0, %v6254
  %6256 = vmatmul.f32.gmra.mxu0 %v4355
  %v6257 = vpop.f32.mrf.mxu0
  %v6258 = vadd.f32 0.0, %v6257
  %6259 = vmatmul.f32.gmra.mxu0 %v4357
  %v6260 = vpop.f32.mrf.mxu0
  %v6261 = vadd.f32 0.0, %v6260
  %6262 = vmatmul.f32.gmra.mxu0 %v5274
  %v6263 = vpop.f32.mrf.mxu0
  %v6264 = vadd.f32 0.0, %v6263
  %6265 = vmatmul.f32.gmra.mxu0 %v6205
  %v6266 = vpop.f32.mrf.mxu0
  %v6267 = vadd.f32 0.0, %v6266
  %6268 = vmatmul.f32.gmra.mxu0 %v4363
  %v6269 = vpop.f32.mrf.mxu0
  %v6270 = vadd.f32 0.0, %v6269
  %6271 = vmatmul.f32.gmra.mxu0 %v4365
  %v6272 = vpop.f32.mrf.mxu0
  %v6273 = vadd.f32 0.0, %v6272
  %6274 = vmatmul.f32.gmra.mxu0 %v4367
  %v6275 = vpop.f32.mrf.mxu0
  %v6276 = vadd.f32 0.0, %v6275
  %6277 = vmatmul.f32.gmra.mxu0 %v4369
  %v6278 = vpop.f32.mrf.mxu0
  %v6279 = vadd.f32 0.0, %v6278
  %6280 = vmatmul.f32.gmra.mxu0 %v4371
  %v6281 = vpop.f32.mrf.mxu0
  %v6282 = vadd.f32 0.0, %v6281
  %6283 = vmatmul.f32.gmra.mxu0 %v4373
  %v6284 = vpop.f32.mrf.mxu0
  %v6285 = vadd.f32 0.0, %v6284
  %6286 = vmatmul.f32.gmra.mxu0 %v5277
  %v6287 = vpop.f32.mrf.mxu0
  %v6288 = vadd.f32 0.0, %v6287
  %6289 = vmatmul.f32.gmra.mxu0 %v6208
  %v6290 = vpop.f32.mrf.mxu0
  %v6291 = vadd.f32 0.0, %v6290
  %6292 = vmatmul.f32.gmra.mxu0 %v4379
  %v6293 = vpop.f32.mrf.mxu0
  %v6294 = vadd.f32 0.0, %v6293
  %6295 = vmatmul.f32.gmra.mxu0 %v4381
  %v6296 = vpop.f32.mrf.mxu0
  %v6297 = vadd.f32 0.0, %v6296
  %6298 = vmatmul.f32.gmra.mxu0 %v4383
  %v6299 = vpop.f32.mrf.mxu0
  %v6300 = vadd.f32 0.0, %v6299
  %6301 = vmatmul.f32.gmra.mxu0 %v4385
  %v6302 = vpop.f32.mrf.mxu0
  %v6303 = vadd.f32 0.0, %v6302
  %6304 = vmatmul.f32.gmra.mxu0 %v4387
  %v6305 = vpop.f32.mrf.mxu0
  %v6306 = vadd.f32 0.0, %v6305
  %6307 = vmatmul.f32.gmra.mxu0 %v4389
  %v6308 = vpop.f32.mrf.mxu0
  %v6309 = vadd.f32 0.0, %v6308
  %6310 = vmatmul.f32.gmra.mxu0 %v5280
  %v6311 = vpop.f32.mrf.mxu0
  %v6312 = vadd.f32 0.0, %v6311
  %6313 = vmatmul.f32.gmra.mxu0 %v6211
  %v6314 = vpop.f32.mrf.mxu0
  %v6315 = vadd.f32 0.0, %v6314
  %6316 = vmatmul.f32.gmra.mxu0 %v4395
  %v6317 = vpop.f32.mrf.mxu0
  %v6318 = vadd.f32 0.0, %v6317
  %6319 = vmatmul.f32.gmra.mxu0 %v4397
  %v6320 = vpop.f32.mrf.mxu0
  %v6321 = vadd.f32 0.0, %v6320
  %6322 = vmatmul.f32.gmra.mxu0 %v4399
  %v6323 = vpop.f32.mrf.mxu0
  %v6324 = vadd.f32 0.0, %v6323
  %6325 = vmatmul.f32.gmra.mxu0 %v4401
  %v6326 = vpop.f32.mrf.mxu0
  %v6327 = vadd.f32 0.0, %v6326
  %6328 = vmatmul.f32.gmra.mxu0 %v4403
  %v6329 = vpop.f32.mrf.mxu0
  %v6330 = vadd.f32 0.0, %v6329
  %6331 = vmatmul.f32.gmra.mxu0 %v4405
  %v6332 = vpop.f32.mrf.mxu0
  %v6333 = vadd.f32 0.0, %v6332
  %6334 = vmatmul.f32.gmra.mxu0 %v5283
  %v6335 = vpop.f32.mrf.mxu0
  %v6336 = vadd.f32 0.0, %v6335
  %6337 = vmatmul.f32.gmra.mxu0 %v6214
  %v6338 = vpop.f32.mrf.mxu0
  %v6339 = vadd.f32 0.0, %v6338
  %6340 = vmatmul.f32.gmra.mxu0 %v4411
  %v6341 = vpop.f32.mrf.mxu0
  %v6342 = vadd.f32 0.0, %v6341
  %6343 = vmatmul.f32.gmra.mxu0 %v4413
  %v6344 = vpop.f32.mrf.mxu0
  %v6345 = vadd.f32 0.0, %v6344
  %6346 = vmatmul.f32.gmra.mxu0 %v4415
  %v6347 = vpop.f32.mrf.mxu0
  %v6348 = vadd.f32 0.0, %v6347
  %6349 = vmatmul.f32.gmra.mxu0 %v4417
  %v6350 = vpop.f32.mrf.mxu0
  %v6351 = vadd.f32 0.0, %v6350
  %6352 = vmatmul.f32.gmra.mxu0 %v4419
  %v6353 = vpop.f32.mrf.mxu0
  %v6354 = vadd.f32 0.0, %v6353
  %6355 = vmatmul.f32.gmra.mxu0 %v4421
  %v6356 = vpop.f32.mrf.mxu0
  %v6357 = vadd.f32 0.0, %v6356
  %6358 = vmatmul.f32.gmra.mxu0 %v5286
  %v6359 = vpop.f32.mrf.mxu0
  %v6360 = vadd.f32 0.0, %v6359
  %6361 = vmatmul.f32.gmra.mxu0 %v6217
  %v6362 = vpop.f32.mrf.mxu0
  %v6363 = vadd.f32 0.0, %v6362
  %6364 = vmatmul.f32.gmra.mxu0 %v4427
  %v6365 = vpop.f32.mrf.mxu0
  %v6366 = vadd.f32 0.0, %v6365
  %6367 = vmatmul.f32.gmra.mxu0 %v4429
  %v6368 = vpop.f32.mrf.mxu0
  %v6369 = vadd.f32 0.0, %v6368
  %6370 = vmatmul.f32.gmra.mxu0 %v4431
  %v6371 = vpop.f32.mrf.mxu0
  %v6372 = vadd.f32 0.0, %v6371
  %6373 = vmatmul.f32.gmra.mxu0 %v4433
  %v6374 = vpop.f32.mrf.mxu0
  %v6375 = vadd.f32 0.0, %v6374
  %6376 = vmatmul.f32.gmra.mxu0 %v4435
  %v6377 = vpop.f32.mrf.mxu0
  %v6378 = vadd.f32 0.0, %v6377
  %6379 = vmatmul.f32.gmra.mxu0 %v4437
  %v6380 = vpop.f32.mrf.mxu0
  %v6381 = vadd.f32 0.0, %v6380
  %6382 = vmatmul.f32.gmra.mxu0 %v5289
  %v6383 = vpop.f32.mrf.mxu0
  %v6384 = vadd.f32 0.0, %v6383
  %6385 = vmatmul.f32.gmra.mxu0 %v6220
  %v6386 = vpop.f32.mrf.mxu0
  %v6387 = vadd.f32 0.0, %v6386
  %6388 = vmatmul.f32.gmra.mxu0 %v4443
  %v6389 = vpop.f32.mrf.mxu0
  %v6390 = vadd.f32 0.0, %v6389
  %6391 = vmatmul.f32.gmra.mxu0 %v4445
  %v6392 = vpop.f32.mrf.mxu0
  %v6393 = vadd.f32 0.0, %v6392
  %6394 = vmatmul.f32.gmra.mxu0 %v4447
  %v6395 = vpop.f32.mrf.mxu0
  %v6396 = vadd.f32 0.0, %v6395
  %6397 = vmatmul.f32.gmra.mxu0 %v4449
  %v6398 = vpop.f32.mrf.mxu0
  %v6399 = vadd.f32 0.0, %v6398
  %6400 = vmatmul.f32.gmra.mxu0 %v4451
  %v6401 = vpop.f32.mrf.mxu0
  %v6402 = vadd.f32 0.0, %v6401
  %6403 = vmatmul.f32.gmra.mxu0 %v4453
  %v6404 = vpop.f32.mrf.mxu0
  %v6405 = vadd.f32 0.0, %v6404
  %6406 = vmatmul.f32.gmra.mxu0 %v5292
  %v6407 = vpop.f32.mrf.mxu0
  %v6408 = vadd.f32 0.0, %v6407
  %6409 = vmatmul.f32.gmra.mxu0 %v6223
  %v6410 = vpop.f32.mrf.mxu0
  %v6411 = vadd.f32 0.0, %v6410
  %6412 = vmatmul.f32.gmra.mxu0 %v4459
  %v6413 = vpop.f32.mrf.mxu0
  %v6414 = vadd.f32 0.0, %v6413
  %6415 = vmatmul.f32.gmra.mxu0 %v4461
  %v6416 = vpop.f32.mrf.mxu0
  %v6417 = vadd.f32 0.0, %v6416
  %6418 = vmatmul.f32.gmra.mxu0 %v4463
  %v6419 = vpop.f32.mrf.mxu0
  %v6420 = vadd.f32 0.0, %v6419
  %6421 = vmatmul.f32.gmra.mxu0 %v4465
  %v6422 = vpop.f32.mrf.mxu0
  %v6423 = vadd.f32 0.0, %v6422
  %6424 = vmatmul.f32.gmra.mxu0 %v4467
  %v6425 = vpop.f32.mrf.mxu0
  %v6426 = vadd.f32 0.0, %v6425
  %6427 = vmatmul.f32.gmra.mxu0 %v4469
  %v6428 = vpop.f32.mrf.mxu0
  %v6429 = vadd.f32 0.0, %v6428
  %6430 = vmatmul.f32.gmra.mxu0 %v5295
  %v6431 = vpop.f32.mrf.mxu0
  %v6432 = vadd.f32 0.0, %v6431
  %6433 = vmatmul.f32.gmra.mxu0 %v6226
  %v6434 = vpop.f32.mrf.mxu0
  %v6435 = vadd.f32 0.0, %v6434
  %6436 = vdwg.mxu0
  %v6437 = vadd.f32 %v6140, %v6246
  %v6438 = vadd.f32 %v6141, %v6249
  %v6439 = vadd.f32 %v6142, %v6252
  %v6440 = vadd.f32 %v6143, %v6255
  %v6441 = vadd.f32 %v6144, %v6258
  %v6442 = vadd.f32 %v6145, %v6261
  %v6443 = vadd.f32 %v6146, %v6264
  %v6444 = vadd.f32 %v6147, %v6267
  %v6445 = vadd.f32 %v6148, %v6270
  %v6446 = vadd.f32 %v6149, %v6273
  %v6447 = vadd.f32 %v6150, %v6276
  %v6448 = vadd.f32 %v6151, %v6279
  %v6449 = vadd.f32 %v6152, %v6282
  %v6450 = vadd.f32 %v6153, %v6285
  %v6451 = vadd.f32 %v6154, %v6288
  %v6452 = vadd.f32 %v6155, %v6291
  %v6453 = vadd.f32 %v6156, %v6294
  %v6454 = vadd.f32 %v6157, %v6297
  %v6455 = vadd.f32 %v6158, %v6300
  %v6456 = vadd.f32 %v6159, %v6303
  %v6457 = vadd.f32 %v6160, %v6306
  %v6458 = vadd.f32 %v6161, %v6309
  %v6459 = vadd.f32 %v6162, %v6312
  %v6460 = vadd.f32 %v6163, %v6315
  %v6461 = vadd.f32 %v6164, %v6318
  %v6462 = vadd.f32 %v6165, %v6321
  %v6463 = vadd.f32 %v6166, %v6324
  %v6464 = vadd.f32 %v6167, %v6327
  %v6465 = vadd.f32 %v6168, %v6330
  %v6466 = vadd.f32 %v6169, %v6333
  %v6467 = vadd.f32 %v6170, %v6336
  %v6468 = vadd.f32 %v6171, %v6339
  %v6469 = vadd.f32 %v6172, %v6342
  %v6470 = vadd.f32 %v6173, %v6345
  %v6471 = vadd.f32 %v6174, %v6348
  %v6472 = vadd.f32 %v6175, %v6351
  %v6473 = vadd.f32 %v6176, %v6354
  %v6474 = vadd.f32 %v6177, %v6357
  %v6475 = vadd.f32 %v6178, %v6360
  %v6476 = vadd.f32 %v6179, %v6363
  %v6477 = vadd.f32 %v6180, %v6366
  %v6478 = vadd.f32 %v6181, %v6369
  %v6479 = vadd.f32 %v6182, %v6372
  %v6480 = vadd.f32 %v6183, %v6375
  %v6481 = vadd.f32 %v6184, %v6378
  %v6482 = vadd.f32 %v6185, %v6381
  %v6483 = vadd.f32 %v6186, %v6384
  %v6484 = vadd.f32 %v6187, %v6387
  %v6485 = vadd.f32 %v6188, %v6390
  %v6486 = vadd.f32 %v6189, %v6393
  %v6487 = vadd.f32 %v6190, %v6396
  %v6488 = vadd.f32 %v6191, %v6399
  %v6489 = vadd.f32 %v6192, %v6402
  %v6490 = vadd.f32 %v6193, %v6405
  %v6491 = vadd.f32 %v6194, %v6408
  %v6492 = vadd.f32 %v6195, %v6411
  %v6493 = vadd.f32 %v6196, %v6414
  %v6494 = vadd.f32 %v6197, %v6417
  %v6495 = vadd.f32 %v6198, %v6420
  %v6496 = vadd.f32 %v6199, %v6423
  %v6497 = vadd.f32 %v6200, %v6426
  %v6498 = vadd.f32 %v6201, %v6429
  %v6499 = vadd.f32 %v6202, %v6432
  %v6500 = vadd.f32 %v6203, %v6435
  %v6509 = vrot.slane %v3544, 1
  %v6510 = vrot.slane %v3545, 1
  %v6511 = vsel %vm243, %v6509, %v6510
  %v6512 = vrot.slane %v3564, 1
  %v6513 = vrot.slane %v3565, 1
  %v6514 = vsel %vm243, %v6512, %v6513
  %v6515 = vrot.slane %v3584, 1
  %v6516 = vrot.slane %v3585, 1
  %v6517 = vsel %vm243, %v6515, %v6516
  %v6518 = vrot.slane %v3604, 1
  %v6519 = vrot.slane %v3605, 1
  %v6520 = vsel %vm243, %v6518, %v6519
  %v6521 = vrot.slane %v3624, 1
  %v6522 = vrot.slane %v3625, 1
  %v6523 = vsel %vm243, %v6521, %v6522
  %v6524 = vrot.slane %v3644, 1
  %v6525 = vrot.slane %v3645, 1
  %v6526 = vsel %vm243, %v6524, %v6525
  %v6527 = vrot.slane %v3664, 1
  %v6528 = vrot.slane %v3665, 1
  %v6529 = vsel %vm243, %v6527, %v6528
  %v6530 = vrot.slane %v3684, 1
  %v6531 = vrot.slane %v3685, 1
  %v6532 = vsel %vm243, %v6530, %v6531
  %v6533 = vsel %vm406, %v6511, 0
  %v6535 = vsel %vm406, %v6514, 0
  %v6537 = vsel %vm406, %v6517, 0
  %v6539 = vsel %vm406, %v6520, 0
  %v6541 = vsel %vm406, %v6523, 0
  %v6543 = vsel %vm406, %v6526, 0
  %v6545 = vsel %vm406, %v6529, 0
  %v6547 = vsel %vm406, %v6532, 0
  %6549 = vmatpush.msra.mxu0 0.0
  %6550 = vmatpush.msra.mxu0 0.0
  %6551 = vmatpush.msra.mxu0 0.0
  %6552 = vmatpush.msra.mxu0 0.0
  %6553 = vmatpush.msra.mxu0 0.0
  %6554 = vmatpush.msra.mxu0 0.0
  %6555 = vmatpush.msra.mxu0 0.0
  %6556 = vmatpush.msra.mxu0 0.0
  %6557 = vmatpush.msra.mxu0 0.0
  %6558 = vmatpush.msra.mxu0 0.0
  %6559 = vmatpush.msra.mxu0 0.0
  %6560 = vmatpush.msra.mxu0 0.0
  %6561 = vmatpush.msra.mxu0 0.0
  %6562 = vmatpush.msra.mxu0 0.0
  %6563 = vmatpush.msra.mxu0 0.0
  %6564 = vmatpush.msra.mxu0 %v2820
  %6565 = vmatmul.f32.gmra.mxu0 %v4010
  %v6566 = vpop.f32.mrf.mxu0
  %v6567 = vadd.f32 0.0, %v6566
  %6568 = vmatmul.f32.gmra.mxu0 %v4012
  %v6569 = vpop.f32.mrf.mxu0
  %v6570 = vadd.f32 0.0, %v6569
  %6571 = vmatmul.f32.gmra.mxu0 %v4014
  %v6572 = vpop.f32.mrf.mxu0
  %v6573 = vadd.f32 0.0, %v6572
  %6574 = vmatmul.f32.gmra.mxu0 %v4016
  %v6575 = vpop.f32.mrf.mxu0
  %v6576 = vadd.f32 0.0, %v6575
  %6577 = vmatmul.f32.gmra.mxu0 %v4018
  %v6578 = vpop.f32.mrf.mxu0
  %v6579 = vadd.f32 0.0, %v6578
  %6580 = vmatmul.f32.gmra.mxu0 %v4020
  %v6581 = vpop.f32.mrf.mxu0
  %v6582 = vadd.f32 0.0, %v6581
  %6583 = vmatmul.f32.gmra.mxu0 %v5602
  %v6584 = vpop.f32.mrf.mxu0
  %v6585 = vadd.f32 0.0, %v6584
  %6586 = vmatmul.f32.gmra.mxu0 %v6533
  %v6587 = vpop.f32.mrf.mxu0
  %v6588 = vadd.f32 0.0, %v6587
  %6589 = vmatmul.f32.gmra.mxu0 %v4026
  %v6590 = vpop.f32.mrf.mxu0
  %v6591 = vadd.f32 0.0, %v6590
  %6592 = vmatmul.f32.gmra.mxu0 %v4028
  %v6593 = vpop.f32.mrf.mxu0
  %v6594 = vadd.f32 0.0, %v6593
  %6595 = vmatmul.f32.gmra.mxu0 %v4030
  %v6596 = vpop.f32.mrf.mxu0
  %v6597 = vadd.f32 0.0, %v6596
  %6598 = vmatmul.f32.gmra.mxu0 %v4032
  %v6599 = vpop.f32.mrf.mxu0
  %v6600 = vadd.f32 0.0, %v6599
  %6601 = vmatmul.f32.gmra.mxu0 %v4034
  %v6602 = vpop.f32.mrf.mxu0
  %v6603 = vadd.f32 0.0, %v6602
  %6604 = vmatmul.f32.gmra.mxu0 %v4036
  %v6605 = vpop.f32.mrf.mxu0
  %v6606 = vadd.f32 0.0, %v6605
  %6607 = vmatmul.f32.gmra.mxu0 %v5604
  %v6608 = vpop.f32.mrf.mxu0
  %v6609 = vadd.f32 0.0, %v6608
  %6610 = vmatmul.f32.gmra.mxu0 %v6535
  %v6611 = vpop.f32.mrf.mxu0
  %v6612 = vadd.f32 0.0, %v6611
  %6613 = vmatmul.f32.gmra.mxu0 %v4042
  %v6614 = vpop.f32.mrf.mxu0
  %v6615 = vadd.f32 0.0, %v6614
  %6616 = vmatmul.f32.gmra.mxu0 %v4044
  %v6617 = vpop.f32.mrf.mxu0
  %v6618 = vadd.f32 0.0, %v6617
  %6619 = vmatmul.f32.gmra.mxu0 %v4046
  %v6620 = vpop.f32.mrf.mxu0
  %v6621 = vadd.f32 0.0, %v6620
  %6622 = vmatmul.f32.gmra.mxu0 %v4048
  %v6623 = vpop.f32.mrf.mxu0
  %v6624 = vadd.f32 0.0, %v6623
  %6625 = vmatmul.f32.gmra.mxu0 %v4050
  %v6626 = vpop.f32.mrf.mxu0
  %v6627 = vadd.f32 0.0, %v6626
  %6628 = vmatmul.f32.gmra.mxu0 %v4052
  %v6629 = vpop.f32.mrf.mxu0
  %v6630 = vadd.f32 0.0, %v6629
  %6631 = vmatmul.f32.gmra.mxu0 %v5606
  %v6632 = vpop.f32.mrf.mxu0
  %v6633 = vadd.f32 0.0, %v6632
  %6634 = vmatmul.f32.gmra.mxu0 %v6537
  %v6635 = vpop.f32.mrf.mxu0
  %v6636 = vadd.f32 0.0, %v6635
  %6637 = vmatmul.f32.gmra.mxu0 %v4058
  %v6638 = vpop.f32.mrf.mxu0
  %v6639 = vadd.f32 0.0, %v6638
  %6640 = vmatmul.f32.gmra.mxu0 %v4060
  %v6641 = vpop.f32.mrf.mxu0
  %v6642 = vadd.f32 0.0, %v6641
  %6643 = vmatmul.f32.gmra.mxu0 %v4062
  %v6644 = vpop.f32.mrf.mxu0
  %v6645 = vadd.f32 0.0, %v6644
  %6646 = vmatmul.f32.gmra.mxu0 %v4064
  %v6647 = vpop.f32.mrf.mxu0
  %v6648 = vadd.f32 0.0, %v6647
  %6649 = vmatmul.f32.gmra.mxu0 %v4066
  %v6650 = vpop.f32.mrf.mxu0
  %v6651 = vadd.f32 0.0, %v6650
  %6652 = vmatmul.f32.gmra.mxu0 %v4068
  %v6653 = vpop.f32.mrf.mxu0
  %v6654 = vadd.f32 0.0, %v6653
  %6655 = vmatmul.f32.gmra.mxu0 %v5608
  %v6656 = vpop.f32.mrf.mxu0
  %v6657 = vadd.f32 0.0, %v6656
  %6658 = vmatmul.f32.gmra.mxu0 %v6539
  %v6659 = vpop.f32.mrf.mxu0
  %v6660 = vadd.f32 0.0, %v6659
  %6661 = vmatmul.f32.gmra.mxu0 %v4074
  %v6662 = vpop.f32.mrf.mxu0
  %v6663 = vadd.f32 0.0, %v6662
  %6664 = vmatmul.f32.gmra.mxu0 %v4076
  %v6665 = vpop.f32.mrf.mxu0
  %v6666 = vadd.f32 0.0, %v6665
  %6667 = vmatmul.f32.gmra.mxu0 %v4078
  %v6668 = vpop.f32.mrf.mxu0
  %v6669 = vadd.f32 0.0, %v6668
  %6670 = vmatmul.f32.gmra.mxu0 %v4080
  %v6671 = vpop.f32.mrf.mxu0
  %v6672 = vadd.f32 0.0, %v6671
  %6673 = vmatmul.f32.gmra.mxu0 %v4082
  %v6674 = vpop.f32.mrf.mxu0
  %v6675 = vadd.f32 0.0, %v6674
  %6676 = vmatmul.f32.gmra.mxu0 %v4084
  %v6677 = vpop.f32.mrf.mxu0
  %v6678 = vadd.f32 0.0, %v6677
  %6679 = vmatmul.f32.gmra.mxu0 %v5610
  %v6680 = vpop.f32.mrf.mxu0
  %v6681 = vadd.f32 0.0, %v6680
  %6682 = vmatmul.f32.gmra.mxu0 %v6541
  %v6683 = vpop.f32.mrf.mxu0
  %v6684 = vadd.f32 0.0, %v6683
  %6685 = vmatmul.f32.gmra.mxu0 %v4090
  %v6686 = vpop.f32.mrf.mxu0
  %v6687 = vadd.f32 0.0, %v6686
  %6688 = vmatmul.f32.gmra.mxu0 %v4092
  %v6689 = vpop.f32.mrf.mxu0
  %v6690 = vadd.f32 0.0, %v6689
  %6691 = vmatmul.f32.gmra.mxu0 %v4094
  %v6692 = vpop.f32.mrf.mxu0
  %v6693 = vadd.f32 0.0, %v6692
  %6694 = vmatmul.f32.gmra.mxu0 %v4096
  %v6695 = vpop.f32.mrf.mxu0
  %v6696 = vadd.f32 0.0, %v6695
  %6697 = vmatmul.f32.gmra.mxu0 %v4098
  %v6698 = vpop.f32.mrf.mxu0
  %v6699 = vadd.f32 0.0, %v6698
  %6700 = vmatmul.f32.gmra.mxu0 %v4100
  %v6701 = vpop.f32.mrf.mxu0
  %v6702 = vadd.f32 0.0, %v6701
  %6703 = vmatmul.f32.gmra.mxu0 %v5612
  %v6704 = vpop.f32.mrf.mxu0
  %v6705 = vadd.f32 0.0, %v6704
  %6706 = vmatmul.f32.gmra.mxu0 %v6543
  %v6707 = vpop.f32.mrf.mxu0
  %v6708 = vadd.f32 0.0, %v6707
  %6709 = vmatmul.f32.gmra.mxu0 %v4106
  %v6710 = vpop.f32.mrf.mxu0
  %v6711 = vadd.f32 0.0, %v6710
  %6712 = vmatmul.f32.gmra.mxu0 %v4108
  %v6713 = vpop.f32.mrf.mxu0
  %v6714 = vadd.f32 0.0, %v6713
  %6715 = vmatmul.f32.gmra.mxu0 %v4110
  %v6716 = vpop.f32.mrf.mxu0
  %v6717 = vadd.f32 0.0, %v6716
  %6718 = vmatmul.f32.gmra.mxu0 %v4112
  %v6719 = vpop.f32.mrf.mxu0
  %v6720 = vadd.f32 0.0, %v6719
  %6721 = vmatmul.f32.gmra.mxu0 %v4114
  %v6722 = vpop.f32.mrf.mxu0
  %v6723 = vadd.f32 0.0, %v6722
  %6724 = vmatmul.f32.gmra.mxu0 %v4116
  %v6725 = vpop.f32.mrf.mxu0
  %v6726 = vadd.f32 0.0, %v6725
  %6727 = vmatmul.f32.gmra.mxu0 %v5614
  %v6728 = vpop.f32.mrf.mxu0
  %v6729 = vadd.f32 0.0, %v6728
  %6730 = vmatmul.f32.gmra.mxu0 %v6545
  %v6731 = vpop.f32.mrf.mxu0
  %v6732 = vadd.f32 0.0, %v6731
  %6733 = vmatmul.f32.gmra.mxu0 %v4122
  %v6734 = vpop.f32.mrf.mxu0
  %v6735 = vadd.f32 0.0, %v6734
  %6736 = vmatmul.f32.gmra.mxu0 %v4124
  %v6737 = vpop.f32.mrf.mxu0
  %v6738 = vadd.f32 0.0, %v6737
  %6739 = vmatmul.f32.gmra.mxu0 %v4126
  %v6740 = vpop.f32.mrf.mxu0
  %v6741 = vadd.f32 0.0, %v6740
  %6742 = vmatmul.f32.gmra.mxu0 %v4128
  %v6743 = vpop.f32.mrf.mxu0
  %v6744 = vadd.f32 0.0, %v6743
  %6745 = vmatmul.f32.gmra.mxu0 %v4130
  %v6746 = vpop.f32.mrf.mxu0
  %v6747 = vadd.f32 0.0, %v6746
  %6748 = vmatmul.f32.gmra.mxu0 %v4132
  %v6749 = vpop.f32.mrf.mxu0
  %v6750 = vadd.f32 0.0, %v6749
  %6751 = vmatmul.f32.gmra.mxu0 %v5616
  %v6752 = vpop.f32.mrf.mxu0
  %v6753 = vadd.f32 0.0, %v6752
  %6754 = vmatmul.f32.gmra.mxu0 %v6547
  %v6755 = vpop.f32.mrf.mxu0
  %v6756 = vadd.f32 0.0, %v6755
  %6757 = vdwg.mxu0
  %v6758 = vadd.f32 %v6437, %v6567
  %v6759 = vadd.f32 %v6438, %v6570
  %v6760 = vadd.f32 %v6439, %v6573
  %v6761 = vadd.f32 %v6440, %v6576
  %v6762 = vadd.f32 %v6441, %v6579
  %v6763 = vadd.f32 %v6442, %v6582
  %v6764 = vadd.f32 %v6443, %v6585
  %v6765 = vadd.f32 %v6444, %v6588
  %v6766 = vadd.f32 %v6445, %v6591
  %v6767 = vadd.f32 %v6446, %v6594
  %v6768 = vadd.f32 %v6447, %v6597
  %v6769 = vadd.f32 %v6448, %v6600
  %v6770 = vadd.f32 %v6449, %v6603
  %v6771 = vadd.f32 %v6450, %v6606
  %v6772 = vadd.f32 %v6451, %v6609
  %v6773 = vadd.f32 %v6452, %v6612
  %v6774 = vadd.f32 %v6453, %v6615
  %v6775 = vadd.f32 %v6454, %v6618
  %v6776 = vadd.f32 %v6455, %v6621
  %v6777 = vadd.f32 %v6456, %v6624
  %v6778 = vadd.f32 %v6457, %v6627
  %v6779 = vadd.f32 %v6458, %v6630
  %v6780 = vadd.f32 %v6459, %v6633
  %v6781 = vadd.f32 %v6460, %v6636
  %v6782 = vadd.f32 %v6461, %v6639
  %v6783 = vadd.f32 %v6462, %v6642
  %v6784 = vadd.f32 %v6463, %v6645
  %v6785 = vadd.f32 %v6464, %v6648
  %v6786 = vadd.f32 %v6465, %v6651
  %v6787 = vadd.f32 %v6466, %v6654
  %v6788 = vadd.f32 %v6467, %v6657
  %v6789 = vadd.f32 %v6468, %v6660
  %v6790 = vadd.f32 %v6469, %v6663
  %v6791 = vadd.f32 %v6470, %v6666
  %v6792 = vadd.f32 %v6471, %v6669
  %v6793 = vadd.f32 %v6472, %v6672
  %v6794 = vadd.f32 %v6473, %v6675
  %v6795 = vadd.f32 %v6474, %v6678
  %v6796 = vadd.f32 %v6475, %v6681
  %v6797 = vadd.f32 %v6476, %v6684
  %v6798 = vadd.f32 %v6477, %v6687
  %v6799 = vadd.f32 %v6478, %v6690
  %v6800 = vadd.f32 %v6479, %v6693
  %v6801 = vadd.f32 %v6480, %v6696
  %v6802 = vadd.f32 %v6481, %v6699
  %v6803 = vadd.f32 %v6482, %v6702
  %v6804 = vadd.f32 %v6483, %v6705
  %v6805 = vadd.f32 %v6484, %v6708
  %v6806 = vadd.f32 %v6485, %v6711
  %v6807 = vadd.f32 %v6486, %v6714
  %v6808 = vadd.f32 %v6487, %v6717
  %v6809 = vadd.f32 %v6488, %v6720
  %v6810 = vadd.f32 %v6489, %v6723
  %v6811 = vadd.f32 %v6490, %v6726
  %v6812 = vadd.f32 %v6491, %v6729
  %v6813 = vadd.f32 %v6492, %v6732
  %v6814 = vadd.f32 %v6493, %v6735
  %v6815 = vadd.f32 %v6494, %v6738
  %v6816 = vadd.f32 %v6495, %v6741
  %v6817 = vadd.f32 %v6496, %v6744
  %v6818 = vadd.f32 %v6497, %v6747
  %v6819 = vadd.f32 %v6498, %v6750
  %v6820 = vadd.f32 %v6499, %v6753
  %v6821 = vadd.f32 %v6500, %v6756
  %v6822 = vrot.slane %v3544, 2
  %v6823 = vrot.slane %v3545, 2
  %v6824 = vsel %vm1081, %v6822, %v6823
  %v6825 = vrot.slane %v3564, 2
  %v6826 = vrot.slane %v3565, 2
  %v6827 = vsel %vm1081, %v6825, %v6826
  %v6828 = vrot.slane %v3584, 2
  %v6829 = vrot.slane %v3585, 2
  %v6830 = vsel %vm1081, %v6828, %v6829
  %v6831 = vrot.slane %v3604, 2
  %v6832 = vrot.slane %v3605, 2
  %v6833 = vsel %vm1081, %v6831, %v6832
  %v6834 = vrot.slane %v3624, 2
  %v6835 = vrot.slane %v3625, 2
  %v6836 = vsel %vm1081, %v6834, %v6835
  %v6837 = vrot.slane %v3644, 2
  %v6838 = vrot.slane %v3645, 2
  %v6839 = vsel %vm1081, %v6837, %v6838
  %v6840 = vrot.slane %v3664, 2
  %v6841 = vrot.slane %v3665, 2
  %v6842 = vsel %vm1081, %v6840, %v6841
  %v6843 = vrot.slane %v3684, 2
  %v6844 = vrot.slane %v3685, 2
  %v6845 = vsel %vm1081, %v6843, %v6844
  %v6846 = vsel %vm406, %v6824, 0
  %v6848 = vsel %vm406, %v6827, 0
  %v6850 = vsel %vm406, %v6830, 0
  %v6852 = vsel %vm406, %v6833, 0
  %v6854 = vsel %vm406, %v6836, 0
  %v6856 = vsel %vm406, %v6839, 0
  %v6858 = vsel %vm406, %v6842, 0
  %v6860 = vsel %vm406, %v6845, 0
  %6862 = vmatpush.msra.mxu0 0.0
  %6863 = vmatpush.msra.mxu0 0.0
  %6864 = vmatpush.msra.mxu0 0.0
  %6865 = vmatpush.msra.mxu0 0.0
  %6866 = vmatpush.msra.mxu0 0.0
  %6867 = vmatpush.msra.mxu0 0.0
  %6868 = vmatpush.msra.mxu0 0.0
  %6869 = vmatpush.msra.mxu0 0.0
  %6870 = vmatpush.msra.mxu0 0.0
  %6871 = vmatpush.msra.mxu0 0.0
  %6872 = vmatpush.msra.mxu0 0.0
  %6873 = vmatpush.msra.mxu0 0.0
  %6874 = vmatpush.msra.mxu0 0.0
  %6875 = vmatpush.msra.mxu0 0.0
  %6876 = vmatpush.msra.mxu0 0.0
  %6877 = vmatpush.msra.mxu0 %v3113
  %6878 = vmatmul.f32.gmra.mxu0 %v4876
  %v6879 = vpop.f32.mrf.mxu0
  %v6880 = vadd.f32 0.0, %v6879
  %6881 = vmatmul.f32.gmra.mxu0 %v4878
  %v6882 = vpop.f32.mrf.mxu0
  %v6883 = vadd.f32 0.0, %v6882
  %6884 = vmatmul.f32.gmra.mxu0 %v4880
  %v6885 = vpop.f32.mrf.mxu0
  %v6886 = vadd.f32 0.0, %v6885
  %6887 = vmatmul.f32.gmra.mxu0 %v4882
  %v6888 = vpop.f32.mrf.mxu0
  %v6889 = vadd.f32 0.0, %v6888
  %6890 = vmatmul.f32.gmra.mxu0 %v4884
  %v6891 = vpop.f32.mrf.mxu0
  %v6892 = vadd.f32 0.0, %v6891
  %6893 = vmatmul.f32.gmra.mxu0 %v4886
  %v6894 = vpop.f32.mrf.mxu0
  %v6895 = vadd.f32 0.0, %v6894
  %6896 = vmatmul.f32.gmra.mxu0 %v5915
  %v6897 = vpop.f32.mrf.mxu0
  %v6898 = vadd.f32 0.0, %v6897
  %6899 = vmatmul.f32.gmra.mxu0 %v6846
  %v6900 = vpop.f32.mrf.mxu0
  %v6901 = vadd.f32 0.0, %v6900
  %6902 = vmatmul.f32.gmra.mxu0 %v4892
  %v6903 = vpop.f32.mrf.mxu0
  %v6904 = vadd.f32 0.0, %v6903
  %6905 = vmatmul.f32.gmra.mxu0 %v4894
  %v6906 = vpop.f32.mrf.mxu0
  %v6907 = vadd.f32 0.0, %v6906
  %6908 = vmatmul.f32.gmra.mxu0 %v4896
  %v6909 = vpop.f32.mrf.mxu0
  %v6910 = vadd.f32 0.0, %v6909
  %6911 = vmatmul.f32.gmra.mxu0 %v4898
  %v6912 = vpop.f32.mrf.mxu0
  %v6913 = vadd.f32 0.0, %v6912
  %6914 = vmatmul.f32.gmra.mxu0 %v4900
  %v6915 = vpop.f32.mrf.mxu0
  %v6916 = vadd.f32 0.0, %v6915
  %6917 = vmatmul.f32.gmra.mxu0 %v4902
  %v6918 = vpop.f32.mrf.mxu0
  %v6919 = vadd.f32 0.0, %v6918
  %6920 = vmatmul.f32.gmra.mxu0 %v5917
  %v6921 = vpop.f32.mrf.mxu0
  %v6922 = vadd.f32 0.0, %v6921
  %6923 = vmatmul.f32.gmra.mxu0 %v6848
  %v6924 = vpop.f32.mrf.mxu0
  %v6925 = vadd.f32 0.0, %v6924
  %6926 = vmatmul.f32.gmra.mxu0 %v4908
  %v6927 = vpop.f32.mrf.mxu0
  %v6928 = vadd.f32 0.0, %v6927
  %6929 = vmatmul.f32.gmra.mxu0 %v4910
  %v6930 = vpop.f32.mrf.mxu0
  %v6931 = vadd.f32 0.0, %v6930
  %6932 = vmatmul.f32.gmra.mxu0 %v4912
  %v6933 = vpop.f32.mrf.mxu0
  %v6934 = vadd.f32 0.0, %v6933
  %6935 = vmatmul.f32.gmra.mxu0 %v4914
  %v6936 = vpop.f32.mrf.mxu0
  %v6937 = vadd.f32 0.0, %v6936
  %6938 = vmatmul.f32.gmra.mxu0 %v4916
  %v6939 = vpop.f32.mrf.mxu0
  %v6940 = vadd.f32 0.0, %v6939
  %6941 = vmatmul.f32.gmra.mxu0 %v4918
  %v6942 = vpop.f32.mrf.mxu0
  %v6943 = vadd.f32 0.0, %v6942
  %6944 = vmatmul.f32.gmra.mxu0 %v5919
  %v6945 = vpop.f32.mrf.mxu0
  %v6946 = vadd.f32 0.0, %v6945
  %6947 = vmatmul.f32.gmra.mxu0 %v6850
  %v6948 = vpop.f32.mrf.mxu0
  %v6949 = vadd.f32 0.0, %v6948
  %6950 = vmatmul.f32.gmra.mxu0 %v4924
  %v6951 = vpop.f32.mrf.mxu0
  %v6952 = vadd.f32 0.0, %v6951
  %6953 = vmatmul.f32.gmra.mxu0 %v4926
  %v6954 = vpop.f32.mrf.mxu0
  %v6955 = vadd.f32 0.0, %v6954
  %6956 = vmatmul.f32.gmra.mxu0 %v4928
  %v6957 = vpop.f32.mrf.mxu0
  %v6958 = vadd.f32 0.0, %v6957
  %6959 = vmatmul.f32.gmra.mxu0 %v4930
  %v6960 = vpop.f32.mrf.mxu0
  %v6961 = vadd.f32 0.0, %v6960
  %6962 = vmatmul.f32.gmra.mxu0 %v4932
  %v6963 = vpop.f32.mrf.mxu0
  %v6964 = vadd.f32 0.0, %v6963
  %6965 = vmatmul.f32.gmra.mxu0 %v4934
  %v6966 = vpop.f32.mrf.mxu0
  %v6967 = vadd.f32 0.0, %v6966
  %6968 = vmatmul.f32.gmra.mxu0 %v5921
  %v6969 = vpop.f32.mrf.mxu0
  %v6970 = vadd.f32 0.0, %v6969
  %6971 = vmatmul.f32.gmra.mxu0 %v6852
  %v6972 = vpop.f32.mrf.mxu0
  %v6973 = vadd.f32 0.0, %v6972
  %6974 = vmatmul.f32.gmra.mxu0 %v4940
  %v6975 = vpop.f32.mrf.mxu0
  %v6976 = vadd.f32 0.0, %v6975
  %6977 = vmatmul.f32.gmra.mxu0 %v4942
  %v6978 = vpop.f32.mrf.mxu0
  %v6979 = vadd.f32 0.0, %v6978
  %6980 = vmatmul.f32.gmra.mxu0 %v4944
  %v6981 = vpop.f32.mrf.mxu0
  %v6982 = vadd.f32 0.0, %v6981
  %6983 = vmatmul.f32.gmra.mxu0 %v4946
  %v6984 = vpop.f32.mrf.mxu0
  %v6985 = vadd.f32 0.0, %v6984
  %6986 = vmatmul.f32.gmra.mxu0 %v4948
  %v6987 = vpop.f32.mrf.mxu0
  %v6988 = vadd.f32 0.0, %v6987
  %6989 = vmatmul.f32.gmra.mxu0 %v4950
  %v6990 = vpop.f32.mrf.mxu0
  %v6991 = vadd.f32 0.0, %v6990
  %6992 = vmatmul.f32.gmra.mxu0 %v5923
  %v6993 = vpop.f32.mrf.mxu0
  %v6994 = vadd.f32 0.0, %v6993
  %6995 = vmatmul.f32.gmra.mxu0 %v6854
  %v6996 = vpop.f32.mrf.mxu0
  %v6997 = vadd.f32 0.0, %v6996
  %6998 = vmatmul.f32.gmra.mxu0 %v4956
  %v6999 = vpop.f32.mrf.mxu0
  %v7000 = vadd.f32 0.0, %v6999
  %7001 = vmatmul.f32.gmra.mxu0 %v4958
  %v7002 = vpop.f32.mrf.mxu0
  %v7003 = vadd.f32 0.0, %v7002
  %7004 = vmatmul.f32.gmra.mxu0 %v4960
  %v7005 = vpop.f32.mrf.mxu0
  %v7006 = vadd.f32 0.0, %v7005
  %7007 = vmatmul.f32.gmra.mxu0 %v4962
  %v7008 = vpop.f32.mrf.mxu0
  %v7009 = vadd.f32 0.0, %v7008
  %7010 = vmatmul.f32.gmra.mxu0 %v4964
  %v7011 = vpop.f32.mrf.mxu0
  %v7012 = vadd.f32 0.0, %v7011
  %7013 = vmatmul.f32.gmra.mxu0 %v4966
  %v7014 = vpop.f32.mrf.mxu0
  %v7015 = vadd.f32 0.0, %v7014
  %7016 = vmatmul.f32.gmra.mxu0 %v5925
  %v7017 = vpop.f32.mrf.mxu0
  %v7018 = vadd.f32 0.0, %v7017
  %7019 = vmatmul.f32.gmra.mxu0 %v6856
  %v7020 = vpop.f32.mrf.mxu0
  %v7021 = vadd.f32 0.0, %v7020
  %7022 = vmatmul.f32.gmra.mxu0 %v4972
  %v7023 = vpop.f32.mrf.mxu0
  %v7024 = vadd.f32 0.0, %v7023
  %7025 = vmatmul.f32.gmra.mxu0 %v4974
  %v7026 = vpop.f32.mrf.mxu0
  %v7027 = vadd.f32 0.0, %v7026
  %7028 = vmatmul.f32.gmra.mxu0 %v4976
  %v7029 = vpop.f32.mrf.mxu0
  %v7030 = vadd.f32 0.0, %v7029
  %7031 = vmatmul.f32.gmra.mxu0 %v4978
  %v7032 = vpop.f32.mrf.mxu0
  %v7033 = vadd.f32 0.0, %v7032
  %7034 = vmatmul.f32.gmra.mxu0 %v4980
  %v7035 = vpop.f32.mrf.mxu0
  %v7036 = vadd.f32 0.0, %v7035
  %7037 = vmatmul.f32.gmra.mxu0 %v4982
  %v7038 = vpop.f32.mrf.mxu0
  %v7039 = vadd.f32 0.0, %v7038
  %7040 = vmatmul.f32.gmra.mxu0 %v5927
  %v7041 = vpop.f32.mrf.mxu0
  %v7042 = vadd.f32 0.0, %v7041
  %7043 = vmatmul.f32.gmra.mxu0 %v6858
  %v7044 = vpop.f32.mrf.mxu0
  %v7045 = vadd.f32 0.0, %v7044
  %7046 = vmatmul.f32.gmra.mxu0 %v4988
  %v7047 = vpop.f32.mrf.mxu0
  %v7048 = vadd.f32 0.0, %v7047
  %7049 = vmatmul.f32.gmra.mxu0 %v4990
  %v7050 = vpop.f32.mrf.mxu0
  %v7051 = vadd.f32 0.0, %v7050
  %7052 = vmatmul.f32.gmra.mxu0 %v4992
  %v7053 = vpop.f32.mrf.mxu0
  %v7054 = vadd.f32 0.0, %v7053
  %7055 = vmatmul.f32.gmra.mxu0 %v4994
  %v7056 = vpop.f32.mrf.mxu0
  %v7057 = vadd.f32 0.0, %v7056
  %7058 = vmatmul.f32.gmra.mxu0 %v4996
  %v7059 = vpop.f32.mrf.mxu0
  %v7060 = vadd.f32 0.0, %v7059
  %7061 = vmatmul.f32.gmra.mxu0 %v4998
  %v7062 = vpop.f32.mrf.mxu0
  %v7063 = vadd.f32 0.0, %v7062
  %7064 = vmatmul.f32.gmra.mxu0 %v5929
  %v7065 = vpop.f32.mrf.mxu0
  %v7066 = vadd.f32 0.0, %v7065
  %7067 = vmatmul.f32.gmra.mxu0 %v6860
  %v7068 = vpop.f32.mrf.mxu0
  %v7069 = vadd.f32 0.0, %v7068
  %7070 = vdwg.mxu0
  %v7071 = vadd.f32 %v6758, %v6880
  %v7072 = vadd.f32 %v6759, %v6883
  %v7073 = vadd.f32 %v6760, %v6886
  %v7074 = vadd.f32 %v6761, %v6889
  %v7075 = vadd.f32 %v6762, %v6892
  %v7076 = vadd.f32 %v6763, %v6895
  %v7077 = vadd.f32 %v6764, %v6898
  %v7078 = vadd.f32 %v6765, %v6901
  %v7079 = vadd.f32 %v6766, %v6904
  %v7080 = vadd.f32 %v6767, %v6907
  %v7081 = vadd.f32 %v6768, %v6910
  %v7082 = vadd.f32 %v6769, %v6913
  %v7083 = vadd.f32 %v6770, %v6916
  %v7084 = vadd.f32 %v6771, %v6919
  %v7085 = vadd.f32 %v6772, %v6922
  %v7086 = vadd.f32 %v6773, %v6925
  %v7087 = vadd.f32 %v6774, %v6928
  %v7088 = vadd.f32 %v6775, %v6931
  %v7089 = vadd.f32 %v6776, %v6934
  %v7090 = vadd.f32 %v6777, %v6937
  %v7091 = vadd.f32 %v6778, %v6940
  %v7092 = vadd.f32 %v6779, %v6943
  %v7093 = vadd.f32 %v6780, %v6946
  %v7094 = vadd.f32 %v6781, %v6949
  %v7095 = vadd.f32 %v6782, %v6952
  %v7096 = vadd.f32 %v6783, %v6955
  %v7097 = vadd.f32 %v6784, %v6958
  %v7098 = vadd.f32 %v6785, %v6961
  %v7099 = vadd.f32 %v6786, %v6964
  %v7100 = vadd.f32 %v6787, %v6967
  %v7101 = vadd.f32 %v6788, %v6970
  %v7102 = vadd.f32 %v6789, %v6973
  %v7103 = vadd.f32 %v6790, %v6976
  %v7104 = vadd.f32 %v6791, %v6979
  %v7105 = vadd.f32 %v6792, %v6982
  %v7106 = vadd.f32 %v6793, %v6985
  %v7107 = vadd.f32 %v6794, %v6988
  %v7108 = vadd.f32 %v6795, %v6991
  %v7109 = vadd.f32 %v6796, %v6994
  %v7110 = vadd.f32 %v6797, %v6997
  %v7111 = vadd.f32 %v6798, %v7000
  %v7112 = vadd.f32 %v6799, %v7003
  %v7113 = vadd.f32 %v6800, %v7006
  %v7114 = vadd.f32 %v6801, %v7009
  %v7115 = vadd.f32 %v6802, %v7012
  %v7116 = vadd.f32 %v6803, %v7015
  %v7117 = vadd.f32 %v6804, %v7018
  %v7118 = vadd.f32 %v6805, %v7021
  %v7119 = vadd.f32 %v6806, %v7024
  %v7120 = vadd.f32 %v6807, %v7027
  %v7121 = vadd.f32 %v6808, %v7030
  %v7122 = vadd.f32 %v6809, %v7033
  %v7123 = vadd.f32 %v6810, %v7036
  %v7124 = vadd.f32 %v6811, %v7039
  %v7125 = vadd.f32 %v6812, %v7042
  %v7126 = vadd.f32 %v6813, %v7045
  %v7127 = vadd.f32 %v6814, %v7048
  %v7128 = vadd.f32 %v6815, %v7051
  %v7129 = vadd.f32 %v6816, %v7054
  %v7130 = vadd.f32 %v6817, %v7057
  %v7131 = vadd.f32 %v6818, %v7060
  %v7132 = vadd.f32 %v6819, %v7063
  %v7133 = vadd.f32 %v6820, %v7066
  %v7134 = vadd.f32 %v6821, %v7069
  %v7135 = vadd.f32 %v7071, %v3396
  %v7136 = vadd.f32 %v7072, %v3396
  %v7137 = vadd.f32 %v7073, %v3396
  %v7138 = vadd.f32 %v7074, %v3396
  %v7139 = vadd.f32 %v7075, %v3396
  %v7140 = vadd.f32 %v7076, %v3396
  %v7141 = vadd.f32 %v7077, %v3396
  %v7142 = vadd.f32 %v7078, %v3396
  %v7143 = vadd.f32 %v7079, %v3396
  %v7144 = vadd.f32 %v7080, %v3396
  %v7145 = vadd.f32 %v7081, %v3396
  %v7146 = vadd.f32 %v7082, %v3396
  %v7147 = vadd.f32 %v7083, %v3396
  %v7148 = vadd.f32 %v7084, %v3396
  %v7149 = vadd.f32 %v7085, %v3396
  %v7150 = vadd.f32 %v7086, %v3396
  %v7151 = vadd.f32 %v7087, %v3396
  %v7152 = vadd.f32 %v7088, %v3396
  %v7153 = vadd.f32 %v7089, %v3396
  %v7154 = vadd.f32 %v7090, %v3396
  %v7155 = vadd.f32 %v7091, %v3396
  %v7156 = vadd.f32 %v7092, %v3396
  %v7157 = vadd.f32 %v7093, %v3396
  %v7158 = vadd.f32 %v7094, %v3396
  %v7159 = vadd.f32 %v7095, %v3396
  %v7160 = vadd.f32 %v7096, %v3396
  %v7161 = vadd.f32 %v7097, %v3396
  %v7162 = vadd.f32 %v7098, %v3396
  %v7163 = vadd.f32 %v7099, %v3396
  %v7164 = vadd.f32 %v7100, %v3396
  %v7165 = vadd.f32 %v7101, %v3396
  %v7166 = vadd.f32 %v7102, %v3396
  %v7167 = vadd.f32 %v7103, %v3396
  %v7168 = vadd.f32 %v7104, %v3396
  %v7169 = vadd.f32 %v7105, %v3396
  %v7170 = vadd.f32 %v7106, %v3396
  %v7171 = vadd.f32 %v7107, %v3396
  %v7172 = vadd.f32 %v7108, %v3396
  %v7173 = vadd.f32 %v7109, %v3396
  %v7174 = vadd.f32 %v7110, %v3396
  %v7175 = vadd.f32 %v7111, %v3396
  %v7176 = vadd.f32 %v7112, %v3396
  %v7177 = vadd.f32 %v7113, %v3396
  %v7178 = vadd.f32 %v7114, %v3396
  %v7179 = vadd.f32 %v7115, %v3396
  %v7180 = vadd.f32 %v7116, %v3396
  %v7181 = vadd.f32 %v7117, %v3396
  %v7182 = vadd.f32 %v7118, %v3396
  %v7183 = vadd.f32 %v7119, %v3396
  %v7184 = vadd.f32 %v7120, %v3396
  %v7185 = vadd.f32 %v7121, %v3396
  %v7186 = vadd.f32 %v7122, %v3396
  %v7187 = vadd.f32 %v7123, %v3396
  %v7188 = vadd.f32 %v7124, %v3396
  %v7189 = vadd.f32 %v7125, %v3396
  %v7190 = vadd.f32 %v7126, %v3396
  %v7191 = vadd.f32 %v7127, %v3396
  %v7192 = vadd.f32 %v7128, %v3396
  %v7193 = vadd.f32 %v7129, %v3396
  %v7194 = vadd.f32 %v7130, %v3396
  %v7195 = vadd.f32 %v7131, %v3396
  %v7196 = vadd.f32 %v7132, %v3396
  %v7197 = vadd.f32 %v7133, %v3396
  %v7198 = vadd.f32 %v7134, %v3396
  %v7199 = vmax.f32 %v7135, 0.0
  %v7200 = vmax.f32 %v7136, 0.0
  %v7201 = vmax.f32 %v7137, 0.0
  %v7202 = vmax.f32 %v7138, 0.0
  %v7203 = vmax.f32 %v7139, 0.0
  %v7204 = vmax.f32 %v7140, 0.0
  %v7205 = vmax.f32 %v7141, 0.0
  %v7206 = vmax.f32 %v7142, 0.0
  %v7207 = vmax.f32 %v7143, 0.0
  %v7208 = vmax.f32 %v7144, 0.0
  %v7209 = vmax.f32 %v7145, 0.0
  %v7210 = vmax.f32 %v7146, 0.0
  %v7211 = vmax.f32 %v7147, 0.0
  %v7212 = vmax.f32 %v7148, 0.0
  %v7213 = vmax.f32 %v7149, 0.0
  %v7214 = vmax.f32 %v7150, 0.0
  %v7215 = vmax.f32 %v7151, 0.0
  %v7216 = vmax.f32 %v7152, 0.0
  %v7217 = vmax.f32 %v7153, 0.0
  %v7218 = vmax.f32 %v7154, 0.0
  %v7219 = vmax.f32 %v7155, 0.0
  %v7220 = vmax.f32 %v7156, 0.0
  %v7221 = vmax.f32 %v7157, 0.0
  %v7222 = vmax.f32 %v7158, 0.0
  %v7223 = vmax.f32 %v7159, 0.0
  %v7224 = vmax.f32 %v7160, 0.0
  %v7225 = vmax.f32 %v7161, 0.0
  %v7226 = vmax.f32 %v7162, 0.0
  %v7227 = vmax.f32 %v7163, 0.0
  %v7228 = vmax.f32 %v7164, 0.0
  %v7229 = vmax.f32 %v7165, 0.0
  %v7230 = vmax.f32 %v7166, 0.0
  %v7231 = vmax.f32 %v7167, 0.0
  %v7232 = vmax.f32 %v7168, 0.0
  %v7233 = vmax.f32 %v7169, 0.0
  %v7234 = vmax.f32 %v7170, 0.0
  %v7235 = vmax.f32 %v7171, 0.0
  %v7236 = vmax.f32 %v7172, 0.0
  %v7237 = vmax.f32 %v7173, 0.0
  %v7238 = vmax.f32 %v7174, 0.0
  %v7239 = vmax.f32 %v7175, 0.0
  %v7240 = vmax.f32 %v7176, 0.0
  %v7241 = vmax.f32 %v7177, 0.0
  %v7242 = vmax.f32 %v7178, 0.0
  %v7243 = vmax.f32 %v7179, 0.0
  %v7244 = vmax.f32 %v7180, 0.0
  %v7245 = vmax.f32 %v7181, 0.0
  %v7246 = vmax.f32 %v7182, 0.0
  %v7247 = vmax.f32 %v7183, 0.0
  %v7248 = vmax.f32 %v7184, 0.0
  %v7249 = vmax.f32 %v7185, 0.0
  %v7250 = vmax.f32 %v7186, 0.0
  %v7251 = vmax.f32 %v7187, 0.0
  %v7252 = vmax.f32 %v7188, 0.0
  %v7253 = vmax.f32 %v7189, 0.0
  %v7254 = vmax.f32 %v7190, 0.0
  %v7255 = vmax.f32 %v7191, 0.0
  %v7256 = vmax.f32 %v7192, 0.0
  %v7257 = vmax.f32 %v7193, 0.0
  %v7258 = vmax.f32 %v7194, 0.0
  %v7259 = vmax.f32 %v7195, 0.0
  %v7260 = vmax.f32 %v7196, 0.0
  %v7261 = vmax.f32 %v7197, 0.0
  %v7262 = vmax.f32 %v7198, 0.0
  %vm7263 = vcmask 261120
  %v7264 = vsel %vm7263, %v3462, 0.0
  %v7265 = vsel %vm7263, %v3463, 0.0
  %v7266 = vadd.f32 %v7264, %v7265
  %v7267 = vsel %vm7263, %v3464, 0.0
  %v7268 = vadd.f32 %v7266, %v7267
  %v7269 = vsel %vm7263, %v3465, 0.0
  %v7270 = vadd.f32 %v7268, %v7269
  %v7271 = vsel %vm7263, %v3466, 0.0
  %v7272 = vadd.f32 %v7270, %v7271
  %v7273 = vsel %vm7263, %v3467, 0.0
  %v7274 = vadd.f32 %v7272, %v7273
  %v7275 = vsel %vm7263, %v3468, 0.0
  %v7276 = vadd.f32 %v7274, %v7275
  %v7277 = vsel %vm7263, %v3469, 0.0
  %v7278 = vadd.f32 %v7276, %v7277
  %v7279 = vsel %vm7263, %v3470, 0.0
  %v7280 = vadd.f32 %v7278, %v7279
  %v7281 = vsel %vm7263, %v3471, 0.0
  %v7282 = vadd.f32 %v7280, %v7281
  %v7283 = vsel %vm7263, %v3472, 0.0
  %v7284 = vadd.f32 %v7282, %v7283
  %v7285 = vsel %vm7263, %v3473, 0.0
  %v7286 = vadd.f32 %v7284, %v7285
  %v7287 = vsel %vm7263, %v3474, 0.0
  %v7288 = vadd.f32 %v7286, %v7287
  %v7289 = vsel %vm7263, %v3475, 0.0
  %v7290 = vadd.f32 %v7288, %v7289
  %v7291 = vsel %vm7263, %v3476, 0.0
  %v7292 = vadd.f32 %v7290, %v7291
  %v7293 = vsel %vm7263, %v3477, 0.0
  %v7294 = vadd.f32 %v7292, %v7293
  %v7295 = vsel %vm7263, %v3478, 0.0
  %v7296 = vadd.f32 %v7294, %v7295
  %v7297 = vsel %vm7263, %v3479, 0.0
  %v7298 = vadd.f32 %v7296, %v7297
  %v7299 = vsel %vm7263, %v3480, 0.0
  %v7300 = vadd.f32 %v7298, %v7299
  %v7301 = vsel %vm7263, %v3481, 0.0
  %v7302 = vadd.f32 %v7300, %v7301
  %v7303 = vsel %vm7263, %v3482, 0.0
  %v7304 = vadd.f32 %v7302, %v7303
  %v7305 = vsel %vm7263, %v3483, 0.0
  %v7306 = vadd.f32 %v7304, %v7305
  %v7307 = vsel %vm7263, %v3484, 0.0
  %v7308 = vadd.f32 %v7306, %v7307
  %v7309 = vsel %vm7263, %v3485, 0.0
  %v7310 = vadd.f32 %v7308, %v7309
  %v7311 = vsel %vm7263, %v3486, 0.0
  %v7312 = vadd.f32 %v7310, %v7311
  %v7313 = vsel %vm7263, %v3487, 0.0
  %v7314 = vadd.f32 %v7312, %v7313
  %v7315 = vsel %vm7263, %v3488, 0.0
  %v7316 = vadd.f32 %v7314, %v7315
  %v7317 = vsel %vm7263, %v3489, 0.0
  %v7318 = vadd.f32 %v7316, %v7317
  %v7319 = vsel %vm7263, %v3490, 0.0
  %v7320 = vadd.f32 %v7318, %v7319
  %v7321 = vsel %vm7263, %v3491, 0.0
  %v7322 = vadd.f32 %v7320, %v7321
  %v7323 = vsel %vm7263, %v3492, 0.0
  %v7324 = vadd.f32 %v7322, %v7323
  %v7325 = vsel %vm7263, %v3493, 0.0
  %v7326 = vadd.f32 %v7324, %v7325
  %v7327 = vrot.slane %v7326, 4
  %v7328 = vadd.f32 %v7326, %v7327
  %v7329 = vrot.slane %v7328, 2
  %v7330 = vadd.f32 %v7328, %v7329
  %v7331 = vrot.slane %v7330, 1
  %v7332 = vadd.f32 %v7330, %v7331
  %v7333 = vmul.f32 %v7332, 0.00390625
  %vm7334 = vcmask 253952
  %7335 = vst.msk [vmem:[#allocation2] sm:$0x1] %vm7334, %v7333
  %v7336 = vsel %vm7263, %v3494, 0.0
  %v7337 = vsel %vm7263, %v3495, 0.0
  %v7338 = vadd.f32 %v7336, %v7337
  %v7339 = vsel %vm7263, %v3496, 0.0
  %v7340 = vadd.f32 %v7338, %v7339
  %v7341 = vsel %vm7263, %v3497, 0.0
  %v7342 = vadd.f32 %v7340, %v7341
  %v7343 = vsel %vm7263, %v3498, 0.0
  %v7344 = vadd.f32 %v7342, %v7343
  %v7345 = vsel %vm7263, %v3499, 0.0
  %v7346 = vadd.f32 %v7344, %v7345
  %v7347 = vsel %vm7263, %v3500, 0.0
  %v7348 = vadd.f32 %v7346, %v7347
  %v7349 = vsel %vm7263, %v3501, 0.0
  %v7350 = vadd.f32 %v7348, %v7349
  %v7351 = vsel %vm7263, %v3502, 0.0
  %v7352 = vadd.f32 %v7350, %v7351
  %v7353 = vsel %vm7263, %v3503, 0.0
  %v7354 = vadd.f32 %v7352, %v7353
  %v7355 = vsel %vm7263, %v3504, 0.0
  %v7356 = vadd.f32 %v7354, %v7355
  %v7357 = vsel %vm7263, %v3505, 0.0
  %v7358 = vadd.f32 %v7356, %v7357
  %v7359 = vsel %vm7263, %v3506, 0.0
  %v7360 = vadd.f32 %v7358, %v7359
  %v7361 = vsel %vm7263, %v3507, 0.0
  %v7362 = vadd.f32 %v7360, %v7361
  %v7363 = vsel %vm7263, %v3508, 0.0
  %v7364 = vadd.f32 %v7362, %v7363
  %v7365 = vsel %vm7263, %v3509, 0.0
  %v7366 = vadd.f32 %v7364, %v7365
  %v7367 = vsel %vm7263, %v3510, 0.0
  %v7368 = vadd.f32 %v7366, %v7367
  %v7369 = vsel %vm7263, %v3511, 0.0
  %v7370 = vadd.f32 %v7368, %v7369
  %v7371 = vsel %vm7263, %v3512, 0.0
  %v7372 = vadd.f32 %v7370, %v7371
  %v7373 = vsel %vm7263, %v3513, 0.0
  %v7374 = vadd.f32 %v7372, %v7373
  %v7375 = vsel %vm7263, %v3514, 0.0
  %v7376 = vadd.f32 %v7374, %v7375
  %v7377 = vsel %vm7263, %v3515, 0.0
  %v7378 = vadd.f32 %v7376, %v7377
  %v7379 = vsel %vm7263, %v3516, 0.0
  %v7380 = vadd.f32 %v7378, %v7379
  %v7381 = vsel %vm7263, %v3517, 0.0
  %v7382 = vadd.f32 %v7380, %v7381
  %v7383 = vsel %vm7263, %v3518, 0.0
  %v7384 = vadd.f32 %v7382, %v7383
  %v7385 = vsel %vm7263, %v3519, 0.0
  %v7386 = vadd.f32 %v7384, %v7385
  %v7387 = vsel %vm7263, %v3520, 0.0
  %v7388 = vadd.f32 %v7386, %v7387
  %v7389 = vsel %vm7263, %v3521, 0.0
  %v7390 = vadd.f32 %v7388, %v7389
  %v7391 = vsel %vm7263, %v3522, 0.0
  %v7392 = vadd.f32 %v7390, %v7391
  %v7393 = vsel %vm7263, %v3523, 0.0
  %v7394 = vadd.f32 %v7392, %v7393
  %v7395 = vsel %vm7263, %v3524, 0.0
  %v7396 = vadd.f32 %v7394, %v7395
  %v7397 = vsel %vm7263, %v3525, 0.0
  %v7398 = vadd.f32 %v7396, %v7397
  %v7399 = vrot.slane %v7398, 4
  %v7400 = vadd.f32 %v7398, %v7399
  %v7401 = vrot.slane %v7400, 2
  %v7402 = vadd.f32 %v7400, %v7401
  %v7403 = vrot.slane %v7402, 1
  %v7404 = vadd.f32 %v7402, %v7403
  %v7405 = vmul.f32 %v7404, 0.00390625
  %7406 = vst.msk [vmem:[#allocation2 + $0x1] sm:$0x1] %vm7334, %v7405
  %v7407 = vsel %vm7263, %v7199, 0.0
  %v7408 = vsel %vm7263, %v7200, 0.0
  %v7409 = vadd.f32 %v7407, %v7408
  %v7410 = vsel %vm7263, %v7201, 0.0
  %v7411 = vadd.f32 %v7409, %v7410
  %v7412 = vsel %vm7263, %v7202, 0.0
  %v7413 = vadd.f32 %v7411, %v7412
  %v7414 = vsel %vm7263, %v7203, 0.0
  %v7415 = vadd.f32 %v7413, %v7414
  %v7416 = vsel %vm7263, %v7204, 0.0
  %v7417 = vadd.f32 %v7415, %v7416
  %v7418 = vsel %vm7263, %v7205, 0.0
  %v7419 = vadd.f32 %v7417, %v7418
  %v7420 = vsel %vm7263, %v7206, 0.0
  %v7421 = vadd.f32 %v7419, %v7420
  %v7422 = vrot.slane %v7421, 4
  %v7423 = vadd.f32 %v7421, %v7422
  %v7424 = vrot.slane %v7423, 2
  %v7425 = vadd.f32 %v7423, %v7424
  %v7426 = vrot.slane %v7425, 1
  %v7427 = vadd.f32 %v7425, %v7426
  %v7428 = vmul.f32 %v7427, 0.015625
  %7429 = vst.msk [vmem:[#allocation2 + $0x2] sm:$0x1] %vm7334, %v7428
  %v7430 = vsel %vm7263, %v7207, 0.0
  %v7431 = vsel %vm7263, %v7208, 0.0
  %v7432 = vadd.f32 %v7430, %v7431
  %v7433 = vsel %vm7263, %v7209, 0.0
  %v7434 = vadd.f32 %v7432, %v7433
  %v7435 = vsel %vm7263, %v7210, 0.0
  %v7436 = vadd.f32 %v7434, %v7435
  %v7437 = vsel %vm7263, %v7211, 0.0
  %v7438 = vadd.f32 %v7436, %v7437
  %v7439 = vsel %vm7263, %v7212, 0.0
  %v7440 = vadd.f32 %v7438, %v7439
  %v7441 = vsel %vm7263, %v7213, 0.0
  %v7442 = vadd.f32 %v7440, %v7441
  %v7443 = vsel %vm7263, %v7214, 0.0
  %v7444 = vadd.f32 %v7442, %v7443
  %v7445 = vrot.slane %v7444, 4
  %v7446 = vadd.f32 %v7444, %v7445
  %v7447 = vrot.slane %v7446, 2
  %v7448 = vadd.f32 %v7446, %v7447
  %v7449 = vrot.slane %v7448, 1
  %v7450 = vadd.f32 %v7448, %v7449
  %v7451 = vmul.f32 %v7450, 0.015625
  %7452 = vst.msk [vmem:[#allocation2 + $0x3] sm:$0x1] %vm7334, %v7451
  %v7453 = vsel %vm7263, %v7215, 0.0
  %v7454 = vsel %vm7263, %v7216, 0.0
  %v7455 = vadd.f32 %v7453, %v7454
  %v7456 = vsel %vm7263, %v7217, 0.0
  %v7457 = vadd.f32 %v7455, %v7456
  %v7458 = vsel %vm7263, %v7218, 0.0
  %v7459 = vadd.f32 %v7457, %v7458
  %v7460 = vsel %vm7263, %v7219, 0.0
  %v7461 = vadd.f32 %v7459, %v7460
  %v7462 = vsel %vm7263, %v7220, 0.0
  %v7463 = vadd.f32 %v7461, %v7462
  %v7464 = vsel %vm7263, %v7221, 0.0
  %v7465 = vadd.f32 %v7463, %v7464
  %v7466 = vsel %vm7263, %v7222, 0.0
  %v7467 = vadd.f32 %v7465, %v7466
  %v7468 = vrot.slane %v7467, 4
  %v7469 = vadd.f32 %v7467, %v7468
  %v7470 = vrot.slane %v7469, 2
  %v7471 = vadd.f32 %v7469, %v7470
  %v7472 = vrot.slane %v7471, 1
  %v7473 = vadd.f32 %v7471, %v7472
  %v7474 = vmul.f32 %v7473, 0.015625
  %7475 = vst.msk [vmem:[#allocation2 + $0x4] sm:$0x1] %vm7334, %v7474
  %v7476 = vsel %vm7263, %v7223, 0.0
  %v7477 = vsel %vm7263, %v7224, 0.0
  %v7478 = vadd.f32 %v7476, %v7477
  %v7479 = vsel %vm7263, %v7225, 0.0
  %v7480 = vadd.f32 %v7478, %v7479
  %v7481 = vsel %vm7263, %v7226, 0.0
  %v7482 = vadd.f32 %v7480, %v7481
  %v7483 = vsel %vm7263, %v7227, 0.0
  %v7484 = vadd.f32 %v7482, %v7483
  %v7485 = vsel %vm7263, %v7228, 0.0
  %v7486 = vadd.f32 %v7484, %v7485
  %v7487 = vsel %vm7263, %v7229, 0.0
  %v7488 = vadd.f32 %v7486, %v7487
  %v7489 = vsel %vm7263, %v7230, 0.0
  %v7490 = vadd.f32 %v7488, %v7489
  %v7491 = vrot.slane %v7490, 4
  %v7492 = vadd.f32 %v7490, %v7491
  %v7493 = vrot.slane %v7492, 2
  %v7494 = vadd.f32 %v7492, %v7493
  %v7495 = vrot.slane %v7494, 1
  %v7496 = vadd.f32 %v7494, %v7495
  %v7497 = vmul.f32 %v7496, 0.015625
  %7498 = vst.msk [vmem:[#allocation2 + $0x5] sm:$0x1] %vm7334, %v7497
  %v7499 = vsel %vm7263, %v7231, 0.0
  %v7500 = vsel %vm7263, %v7232, 0.0
  %v7501 = vadd.f32 %v7499, %v7500
  %v7502 = vsel %vm7263, %v7233, 0.0
  %v7503 = vadd.f32 %v7501, %v7502
  %v7504 = vsel %vm7263, %v7234, 0.0
  %v7505 = vadd.f32 %v7503, %v7504
  %v7506 = vsel %vm7263, %v7235, 0.0
  %v7507 = vadd.f32 %v7505, %v7506
  %v7508 = vsel %vm7263, %v7236, 0.0
  %v7509 = vadd.f32 %v7507, %v7508
  %v7510 = vsel %vm7263, %v7237, 0.0
  %v7511 = vadd.f32 %v7509, %v7510
  %v7512 = vsel %vm7263, %v7238, 0.0
  %v7513 = vadd.f32 %v7511, %v7512
  %v7514 = vrot.slane %v7513, 4
  %v7515 = vadd.f32 %v7513, %v7514
  %v7516 = vrot.slane %v7515, 2
  %v7517 = vadd.f32 %v7515, %v7516
  %v7518 = vrot.slane %v7517, 1
  %v7519 = vadd.f32 %v7517, %v7518
  %v7520 = vmul.f32 %v7519, 0.015625
  %7521 = vst.msk [vmem:[#allocation2 + $0x6] sm:$0x1] %vm7334, %v7520
  %v7522 = vsel %vm7263, %v7239, 0.0
  %v7523 = vsel %vm7263, %v7240, 0.0
  %v7524 = vadd.f32 %v7522, %v7523
  %v7525 = vsel %vm7263, %v7241, 0.0
  %v7526 = vadd.f32 %v7524, %v7525
  %v7527 = vsel %vm7263, %v7242, 0.0
  %v7528 = vadd.f32 %v7526, %v7527
  %v7529 = vsel %vm7263, %v7243, 0.0
  %v7530 = vadd.f32 %v7528, %v7529
  %v7531 = vsel %vm7263, %v7244, 0.0
  %v7532 = vadd.f32 %v7530, %v7531
  %v7533 = vsel %vm7263, %v7245, 0.0
  %v7534 = vadd.f32 %v7532, %v7533
  %v7535 = vsel %vm7263, %v7246, 0.0
  %v7536 = vadd.f32 %v7534, %v7535
  %v7537 = vrot.slane %v7536, 4
  %v7538 = vadd.f32 %v7536, %v7537
  %v7539 = vrot.slane %v7538, 2
  %v7540 = vadd.f32 %v7538, %v7539
  %v7541 = vrot.slane %v7540, 1
  %v7542 = vadd.f32 %v7540, %v7541
  %v7543 = vmul.f32 %v7542, 0.015625
  %7544 = vst.msk [vmem:[#allocation2 + $0x7] sm:$0x1] %vm7334, %v7543
  %v7545 = vsel %vm7263, %v7247, 0.0
  %v7546 = vsel %vm7263, %v7248, 0.0
  %v7547 = vadd.f32 %v7545, %v7546
  %v7548 = vsel %vm7263, %v7249, 0.0
  %v7549 = vadd.f32 %v7547, %v7548
  %v7550 = vsel %vm7263, %v7250, 0.0
  %v7551 = vadd.f32 %v7549, %v7550
  %v7552 = vsel %vm7263, %v7251, 0.0
  %v7553 = vadd.f32 %v7551, %v7552
  %v7554 = vsel %vm7263, %v7252, 0.0
  %v7555 = vadd.f32 %v7553, %v7554
  %v7556 = vsel %vm7263, %v7253, 0.0
  %v7557 = vadd.f32 %v7555, %v7556
  %v7558 = vsel %vm7263, %v7254, 0.0
  %v7559 = vadd.f32 %v7557, %v7558
  %v7560 = vrot.slane %v7559, 4
  %v7561 = vadd.f32 %v7559, %v7560
  %v7562 = vrot.slane %v7561, 2
  %v7563 = vadd.f32 %v7561, %v7562
  %v7564 = vrot.slane %v7563, 1
  %v7565 = vadd.f32 %v7563, %v7564
  %v7566 = vmul.f32 %v7565, 0.015625
  %7567 = vst.msk [vmem:[#allocation2 + $0x8] sm:$0x1] %vm7334, %v7566
  %v7568 = vsel %vm7263, %v7255, 0.0
  %v7569 = vsel %vm7263, %v7256, 0.0
  %v7570 = vadd.f32 %v7568, %v7569
  %v7571 = vsel %vm7263, %v7257, 0.0
  %v7572 = vadd.f32 %v7570, %v7571
  %v7573 = vsel %vm7263, %v7258, 0.0
  %v7574 = vadd.f32 %v7572, %v7573
  %v7575 = vsel %vm7263, %v7259, 0.0
  %v7576 = vadd.f32 %v7574, %v7575
  %v7577 = vsel %vm7263, %v7260, 0.0
  %v7578 = vadd.f32 %v7576, %v7577
  %v7579 = vsel %vm7263, %v7261, 0.0
  %v7580 = vadd.f32 %v7578, %v7579
  %v7581 = vsel %vm7263, %v7262, 0.0
  %v7582 = vadd.f32 %v7580, %v7581
  %v7583 = vrot.slane %v7582, 4
  %v7584 = vadd.f32 %v7582, %v7583
  %v7585 = vrot.slane %v7584, 2
  %v7586 = vadd.f32 %v7584, %v7585
  %v7587 = vrot.slane %v7586, 1
  %v7588 = vadd.f32 %v7586, %v7587
  %v7589 = vmul.f32 %v7588, 0.015625
  %7590 = vst.msk [vmem:[#allocation2 + $0x9] sm:$0x1] %vm7334, %v7589
  %v7591 = vld [vmem:[#allocation2] sm:$0xff]
  %v7592 = vld [vmem:[#allocation2 + $0x8] sm:$0x3]
  %v7593 = vld [vmem:[%s4] sm:$0xff]
  %v7594 = vld [vmem:[%s4 + $0x8] sm:$0xff]
  %v7595 = vld [vmem:[%s4 + $0x10] sm:$0xff]
  %v7596 = vld [vmem:[%s4 + $0x18] sm:$0xff]
  %v7597 = vld [vmem:[%s5] sm:$0x1]
  %v7599 = vperm.slane %v7597, 0
  %v7602 = vsel %vm7263, %v7591, 0
  %v7605 = vsel %vm7263, %v7592, 0
  %7607 = vmatpush.msra.mxu0 0.0
  %7608 = vmatpush.msra.mxu0 0.0
  %7609 = vmatpush.msra.mxu0 0.0
  %7610 = vmatpush.msra.mxu0 0.0
  %7611 = vmatpush.msra.mxu0 0.0
  %7612 = vmatpush.msra.mxu0 0.0
  %7613 = vmatpush.msra.mxu0 0.0
  %7614 = vmatpush.msra.mxu0 0.0
  %7615 = vmatpush.msra.mxu0 0.0
  %7616 = vmatpush.msra.mxu0 0.0
  %7617 = vmatpush.msra.mxu0 0.0
  %7618 = vmatpush.msra.mxu0 0.0
  %7619 = vmatpush.msra.mxu0 %v7596
  %7620 = vmatpush.msra.mxu0 %v7595
  %7621 = vmatpush.msra.mxu0 %v7594
  %7622 = vmatpush.msra.mxu0 %v7593
  %7623 = vmatmul.f32.gmra.mxu0 %v7602
  %v7624 = vpop.f32.mrf.mxu0
  %v7625 = vadd.f32 %v7599, %v7624
  %7626 = vmatmul.f32.gmra.mxu0 %v7605
  %v7627 = vpop.f32.mrf.mxu0
  %v7628 = vadd.f32 %v7599, %v7627
  %7629 = vdwg.mxu0
  %v7630 = vmul.f32 %v7625, %v7625
  %v7631 = vmul.f32 %v7628, %v7628
  %v7632 = vsel %vm7263, %v7630, 0.0
  %7633 = vadd.xlane.f32.xlu0 %v7632
  %v7634 = vpop.xlane.xlu0 %7633
  %vm7635 = vcmask 254976
  %v7636 = vsel %vm7635, %v7631, 0.0
  %7637 = vadd.xlane.f32.xlu0 %v7636
  %v7638 = vpop.xlane.xlu0 %7637
  %v7639 = vmax.f32 %v7634, 1e-24
  %v7640 = vmax.f32 %v7638, 1e-24
  %v7641 = vrsqrt.pop %v7639
  %v7642 = vmul.f32 %v7641, %v7639
  %v7643 = vmul.f32 %v7642, %v7641
  %v7644 = vmul.f32 0.5, %v7643
  %v7645 = vsub.f32 1.5, %v7644
  %v7646 = vmul.f32 %v7641, %v7645
  %vm7647 = vweird.f32 %v7639
  %vm7648 = vweird.f32 %v7641
  %vm7649 = vmor %vm7647, %vm7648
  %v7650 = vsel %vm7649, %v7641, %v7646
  %v7651 = vrsqrt.pop %v7640
  %v7652 = vmul.f32 %v7651, %v7640
  %v7653 = vmul.f32 %v7652, %v7651
  %v7654 = vmul.f32 0.5, %v7653
  %v7655 = vsub.f32 1.5, %v7654
  %v7656 = vmul.f32 %v7651, %v7655
  %vm7657 = vweird.f32 %v7640
  %vm7658 = vweird.f32 %v7651
  %vm7659 = vmor %vm7657, %vm7658
  %v7660 = vsel %vm7659, %v7651, %v7656
  %v7661 = vmul.f32 %v7625, %v7650
  %v7662 = vmul.f32 %v7628, %v7660
  %7663 = vst.msk [vmem:[%s10] sm:$0xff] %vm7263, %v7661
  %7664 = vst.msk [vmem:[%s10 + $0x8] sm:$0x3] %vm7635, %v7662
  %v7665 = vld [vmem:[%s6] sm:$0x1]
  %v7666 = vld [vmem:[%s7] sm:$0xff]
  %v7667 = vld [vmem:[%s7 + $0x8] sm:$0xff]
  %v7668 = vmul.f32 %v7665, %v7661
  %v7669 = vsel %vm7334, %v7668, 0.0
  %7670 = vadd.xlane.f32.xlu0 %v7669
  %v7671 = vpop.xlane.xlu0 %7670
  %v7672 = vmul.f32 %v7671, 14.285714
  %v7673 = vperm.slane %v7661, 0
  %v7674 = vmul.f32 %v7666, %v7673
  %v7675 = vmul.f32 %v7667, %v7673
  %v7676 = vsel %vm7263, %v7674, 0.0
  %7677 = vadd.xlane.f32.xlu0 %v7676
  %v7678 = vpop.xlane.xlu0 %7677
  %v7679 = vsel %vm7263, %v7675, 0.0
  %7680 = vadd.xlane.f32.xlu0 %v7679
  %v7681 = vpop.xlane.xlu0 %7680
  %v7682 = vmul.f32 %v7678, 14.285714
  %v7683 = vmul.f32 %v7681, 14.285714
  %v7684 = vmax.f32 %v7682, %v7683
  %v7685 = vrot.slane %v7684, 4
  %v7686 = vmax.f32 %v7684, %v7685
  %v7687 = vrot.slane %v7686, 2
  %v7688 = vmax.f32 %v7686, %v7687
  %v7689 = vrot.slane %v7688, 1
  %v7690 = vmax.f32 %v7688, %v7689
  %v7691 = vmax.f32 %v7672, %v7690
  %v7692 = vsub.f32 %v7672, %v7691
  %v7693 = vmul.f32 %v7692, 1.442695
  %v7694 = vpow.pop %v7693
  %v7695 = vperm.slane %v7691, 0
  %v7696 = vsub.f32 %v7682, %v7695
  %v7697 = vsub.f32 %v7683, %v7695
  %v7698 = vmul.f32 %v7696, 1.442695
  %v7699 = vpow.pop %v7698
  %v7700 = vmul.f32 %v7697, 1.442695
  %v7701 = vpow.pop %v7700
  %v7702 = vadd.f32 %v7699, %v7701
  %v7703 = vrot.slane %v7702, 4
  %v7704 = vadd.f32 %v7702, %v7703
  %v7705 = vrot.slane %v7704, 2
  %v7706 = vadd.f32 %v7704, %v7705
  %v7707 = vrot.slane %v7706, 1
  %v7708 = vadd.f32 %v7706, %v7707
  %v7709 = vadd.f32 %v7694, %v7708
  %v7710 = vlog2.pop %v7709
  %v7711 = vmul.f32 %v7710, 0.6931472
  %v7712 = vadd.f32 %v7691, %v7711
  %v7713 = vsub.f32 %v7712, %v7672
  %v7714 = vadd.f32 %v7713, 0.0
  %v7715 = vld [vmem:[%s6 + $0x1] sm:$0x1]
  %s7716 = scalar_lea.vmem %s7, 16
  %v7717 = vld [vmem:[%s7716] sm:$0xff]
  %v7718 = vld [vmem:[%s7716 + $0x8] sm:$0xff]
  %v7720 = vrot.slane %v7661, 1
  %v7722 = vmul.f32 %v7715, %v7720
  %v7723 = vsel %vm7334, %v7722, 0.0
  %7724 = vadd.xlane.f32.xlu0 %v7723
  %v7725 = vpop.xlane.xlu0 %7724
  %v7726 = vmul.f32 %v7725, 14.285714
  %v7727 = vperm.slane %v7661, 1
  %v7728 = vmul.f32 %v7717, %v7727
  %v7729 = vmul.f32 %v7718, %v7727
  %v7730 = vsel %vm7263, %v7728, 0.0
  %7731 = vadd.xlane.f32.xlu0 %v7730
  %v7732 = vpop.xlane.xlu0 %7731
  %v7733 = vsel %vm7263, %v7729, 0.0
  %7734 = vadd.xlane.f32.xlu0 %v7733
  %v7735 = vpop.xlane.xlu0 %7734
  %v7736 = vmul.f32 %v7732, 14.285714
  %v7737 = vmul.f32 %v7735, 14.285714
  %v7738 = vmax.f32 %v7736, %v7737
  %v7739 = vrot.slane %v7738, 4
  %v7740 = vmax.f32 %v7738, %v7739
  %v7741 = vrot.slane %v7740, 2
  %v7742 = vmax.f32 %v7740, %v7741
  %v7743 = vrot.slane %v7742, 1
  %v7744 = vmax.f32 %v7742, %v7743
  %v7745 = vmax.f32 %v7726, %v7744
  %v7746 = vsub.f32 %v7726, %v7745
  %v7747 = vmul.f32 %v7746, 1.442695
  %v7748 = vpow.pop %v7747
  %v7749 = vperm.slane %v7745, 0
  %v7750 = vsub.f32 %v7736, %v7749
  %v7751 = vsub.f32 %v7737, %v7749
  %v7752 = vmul.f32 %v7750, 1.442695
  %v7753 = vpow.pop %v7752
  %v7754 = vmul.f32 %v7751, 1.442695
  %v7755 = vpow.pop %v7754
  %v7756 = vadd.f32 %v7753, %v7755
  %v7757 = vrot.slane %v7756, 4
  %v7758 = vadd.f32 %v7756, %v7757
  %v7759 = vrot.slane %v7758, 2
  %v7760 = vadd.f32 %v7758, %v7759
  %v7761 = vrot.slane %v7760, 1
  %v7762 = vadd.f32 %v7760, %v7761
  %v7763 = vadd.f32 %v7748, %v7762
  %v7764 = vlog2.pop %v7763
  %v7765 = vmul.f32 %v7764, 0.6931472
  %v7766 = vadd.f32 %v7745, %v7765
  %v7767 = vsub.f32 %v7766, %v7726
  %v7768 = vadd.f32 %v7714, %v7767
  %v7769 = vld [vmem:[%s8] sm:$0x1]
  %v7770 = vld [vmem:[%s9] sm:$0xff]
  %v7771 = vld [vmem:[%s9 + $0x8] sm:$0xff]
  %v7772 = vrot.slane %v7661, 2
  %v7774 = vmul.f32 %v7769, %v7772
  %v7775 = vsel %vm7334, %v7774, 0.0
  %7776 = vadd.xlane.f32.xlu0 %v7775
  %v7777 = vpop.xlane.xlu0 %7776
  %v7778 = vmul.f32 %v7777, 14.285714
  %v7779 = vperm.slane %v7661, 2
  %v7780 = vmul.f32 %v7770, %v7779
  %v7781 = vmul.f32 %v7771, %v7779
  %v7782 = vsel %vm7263, %v7780, 0.0
  %7783 = vadd.xlane.f32.xlu0 %v7782
  %v7784 = vpop.xlane.xlu0 %7783
  %v7785 = vsel %vm7263, %v7781, 0.0
  %7786 = vadd.xlane.f32.xlu0 %v7785
  %v7787 = vpop.xlane.xlu0 %7786
  %v7788 = vmul.f32 %v7784, 14.285714
  %v7789 = vmul.f32 %v7787, 14.285714
  %v7790 = vmax.f32 %v7788, %v7789
  %v7791 = vrot.slane %v7790, 4
  %v7792 = vmax.f32 %v7790, %v7791
  %v7793 = vrot.slane %v7792, 2
  %v7794 = vmax.f32 %v7792, %v7793
  %v7795 = vrot.slane %v7794, 1
  %v7796 = vmax.f32 %v7794, %v7795
  %v7797 = vmax.f32 %v7778, %v7796
  %v7798 = vsub.f32 %v7778, %v7797
  %v7799 = vmul.f32 %v7798, 1.442695
  %v7800 = vpow.pop %v7799
  %v7801 = vperm.slane %v7797, 0
  %v7802 = vsub.f32 %v7788, %v7801
  %v7803 = vsub.f32 %v7789, %v7801
  %v7804 = vmul.f32 %v7802, 1.442695
  %v7805 = vpow.pop %v7804
  %v7806 = vmul.f32 %v7803, 1.442695
  %v7807 = vpow.pop %v7806
  %v7808 = vadd.f32 %v7805, %v7807
  %v7809 = vrot.slane %v7808, 4
  %v7810 = vadd.f32 %v7808, %v7809
  %v7811 = vrot.slane %v7810, 2
  %v7812 = vadd.f32 %v7810, %v7811
  %v7813 = vrot.slane %v7812, 1
  %v7814 = vadd.f32 %v7812, %v7813
  %v7815 = vadd.f32 %v7800, %v7814
  %v7816 = vlog2.pop %v7815
  %v7817 = vmul.f32 %v7816, 0.6931472
  %v7818 = vadd.f32 %v7797, %v7817
  %v7819 = vsub.f32 %v7818, %v7778
  %v7820 = vadd.f32 %v7819, 0.0
  %v7821 = vld [vmem:[%s8 + $0x1] sm:$0x1]
  %s7822 = scalar_lea.vmem %s9, 16
  %v7823 = vld [vmem:[%s7822] sm:$0xff]
  %v7824 = vld [vmem:[%s7822 + $0x8] sm:$0xff]
  %v7825 = vrot.slane %v7661, 3
  %v7827 = vmul.f32 %v7821, %v7825
  %v7828 = vsel %vm7334, %v7827, 0.0
  %7829 = vadd.xlane.f32.xlu0 %v7828
  %v7830 = vpop.xlane.xlu0 %7829
  %v7831 = vmul.f32 %v7830, 14.285714
  %v7832 = vperm.slane %v7661, 3
  %v7833 = vmul.f32 %v7823, %v7832
  %v7834 = vmul.f32 %v7824, %v7832
  %v7835 = vsel %vm7263, %v7833, 0.0
  %7836 = vadd.xlane.f32.xlu0 %v7835
  %v7837 = vpop.xlane.xlu0 %7836
  %v7838 = vsel %vm7263, %v7834, 0.0
  %7839 = vadd.xlane.f32.xlu0 %v7838
  %v7840 = vpop.xlane.xlu0 %7839
  %v7841 = vmul.f32 %v7837, 14.285714
  %v7842 = vmul.f32 %v7840, 14.285714
  %v7843 = vmax.f32 %v7841, %v7842
  %v7844 = vrot.slane %v7843, 4
  %v7845 = vmax.f32 %v7843, %v7844
  %v7846 = vrot.slane %v7845, 2
  %v7847 = vmax.f32 %v7845, %v7846
  %v7848 = vrot.slane %v7847, 1
  %v7849 = vmax.f32 %v7847, %v7848
  %v7850 = vmax.f32 %v7831, %v7849
  %v7851 = vsub.f32 %v7831, %v7850
  %v7852 = vmul.f32 %v7851, 1.442695
  %v7853 = vpow.pop %v7852
  %v7854 = vperm.slane %v7850, 0
  %v7855 = vsub.f32 %v7841, %v7854
  %v7856 = vsub.f32 %v7842, %v7854
  %v7857 = vmul.f32 %v7855, 1.442695
  %v7858 = vpow.pop %v7857
  %v7859 = vmul.f32 %v7856, 1.442695
  %v7860 = vpow.pop %v7859
  %v7861 = vadd.f32 %v7858, %v7860
  %v7862 = vrot.slane %v7861, 4
  %v7863 = vadd.f32 %v7861, %v7862
  %v7864 = vrot.slane %v7863, 2
  %v7865 = vadd.f32 %v7863, %v7864
  %v7866 = vrot.slane %v7865, 1
  %v7867 = vadd.f32 %v7865, %v7866
  %v7868 = vadd.f32 %v7853, %v7867
  %v7869 = vlog2.pop %v7868
  %v7870 = vmul.f32 %v7869, 0.6931472
  %v7871 = vadd.f32 %v7850, %v7870
  %v7872 = vsub.f32 %v7871, %v7831
  %v7873 = vadd.f32 %v7820, %v7872
  %v7874 = vld [vmem:[%s8 + $0x2] sm:$0x1]
  %s7875 = scalar_lea.vmem %s9, 32
  %v7876 = vld [vmem:[%s7875] sm:$0xff]
  %v7877 = vld [vmem:[%s7875 + $0x8] sm:$0xff]
  %v7878 = vrot.slane %v7661, 4
  %v7880 = vmul.f32 %v7874, %v7878
  %v7881 = vsel %vm7334, %v7880, 0.0
  %7882 = vadd.xlane.f32.xlu0 %v7881
  %v7883 = vpop.xlane.xlu0 %7882
  %v7884 = vmul.f32 %v7883, 14.285714
  %v7885 = vperm.slane %v7661, 4
  %v7886 = vmul.f32 %v7876, %v7885
  %v7887 = vmul.f32 %v7877, %v7885
  %v7888 = vsel %vm7263, %v7886, 0.0
  %7889 = vadd.xlane.f32.xlu0 %v7888
  %v7890 = vpop.xlane.xlu0 %7889
  %v7891 = vsel %vm7263, %v7887, 0.0
  %7892 = vadd.xlane.f32.xlu0 %v7891
  %v7893 = vpop.xlane.xlu0 %7892
  %v7894 = vmul.f32 %v7890, 14.285714
  %v7895 = vmul.f32 %v7893, 14.285714
  %v7896 = vmax.f32 %v7894, %v7895
  %v7897 = vrot.slane %v7896, 4
  %v7898 = vmax.f32 %v7896, %v7897
  %v7899 = vrot.slane %v7898, 2
  %v7900 = vmax.f32 %v7898, %v7899
  %v7901 = vrot.slane %v7900, 1
  %v7902 = vmax.f32 %v7900, %v7901
  %v7903 = vmax.f32 %v7884, %v7902
  %v7904 = vsub.f32 %v7884, %v7903
  %v7905 = vmul.f32 %v7904, 1.442695
  %v7906 = vpow.pop %v7905
  %v7907 = vperm.slane %v7903, 0
  %v7908 = vsub.f32 %v7894, %v7907
  %v7909 = vsub.f32 %v7895, %v7907
  %v7910 = vmul.f32 %v7908, 1.442695
  %v7911 = vpow.pop %v7910
  %v7912 = vmul.f32 %v7909, 1.442695
  %v7913 = vpow.pop %v7912
  %v7914 = vadd.f32 %v7911, %v7913
  %v7915 = vrot.slane %v7914, 4
  %v7916 = vadd.f32 %v7914, %v7915
  %v7917 = vrot.slane %v7916, 2
  %v7918 = vadd.f32 %v7916, %v7917
  %v7919 = vrot.slane %v7918, 1
  %v7920 = vadd.f32 %v7918, %v7919
  %v7921 = vadd.f32 %v7906, %v7920
  %v7922 = vlog2.pop %v7921
  %v7923 = vmul.f32 %v7922, 0.6931472
  %v7924 = vadd.f32 %v7903, %v7923
  %v7925 = vsub.f32 %v7924, %v7884
  %v7926 = vadd.f32 %v7873, %v7925
  %v7927 = vld [vmem:[%s8 + $0x3] sm:$0x1]
  %s7928 = scalar_lea.vmem %s9, 48
  %v7929 = vld [vmem:[%s7928] sm:$0xff]
  %v7930 = vld [vmem:[%s7928 + $0x8] sm:$0xff]
  %v7931 = vrot.slane %v7661, 5
  %v7933 = vmul.f32 %v7927, %v7931
  %v7934 = vsel %vm7334, %v7933, 0.0
  %7935 = vadd.xlane.f32.xlu0 %v7934
  %v7936 = vpop.xlane.xlu0 %7935
  %v7937 = vmul.f32 %v7936, 14.285714
  %v7938 = vperm.slane %v7661, 5
  %v7939 = vmul.f32 %v7929, %v7938
  %v7940 = vmul.f32 %v7930, %v7938
  %v7941 = vsel %vm7263, %v7939, 0.0
  %7942 = vadd.xlane.f32.xlu0 %v7941
  %v7943 = vpop.xlane.xlu0 %7942
  %v7944 = vsel %vm7263, %v7940, 0.0
  %7945 = vadd.xlane.f32.xlu0 %v7944
  %v7946 = vpop.xlane.xlu0 %7945
  %v7947 = vmul.f32 %v7943, 14.285714
  %v7948 = vmul.f32 %v7946, 14.285714
  %v7949 = vmax.f32 %v7947, %v7948
  %v7950 = vrot.slane %v7949, 4
  %v7951 = vmax.f32 %v7949, %v7950
  %v7952 = vrot.slane %v7951, 2
  %v7953 = vmax.f32 %v7951, %v7952
  %v7954 = vrot.slane %v7953, 1
  %v7955 = vmax.f32 %v7953, %v7954
  %v7956 = vmax.f32 %v7937, %v7955
  %v7957 = vsub.f32 %v7937, %v7956
  %v7958 = vmul.f32 %v7957, 1.442695
  %v7959 = vpow.pop %v7958
  %v7960 = vperm.slane %v7956, 0
  %v7961 = vsub.f32 %v7947, %v7960
  %v7962 = vsub.f32 %v7948, %v7960
  %v7963 = vmul.f32 %v7961, 1.442695
  %v7964 = vpow.pop %v7963
  %v7965 = vmul.f32 %v7962, 1.442695
  %v7966 = vpow.pop %v7965
  %v7967 = vadd.f32 %v7964, %v7966
  %v7968 = vrot.slane %v7967, 4
  %v7969 = vadd.f32 %v7967, %v7968
  %v7970 = vrot.slane %v7969, 2
  %v7971 = vadd.f32 %v7969, %v7970
  %v7972 = vrot.slane %v7971, 1
  %v7973 = vadd.f32 %v7971, %v7972
  %v7974 = vadd.f32 %v7959, %v7973
  %v7975 = vlog2.pop %v7974
  %v7976 = vmul.f32 %v7975, 0.6931472
  %v7977 = vadd.f32 %v7956, %v7976
  %v7978 = vsub.f32 %v7977, %v7937
  %v7979 = vadd.f32 %v7926, %v7978
  %v7980 = vld [vmem:[%s8 + $0x4] sm:$0x1]
  %s7981 = scalar_lea.vmem %s9, 64
  %v7982 = vld [vmem:[%s7981] sm:$0xff]
  %v7983 = vld [vmem:[%s7981 + $0x8] sm:$0xff]
  %v7984 = vrot.slane %v7661, 6
  %v7986 = vmul.f32 %v7980, %v7984
  %v7987 = vsel %vm7334, %v7986, 0.0
  %7988 = vadd.xlane.f32.xlu0 %v7987
  %v7989 = vpop.xlane.xlu0 %7988
  %v7990 = vmul.f32 %v7989, 14.285714
  %v7991 = vperm.slane %v7661, 6
  %v7992 = vmul.f32 %v7982, %v7991
  %v7993 = vmul.f32 %v7983, %v7991
  %v7994 = vsel %vm7263, %v7992, 0.0
  %7995 = vadd.xlane.f32.xlu0 %v7994
  %v7996 = vpop.xlane.xlu0 %7995
  %v7997 = vsel %vm7263, %v7993, 0.0
  %7998 = vadd.xlane.f32.xlu0 %v7997
  %v7999 = vpop.xlane.xlu0 %7998
  %v8000 = vmul.f32 %v7996, 14.285714
  %v8001 = vmul.f32 %v7999, 14.285714
  %v8002 = vmax.f32 %v8000, %v8001
  %v8003 = vrot.slane %v8002, 4
  %v8004 = vmax.f32 %v8002, %v8003
  %v8005 = vrot.slane %v8004, 2
  %v8006 = vmax.f32 %v8004, %v8005
  %v8007 = vrot.slane %v8006, 1
  %v8008 = vmax.f32 %v8006, %v8007
  %v8009 = vmax.f32 %v7990, %v8008
  %v8010 = vsub.f32 %v7990, %v8009
  %v8011 = vmul.f32 %v8010, 1.442695
  %v8012 = vpow.pop %v8011
  %v8013 = vperm.slane %v8009, 0
  %v8014 = vsub.f32 %v8000, %v8013
  %v8015 = vsub.f32 %v8001, %v8013
  %v8016 = vmul.f32 %v8014, 1.442695
  %v8017 = vpow.pop %v8016
  %v8018 = vmul.f32 %v8015, 1.442695
  %v8019 = vpow.pop %v8018
  %v8020 = vadd.f32 %v8017, %v8019
  %v8021 = vrot.slane %v8020, 4
  %v8022 = vadd.f32 %v8020, %v8021
  %v8023 = vrot.slane %v8022, 2
  %v8024 = vadd.f32 %v8022, %v8023
  %v8025 = vrot.slane %v8024, 1
  %v8026 = vadd.f32 %v8024, %v8025
  %v8027 = vadd.f32 %v8012, %v8026
  %v8028 = vlog2.pop %v8027
  %v8029 = vmul.f32 %v8028, 0.6931472
  %v8030 = vadd.f32 %v8009, %v8029
  %v8031 = vsub.f32 %v8030, %v7990
  %v8032 = vadd.f32 %v7979, %v8031
  %v8033 = vld [vmem:[%s8 + $0x5] sm:$0x1]
  %s8034 = scalar_lea.vmem %s9, 80
  %v8035 = vld [vmem:[%s8034] sm:$0xff]
  %v8036 = vld [vmem:[%s8034 + $0x8] sm:$0xff]
  %v8037 = vrot.slane %v7661, 7
  %v8039 = vmul.f32 %v8033, %v8037
  %v8040 = vsel %vm7334, %v8039, 0.0
  %8041 = vadd.xlane.f32.xlu0 %v8040
  %v8042 = vpop.xlane.xlu0 %8041
  %v8043 = vmul.f32 %v8042, 14.285714
  %v8044 = vperm.slane %v7661, 7
  %v8045 = vmul.f32 %v8035, %v8044
  %v8046 = vmul.f32 %v8036, %v8044
  %v8047 = vsel %vm7263, %v8045, 0.0
  %8048 = vadd.xlane.f32.xlu0 %v8047
  %v8049 = vpop.xlane.xlu0 %8048
  %v8050 = vsel %vm7263, %v8046, 0.0
  %8051 = vadd.xlane.f32.xlu0 %v8050
  %v8052 = vpop.xlane.xlu0 %8051
  %v8053 = vmul.f32 %v8049, 14.285714
  %v8054 = vmul.f32 %v8052, 14.285714
  %v8055 = vmax.f32 %v8053, %v8054
  %v8056 = vrot.slane %v8055, 4
  %v8057 = vmax.f32 %v8055, %v8056
  %v8058 = vrot.slane %v8057, 2
  %v8059 = vmax.f32 %v8057, %v8058
  %v8060 = vrot.slane %v8059, 1
  %v8061 = vmax.f32 %v8059, %v8060
  %v8062 = vmax.f32 %v8043, %v8061
  %v8063 = vsub.f32 %v8043, %v8062
  %v8064 = vmul.f32 %v8063, 1.442695
  %v8065 = vpow.pop %v8064
  %v8066 = vperm.slane %v8062, 0
  %v8067 = vsub.f32 %v8053, %v8066
  %v8068 = vsub.f32 %v8054, %v8066
  %v8069 = vmul.f32 %v8067, 1.442695
  %v8070 = vpow.pop %v8069
  %v8071 = vmul.f32 %v8068, 1.442695
  %v8072 = vpow.pop %v8071
  %v8073 = vadd.f32 %v8070, %v8072
  %v8074 = vrot.slane %v8073, 4
  %v8075 = vadd.f32 %v8073, %v8074
  %v8076 = vrot.slane %v8075, 2
  %v8077 = vadd.f32 %v8075, %v8076
  %v8078 = vrot.slane %v8077, 1
  %v8079 = vadd.f32 %v8077, %v8078
  %v8080 = vadd.f32 %v8065, %v8079
  %v8081 = vlog2.pop %v8080
  %v8082 = vmul.f32 %v8081, 0.6931472
  %v8083 = vadd.f32 %v8062, %v8082
  %v8084 = vsub.f32 %v8083, %v8043
  %v8085 = vadd.f32 %v8032, %v8084
  %v8086 = vld [vmem:[%s8 + $0x6] sm:$0x1]
  %s8087 = scalar_lea.vmem %s9, 96
  %v8088 = vld [vmem:[%s8087] sm:$0xff]
  %v8089 = vld [vmem:[%s8087 + $0x8] sm:$0xff]
  %v8090 = vmul.f32 %v8086, %v7662
  %v8091 = vsel %vm7334, %v8090, 0.0
  %8092 = vadd.xlane.f32.xlu0 %v8091
  %v8093 = vpop.xlane.xlu0 %8092
  %v8094 = vmul.f32 %v8093, 14.285714
  %v8095 = vperm.slane %v7662, 0
  %v8096 = vmul.f32 %v8088, %v8095
  %v8097 = vmul.f32 %v8089, %v8095
  %v8098 = vsel %vm7263, %v8096, 0.0
  %8099 = vadd.xlane.f32.xlu0 %v8098
  %v8100 = vpop.xlane.xlu0 %8099
  %v8101 = vsel %vm7263, %v8097, 0.0
  %8102 = vadd.xlane.f32.xlu0 %v8101
  %v8103 = vpop.xlane.xlu0 %8102
  %v8104 = vmul.f32 %v8100, 14.285714
  %v8105 = vmul.f32 %v8103, 14.285714
  %v8106 = vmax.f32 %v8104, %v8105
  %v8107 = vrot.slane %v8106, 4
  %v8108 = vmax.f32 %v8106, %v8107
  %v8109 = vrot.slane %v8108, 2
  %v8110 = vmax.f32 %v8108, %v8109
  %v8111 = vrot.slane %v8110, 1
  %v8112 = vmax.f32 %v8110, %v8111
  %v8113 = vmax.f32 %v8094, %v8112
  %v8114 = vsub.f32 %v8094, %v8113
  %v8115 = vmul.f32 %v8114, 1.442695
  %v8116 = vpow.pop %v8115
  %v8117 = vperm.slane %v8113, 0
  %v8118 = vsub.f32 %v8104, %v8117
  %v8119 = vsub.f32 %v8105, %v8117
  %v8120 = vmul.f32 %v8118, 1.442695
  %v8121 = vpow.pop %v8120
  %v8122 = vmul.f32 %v8119, 1.442695
  %v8123 = vpow.pop %v8122
  %v8124 = vadd.f32 %v8121, %v8123
  %v8125 = vrot.slane %v8124, 4
  %v8126 = vadd.f32 %v8124, %v8125
  %v8127 = vrot.slane %v8126, 2
  %v8128 = vadd.f32 %v8126, %v8127
  %v8129 = vrot.slane %v8128, 1
  %v8130 = vadd.f32 %v8128, %v8129
  %v8131 = vadd.f32 %v8116, %v8130
  %v8132 = vlog2.pop %v8131
  %v8133 = vmul.f32 %v8132, 0.6931472
  %v8134 = vadd.f32 %v8113, %v8133
  %v8135 = vsub.f32 %v8134, %v8094
  %v8136 = vadd.f32 %v8085, %v8135
  %v8137 = vld [vmem:[%s8 + $0x7] sm:$0x1]
  %s8138 = scalar_lea.vmem %s9, 112
  %v8139 = vld [vmem:[%s8138] sm:$0xff]
  %v8140 = vld [vmem:[%s8138 + $0x8] sm:$0xff]
  %v8142 = vrot.slane %v7662, 1
  %v8144 = vmul.f32 %v8137, %v8142
  %v8145 = vsel %vm7334, %v8144, 0.0
  %8146 = vadd.xlane.f32.xlu0 %v8145
  %v8147 = vpop.xlane.xlu0 %8146
  %v8148 = vmul.f32 %v8147, 14.285714
  %v8149 = vperm.slane %v7662, 1
  %v8150 = vmul.f32 %v8139, %v8149
  %v8151 = vmul.f32 %v8140, %v8149
  %v8152 = vsel %vm7263, %v8150, 0.0
  %8153 = vadd.xlane.f32.xlu0 %v8152
  %v8154 = vpop.xlane.xlu0 %8153
  %v8155 = vsel %vm7263, %v8151, 0.0
  %8156 = vadd.xlane.f32.xlu0 %v8155
  %v8157 = vpop.xlane.xlu0 %8156
  %v8158 = vmul.f32 %v8154, 14.285714
  %v8159 = vmul.f32 %v8157, 14.285714
  %v8160 = vmax.f32 %v8158, %v8159
  %v8161 = vrot.slane %v8160, 4
  %v8162 = vmax.f32 %v8160, %v8161
  %v8163 = vrot.slane %v8162, 2
  %v8164 = vmax.f32 %v8162, %v8163
  %v8165 = vrot.slane %v8164, 1
  %v8166 = vmax.f32 %v8164, %v8165
  %v8167 = vmax.f32 %v8148, %v8166
  %v8168 = vsub.f32 %v8148, %v8167
  %v8169 = vmul.f32 %v8168, 1.442695
  %v8170 = vpow.pop %v8169
  %v8171 = vperm.slane %v8167, 0
  %v8172 = vsub.f32 %v8158, %v8171
  %v8173 = vsub.f32 %v8159, %v8171
  %v8174 = vmul.f32 %v8172, 1.442695
  %v8175 = vpow.pop %v8174
  %v8176 = vmul.f32 %v8173, 1.442695
  %v8177 = vpow.pop %v8176
  %v8178 = vadd.f32 %v8175, %v8177
  %v8179 = vrot.slane %v8178, 4
  %v8180 = vadd.f32 %v8178, %v8179
  %v8181 = vrot.slane %v8180, 2
  %v8182 = vadd.f32 %v8180, %v8181
  %v8183 = vrot.slane %v8182, 1
  %v8184 = vadd.f32 %v8182, %v8183
  %v8185 = vadd.f32 %v8170, %v8184
  %v8186 = vlog2.pop %v8185
  %v8187 = vmul.f32 %v8186, 0.6931472
  %v8188 = vadd.f32 %v8167, %v8187
  %v8189 = vsub.f32 %v8188, %v8148
  %v8190 = vadd.f32 %v8136, %v8189
  %v8191 = vmul.f32 %v7768, 0.5
  %vm8192 = vcmask 0
  %8193 = vst.msk [vmem:[%s11] sm:$0x1] %vm8192, %v8191
  %v8194 = vmul.f32 %v8190, 0.125
  %8195 = vst.msk [vmem:[%s11 + $0x1] sm:$0x1] %vm8192, %v8194
  // Predicated region
  $region42: #{forward_train.1} parent=0 // pred_check
    _
  $region43: #{forward_train.1} parent=0 // pred_check_branch
    %8197 = sbr.rel (0) target = $region45
  $region44: #{forward_train.1} parent=0 // pred_region
    _
  $region45: #{forward_train.1} parent=0 // pred_fallthru
    _
  // Predicated region
  $region46: #{forward_train.1} parent=0 // pred_check
    _
  $region47: #{forward_train.1} parent=0 // pred_check_branch
    %8199 = sbr.rel (0) target = $region49
  $region48: #{forward_train.1} parent=0 // pred_region
    _
  $region49: #{forward_train.1} parent=0 // pred_fallthru
    _
  // Predicated region
  $region50: #{forward_train.1} parent=0 // pred_check
    _
  $region51: #{forward_train.1} parent=0 // pred_check_branch
    %8201 = sbr.rel (0) target = $region53
  $region52: #{forward_train.1} parent=0 // pred_region
    _
  $region53: #{forward_train.1} parent=0 // pred_fallthru
    _
  // Predicated region
  $region54: #{forward_train.1} parent=0 // pred_check
    _
  $region55: #{forward_train.1} parent=0 // pred_check_branch
    %8203 = sbr.rel (0) target = $region57
  $region56: #{forward_train.1} parent=0 // pred_region
    _
  $region57: #{forward_train.1} parent=0 // pred_fallthru
    _

</llo_original>
